<compile_context>
chip_gen: v5e
topology: v5e:2x2
jax: 0.10.0
libtpu: 0.0.40
codegen_flags: <defaults>
</compile_context>

<pallas_src>
import functools

import numpy as np
import jax
import jax.numpy as jnp
from jax.experimental import pallas as pl
from jax.experimental.pallas import tpu as pltpu

# ----- module constants (from the PyTorch file) -----
CHANNELS = 64
HAND_GRID = 24
HEAD_GRID = 16
REL_GRID = 32
BN_EPS = 1e-5

_VMEM_LIMIT_CACHE = [None]


def _round_up(a, b):
    return (a + b - 1) // b * b


def _vmem():
    # Generation-aware scoped-VMEM limit: half the physical capacity,
    # clamped to [32 MiB, 64 MiB] (v7x has only 64 MiB physical).
    if _VMEM_LIMIT_CACHE[0] is None:
        try:
            cap = pltpu.get_tpu_info().vmem_capacity_bytes
        except Exception:
            cap = 64 * 1024 * 1024
        _VMEM_LIMIT_CACHE[0] = int(min(max(cap // 2, 32 * 1024 * 1024),
                                       64 * 1024 * 1024))
    return _VMEM_LIMIT_CACHE[0]


# ============================================================================
# Pallas kernels: tiled matmul with fused bias / residual / ReLU epilogue
# ============================================================================
def _mm_kernel_acc(*refs, relu, nk, has_res):
    """K-looped matmul: f32 VMEM accumulator, pl.when init / epilogue."""
    if has_res:
        x_ref, w_ref, b_ref, r_ref, o_ref, acc_ref = refs
    else:
        x_ref, w_ref, b_ref, o_ref, acc_ref = refs
        r_ref = None
    k = pl.program_id(2)

    @pl.when(k == 0)
    def _():
        acc_ref[...] = jnp.zeros_like(acc_ref)

    acc_ref[...] += jnp.dot(x_ref[...], w_ref[...],
                            preferred_element_type=jnp.float32)

    @pl.when(k == nk - 1)
    def _():
        out = acc_ref[...] + b_ref[...]
        if has_res:
            out = out + r_ref[...].astype(jnp.float32)
        if relu:
            out = jnp.maximum(out, 0.0)
        o_ref[...] = out.astype(o_ref.dtype)


def _mm_kernel_single(*refs, relu, has_res):
    """Single-K-tile matmul: no scratch, no predication, direct store."""
    if has_res:
        x_ref, w_ref, b_ref, r_ref, o_ref = refs
    else:
        x_ref, w_ref, b_ref, o_ref = refs
        r_ref = None
    out = jnp.dot(x_ref[...], w_ref[...], preferred_element_type=jnp.float32)
    out = out + b_ref[...]
    if has_res:
        out = out + r_ref[...].astype(jnp.float32)
    if relu:
        out = jnp.maximum(out, 0.0)
    o_ref[...] = out.astype(o_ref.dtype)


# ============================================================================
# Pallas wrapper
# ============================================================================
def _pick_tk(Kp):
    # Kp is a multiple of 128.  Single tile if it fits, else the largest
    # 128-multiple divisor <= 2048.
    if Kp <= 2048:
        return Kp
    m = Kp // 128
    for d in range(16, 0, -1):
        if m % d == 0:
            return 128 * d
    return 128


def _pick_tm(M):
    if M < 128:
        return _round_up(M, 8)
    best = None
    for c in (512, 256, 128):           # prefer larger tiles on ties
        mp = _round_up(M, c)
        if best is None or mp < best[0]:
            best = (mp, c)
    return best[1]


def matmul_bn_act(x, w, bias, relu, residual=None, out_dtype=jnp.bfloat16):
    """x: (M, Kp) bf16 (K already zero-padded by im2col), w: (Kp, N) bf16
    (BN scale folded), bias: (1, N) f32, residual: optional (M, N) bf16."""
    M, Kp = x.shape
    Kp_w, N = w.shape
    assert Kp == Kp_w, (Kp, Kp_w)

    TM = _pick_tm(M)
    Mp = _round_up(M, TM)
    if Mp != M:
        x = jnp.pad(x, ((0, Mp - M), (0, 0)))
        if residual is not None:
            residual = jnp.pad(residual, ((0, Mp - M), (0, 0)))

    TN = N if N <= 256 else 256
    TK = _pick_tk(Kp)
    nk = Kp // TK
    has_res = residual is not None

    if nk == 1:
        grid = (Mp // TM, N // TN)
        in_specs = [
            pl.BlockSpec((TM, Kp), lambda i, j: (i, 0)),
            pl.BlockSpec((Kp, TN), lambda i, j: (0, j)),
            pl.BlockSpec((1, TN), lambda i, j: (0, j)),
        ]
        args = [x, w, bias]
        if has_res:
            in_specs.append(pl.BlockSpec((TM, TN), lambda i, j: (i, j)))
            args.append(residual)
        kern = functools.partial(_mm_kernel_single, relu=relu, has_res=has_res)
        out = pl.pallas_call(
            kern,
            out_shape=jax.ShapeDtypeStruct((Mp, N), out_dtype),
            grid=grid,
            in_specs=in_specs,
            out_specs=pl.BlockSpec((TM, TN), lambda i, j: (i, j)),
            compiler_params=pltpu.CompilerParams(
                dimension_semantics=("parallel", "parallel"),
                vmem_limit_bytes=_vmem()),
        )(*args)
    else:
        grid = (Mp // TM, N // TN, nk)
        in_specs = [
            pl.BlockSpec((TM, TK), lambda i, j, k: (i, k)),
            pl.BlockSpec((TK, TN), lambda i, j, k: (k, j)),
            pl.BlockSpec((1, TN), lambda i, j, k: (0, j)),
        ]
        args = [x, w, bias]
        if has_res:
            in_specs.append(pl.BlockSpec((TM, TN), lambda i, j, k: (i, j)))
            args.append(residual)
        kern = functools.partial(_mm_kernel_acc, relu=relu, nk=nk,
                                 has_res=has_res)
        out = pl.pallas_call(
            kern,
            out_shape=jax.ShapeDtypeStruct((Mp, N), out_dtype),
            grid=grid,
            in_specs=in_specs,
            out_specs=pl.BlockSpec((TM, TN), lambda i, j, k: (i, j)),
            scratch_shapes=[pltpu.VMEM((TM, TN), jnp.float32)],
            compiler_params=pltpu.CompilerParams(
                dimension_semantics=("parallel", "parallel", "arbitrary"),
                vmem_limit_bytes=_vmem()),
        )(*args)

    return out[:M] if Mp != M else out


# ============================================================================
# Pooling: tiny, launch-overhead-dominated -> plain JAX, XLA fuses them.
# ============================================================================
def maxpool_stem(x):
    # PyTorch MaxPool2d(3, 2, 1), floor mode, NHWC.  Pad value is -inf so the
    # semantics match for arbitrary (not only post-ReLU) inputs.
    neg_inf = jnp.array(-jnp.inf, dtype=x.dtype)
    return jax.lax.reduce_window(
        x, neg_inf, jax.lax.max,
        window_dimensions=(1, 3, 3, 1),
        window_strides=(1, 2, 2, 1),
        padding=((0, 0), (1, 1), (1, 1), (0, 0)))


def maxpool2x2(x):
    # PyTorch MaxPool2d(kernel_size=2) (stride 2, no pad, floor mode), NHWC.
    N, H, W, C = x.shape
    Hc, Wc = (H // 2) * 2, (W // 2) * 2
    x = x[:, :Hc, :Wc, :]
    x = x.reshape(N, Hc // 2, 2, Wc // 2, 2, C)
    return jnp.max(x, axis=(2, 4))


def global_avg_pool(x):
    # AdaptiveAvgPool2d((1,1)) + squeeze: (N, H, W, C) -> (N, C), f32.
    return jnp.mean(x.astype(jnp.float32), axis=(1, 2))


# ============================================================================
# Conv glue (layout plumbing in plain JAX, compute in Pallas)
# ============================================================================
def im2col(x, kh, kw, stride, pad, Kp):
    # x: (N, H, W, C) bf16 -> (N*Ho*Wo, Kp); the K zero-pad is folded into the
    # concatenate (extra zero tap) so no second full-matrix pad copy is made.
    if pad > 0:
        x = jnp.pad(x, ((0, 0), (pad, pad), (pad, pad), (0, 0)))
    N, H, W, C = x.shape
    Ho = (H - kh) // stride + 1
    Wo = (W - kw) // stride + 1
    taps = []
    for i in range(kh):
        for j in range(kw):
            taps.append(jax.lax.slice(
                x, (0, i, j, 0),
                (N, i + (Ho - 1) * stride + 1, j + (Wo - 1) * stride + 1, C),
                (1, stride, stride, 1)))
    K = kh * kw * C
    if Kp > K:
        taps.append(jnp.zeros((N, Ho, Wo, Kp - K), x.dtype))
    cols = jnp.concatenate(taps, axis=-1)
    return cols.reshape(N * Ho * Wo, Kp), (N, Ho, Wo)


def conv_bn(x, p, kh, kw, stride, pad, relu, residual=None):
    # Conv2d + folded eval-BatchNorm (+ optional fused residual add) (+ ReLU).
    Kp, cout = p['w'].shape
    cols, (N, Ho, Wo) = im2col(x, kh, kw, stride, pad, Kp)
    res2d = None if residual is None else residual.reshape(N * Ho * Wo, cout)
    out = matmul_bn_act(cols, p['w'], p['bias'], relu, residual=res2d)
    return out.reshape(N, Ho, Wo, cout)


# ============================================================================
# ResNet18 / simpleCNN structure (deterministic random weights)
# ============================================================================
def make_conv(key, kh, kw, cin, cout):
    w = jax.random.normal(key, (kh, kw, cin, cout), jnp.float32)
    w = w * (1.0 / np.sqrt(kh * kw * cin))
    # eval-mode BN folded into the weights: gamma=1, beta=0, mean=0, var=1.
    # Real checkpoints would fold running mean/var into both w and bias.
    scale = 1.0 / np.sqrt(1.0 + BN_EPS)
    w2 = (w * scale).reshape(kh * kw * cin, cout)
    K = kh * kw * cin
    Kp = _round_up(K, 128)                       # MXU-friendly K padding
    if Kp != K:
        w2 = jnp.pad(w2, ((0, Kp - K), (0, 0)))
    return {'w': w2.astype(jnp.bfloat16),
            'bias': jnp.zeros((1, cout), jnp.float32)}


def make_basic_block(key, cin, cout, stride):
    k1, k2, k3 = jax.random.split(key, 3)
    p = {'conv1': make_conv(k1, 3, 3, cin, cout),
         'conv2': make_conv(k2, 3, 3, cout, cout)}
    if stride != 1 or cin != cout:
        p['down'] = make_conv(k3, 1, 1, cin, cout)
    return p


def make_layer(key, cin, cout, stride):
    k1, k2 = jax.random.split(key)
    return [make_basic_block(k1, cin, cout, stride),
            make_basic_block(k2, cout, cout, 1)]


def make_simple_cnn(key):
    k1, k2, k3 = jax.random.split(key, 3)
    return {'conv1': make_conv(k1, 5, 5, 64, 128),
            'conv2': make_conv(k2, 5, 5, 128, 256),
            'conv3': make_conv(k3, 5, 5, 256, 512)}


def init_params(key):
    ks = jax.random.split(key, 7)
    return {
        'stem': make_conv(ks[0], 7, 7, 3, 64),
        'layer1': make_layer(ks[1], 64, 64, 1),
        'layer2': make_layer(ks[2], 64, 128, 2),
        'layer3': make_layer(ks[3], 128, 256, 2),
        'layer4': make_layer(ks[4], 256, 512, 2),
        'head_conv': make_simple_cnn(ks[5]),
        'hand_conv': make_simple_cnn(ks[6]),
    }


def run_block(x, p, stride):
    out = conv_bn(x, p['conv1'], 3, 3, stride, 1, relu=True)
    identity = (conv_bn(x, p['down'], 1, 1, stride, 0, relu=False)
                if 'down' in p else x)
    # residual add + ReLU fused into conv2's epilogue
    return conv_bn(out, p['conv2'], 3, 3, 1, 1, relu=True, residual=identity)


def run_layer(x, layer_p, stride):
    x = run_block(x, layer_p[0], stride)
    x = run_block(x, layer_p[1], 1)
    return x


def backbone_tail(x, params):
    x = run_layer(x, params['layer2'], 2)
    x = run_layer(x, params['layer3'], 2)
    x = run_layer(x, params['layer4'], 2)
    return global_avg_pool(x)


def simple_cnn(x, p):
    x = conv_bn(x, p['conv1'], 5, 5, 1, 2, relu=True)
    x = maxpool2x2(x)
    x = conv_bn(x, p['conv2'], 5, 5, 1, 2, relu=True)
    x = maxpool2x2(x)
    x = conv_bn(x, p['conv3'], 5, 5, 1, 2, relu=True)
    x = maxpool2x2(x)
    return global_avg_pool(x)


# ============================================================================
# Host-side ROI proposal (exact PyTorch semantics, data-dependent slicing)
# ============================================================================
def linearinter_np(ctr, x_len):
    presum = [sum(x_len[:i]) for i in range(len(x_len))] + [sum(x_len)]
    cur = 0
    points = ctr.shape[1]
    seq_len = ctr.shape[0]
    for i in range(points):
        temp = ctr[:, i, :]
        for seq_index in range(seq_len):
            while presum[cur + 1] <= seq_index:
                cur += 1
            if temp[seq_index, 2] == 0:
                front = seq_index - 1
                if front < presum[cur]:
                    front = presum[cur]
                end = seq_index
                while temp[end, 2] == 0:
                    end = end + 1
                    if end > presum[cur + 1] - 1:
                        end = presum[cur + 1] - 1
                        break
                if front == presum[cur]:
                    for j in range(presum[cur], end):
                        temp[j, :] = temp[end, :]
                elif end == presum[cur + 1] - 1:
                    for j in range(front + 1, presum[cur + 1]):
                        temp[j, :] = temp[front, :]
                else:
                    step = (temp[end, :] - temp[front, :]) / (end - front)
                    for j in range(front + 1, end):
                        temp[j, :] = temp[front, :] + (j - front) * step
        ctr[:, i, :] = temp
    return ctr


def adaptive_max_pool_np(x, out_hw):
    # x: (C, H, W); exact torch AdaptiveMaxPool2d bin boundaries.
    C, H, W = x.shape
    oh, ow = out_hw
    out = np.zeros((C, oh, ow), dtype=x.dtype)
    for i in range(oh):
        hs, he = (i * H) // oh, ((i + 1) * H + oh - 1) // oh
        for j in range(ow):
            ws, we = (j * W) // ow, ((j + 1) * W + ow - 1) // ow
            out[:, i, j] = x[:, hs:he, ws:we].max(axis=(1, 2))
    return out


def get_proposal_np(x, ctr, x_len):
    # x: (seq, C, H, W) numpy f32 (NCHW, matching the PyTorch indexing).
    # NOTE: like the original PyTorch, x coordinates are clamped against h,
    # which is only correct for square feature maps (replicated faithfully).
    h, w = x.shape[2], x.shape[3]
    seq_len = ctr.shape[0]
    ctr = linearinter_np(ctr, x_len)
    ctr[:, :, 0] = ctr[:, :, 0] * (w / 224)
    ctr[:, :, 1] = ctr[:, :, 1] * (h / 224)
    ctr = ctr.astype(np.int64)

    h_roi = np.zeros((seq_len, 4), np.int64)
    rh_roi = np.zeros((seq_len, 4), np.int64)
    lh_roi = np.zeros((seq_len, 4), np.int64)
    re_roi = np.zeros((seq_len, 4), np.int64)
    head_roi = np.zeros((seq_len, CHANNELS, HEAD_GRID, HEAD_GRID), np.float32)
    rhand_roi = np.zeros((seq_len, CHANNELS, HAND_GRID, HAND_GRID), np.float32)
    lhand_roi = np.zeros((seq_len, CHANNELS, HAND_GRID, HAND_GRID), np.float32)
    h_lh_re_roi = np.zeros((seq_len, CHANNELS, REL_GRID, REL_GRID), np.float32)
    h_rh_re_roi = np.zeros_like(h_lh_re_roi)
    rh_lh_re_roi = np.zeros_like(h_lh_re_roi)

    h_roi[:, 0] = ctr[:, 0, 0] - HEAD_GRID // 2
    h_roi[:, 1] = ctr[:, 0, 0] + HEAD_GRID // 2
    h_roi[:, 2] = ctr[:, 0, 1] - HEAD_GRID // 2
    h_roi[:, 3] = ctr[:, 0, 1] + HEAD_GRID // 2
    h_roi = np.where(h_roi < 0, 0, h_roi)
    h_roi = np.where(h_roi > h, h, h_roi)
    for i in range(seq_len):
        src = x[i, :, h_roi[i, 2]:h_roi[i, 3], h_roi[i, 0]:h_roi[i, 1]]
        if h_roi[i, 0] == 0:
            head_roi[i, :, h_roi[i, 2] - (h_roi[i, 3] - HEAD_GRID):HEAD_GRID,
                     0:h_roi[i, 1] - h_roi[i, 0]] = src
        else:
            head_roi[i, :, h_roi[i, 2] - (h_roi[i, 3] - HEAD_GRID):HEAD_GRID,
                     HEAD_GRID - (h_roi[i, 1] - h_roi[i, 0]):HEAD_GRID] = src

    rh_roi[:, 0] = ctr[:, 1, 0] - HAND_GRID // 2
    rh_roi[:, 1] = ctr[:, 1, 0] + HAND_GRID // 2
    rh_roi[:, 2] = ctr[:, 1, 1] - HAND_GRID // 2
    rh_roi[:, 3] = ctr[:, 1, 1] + HAND_GRID // 2
    rh_roi = np.where(rh_roi < 0, 0, rh_roi)
    rh_roi = np.where(rh_roi > h, h, rh_roi)
    for i in range(seq_len):
        src = x[i, :, rh_roi[i, 2]:rh_roi[i, 3], rh_roi[i, 0]:rh_roi[i, 1]]
        if rh_roi[i, 2] == 0:
            rhand_roi[i, :, HAND_GRID - (rh_roi[i, 3] - rh_roi[i, 2]):HAND_GRID,
                      rh_roi[i, 0] - (rh_roi[i, 1] - HAND_GRID):HAND_GRID] = src
        else:
            rhand_roi[i, :, 0:rh_roi[i, 3] - rh_roi[i, 2],
                      rh_roi[i, 0] - (rh_roi[i, 1] - HAND_GRID):HAND_GRID] = src

    lh_roi[:, 0] = ctr[:, 2, 0] - HAND_GRID // 2
    lh_roi[:, 1] = ctr[:, 2, 0] + HAND_GRID // 2
    lh_roi[:, 2] = ctr[:, 2, 1] - HAND_GRID // 2
    lh_roi[:, 3] = ctr[:, 2, 1] + HAND_GRID // 2
    lh_roi = np.where(lh_roi > h, h, lh_roi)
    lh_roi = np.where(lh_roi < 0, 0, lh_roi)
    for i in range(seq_len):
        src = x[i, :, lh_roi[i, 2]:lh_roi[i, 3], lh_roi[i, 0]:lh_roi[i, 1]]
        if lh_roi[i, 2] == 0:
            lhand_roi[i, :, HAND_GRID - (lh_roi[i, 3] - lh_roi[i, 2]):HAND_GRID,
                      0:lh_roi[i, 1] - lh_roi[i, 0]] = src
        else:
            lhand_roi[i, :, 0:lh_roi[i, 3] - lh_roi[i, 2],
                      0:lh_roi[i, 1] - lh_roi[i, 0]] = src

    for dst, a_roi, b_roi in ((h_lh_re_roi, h_roi, lh_roi),
                              (h_rh_re_roi, h_roi, rh_roi),
                              (rh_lh_re_roi, rh_roi, lh_roi)):
        re_roi[:, 0] = np.minimum(a_roi[:, 0], b_roi[:, 0])
        re_roi[:, 1] = np.maximum(a_roi[:, 1], b_roi[:, 1])
        re_roi[:, 2] = np.minimum(a_roi[:, 2], b_roi[:, 2])
        re_roi[:, 3] = np.maximum(a_roi[:, 3], b_roi[:, 3])
        for i in range(seq_len):
            region = x[i, :, re_roi[i, 2]:re_roi[i, 3], re_roi[i, 0]:re_roi[i, 1]]
            dst[i] = adaptive_max_pool_np(region, (REL_GRID, REL_GRID))

    return head_roi, lhand_roi, rhand_roi, h_lh_re_roi, h_rh_re_roi, rh_lh_re_roi


# ============================================================================
# FeatureGenNet forward
# ============================================================================
@jax.jit
def front_fn(params, x_nchw):
    x = jnp.transpose(x_nchw, (0, 2, 3, 1)).astype(jnp.bfloat16)   # NCHW -> NHWC
    x = conv_bn(x, params['stem'], 7, 7, 2, 3, relu=True)          # stem conv/bn/relu
    x = maxpool_stem(x)                                            # stem maxpool
    x = run_layer(x, params['layer1'], 1)                          # layer1
    return x  # (N, H/4, W/4, 64) bf16


@jax.jit
def main_branch_fn(params, feat):
    # Main backbone branch: layer2-4 + avgpool of the layer1 feature map.
    # Dispatched asynchronously so the device works while the host runs the
    # ROI proposal.
    return backbone_tail(feat, params)                             # (N, 512) f32


@jax.jit
def roi_tail_fn(params, main_x, head, lhand, rhand, rel):
    N = head.shape[0]
    head_x = simple_cnn(head, params['head_conv'])                 # (N, 512)
    hands_x = simple_cnn(jnp.concatenate([lhand, rhand], 0),
                         params['hand_conv'])                      # shared hand_conv
    lhand_x, rhand_x = hands_x[:N], hands_x[N:]
    rel_x = backbone_tail(rel, params)                             # shared layer2-4
    hlh_x, hrh_x, rhlh_x = rel_x[:N], rel_x[N:2 * N], rel_x[2 * N:]
    # torch: stack(dim=1) of (N,512,1,1) then mean(dim=4).mean(dim=3) -> (N,7,512)
    return jnp.stack([main_x, head_x, lhand_x, rhand_x, hlh_x, hrh_x, rhlh_x],
                     axis=1).astype(jnp.float32)


def feature_gen_net_forward(params, x, ctr, xlen):
    feat = front_fn(params, x)                                     # (N, h, w, 64) bf16
    # Kick off the main branch on the device before touching the host: it does
    # not depend on the ROIs, so it overlaps with get_proposal_np below.
    main_x = main_branch_fn(params, feat)
    feat_np = np.transpose(
        np.asarray(jax.device_get(feat)).astype(np.float32), (0, 3, 1, 2))
    ctr_np = np.array(ctr, dtype=np.float32)
    rois = get_proposal_np(feat_np, ctr_np, list(xlen))
    head, lhand, rhand, hlh, hrh, rhlh = rois
    to_nhwc = lambda a: jnp.asarray(np.transpose(a, (0, 2, 3, 1)),
                                    dtype=jnp.bfloat16)
    rel = jnp.concatenate([to_nhwc(hlh), to_nhwc(hrh), to_nhwc(rhlh)], axis=0)
    return roi_tail_fn(params, main_x, to_nhwc(head), to_nhwc(lhand),
                       to_nhwc(rhand), rel)


# ============================================================================
if __name__ == "__main__":
    key = jax.random.PRNGKey(0)
    k_param, k_x = jax.random.split(key)

    params = init_params(k_param)

    # Small but structure-consistent inputs: seq_len=2 frames, 3x64x64 images
    # (coordinates are in the module's 224-pixel reference frame).
    seq_len = 2
    x = jax.random.normal(k_x, (seq_len, 3, 64, 64), jnp.float32)
    ctr = jnp.array(
        [[[112.0, 60.0, 1.0], [60.0, 150.0, 1.0], [170.0, 150.0, 1.0]],
         [[110.0, 66.0, 1.0], [64.0, 148.0, 1.0], [166.0, 152.0, 1.0]]],
        dtype=jnp.float32)                                         # (seq, 3 pts, xyc)
    xlen = [seq_len]                                               # one clip of 2 frames

    result = feature_gen_net_forward(params, x, ctr, xlen)
    result = jax.block_until_ready(result)

    assert result.shape == (seq_len, 7, 512), result.shape
    assert bool(jnp.all(jnp.isfinite(result)))
    print("KERNEL_OK")
</pallas_src>

<mosaic_0001>
module attributes {stable_mosaic.version = 11 : i64} {
  func.func @_mm_kernel_single(%arg0: i32, %arg1: i32, %arg2: memref<512x256xbf16, #tpu.memory_space<vmem>>, %arg3: memref<256x64xbf16, #tpu.memory_space<vmem>>, %arg4: memref<1x64xf32, #tpu.memory_space<vmem>>, %arg5: memref<512x64xbf16, #tpu.memory_space<vmem>>) attributes {dimension_semantics = [#tpu.dimension_semantics<parallel>, #tpu.dimension_semantics<parallel>], iteration_bounds = array<i64: 4, 1>, scalar_prefetch = 0 : i64, scratch_operands = 0 : i64, tpu.core_type = #tpu.core_type<tc>, window_params = [{transform_indices = @transform_0, window_bounds = array<i64: 512, 256>}, {transform_indices = @transform_1, window_bounds = array<i64: 256, 64>}, {transform_indices = @transform_2, window_bounds = array<i64: 1, 64>}, {transform_indices = @transform_3, window_bounds = array<i64: 512, 64>}]} {
    %c0 = arith.constant 0 : index
    %c0_0 = arith.constant 0 : index
    %0 = vector.load %arg2[%c0, %c0_0] : memref<512x256xbf16, #tpu.memory_space<vmem>>, vector<512x256xbf16>
    %c0_1 = arith.constant 0 : index
    %c0_2 = arith.constant 0 : index
    %1 = vector.load %arg3[%c0_1, %c0_2] : memref<256x64xbf16, #tpu.memory_space<vmem>>, vector<256x64xbf16>
    %cst = arith.constant dense<0.000000e+00> : vector<512x64xf32>
    %2 = tpu.matmul %0, %1, %cst {dimension_numbers = #tpu.dot_dimension_numbers<[1], [0], [0], [1], [0, 0, 1, 1], [], []>} : vector<512x256xbf16>, vector<256x64xbf16>, vector<512x64xf32> -> vector<512x64xf32>
    %c0_3 = arith.constant 0 : index
    %c0_4 = arith.constant 0 : index
    %3 = vector.load %arg4[%c0_3, %c0_4] : memref<1x64xf32, #tpu.memory_space<vmem>>, vector<1x64xf32>
    %4 = vector.broadcast %3 : vector<1x64xf32> to vector<512x64xf32>
    %5 = arith.addf %2, %4 : vector<512x64xf32>
    %cst_5 = arith.constant 0.000000e+00 : f32
    %6 = vector.broadcast %cst_5 : f32 to vector<512x64xf32>
    %7 = arith.maximumf %5, %6 : vector<512x64xf32>
    %8 = arith.truncf %7 : vector<512x64xf32> to vector<512x64xbf16>
    %c0_6 = arith.constant 0 : index
    %c0_7 = arith.constant 0 : index
    %9 = vector.load %arg5[%c0_6, %c0_7] : memref<512x64xbf16, #tpu.memory_space<vmem>>, vector<512x64xbf16>
    tpu.vector_store %arg5[%c0_6, %c0_7], %8 {strides = array<i32>} : memref<512x64xbf16, #tpu.memory_space<vmem>>, vector<512x64xbf16>,
    return
  }
  func.func @transform_0(%arg0: i32, %arg1: i32) -> (i32, i32) {
    %c0_i32 = arith.constant 0 : i32
    %c0_i32_0 = arith.constant 0 : i32
    return %arg0, %c0_i32 : i32, i32
  }
  func.func @transform_1(%arg0: i32, %arg1: i32) -> (i32, i32) {
    %c0_i32 = arith.constant 0 : i32
    %c0_i32_0 = arith.constant 0 : i32
    return %c0_i32, %arg1 : i32, i32
  }
  func.func @transform_2(%arg0: i32, %arg1: i32) -> (i32, i32) {
    %c0_i32 = arith.constant 0 : i32
    %c0_i32_0 = arith.constant 0 : i32
    return %c0_i32, %arg1 : i32, i32
  }
  func.func @transform_3(%arg0: i32, %arg1: i32) -> (i32, i32) {
    %c0_i32 = arith.constant 0 : i32
    return %arg0, %arg1 : i32, i32
  }
}

module attributes {stable_mosaic.version = 11 : i64} {
  func.func @_mm_kernel_single(%arg0: i32, %arg1: i32, %arg2: memref<512x640xbf16, #tpu.memory_space<vmem>>, %arg3: memref<640x64xbf16, #tpu.memory_space<vmem>>, %arg4: memref<1x64xf32, #tpu.memory_space<vmem>>, %arg5: memref<512x64xbf16, #tpu.memory_space<vmem>>) attributes {dimension_semantics = [#tpu.dimension_semantics<parallel>, #tpu.dimension_semantics<parallel>], iteration_bounds = array<i64: 1, 1>, scalar_prefetch = 0 : i64, scratch_operands = 0 : i64, tpu.core_type = #tpu.core_type<tc>, window_params = [{transform_indices = @transform_0, window_bounds = array<i64: 512, 640>}, {transform_indices = @transform_1, window_bounds = array<i64: 640, 64>}, {transform_indices = @transform_2, window_bounds = array<i64: 1, 64>}, {transform_indices = @transform_3, window_bounds = array<i64: 512, 64>}]} {
    %c0 = arith.constant 0 : index
    %c0_0 = arith.constant 0 : index
    %0 = vector.load %arg2[%c0, %c0_0] : memref<512x640xbf16, #tpu.memory_space<vmem>>, vector<512x640xbf16>
    %c0_1 = arith.constant 0 : index
    %c0_2 = arith.constant 0 : index
    %1 = vector.load %arg3[%c0_1, %c0_2] : memref<640x64xbf16, #tpu.memory_space<vmem>>, vector<640x64xbf16>
    %cst = arith.constant dense<0.000000e+00> : vector<512x64xf32>
    %2 = tpu.matmul %0, %1, %cst {dimension_numbers = #tpu.dot_dimension_numbers<[1], [0], [0], [1], [0, 0, 1, 1], [], []>} : vector<512x640xbf16>, vector<640x64xbf16>, vector<512x64xf32> -> vector<512x64xf32>
    %c0_3 = arith.constant 0 : index
    %c0_4 = arith.constant 0 : index
    %3 = vector.load %arg4[%c0_3, %c0_4] : memref<1x64xf32, #tpu.memory_space<vmem>>, vector<1x64xf32>
    %4 = vector.broadcast %3 : vector<1x64xf32> to vector<512x64xf32>
    %5 = arith.addf %2, %4 : vector<512x64xf32>
    %cst_5 = arith.constant 0.000000e+00 : f32
    %6 = vector.broadcast %cst_5 : f32 to vector<512x64xf32>
    %7 = arith.maximumf %5, %6 : vector<512x64xf32>
    %8 = arith.truncf %7 : vector<512x64xf32> to vector<512x64xbf16>
    %c0_6 = arith.constant 0 : index
    %c0_7 = arith.constant 0 : index
    %9 = vector.load %arg5[%c0_6, %c0_7] : memref<512x64xbf16, #tpu.memory_space<vmem>>, vector<512x64xbf16>
    tpu.vector_store %arg5[%c0_6, %c0_7], %8 {strides = array<i32>} : memref<512x64xbf16, #tpu.memory_space<vmem>>, vector<512x64xbf16>,
    return
  }
  func.func @transform_0(%arg0: i32, %arg1: i32) -> (i32, i32) {
    %c0_i32 = arith.constant 0 : i32
    %c0_i32_0 = arith.constant 0 : i32
    return %arg0, %c0_i32 : i32, i32
  }
  func.func @transform_1(%arg0: i32, %arg1: i32) -> (i32, i32) {
    %c0_i32 = arith.constant 0 : i32
    %c0_i32_0 = arith.constant 0 : i32
    return %c0_i32, %arg1 : i32, i32
  }
  func.func @transform_2(%arg0: i32, %arg1: i32) -> (i32, i32) {
    %c0_i32 = arith.constant 0 : i32
    %c0_i32_0 = arith.constant 0 : i32
    return %c0_i32, %arg1 : i32, i32
  }
  func.func @transform_3(%arg0: i32, %arg1: i32) -> (i32, i32) {
    %c0_i32 = arith.constant 0 : i32
    return %arg0, %arg1 : i32, i32
  }
}

module attributes {stable_mosaic.version = 11 : i64} {
  func.func @_mm_kernel_single(%arg0: i32, %arg1: i32, %arg2: memref<512x640xbf16, #tpu.memory_space<vmem>>, %arg3: memref<640x64xbf16, #tpu.memory_space<vmem>>, %arg4: memref<1x64xf32, #tpu.memory_space<vmem>>, %arg5: memref<512x64xbf16, #tpu.memory_space<vmem>>, %arg6: memref<512x64xbf16, #tpu.memory_space<vmem>>) attributes {dimension_semantics = [#tpu.dimension_semantics<parallel>, #tpu.dimension_semantics<parallel>], iteration_bounds = array<i64: 1, 1>, scalar_prefetch = 0 : i64, scratch_operands = 0 : i64, tpu.core_type = #tpu.core_type<tc>, window_params = [{transform_indices = @transform_0, window_bounds = array<i64: 512, 640>}, {transform_indices = @transform_1, window_bounds = array<i64: 640, 64>}, {transform_indices = @transform_2, window_bounds = array<i64: 1, 64>}, {transform_indices = @transform_3, window_bounds = array<i64: 512, 64>}, {transform_indices = @transform_4, window_bounds = array<i64: 512, 64>}]} {
    %c0 = arith.constant 0 : index
    %c0_0 = arith.constant 0 : index
    %0 = vector.load %arg2[%c0, %c0_0] : memref<512x640xbf16, #tpu.memory_space<vmem>>, vector<512x640xbf16>
    %c0_1 = arith.constant 0 : index
    %c0_2 = arith.constant 0 : index
    %1 = vector.load %arg3[%c0_1, %c0_2] : memref<640x64xbf16, #tpu.memory_space<vmem>>, vector<640x64xbf16>
    %cst = arith.constant dense<0.000000e+00> : vector<512x64xf32>
    %2 = tpu.matmul %0, %1, %cst {dimension_numbers = #tpu.dot_dimension_numbers<[1], [0], [0], [1], [0, 0, 1, 1], [], []>} : vector<512x640xbf16>, vector<640x64xbf16>, vector<512x64xf32> -> vector<512x64xf32>
    %c0_3 = arith.constant 0 : index
    %c0_4 = arith.constant 0 : index
    %3 = vector.load %arg4[%c0_3, %c0_4] : memref<1x64xf32, #tpu.memory_space<vmem>>, vector<1x64xf32>
    %4 = vector.broadcast %3 : vector<1x64xf32> to vector<512x64xf32>
    %5 = arith.addf %2, %4 : vector<512x64xf32>
    %c0_5 = arith.constant 0 : index
    %c0_6 = arith.constant 0 : index
    %6 = vector.load %arg5[%c0_5, %c0_6] : memref<512x64xbf16, #tpu.memory_space<vmem>>, vector<512x64xbf16>
    %7 = arith.extf %6 : vector<512x64xbf16> to vector<512x64xf32>
    %8 = arith.addf %5, %7 : vector<512x64xf32>
    %cst_7 = arith.constant 0.000000e+00 : f32
    %9 = vector.broadcast %cst_7 : f32 to vector<512x64xf32>
    %10 = arith.maximumf %8, %9 : vector<512x64xf32>
    %11 = arith.truncf %10 : vector<512x64xf32> to vector<512x64xbf16>
    %c0_8 = arith.constant 0 : index
    %c0_9 = arith.constant 0 : index
    %12 = vector.load %arg6[%c0_8, %c0_9] : memref<512x64xbf16, #tpu.memory_space<vmem>>, vector<512x64xbf16>
    tpu.vector_store %arg6[%c0_8, %c0_9], %11 {strides = array<i32>} : memref<512x64xbf16, #tpu.memory_space<vmem>>, vector<512x64xbf16>,
    return
  }
  func.func @transform_0(%arg0: i32, %arg1: i32) -> (i32, i32) {
    %c0_i32 = arith.constant 0 : i32
    %c0_i32_0 = arith.constant 0 : i32
    return %arg0, %c0_i32 : i32, i32
  }
  func.func @transform_1(%arg0: i32, %arg1: i32) -> (i32, i32) {
    %c0_i32 = arith.constant 0 : i32
    %c0_i32_0 = arith.constant 0 : i32
    return %c0_i32, %arg1 : i32, i32
  }
  func.func @transform_2(%arg0: i32, %arg1: i32) -> (i32, i32) {
    %c0_i32 = arith.constant 0 : i32
    %c0_i32_0 = arith.constant 0 : i32
    return %c0_i32, %arg1 : i32, i32
  }
  func.func @transform_3(%arg0: i32, %arg1: i32) -> (i32, i32) {
    %c0_i32 = arith.constant 0 : i32
    return %arg0, %arg1 : i32, i32
  }
  func.func @transform_4(%arg0: i32, %arg1: i32) -> (i32, i32) {
    %c0_i32 = arith.constant 0 : i32
    return %arg0, %arg1 : i32, i32
  }
}

module attributes {stable_mosaic.version = 11 : i64} {
  func.func @_mm_kernel_single(%arg0: i32, %arg1: i32, %arg2: memref<512x640xbf16, #tpu.memory_space<vmem>>, %arg3: memref<640x64xbf16, #tpu.memory_space<vmem>>, %arg4: memref<1x64xf32, #tpu.memory_space<vmem>>, %arg5: memref<512x64xbf16, #tpu.memory_space<vmem>>, %arg6: memref<512x64xbf16, #tpu.memory_space<vmem>>) attributes {dimension_semantics = [#tpu.dimension_semantics<parallel>, #tpu.dimension_semantics<parallel>], iteration_bounds = array<i64: 1, 1>, scalar_prefetch = 0 : i64, scratch_operands = 0 : i64, tpu.core_type = #tpu.core_type<tc>, window_params = [{transform_indices = @transform_0, window_bounds = array<i64: 512, 640>}, {transform_indices = @transform_1, window_bounds = array<i64: 640, 64>}, {transform_indices = @transform_2, window_bounds = array<i64: 1, 64>}, {transform_indices = @transform_3, window_bounds = array<i64: 512, 64>}, {transform_indices = @transform_4, window_bounds = array<i64: 512, 64>}]} {
    %c0 = arith.constant 0 : index
    %c0_0 = arith.constant 0 : index
    %0 = vector.load %arg2[%c0, %c0_0] : memref<512x640xbf16, #tpu.memory_space<vmem>>, vector<512x640xbf16>
    %c0_1 = arith.constant 0 : index
    %c0_2 = arith.constant 0 : index
    %1 = vector.load %arg3[%c0_1, %c0_2] : memref<640x64xbf16, #tpu.memory_space<vmem>>, vector<640x64xbf16>
    %cst = arith.constant dense<0.000000e+00> : vector<512x64xf32>
    %2 = tpu.matmul %0, %1, %cst {dimension_numbers = #tpu.dot_dimension_numbers<[1], [0], [0], [1], [0, 0, 1, 1], [], []>} : vector<512x640xbf16>, vector<640x64xbf16>, vector<512x64xf32> -> vector<512x64xf32>
    %c0_3 = arith.constant 0 : index
    %c0_4 = arith.constant 0 : index
    %3 = vector.load %arg4[%c0_3, %c0_4] : memref<1x64xf32, #tpu.memory_space<vmem>>, vector<1x64xf32>
    %4 = vector.broadcast %3 : vector<1x64xf32> to vector<512x64xf32>
    %5 = arith.addf %2, %4 : vector<512x64xf32>
    %c0_5 = arith.constant 0 : index
    %c0_6 = arith.constant 0 : index
    %6 = vector.load %arg5[%c0_5, %c0_6] : memref<512x64xbf16, #tpu.memory_space<vmem>>, vector<512x64xbf16>
    %7 = arith.extf %6 : vector<512x64xbf16> to vector<512x64xf32>
    %8 = arith.addf %5, %7 : vector<512x64xf32>
    %cst_7 = arith.constant 0.000000e+00 : f32
    %9 = vector.broadcast %cst_7 : f32 to vector<512x64xf32>
    %10 = arith.maximumf %8, %9 : vector<512x64xf32>
    %11 = arith.truncf %10 : vector<512x64xf32> to vector<512x64xbf16>
    %c0_8 = arith.constant 0 : index
    %c0_9 = arith.constant 0 : index
    %12 = vector.load %arg6[%c0_8, %c0_9] : memref<512x64xbf16, #tpu.memory_space<vmem>>, vector<512x64xbf16>
    tpu.vector_store %arg6[%c0_8, %c0_9], %11 {strides = array<i32>} : memref<512x64xbf16, #tpu.memory_space<vmem>>, vector<512x64xbf16>,
    return
  }
  func.func @transform_0(%arg0: i32, %arg1: i32) -> (i32, i32) {
    %c0_i32 = arith.constant 0 : i32
    %c0_i32_0 = arith.constant 0 : i32
    return %arg0, %c0_i32 : i32, i32
  }
  func.func @transform_1(%arg0: i32, %arg1: i32) -> (i32, i32) {
    %c0_i32 = arith.constant 0 : i32
    %c0_i32_0 = arith.constant 0 : i32
    return %c0_i32, %arg1 : i32, i32
  }
  func.func @transform_2(%arg0: i32, %arg1: i32) -> (i32, i32) {
    %c0_i32 = arith.constant 0 : i32
    %c0_i32_0 = arith.constant 0 : i32
    return %c0_i32, %arg1 : i32, i32
  }
  func.func @transform_3(%arg0: i32, %arg1: i32) -> (i32, i32) {
    %c0_i32 = arith.constant 0 : i32
    return %arg0, %arg1 : i32, i32
  }
  func.func @transform_4(%arg0: i32, %arg1: i32) -> (i32, i32) {
    %c0_i32 = arith.constant 0 : i32
    return %arg0, %arg1 : i32, i32
  }
}

</mosaic_0001>

<llo_original>
// kernel: front_fn.5
$region0: #{front_fn.5}
  #allocation0 [shape = 'u32[]', space=smem, size = 0x4, offset = 0x4, fixed_abs, tag = 'smem constant byte address 0x4 - core index']
  #allocation1 [shape = 'u32[72,128]{1,0:T(1,128)}', space=vmem, size = 0x9000, scoped, tag = 'internal scratch']
  %s0 = inlined_call_operand.vmem [shape: bf16[2048,256], index: 0, kind: input, shape index: {}]
  %s1 = inlined_call_operand.vmem [shape: bf16[256,64], index: 1, kind: input, shape index: {}]
  %s2 = inlined_call_operand.vmem [shape: f32[1,64], index: 2, kind: input, shape index: {}]
  %s3 = inlined_call_operand.vmem [shape: bf16[2048,64], index: 3, kind: output, shape index: {}]
  %s4 = sld [smem:[#allocation0]]
  $region45: #{front_fn.5} parent=0
    _
  %s6 = ssub.s32 1, %s4
  %s7 = scalar_select 0, %s6, %s4
  loop: start=0, step=1, limit=6
  $region2: #{front_fn.5} parent=0 // loop_pre_header
    _
  $region3: #{front_fn.5} parent=0 // loop_header
    %s9 = sphi 0, %s13
    %p10 = scmp.ge.s32.totalorder %s9, 6
    %s16 = sphi 0, %s28
    %s17 = sphi 0, %s24
    %s18 = sphi 0, %s16
    %s19 = sphi 0, %s17
    %s20 = sphi 0, %s18
    %s21 = sphi 0, %s19
    %s31 = sphi 0, %s33
    %s34 = sphi 0, %s31
    %s35 = sphi 0, %s34
    %s51 = sphi 0, %s35
    %s57 = sphi 0, %s59
    %s60 = sphi 0, %s57
    %s61 = sphi 0, %s60
    %s77 = sphi 0, %s61
    %s83 = sphi 0, %s85
    %s86 = sphi 0, %s83
    %s87 = sphi 0, %s86
    %s103 = sphi 0, %s87
    %s111 = sphi 0, %s113
    %s114 = sphi 0, %s111
    %s115 = sphi 0, %s114
    %s131 = sphi 0, %s115
  $region4: #{front_fn.5} parent=0 // loop_header_branch
    %12 = sbr.rel (%p10) target = $region8
  $region5: #{front_fn.5} parent=0 // loop_body
    %s14 = ssub.s32 %s9, 1
    %s15 = ssub.s32 %s9, 2
    %s22 = sadd.s32 1, %s17
    %p23 = scmp.ge.s32.totalorder %s22, 1
    %s24 = scalar_select %p23, 0, %s22
    %s25 = sadd.s32 1, %s16
    %s26 = scalar_select %p23, %s25, %s16
    %p27 = scmp.ge.s32.totalorder %s26, 4
    %s28 = scalar_select %p27, 0, %s26
    %s29 = ssub.s32 %s16, %s28
    %p30 = scmp.eq.s32.totalorder %s29, 0
    %s32 = sadd.s32 %s31, 1
    %s33 = scalar_select %p30, %s31, %s32
    %p36 = pneg %p30
    %p37 = scmp.eq.s32.totalorder %s9, 3
    %p38 = por %p36, %p37
    %p39 = scmp.ne.s32.totalorder %s31, %s34
    %p40 = scmp.eq.s32.totalorder %s9, 0
    %p41 = por %p39, %p40
    %p42 = scmp.ne.s32.totalorder %s31, %s34
    %p43 = scmp.eq.s32.totalorder %s14, 3
    %p44 = por %p42, %p43
    %p45 = scmp.ne.s32.totalorder %s34, %s35
    %p46 = scmp.eq.s32.totalorder %s14, 0
    %p47 = por %p45, %p46
    %p48 = scmp.ne.s32.totalorder %s34, %s35
    %p49 = scmp.eq.s32.totalorder %s15, 3
    %p50 = por %p48, %p49
    %p52 = scmp.ne.s32.totalorder %s35, %s51
    %p53 = scmp.eq.s32.totalorder %s15, 0
    %p54 = por %p52, %p53
    %s55 = ssub.s32 %s17, %s24
    %p56 = scmp.eq.s32.totalorder %s55, 0
    %s58 = sadd.s32 %s57, 1
    %s59 = scalar_select %p56, %s57, %s58
    %p62 = pneg %p56
    %p63 = scmp.eq.s32.totalorder %s9, 3
    %p64 = por %p62, %p63
    %p65 = scmp.ne.s32.totalorder %s57, %s60
    %p66 = scmp.eq.s32.totalorder %s9, 0
    %p67 = por %p65, %p66
    %p68 = scmp.ne.s32.totalorder %s57, %s60
    %p69 = scmp.eq.s32.totalorder %s14, 3
    %p70 = por %p68, %p69
    %p71 = scmp.ne.s32.totalorder %s60, %s61
    %p72 = scmp.eq.s32.totalorder %s14, 0
    %p73 = por %p71, %p72
    %p74 = scmp.ne.s32.totalorder %s60, %s61
    %p75 = scmp.eq.s32.totalorder %s15, 3
    %p76 = por %p74, %p75
    %p78 = scmp.ne.s32.totalorder %s61, %s77
    %p79 = scmp.eq.s32.totalorder %s15, 0
    %p80 = por %p78, %p79
    %s81 = ssub.s32 %s17, %s24
    %p82 = scmp.eq.s32.totalorder %s81, 0
    %s84 = sadd.s32 %s83, 1
    %s85 = scalar_select %p82, %s83, %s84
    %p88 = pneg %p82
    %p89 = scmp.eq.s32.totalorder %s9, 3
    %p90 = por %p88, %p89
    %p91 = scmp.ne.s32.totalorder %s83, %s86
    %p92 = scmp.eq.s32.totalorder %s9, 0
    %p93 = por %p91, %p92
    %p94 = scmp.ne.s32.totalorder %s83, %s86
    %p95 = scmp.eq.s32.totalorder %s14, 3
    %p96 = por %p94, %p95
    %p97 = scmp.ne.s32.totalorder %s86, %s87
    %p98 = scmp.eq.s32.totalorder %s14, 0
    %p99 = por %p97, %p98
    %p100 = scmp.ne.s32.totalorder %s86, %s87
    %p101 = scmp.eq.s32.totalorder %s15, 3
    %p102 = por %p100, %p101
    %p104 = scmp.ne.s32.totalorder %s87, %s103
    %p105 = scmp.eq.s32.totalorder %s15, 0
    %p106 = por %p104, %p105
    %s107 = ssub.s32 %s16, %s28
    %s108 = ssub.s32 %s17, %s24
    %s109 = sor.u32 %s107, %s108
    %p110 = scmp.eq.s32.totalorder %s109, 0
    %s112 = sadd.s32 %s111, 1
    %s113 = scalar_select %p110, %s111, %s112
    %p116 = pneg %p110
    %p117 = scmp.eq.s32.totalorder %s9, 3
    %p118 = por %p116, %p117
    %p119 = scmp.ne.s32.totalorder %s111, %s114
    %p120 = scmp.eq.s32.totalorder %s9, 0
    %p121 = por %p119, %p120
    %p122 = scmp.ne.s32.totalorder %s111, %s114
    %p123 = scmp.eq.s32.totalorder %s14, 3
    %p124 = por %p122, %p123
    %p125 = scmp.ne.s32.totalorder %s114, %s115
    %p126 = scmp.eq.s32.totalorder %s14, 0
    %p127 = por %p125, %p126
    %p128 = scmp.ne.s32.totalorder %s114, %s115
    %p129 = scmp.eq.s32.totalorder %s15, 3
    %p130 = por %p128, %p129
    %p132 = scmp.ne.s32.totalorder %s115, %s131
    %p133 = scmp.eq.s32.totalorder %s15, 0
    %p134 = por %p132, %p133
    %p135 = scmp.le.s32.totalorder 1, %s9
    %p136 = scmp.lt.s32.totalorder %s9, 5
    %p137 = pnand %p135, %p136
    %p138 = pneg %p137
    // Predicated region
    $region9: #{front_fn.5} parent=5 // pred_check
      _
    $region10: #{front_fn.5} parent=5 // pred_check_branch
      %140 = sbr.rel (%p137) target = $region12
    $region11: #{front_fn.5} parent=5 // pred_region
      %s141 = ssub.s32 %s9, 1
      // Predicated region
      $region13: #{front_fn.5} parent=11 // pred_check
        %p142 = pneg %p73
      $region14: #{front_fn.5} parent=11 // pred_check_branch
        %144 = sbr.rel (%p142) target = $region16
      $region15: #{front_fn.5} parent=11 // pred_region
        %p145 = scmp.lt.s32.totalorder %s19, 0
        %s146 = scalar_select %p145, %s19, 0
        %s147 = smul.addr %s146, 4
        %s148 = scalar_lea.vmem %s1, %s147
      $region16: #{front_fn.5} parent=11 // pred_fallthru
        _
      // Predicated region
      $region17: #{front_fn.5} parent=11 // pred_check
        %p149 = pneg %p99
      $region18: #{front_fn.5} parent=11 // pred_check_branch
        %151 = sbr.rel (%p149) target = $region20
      $region19: #{front_fn.5} parent=11 // pred_region
        %p152 = scmp.lt.s32.totalorder %s19, 0
        %s153 = scalar_select %p152, %s19, 0
        %s154 = scalar_lea.vmem %s2, %s153
      $region20: #{front_fn.5} parent=11 // pred_fallthru
        _
    $region12: #{front_fn.5} parent=5 // pred_fallthru
      _
    %p155 = scmp.lt.s32.totalorder %s9, 4
    // Predicated region
    $region21: #{front_fn.5} parent=5 // pred_check
      %p156 = pneg %p155
    $region22: #{front_fn.5} parent=5 // pred_check_branch
      %158 = sbr.rel (%p156) target = $region24
    $region23: #{front_fn.5} parent=5 // pred_region
      // Predicated region
      $region25: #{front_fn.5} parent=23 // pred_check
        %p159 = pneg %p41
      $region26: #{front_fn.5} parent=23 // pred_check_branch
        %161 = sbr.rel (%p159) target = $region28
      $region27: #{front_fn.5} parent=23 // pred_region
        %s162 = smul.u32 64, %s16
        %p163 = scmp.lt.s32.totalorder %s162, 255
        %s164 = scalar_select %p163, %s162, 255
        %s165 = smul.addr %s164, 2
        %s166 = smul.addr %s165, 4
        %s167 = scalar_lea.vmem %s0, %s166
        %s168 = smul.u32 64, %s16
      $region28: #{front_fn.5} parent=23 // pred_fallthru
        _
    $region24: #{front_fn.5} parent=5 // pred_fallthru
      _
    %p169 = scmp.le.s32.totalorder 1, %s9
    %p170 = scmp.lt.s32.totalorder %s9, 5
    %p171 = pnand %p169, %p170
    %p172 = pneg %p171
    // Predicated region
    $region29: #{front_fn.5} parent=5 // pred_check
      _
    $region30: #{front_fn.5} parent=5 // pred_check_branch
      %174 = sbr.rel (%p171) target = $region32
    $region31: #{front_fn.5} parent=5 // pred_region
      %s175 = ssub.s32 %s9, 1
      %s176 = smul.u32 64, %s18
      %p177 = scmp.lt.s32.totalorder %s176, 255
      %s178 = scalar_select %p177, %s176, 255
      %s179 = smul.addr %s178, 2
      %s180 = smul.addr %s179, 4
      %s181 = scalar_lea.vmem %s0, %s180
      %p182 = pneg %p47
      %p183 = pneg %p44
      %p184 = scmp.lt.s32.totalorder %s19, 0
      %s185 = scalar_select %p184, %s19, 0
      %s186 = smul.addr %s185, 4
      %s187 = scalar_lea.vmem %s1, %s186
      %p188 = pneg %p73
      %p189 = pneg %p70
      %p190 = scmp.lt.s32.totalorder %s19, 0
      %s191 = scalar_select %p190, %s19, 0
      %s192 = scalar_lea.vmem %s2, %s191
      %p193 = pneg %p99
      %p194 = pneg %p96
      %p195 = pneg %p127
      %p196 = pneg %p124
      %s197 = smul.u32 64, %s18
      %p198 = scmp.lt.s32.totalorder %s197, 255
      %s199 = scalar_select %p198, %s197, 255
      %p200 = scmp.lt.s32.totalorder %s19, 0
      %s201 = scalar_select %p200, %s19, 0
      %s202 = sadd.s32 %s201, %s199
      %s203 = smul.addr %s202, 4
      %s204 = scalar_lea.vmem %s3, %s203
      %s205 = smul.u32 64, %s18
      %p206 = scmp.lt.s32.totalorder %s205, 255
      %s207 = scalar_select %p206, %s205, 255
      %s208 = smul.addr %s207, 2
      %s209 = smul.addr %s208, 4
      %s210 = scalar_lea.vmem %s0, %s209
      %s211 = smul.u32 64, %s18
      %p212 = scmp.lt.s32.totalorder %s19, 0
      %s213 = scalar_select %p212, %s19, 0
      %s214 = smul.addr %s213, 4
      %s215 = scalar_lea.vmem %s1, %s214
      %p216 = scmp.lt.s32.totalorder %s19, 0
      %s217 = scalar_select %p216, %s19, 0
      %s218 = scalar_lea.vmem %s2, %s217
      %s219 = smul.u32 64, %s18
      %p220 = scmp.lt.s32.totalorder %s219, 255
      %s221 = scalar_select %p220, %s219, 255
      %p222 = scmp.lt.s32.totalorder %s19, 0
      %s223 = scalar_select %p222, %s19, 0
      %s224 = sadd.s32 %s223, %s221
      %s225 = smul.addr %s224, 4
      %s226 = scalar_lea.vmem %s3, %s225
      %s227 = smul.u32 64, %s18
      %v228 = vld [vmem:[%s210] sm:$0xff]
      %v229 = vld [vmem:[%s210 + $0x8] sm:$0xff]
      %v230 = vld [vmem:[%s210 + $0x10] sm:$0xff]
      %v231 = vld [vmem:[%s210 + $0x18] sm:$0xff]
      %v232 = vld [vmem:[%s210 + $0x20] sm:$0xff]
      %v233 = vld [vmem:[%s210 + $0x28] sm:$0xff]
      %v234 = vld [vmem:[%s210 + $0x30] sm:$0xff]
      %v235 = vld [vmem:[%s210 + $0x38] sm:$0xff]
      %v236 = vld [vmem:[%s210 + $0x40] sm:$0xff]
      %v237 = vld [vmem:[%s210 + $0x48] sm:$0xff]
      %v238 = vld [vmem:[%s210 + $0x50] sm:$0xff]
      %v239 = vld [vmem:[%s210 + $0x58] sm:$0xff]
      %v240 = vld [vmem:[%s210 + $0x60] sm:$0xff]
      %v241 = vld [vmem:[%s210 + $0x68] sm:$0xff]
      %v242 = vld [vmem:[%s210 + $0x70] sm:$0xff]
      %v243 = vld [vmem:[%s210 + $0x78] sm:$0xff]
      %v244 = vld [vmem:[%s210 + $0x80] sm:$0xff]
      %v245 = vld [vmem:[%s210 + $0x88] sm:$0xff]
      %v246 = vld [vmem:[%s210 + $0x90] sm:$0xff]
      %v247 = vld [vmem:[%s210 + $0x98] sm:$0xff]
      %v248 = vld [vmem:[%s210 + $0xa0] sm:$0xff]
      %v249 = vld [vmem:[%s210 + $0xa8] sm:$0xff]
      %v250 = vld [vmem:[%s210 + $0xb0] sm:$0xff]
      %v251 = vld [vmem:[%s210 + $0xb8] sm:$0xff]
      %v252 = vld [vmem:[%s210 + $0xc0] sm:$0xff]
      %v253 = vld [vmem:[%s210 + $0xc8] sm:$0xff]
      %v254 = vld [vmem:[%s210 + $0xd0] sm:$0xff]
      %v255 = vld [vmem:[%s210 + $0xd8] sm:$0xff]
      %v256 = vld [vmem:[%s210 + $0xe0] sm:$0xff]
      %v257 = vld [vmem:[%s210 + $0xe8] sm:$0xff]
      %v258 = vld [vmem:[%s210 + $0xf0] sm:$0xff]
      %v259 = vld [vmem:[%s210 + $0xf8] sm:$0xff]
      %v260 = vld [vmem:[%s210 + $0x100] sm:$0xff]
      %v261 = vld [vmem:[%s210 + $0x108] sm:$0xff]
      %v262 = vld [vmem:[%s210 + $0x110] sm:$0xff]
      %v263 = vld [vmem:[%s210 + $0x118] sm:$0xff]
      %v264 = vld [vmem:[%s210 + $0x120] sm:$0xff]
      %v265 = vld [vmem:[%s210 + $0x128] sm:$0xff]
      %v266 = vld [vmem:[%s210 + $0x130] sm:$0xff]
      %v267 = vld [vmem:[%s210 + $0x138] sm:$0xff]
      %v268 = vld [vmem:[%s210 + $0x140] sm:$0xff]
      %v269 = vld [vmem:[%s210 + $0x148] sm:$0xff]
      %v270 = vld [vmem:[%s210 + $0x150] sm:$0xff]
      %v271 = vld [vmem:[%s210 + $0x158] sm:$0xff]
      %v272 = vld [vmem:[%s210 + $0x160] sm:$0xff]
      %v273 = vld [vmem:[%s210 + $0x168] sm:$0xff]
      %v274 = vld [vmem:[%s210 + $0x170] sm:$0xff]
      %v275 = vld [vmem:[%s210 + $0x178] sm:$0xff]
      %v276 = vld [vmem:[%s210 + $0x180] sm:$0xff]
      %v277 = vld [vmem:[%s210 + $0x188] sm:$0xff]
      %v278 = vld [vmem:[%s210 + $0x190] sm:$0xff]
      %v279 = vld [vmem:[%s210 + $0x198] sm:$0xff]
      %v280 = vld [vmem:[%s210 + $0x1a0] sm:$0xff]
      %v281 = vld [vmem:[%s210 + $0x1a8] sm:$0xff]
      %v282 = vld [vmem:[%s210 + $0x1b0] sm:$0xff]
      %v283 = vld [vmem:[%s210 + $0x1b8] sm:$0xff]
      %v284 = vld [vmem:[%s210 + $0x1c0] sm:$0xff]
      %v285 = vld [vmem:[%s210 + $0x1c8] sm:$0xff]
      %v286 = vld [vmem:[%s210 + $0x1d0] sm:$0xff]
      %v287 = vld [vmem:[%s210 + $0x1d8] sm:$0xff]
      %v288 = vld [vmem:[%s210 + $0x1e0] sm:$0xff]
      %v289 = vld [vmem:[%s210 + $0x1e8] sm:$0xff]
      %v290 = vld [vmem:[%s210 + $0x1f0] sm:$0xff]
      %v291 = vld [vmem:[%s210 + $0x1f8] sm:$0xff]
      %v292 = vld [vmem:[%s215] sm:$0xf]
      %v293 = vld [vmem:[%s215 + $0x4] sm:$0xf]
      %v294 = vld [vmem:[%s215 + $0x8] sm:$0xf]
      %v295 = vld [vmem:[%s215 + $0xc] sm:$0xf]
      %v296 = vld [vmem:[%s215 + $0x10] sm:$0xf]
      %v297 = vld [vmem:[%s215 + $0x14] sm:$0xf]
      %v298 = vld [vmem:[%s215 + $0x18] sm:$0xf]
      %v299 = vld [vmem:[%s215 + $0x1c] sm:$0xf]
      %v300 = vld [vmem:[%s215 + $0x20] sm:$0xf]
      %v301 = vld [vmem:[%s215 + $0x24] sm:$0xf]
      %v302 = vld [vmem:[%s215 + $0x28] sm:$0xf]
      %v303 = vld [vmem:[%s215 + $0x2c] sm:$0xf]
      %v304 = vld [vmem:[%s215 + $0x30] sm:$0xf]
      %v305 = vld [vmem:[%s215 + $0x34] sm:$0xf]
      %v306 = vld [vmem:[%s215 + $0x38] sm:$0xf]
      %v307 = vld [vmem:[%s215 + $0x3c] sm:$0xf]
      %v308 = vld [vmem:[%s215 + $0x40] sm:$0xf]
      %v309 = vld [vmem:[%s215 + $0x44] sm:$0xf]
      %v310 = vld [vmem:[%s215 + $0x48] sm:$0xf]
      %v311 = vld [vmem:[%s215 + $0x4c] sm:$0xf]
      %v312 = vld [vmem:[%s215 + $0x50] sm:$0xf]
      %v313 = vld [vmem:[%s215 + $0x54] sm:$0xf]
      %v314 = vld [vmem:[%s215 + $0x58] sm:$0xf]
      %v315 = vld [vmem:[%s215 + $0x5c] sm:$0xf]
      %v316 = vld [vmem:[%s215 + $0x60] sm:$0xf]
      %v317 = vld [vmem:[%s215 + $0x64] sm:$0xf]
      %v318 = vld [vmem:[%s215 + $0x68] sm:$0xf]
      %v319 = vld [vmem:[%s215 + $0x6c] sm:$0xf]
      %v320 = vld [vmem:[%s215 + $0x70] sm:$0xf]
      %v321 = vld [vmem:[%s215 + $0x74] sm:$0xf]
      %v322 = vld [vmem:[%s215 + $0x78] sm:$0xf]
      %v323 = vld [vmem:[%s215 + $0x7c] sm:$0xf]
      %v324 = vld [vmem:[%s218] sm:$0x1]
      %v326 = vperm.slane %v324, 0
      %v392 = vunpack.c.l.b16 %v228
      %v393 = vunpack.c.h.b16 %v228
      %v394 = vunpack.c.l.b16 %v229
      %v395 = vunpack.c.h.b16 %v229
      %v396 = vunpack.c.l.b16 %v230
      %v397 = vunpack.c.h.b16 %v230
      %v398 = vunpack.c.l.b16 %v231
      %v399 = vunpack.c.h.b16 %v231
      %v400 = vunpack.c.l.b16 %v232
      %v401 = vunpack.c.h.b16 %v232
      %v402 = vunpack.c.l.b16 %v233
      %v403 = vunpack.c.h.b16 %v233
      %v404 = vunpack.c.l.b16 %v234
      %v405 = vunpack.c.h.b16 %v234
      %v406 = vunpack.c.l.b16 %v235
      %v407 = vunpack.c.h.b16 %v235
      %v408 = vunpack.c.l.b16 %v236
      %v409 = vunpack.c.h.b16 %v236
      %v410 = vunpack.c.l.b16 %v237
      %v411 = vunpack.c.h.b16 %v237
      %v412 = vunpack.c.l.b16 %v238
      %v413 = vunpack.c.h.b16 %v238
      %v414 = vunpack.c.l.b16 %v239
      %v415 = vunpack.c.h.b16 %v239
      %v416 = vunpack.c.l.b16 %v240
      %v417 = vunpack.c.h.b16 %v240
      %v418 = vunpack.c.l.b16 %v241
      %v419 = vunpack.c.h.b16 %v241
      %v420 = vunpack.c.l.b16 %v242
      %v421 = vunpack.c.h.b16 %v242
      %v422 = vunpack.c.l.b16 %v243
      %v423 = vunpack.c.h.b16 %v243
      %v424 = vunpack.c.l.b16 %v244
      %v425 = vunpack.c.h.b16 %v244
      %v426 = vunpack.c.l.b16 %v245
      %v427 = vunpack.c.h.b16 %v245
      %v428 = vunpack.c.l.b16 %v246
      %v429 = vunpack.c.h.b16 %v246
      %v430 = vunpack.c.l.b16 %v247
      %v431 = vunpack.c.h.b16 %v247
      %v432 = vunpack.c.l.b16 %v248
      %v433 = vunpack.c.h.b16 %v248
      %v434 = vunpack.c.l.b16 %v249
      %v435 = vunpack.c.h.b16 %v249
      %v436 = vunpack.c.l.b16 %v250
      %v437 = vunpack.c.h.b16 %v250
      %v438 = vunpack.c.l.b16 %v251
      %v439 = vunpack.c.h.b16 %v251
      %v440 = vunpack.c.l.b16 %v252
      %v441 = vunpack.c.h.b16 %v252
      %v442 = vunpack.c.l.b16 %v253
      %v443 = vunpack.c.h.b16 %v253
      %v444 = vunpack.c.l.b16 %v254
      %v445 = vunpack.c.h.b16 %v254
      %v446 = vunpack.c.l.b16 %v255
      %v447 = vunpack.c.h.b16 %v255
      %v448 = vunpack.c.l.b16 %v256
      %v449 = vunpack.c.h.b16 %v256
      %v450 = vunpack.c.l.b16 %v257
      %v451 = vunpack.c.h.b16 %v257
      %v452 = vunpack.c.l.b16 %v258
      %v453 = vunpack.c.h.b16 %v258
      %v454 = vunpack.c.l.b16 %v259
      %v455 = vunpack.c.h.b16 %v259
      %v456 = vunpack.c.l.b16 %v260
      %v457 = vunpack.c.h.b16 %v260
      %v458 = vunpack.c.l.b16 %v261
      %v459 = vunpack.c.h.b16 %v261
      %v460 = vunpack.c.l.b16 %v262
      %v461 = vunpack.c.h.b16 %v262
      %v462 = vunpack.c.l.b16 %v263
      %v463 = vunpack.c.h.b16 %v263
      %v464 = vunpack.c.l.b16 %v264
      %v465 = vunpack.c.h.b16 %v264
      %v466 = vunpack.c.l.b16 %v265
      %v467 = vunpack.c.h.b16 %v265
      %v468 = vunpack.c.l.b16 %v266
      %v469 = vunpack.c.h.b16 %v266
      %v470 = vunpack.c.l.b16 %v267
      %v471 = vunpack.c.h.b16 %v267
      %v472 = vunpack.c.l.b16 %v268
      %v473 = vunpack.c.h.b16 %v268
      %v474 = vunpack.c.l.b16 %v269
      %v475 = vunpack.c.h.b16 %v269
      %v476 = vunpack.c.l.b16 %v270
      %v477 = vunpack.c.h.b16 %v270
      %v478 = vunpack.c.l.b16 %v271
      %v479 = vunpack.c.h.b16 %v271
      %v480 = vunpack.c.l.b16 %v272
      %v481 = vunpack.c.h.b16 %v272
      %v482 = vunpack.c.l.b16 %v273
      %v483 = vunpack.c.h.b16 %v273
      %v484 = vunpack.c.l.b16 %v274
      %v485 = vunpack.c.h.b16 %v274
      %v486 = vunpack.c.l.b16 %v275
      %v487 = vunpack.c.h.b16 %v275
      %v488 = vunpack.c.l.b16 %v276
      %v489 = vunpack.c.h.b16 %v276
      %v490 = vunpack.c.l.b16 %v277
      %v491 = vunpack.c.h.b16 %v277
      %v492 = vunpack.c.l.b16 %v278
      %v493 = vunpack.c.h.b16 %v278
      %v494 = vunpack.c.l.b16 %v279
      %v495 = vunpack.c.h.b16 %v279
      %v496 = vunpack.c.l.b16 %v280
      %v497 = vunpack.c.h.b16 %v280
      %v498 = vunpack.c.l.b16 %v281
      %v499 = vunpack.c.h.b16 %v281
      %v500 = vunpack.c.l.b16 %v282
      %v501 = vunpack.c.h.b16 %v282
      %v502 = vunpack.c.l.b16 %v283
      %v503 = vunpack.c.h.b16 %v283
      %v504 = vunpack.c.l.b16 %v284
      %v505 = vunpack.c.h.b16 %v284
      %v506 = vunpack.c.l.b16 %v285
      %v507 = vunpack.c.h.b16 %v285
      %v508 = vunpack.c.l.b16 %v286
      %v509 = vunpack.c.h.b16 %v286
      %v510 = vunpack.c.l.b16 %v287
      %v511 = vunpack.c.h.b16 %v287
      %v512 = vunpack.c.l.b16 %v288
      %v513 = vunpack.c.h.b16 %v288
      %v514 = vunpack.c.l.b16 %v289
      %v515 = vunpack.c.h.b16 %v289
      %v516 = vunpack.c.l.b16 %v290
      %v517 = vunpack.c.h.b16 %v290
      %v518 = vunpack.c.l.b16 %v291
      %v519 = vunpack.c.h.b16 %v291
      %v520 = vpack.c.b16 %v394, %v392
      %v521 = vpack.c.b16 %v395, %v393
      %v522 = vpack.c.b16 %v398, %v396
      %v523 = vpack.c.b16 %v399, %v397
      %v524 = vpack.c.b16 %v402, %v400
      %v525 = vpack.c.b16 %v403, %v401
      %v526 = vpack.c.b16 %v406, %v404
      %v527 = vpack.c.b16 %v407, %v405
      %v528 = vpack.c.b16 %v410, %v408
      %v529 = vpack.c.b16 %v411, %v409
      %v530 = vpack.c.b16 %v414, %v412
      %v531 = vpack.c.b16 %v415, %v413
      %v532 = vpack.c.b16 %v418, %v416
      %v533 = vpack.c.b16 %v419, %v417
      %v534 = vpack.c.b16 %v422, %v420
      %v535 = vpack.c.b16 %v423, %v421
      %v536 = vpack.c.b16 %v426, %v424
      %v537 = vpack.c.b16 %v427, %v425
      %v538 = vpack.c.b16 %v430, %v428
      %v539 = vpack.c.b16 %v431, %v429
      %v540 = vpack.c.b16 %v434, %v432
      %v541 = vpack.c.b16 %v435, %v433
      %v542 = vpack.c.b16 %v438, %v436
      %v543 = vpack.c.b16 %v439, %v437
      %v544 = vpack.c.b16 %v442, %v440
      %v545 = vpack.c.b16 %v443, %v441
      %v546 = vpack.c.b16 %v446, %v444
      %v547 = vpack.c.b16 %v447, %v445
      %v548 = vpack.c.b16 %v450, %v448
      %v549 = vpack.c.b16 %v451, %v449
      %v550 = vpack.c.b16 %v454, %v452
      %v551 = vpack.c.b16 %v455, %v453
      %v552 = vpack.c.b16 %v458, %v456
      %v553 = vpack.c.b16 %v459, %v457
      %v554 = vpack.c.b16 %v462, %v460
      %v555 = vpack.c.b16 %v463, %v461
      %v556 = vpack.c.b16 %v466, %v464
      %v557 = vpack.c.b16 %v467, %v465
      %v558 = vpack.c.b16 %v470, %v468
      %v559 = vpack.c.b16 %v471, %v469
      %v560 = vpack.c.b16 %v474, %v472
      %v561 = vpack.c.b16 %v475, %v473
      %v562 = vpack.c.b16 %v478, %v476
      %v563 = vpack.c.b16 %v479, %v477
      %v564 = vpack.c.b16 %v482, %v480
      %v565 = vpack.c.b16 %v483, %v481
      %v566 = vpack.c.b16 %v486, %v484
      %v567 = vpack.c.b16 %v487, %v485
      %v568 = vpack.c.b16 %v490, %v488
      %v569 = vpack.c.b16 %v491, %v489
      %v570 = vpack.c.b16 %v494, %v492
      %v571 = vpack.c.b16 %v495, %v493
      %v572 = vpack.c.b16 %v498, %v496
      %v573 = vpack.c.b16 %v499, %v497
      %v574 = vpack.c.b16 %v502, %v500
      %v575 = vpack.c.b16 %v503, %v501
      %v576 = vpack.c.b16 %v506, %v504
      %v577 = vpack.c.b16 %v507, %v505
      %v578 = vpack.c.b16 %v510, %v508
      %v579 = vpack.c.b16 %v511, %v509
      %v580 = vpack.c.b16 %v514, %v512
      %v581 = vpack.c.b16 %v515, %v513
      %v582 = vpack.c.b16 %v518, %v516
      %v583 = vpack.c.b16 %v519, %v517
      %v680 = vunpack.c.l.b16 %v292
      %v681 = vunpack.c.l.b16 %v293
      %v682 = vunpack.c.l.b16 %v294
      %v683 = vunpack.c.l.b16 %v295
      %v684 = vunpack.c.l.b16 %v296
      %v685 = vunpack.c.l.b16 %v297
      %v686 = vunpack.c.l.b16 %v298
      %v687 = vunpack.c.l.b16 %v299
      %v688 = vunpack.c.l.b16 %v300
      %v689 = vunpack.c.l.b16 %v301
      %v690 = vunpack.c.l.b16 %v302
      %v691 = vunpack.c.l.b16 %v303
      %v692 = vunpack.c.l.b16 %v304
      %v693 = vunpack.c.l.b16 %v305
      %v694 = vunpack.c.l.b16 %v306
      %v695 = vunpack.c.l.b16 %v307
      %v696 = vunpack.c.l.b16 %v308
      %v697 = vunpack.c.l.b16 %v309
      %v698 = vunpack.c.l.b16 %v310
      %v699 = vunpack.c.l.b16 %v311
      %v700 = vunpack.c.l.b16 %v312
      %v701 = vunpack.c.l.b16 %v313
      %v702 = vunpack.c.l.b16 %v314
      %v703 = vunpack.c.l.b16 %v315
      %v704 = vunpack.c.l.b16 %v316
      %v705 = vunpack.c.l.b16 %v317
      %v706 = vunpack.c.l.b16 %v318
      %v707 = vunpack.c.l.b16 %v319
      %v708 = vunpack.c.l.b16 %v320
      %v709 = vunpack.c.l.b16 %v321
      %v710 = vunpack.c.l.b16 %v322
      %v711 = vunpack.c.l.b16 %v323
      %v712 = vpack.c.b16 %v681, %v680
      %v713 = vpack.c.b16 %v683, %v682
      %v714 = vpack.c.b16 %v685, %v684
      %v715 = vpack.c.b16 %v687, %v686
      %v716 = vpack.c.b16 %v689, %v688
      %v717 = vpack.c.b16 %v691, %v690
      %v718 = vpack.c.b16 %v693, %v692
      %v719 = vpack.c.b16 %v695, %v694
      %v720 = vpack.c.b16 %v697, %v696
      %v721 = vpack.c.b16 %v699, %v698
      %v722 = vpack.c.b16 %v701, %v700
      %v723 = vpack.c.b16 %v703, %v702
      %v724 = vpack.c.b16 %v705, %v704
      %v725 = vpack.c.b16 %v707, %v706
      %v726 = vpack.c.b16 %v709, %v708
      %v727 = vpack.c.b16 %v711, %v710
      %744 = vmatpush.bf16.msra.mxu0 %v719
      %745 = vmatpush.bf16.msra.mxu0 %v718
      %746 = vmatpush.bf16.msra.mxu0 %v717
      %747 = vmatpush.bf16.msra.mxu0 %v716
      %748 = vmatpush.bf16.msra.mxu0 %v715
      %749 = vmatpush.bf16.msra.mxu0 %v714
      %750 = vmatpush.bf16.msra.mxu0 %v713
      %751 = vmatpush.bf16.msra.mxu0 %v712
      %752 = vmatmul.bf16.gmra.mxu0 %v520
      %v753 = vpop.f32.mrf.mxu0
      %v754 = vadd.f32 %v326, %v753
      %v755 = vpop.f32.mrf.mxu0
      %v756 = vadd.f32 %v326, %v755
      %757 = vmatmul.bf16.gmra.mxu0 %v522
      %v758 = vpop.f32.mrf.mxu0
      %v759 = vadd.f32 %v326, %v758
      %v760 = vpop.f32.mrf.mxu0
      %v761 = vadd.f32 %v326, %v760
      %762 = vmatmul.bf16.gmra.mxu0 %v524
      %v763 = vpop.f32.mrf.mxu0
      %v764 = vadd.f32 %v326, %v763
      %v765 = vpop.f32.mrf.mxu0
      %v766 = vadd.f32 %v326, %v765
      %767 = vmatmul.bf16.gmra.mxu0 %v526
      %v768 = vpop.f32.mrf.mxu0
      %v769 = vadd.f32 %v326, %v768
      %v770 = vpop.f32.mrf.mxu0
      %v771 = vadd.f32 %v326, %v770
      %772 = vmatmul.bf16.gmra.mxu0 %v528
      %v773 = vpop.f32.mrf.mxu0
      %v774 = vadd.f32 %v326, %v773
      %v775 = vpop.f32.mrf.mxu0
      %v776 = vadd.f32 %v326, %v775
      %777 = vmatmul.bf16.gmra.mxu0 %v530
      %v778 = vpop.f32.mrf.mxu0
      %v779 = vadd.f32 %v326, %v778
      %v780 = vpop.f32.mrf.mxu0
      %v781 = vadd.f32 %v326, %v780
      %782 = vmatmul.bf16.gmra.mxu0 %v532
      %v783 = vpop.f32.mrf.mxu0
      %v784 = vadd.f32 %v326, %v783
      %v785 = vpop.f32.mrf.mxu0
      %v786 = vadd.f32 %v326, %v785
      %787 = vmatmul.bf16.gmra.mxu0 %v534
      %v788 = vpop.f32.mrf.mxu0
      %v789 = vadd.f32 %v326, %v788
      %v790 = vpop.f32.mrf.mxu0
      %v791 = vadd.f32 %v326, %v790
      %792 = vmatmul.bf16.gmra.mxu0 %v536
      %v793 = vpop.f32.mrf.mxu0
      %v794 = vadd.f32 %v326, %v793
      %v795 = vpop.f32.mrf.mxu0
      %v796 = vadd.f32 %v326, %v795
      %797 = vmatmul.bf16.gmra.mxu0 %v538
      %v798 = vpop.f32.mrf.mxu0
      %v799 = vadd.f32 %v326, %v798
      %v800 = vpop.f32.mrf.mxu0
      %v801 = vadd.f32 %v326, %v800
      %802 = vmatmul.bf16.gmra.mxu0 %v540
      %v803 = vpop.f32.mrf.mxu0
      %v804 = vadd.f32 %v326, %v803
      %v805 = vpop.f32.mrf.mxu0
      %v806 = vadd.f32 %v326, %v805
      %807 = vmatmul.bf16.gmra.mxu0 %v542
      %v808 = vpop.f32.mrf.mxu0
      %v809 = vadd.f32 %v326, %v808
      %v810 = vpop.f32.mrf.mxu0
      %v811 = vadd.f32 %v326, %v810
      %812 = vmatmul.bf16.gmra.mxu0 %v544
      %v813 = vpop.f32.mrf.mxu0
      %v814 = vadd.f32 %v326, %v813
      %v815 = vpop.f32.mrf.mxu0
      %v816 = vadd.f32 %v326, %v815
      %817 = vmatmul.bf16.gmra.mxu0 %v546
      %v818 = vpop.f32.mrf.mxu0
      %v819 = vadd.f32 %v326, %v818
      %v820 = vpop.f32.mrf.mxu0
      %v821 = vadd.f32 %v326, %v820
      %822 = vmatmul.bf16.gmra.mxu0 %v548
      %v823 = vpop.f32.mrf.mxu0
      %v824 = vadd.f32 %v326, %v823
      %v825 = vpop.f32.mrf.mxu0
      %v826 = vadd.f32 %v326, %v825
      %827 = vmatmul.bf16.gmra.mxu0 %v550
      %v828 = vpop.f32.mrf.mxu0
      %v829 = vadd.f32 %v326, %v828
      %v830 = vpop.f32.mrf.mxu0
      %v831 = vadd.f32 %v326, %v830
      %832 = vmatmul.bf16.gmra.mxu0 %v552
      %v833 = vpop.f32.mrf.mxu0
      %v834 = vadd.f32 %v326, %v833
      %v835 = vpop.f32.mrf.mxu0
      %v836 = vadd.f32 %v326, %v835
      %837 = vmatmul.bf16.gmra.mxu0 %v554
      %v838 = vpop.f32.mrf.mxu0
      %v839 = vadd.f32 %v326, %v838
      %v840 = vpop.f32.mrf.mxu0
      %v841 = vadd.f32 %v326, %v840
      %842 = vmatmul.bf16.gmra.mxu0 %v556
      %v843 = vpop.f32.mrf.mxu0
      %v844 = vadd.f32 %v326, %v843
      %v845 = vpop.f32.mrf.mxu0
      %v846 = vadd.f32 %v326, %v845
      %847 = vmatmul.bf16.gmra.mxu0 %v558
      %v848 = vpop.f32.mrf.mxu0
      %v849 = vadd.f32 %v326, %v848
      %v850 = vpop.f32.mrf.mxu0
      %v851 = vadd.f32 %v326, %v850
      %852 = vmatmul.bf16.gmra.mxu0 %v560
      %v853 = vpop.f32.mrf.mxu0
      %v854 = vadd.f32 %v326, %v853
      %v855 = vpop.f32.mrf.mxu0
      %v856 = vadd.f32 %v326, %v855
      %857 = vmatmul.bf16.gmra.mxu0 %v562
      %v858 = vpop.f32.mrf.mxu0
      %v859 = vadd.f32 %v326, %v858
      %v860 = vpop.f32.mrf.mxu0
      %v861 = vadd.f32 %v326, %v860
      %862 = vmatmul.bf16.gmra.mxu0 %v564
      %v863 = vpop.f32.mrf.mxu0
      %v864 = vadd.f32 %v326, %v863
      %v865 = vpop.f32.mrf.mxu0
      %v866 = vadd.f32 %v326, %v865
      %867 = vmatmul.bf16.gmra.mxu0 %v566
      %v868 = vpop.f32.mrf.mxu0
      %v869 = vadd.f32 %v326, %v868
      %v870 = vpop.f32.mrf.mxu0
      %v871 = vadd.f32 %v326, %v870
      %872 = vmatmul.bf16.gmra.mxu0 %v568
      %v873 = vpop.f32.mrf.mxu0
      %v874 = vadd.f32 %v326, %v873
      %v875 = vpop.f32.mrf.mxu0
      %v876 = vadd.f32 %v326, %v875
      %877 = vmatmul.bf16.gmra.mxu0 %v570
      %v878 = vpop.f32.mrf.mxu0
      %v879 = vadd.f32 %v326, %v878
      %v880 = vpop.f32.mrf.mxu0
      %v881 = vadd.f32 %v326, %v880
      %882 = vmatmul.bf16.gmra.mxu0 %v572
      %v883 = vpop.f32.mrf.mxu0
      %v884 = vadd.f32 %v326, %v883
      %v885 = vpop.f32.mrf.mxu0
      %v886 = vadd.f32 %v326, %v885
      %887 = vmatmul.bf16.gmra.mxu0 %v574
      %v888 = vpop.f32.mrf.mxu0
      %v889 = vadd.f32 %v326, %v888
      %v890 = vpop.f32.mrf.mxu0
      %v891 = vadd.f32 %v326, %v890
      %892 = vmatmul.bf16.gmra.mxu0 %v576
      %v893 = vpop.f32.mrf.mxu0
      %v894 = vadd.f32 %v326, %v893
      %v895 = vpop.f32.mrf.mxu0
      %v896 = vadd.f32 %v326, %v895
      %897 = vmatmul.bf16.gmra.mxu0 %v578
      %v898 = vpop.f32.mrf.mxu0
      %v899 = vadd.f32 %v326, %v898
      %v900 = vpop.f32.mrf.mxu0
      %v901 = vadd.f32 %v326, %v900
      %902 = vmatmul.bf16.gmra.mxu0 %v580
      %v903 = vpop.f32.mrf.mxu0
      %v904 = vadd.f32 %v326, %v903
      %v905 = vpop.f32.mrf.mxu0
      %v906 = vadd.f32 %v326, %v905
      %907 = vmatmul.bf16.gmra.mxu0 %v582
      %v908 = vpop.f32.mrf.mxu0
      %v909 = vadd.f32 %v326, %v908
      %v910 = vpop.f32.mrf.mxu0
      %v911 = vadd.f32 %v326, %v910
      %912 = vdwg.mxu0
      %913 = vmatpush.bf16.msra.mxu0 %v727
      %914 = vmatpush.bf16.msra.mxu0 %v726
      %915 = vmatpush.bf16.msra.mxu0 %v725
      %916 = vmatpush.bf16.msra.mxu0 %v724
      %917 = vmatpush.bf16.msra.mxu0 %v723
      %918 = vmatpush.bf16.msra.mxu0 %v722
      %919 = vmatpush.bf16.msra.mxu0 %v721
      %920 = vmatpush.bf16.msra.mxu0 %v720
      %921 = vmatmul.bf16.gmra.mxu0 %v521
      %v922 = vpop.f32.mrf.mxu0
      %v923 = vadd.f32 %v754, %v922
      %v924 = vpop.f32.mrf.mxu0
      %v925 = vadd.f32 %v756, %v924
      %926 = vmatmul.bf16.gmra.mxu0 %v523
      %v927 = vpop.f32.mrf.mxu0
      %v928 = vadd.f32 %v759, %v927
      %v929 = vpop.f32.mrf.mxu0
      %v930 = vadd.f32 %v761, %v929
      %931 = vmatmul.bf16.gmra.mxu0 %v525
      %v932 = vpop.f32.mrf.mxu0
      %v933 = vadd.f32 %v764, %v932
      %v934 = vpop.f32.mrf.mxu0
      %v935 = vadd.f32 %v766, %v934
      %936 = vmatmul.bf16.gmra.mxu0 %v527
      %v937 = vpop.f32.mrf.mxu0
      %v938 = vadd.f32 %v769, %v937
      %v939 = vpop.f32.mrf.mxu0
      %v940 = vadd.f32 %v771, %v939
      %941 = vmatmul.bf16.gmra.mxu0 %v529
      %v942 = vpop.f32.mrf.mxu0
      %v943 = vadd.f32 %v774, %v942
      %v944 = vpop.f32.mrf.mxu0
      %v945 = vadd.f32 %v776, %v944
      %946 = vmatmul.bf16.gmra.mxu0 %v531
      %v947 = vpop.f32.mrf.mxu0
      %v948 = vadd.f32 %v779, %v947
      %v949 = vpop.f32.mrf.mxu0
      %v950 = vadd.f32 %v781, %v949
      %951 = vmatmul.bf16.gmra.mxu0 %v533
      %v952 = vpop.f32.mrf.mxu0
      %v953 = vadd.f32 %v784, %v952
      %v954 = vpop.f32.mrf.mxu0
      %v955 = vadd.f32 %v786, %v954
      %956 = vmatmul.bf16.gmra.mxu0 %v535
      %v957 = vpop.f32.mrf.mxu0
      %v958 = vadd.f32 %v789, %v957
      %v959 = vpop.f32.mrf.mxu0
      %v960 = vadd.f32 %v791, %v959
      %961 = vmatmul.bf16.gmra.mxu0 %v537
      %v962 = vpop.f32.mrf.mxu0
      %v963 = vadd.f32 %v794, %v962
      %v964 = vpop.f32.mrf.mxu0
      %v965 = vadd.f32 %v796, %v964
      %966 = vmatmul.bf16.gmra.mxu0 %v539
      %v967 = vpop.f32.mrf.mxu0
      %v968 = vadd.f32 %v799, %v967
      %v969 = vpop.f32.mrf.mxu0
      %v970 = vadd.f32 %v801, %v969
      %971 = vmatmul.bf16.gmra.mxu0 %v541
      %v972 = vpop.f32.mrf.mxu0
      %v973 = vadd.f32 %v804, %v972
      %v974 = vpop.f32.mrf.mxu0
      %v975 = vadd.f32 %v806, %v974
      %976 = vmatmul.bf16.gmra.mxu0 %v543
      %v977 = vpop.f32.mrf.mxu0
      %v978 = vadd.f32 %v809, %v977
      %v979 = vpop.f32.mrf.mxu0
      %v980 = vadd.f32 %v811, %v979
      %981 = vmatmul.bf16.gmra.mxu0 %v545
      %v982 = vpop.f32.mrf.mxu0
      %v983 = vadd.f32 %v814, %v982
      %v984 = vpop.f32.mrf.mxu0
      %v985 = vadd.f32 %v816, %v984
      %986 = vmatmul.bf16.gmra.mxu0 %v547
      %v987 = vpop.f32.mrf.mxu0
      %v988 = vadd.f32 %v819, %v987
      %v989 = vpop.f32.mrf.mxu0
      %v990 = vadd.f32 %v821, %v989
      %991 = vmatmul.bf16.gmra.mxu0 %v549
      %v992 = vpop.f32.mrf.mxu0
      %v993 = vadd.f32 %v824, %v992
      %v994 = vpop.f32.mrf.mxu0
      %v995 = vadd.f32 %v826, %v994
      %996 = vmatmul.bf16.gmra.mxu0 %v551
      %v997 = vpop.f32.mrf.mxu0
      %v998 = vadd.f32 %v829, %v997
      %v999 = vpop.f32.mrf.mxu0
      %v1000 = vadd.f32 %v831, %v999
      %1001 = vmatmul.bf16.gmra.mxu0 %v553
      %v1002 = vpop.f32.mrf.mxu0
      %v1003 = vadd.f32 %v834, %v1002
      %v1004 = vpop.f32.mrf.mxu0
      %v1005 = vadd.f32 %v836, %v1004
      %1006 = vmatmul.bf16.gmra.mxu0 %v555
      %v1007 = vpop.f32.mrf.mxu0
      %v1008 = vadd.f32 %v839, %v1007
      %v1009 = vpop.f32.mrf.mxu0
      %v1010 = vadd.f32 %v841, %v1009
      %1011 = vmatmul.bf16.gmra.mxu0 %v557
      %v1012 = vpop.f32.mrf.mxu0
      %v1013 = vadd.f32 %v844, %v1012
      %v1014 = vpop.f32.mrf.mxu0
      %v1015 = vadd.f32 %v846, %v1014
      %1016 = vmatmul.bf16.gmra.mxu0 %v559
      %v1017 = vpop.f32.mrf.mxu0
      %v1018 = vadd.f32 %v849, %v1017
      %v1019 = vpop.f32.mrf.mxu0
      %v1020 = vadd.f32 %v851, %v1019
      %1021 = vmatmul.bf16.gmra.mxu0 %v561
      %v1022 = vpop.f32.mrf.mxu0
      %v1023 = vadd.f32 %v854, %v1022
      %v1024 = vpop.f32.mrf.mxu0
      %v1025 = vadd.f32 %v856, %v1024
      %1026 = vmatmul.bf16.gmra.mxu0 %v563
      %v1027 = vpop.f32.mrf.mxu0
      %v1028 = vadd.f32 %v859, %v1027
      %v1029 = vpop.f32.mrf.mxu0
      %v1030 = vadd.f32 %v861, %v1029
      %1031 = vmatmul.bf16.gmra.mxu0 %v565
      %v1032 = vpop.f32.mrf.mxu0
      %v1033 = vadd.f32 %v864, %v1032
      %v1034 = vpop.f32.mrf.mxu0
      %v1035 = vadd.f32 %v866, %v1034
      %1036 = vmatmul.bf16.gmra.mxu0 %v567
      %v1037 = vpop.f32.mrf.mxu0
      %v1038 = vadd.f32 %v869, %v1037
      %v1039 = vpop.f32.mrf.mxu0
      %v1040 = vadd.f32 %v871, %v1039
      %1041 = vmatmul.bf16.gmra.mxu0 %v569
      %v1042 = vpop.f32.mrf.mxu0
      %v1043 = vadd.f32 %v874, %v1042
      %v1044 = vpop.f32.mrf.mxu0
      %v1045 = vadd.f32 %v876, %v1044
      %1046 = vmatmul.bf16.gmra.mxu0 %v571
      %v1047 = vpop.f32.mrf.mxu0
      %v1048 = vadd.f32 %v879, %v1047
      %v1049 = vpop.f32.mrf.mxu0
      %v1050 = vadd.f32 %v881, %v1049
      %1051 = vmatmul.bf16.gmra.mxu0 %v573
      %v1052 = vpop.f32.mrf.mxu0
      %v1053 = vadd.f32 %v884, %v1052
      %v1054 = vpop.f32.mrf.mxu0
      %v1055 = vadd.f32 %v886, %v1054
      %1056 = vmatmul.bf16.gmra.mxu0 %v575
      %v1057 = vpop.f32.mrf.mxu0
      %v1058 = vadd.f32 %v889, %v1057
      %v1059 = vpop.f32.mrf.mxu0
      %v1060 = vadd.f32 %v891, %v1059
      %1061 = vmatmul.bf16.gmra.mxu0 %v577
      %v1062 = vpop.f32.mrf.mxu0
      %v1063 = vadd.f32 %v894, %v1062
      %v1064 = vpop.f32.mrf.mxu0
      %v1065 = vadd.f32 %v896, %v1064
      %1066 = vmatmul.bf16.gmra.mxu0 %v579
      %v1067 = vpop.f32.mrf.mxu0
      %v1068 = vadd.f32 %v899, %v1067
      %v1069 = vpop.f32.mrf.mxu0
      %v1070 = vadd.f32 %v901, %v1069
      %1071 = vmatmul.bf16.gmra.mxu0 %v581
      %v1072 = vpop.f32.mrf.mxu0
      %v1073 = vadd.f32 %v904, %v1072
      %v1074 = vpop.f32.mrf.mxu0
      %v1075 = vadd.f32 %v906, %v1074
      %1076 = vmatmul.bf16.gmra.mxu0 %v583
      %v1077 = vpop.f32.mrf.mxu0
      %v1078 = vadd.f32 %v909, %v1077
      %v1079 = vpop.f32.mrf.mxu0
      %v1080 = vadd.f32 %v911, %v1079
      %1081 = vdwg.mxu0
      %v1082 = vmax.f32 %v923, 0.0
      %v1083 = vmax.f32 %v925, 0.0
      %v1084 = vmax.f32 %v928, 0.0
      %v1085 = vmax.f32 %v930, 0.0
      %v1086 = vmax.f32 %v933, 0.0
      %v1087 = vmax.f32 %v935, 0.0
      %v1088 = vmax.f32 %v938, 0.0
      %v1089 = vmax.f32 %v940, 0.0
      %v1090 = vmax.f32 %v943, 0.0
      %v1091 = vmax.f32 %v945, 0.0
      %v1092 = vmax.f32 %v948, 0.0
      %v1093 = vmax.f32 %v950, 0.0
      %v1094 = vmax.f32 %v953, 0.0
      %v1095 = vmax.f32 %v955, 0.0
      %v1096 = vmax.f32 %v958, 0.0
      %v1097 = vmax.f32 %v960, 0.0
      %v1098 = vmax.f32 %v963, 0.0
      %v1099 = vmax.f32 %v965, 0.0
      %v1100 = vmax.f32 %v968, 0.0
      %v1101 = vmax.f32 %v970, 0.0
      %v1102 = vmax.f32 %v973, 0.0
      %v1103 = vmax.f32 %v975, 0.0
      %v1104 = vmax.f32 %v978, 0.0
      %v1105 = vmax.f32 %v980, 0.0
      %v1106 = vmax.f32 %v983, 0.0
      %v1107 = vmax.f32 %v985, 0.0
      %v1108 = vmax.f32 %v988, 0.0
      %v1109 = vmax.f32 %v990, 0.0
      %v1110 = vmax.f32 %v993, 0.0
      %v1111 = vmax.f32 %v995, 0.0
      %v1112 = vmax.f32 %v998, 0.0
      %v1113 = vmax.f32 %v1000, 0.0
      %v1114 = vmax.f32 %v1003, 0.0
      %v1115 = vmax.f32 %v1005, 0.0
      %v1116 = vmax.f32 %v1008, 0.0
      %v1117 = vmax.f32 %v1010, 0.0
      %v1118 = vmax.f32 %v1013, 0.0
      %v1119 = vmax.f32 %v1015, 0.0
      %v1120 = vmax.f32 %v1018, 0.0
      %v1121 = vmax.f32 %v1020, 0.0
      %v1122 = vmax.f32 %v1023, 0.0
      %v1123 = vmax.f32 %v1025, 0.0
      %v1124 = vmax.f32 %v1028, 0.0
      %v1125 = vmax.f32 %v1030, 0.0
      %v1126 = vmax.f32 %v1033, 0.0
      %v1127 = vmax.f32 %v1035, 0.0
      %v1128 = vmax.f32 %v1038, 0.0
      %v1129 = vmax.f32 %v1040, 0.0
      %v1130 = vmax.f32 %v1043, 0.0
      %v1131 = vmax.f32 %v1045, 0.0
      %v1132 = vmax.f32 %v1048, 0.0
      %v1133 = vmax.f32 %v1050, 0.0
      %v1134 = vmax.f32 %v1053, 0.0
      %v1135 = vmax.f32 %v1055, 0.0
      %v1136 = vmax.f32 %v1058, 0.0
      %v1137 = vmax.f32 %v1060, 0.0
      %v1138 = vmax.f32 %v1063, 0.0
      %v1139 = vmax.f32 %v1065, 0.0
      %v1140 = vmax.f32 %v1068, 0.0
      %v1141 = vmax.f32 %v1070, 0.0
      %v1142 = vmax.f32 %v1073, 0.0
      %v1143 = vmax.f32 %v1075, 0.0
      %v1144 = vmax.f32 %v1078, 0.0
      %v1145 = vmax.f32 %v1080, 0.0
      %v1146 = vpack.c.bf16 %v1082, %v1082
      %v1147 = vpack.c.bf16 %v1083, %v1083
      %v1148 = vpack.c.bf16 %v1084, %v1084
      %v1149 = vpack.c.bf16 %v1085, %v1085
      %v1150 = vpack.c.bf16 %v1086, %v1086
      %v1151 = vpack.c.bf16 %v1087, %v1087
      %v1152 = vpack.c.bf16 %v1088, %v1088
      %v1153 = vpack.c.bf16 %v1089, %v1089
      %v1154 = vpack.c.bf16 %v1090, %v1090
      %v1155 = vpack.c.bf16 %v1091, %v1091
      %v1156 = vpack.c.bf16 %v1092, %v1092
      %v1157 = vpack.c.bf16 %v1093, %v1093
      %v1158 = vpack.c.bf16 %v1094, %v1094
      %v1159 = vpack.c.bf16 %v1095, %v1095
      %v1160 = vpack.c.bf16 %v1096, %v1096
      %v1161 = vpack.c.bf16 %v1097, %v1097
      %v1162 = vpack.c.bf16 %v1098, %v1098
      %v1163 = vpack.c.bf16 %v1099, %v1099
      %v1164 = vpack.c.bf16 %v1100, %v1100
      %v1165 = vpack.c.bf16 %v1101, %v1101
      %v1166 = vpack.c.bf16 %v1102, %v1102
      %v1167 = vpack.c.bf16 %v1103, %v1103
      %v1168 = vpack.c.bf16 %v1104, %v1104
      %v1169 = vpack.c.bf16 %v1105, %v1105
      %v1170 = vpack.c.bf16 %v1106, %v1106
      %v1171 = vpack.c.bf16 %v1107, %v1107
      %v1172 = vpack.c.bf16 %v1108, %v1108
      %v1173 = vpack.c.bf16 %v1109, %v1109
      %v1174 = vpack.c.bf16 %v1110, %v1110
      %v1175 = vpack.c.bf16 %v1111, %v1111
      %v1176 = vpack.c.bf16 %v1112, %v1112
      %v1177 = vpack.c.bf16 %v1113, %v1113
      %v1178 = vpack.c.bf16 %v1114, %v1114
      %v1179 = vpack.c.bf16 %v1115, %v1115
      %v1180 = vpack.c.bf16 %v1116, %v1116
      %v1181 = vpack.c.bf16 %v1117, %v1117
      %v1182 = vpack.c.bf16 %v1118, %v1118
      %v1183 = vpack.c.bf16 %v1119, %v1119
      %v1184 = vpack.c.bf16 %v1120, %v1120
      %v1185 = vpack.c.bf16 %v1121, %v1121
      %v1186 = vpack.c.bf16 %v1122, %v1122
      %v1187 = vpack.c.bf16 %v1123, %v1123
      %v1188 = vpack.c.bf16 %v1124, %v1124
      %v1189 = vpack.c.bf16 %v1125, %v1125
      %v1190 = vpack.c.bf16 %v1126, %v1126
      %v1191 = vpack.c.bf16 %v1127, %v1127
      %v1192 = vpack.c.bf16 %v1128, %v1128
      %v1193 = vpack.c.bf16 %v1129, %v1129
      %v1194 = vpack.c.bf16 %v1130, %v1130
      %v1195 = vpack.c.bf16 %v1131, %v1131
      %v1196 = vpack.c.bf16 %v1132, %v1132
      %v1197 = vpack.c.bf16 %v1133, %v1133
      %v1198 = vpack.c.bf16 %v1134, %v1134
      %v1199 = vpack.c.bf16 %v1135, %v1135
      %v1200 = vpack.c.bf16 %v1136, %v1136
      %v1201 = vpack.c.bf16 %v1137, %v1137
      %v1202 = vpack.c.bf16 %v1138, %v1138
      %v1203 = vpack.c.bf16 %v1139, %v1139
      %v1204 = vpack.c.bf16 %v1140, %v1140
      %v1205 = vpack.c.bf16 %v1141, %v1141
      %v1206 = vpack.c.bf16 %v1142, %v1142
      %v1207 = vpack.c.bf16 %v1143, %v1143
      %v1208 = vpack.c.bf16 %v1144, %v1144
      %v1209 = vpack.c.bf16 %v1145, %v1145
      %vm1210 = vcmask 519168
      %1211 = vst.msk [vmem:[%s226] sm:$0xf] %vm1210, %v1146
      %1212 = vst.msk [vmem:[%s226 + $0x4] sm:$0xf] %vm1210, %v1147
      %1213 = vst.msk [vmem:[%s226 + $0x8] sm:$0xf] %vm1210, %v1148
      %1214 = vst.msk [vmem:[%s226 + $0xc] sm:$0xf] %vm1210, %v1149
      %1215 = vst.msk [vmem:[%s226 + $0x10] sm:$0xf] %vm1210, %v1150
      %1216 = vst.msk [vmem:[%s226 + $0x14] sm:$0xf] %vm1210, %v1151
      %1217 = vst.msk [vmem:[%s226 + $0x18] sm:$0xf] %vm1210, %v1152
      %1218 = vst.msk [vmem:[%s226 + $0x1c] sm:$0xf] %vm1210, %v1153
      %1219 = vst.msk [vmem:[%s226 + $0x20] sm:$0xf] %vm1210, %v1154
      %1220 = vst.msk [vmem:[%s226 + $0x24] sm:$0xf] %vm1210, %v1155
      %1221 = vst.msk [vmem:[%s226 + $0x28] sm:$0xf] %vm1210, %v1156
      %1222 = vst.msk [vmem:[%s226 + $0x2c] sm:$0xf] %vm1210, %v1157
      %1223 = vst.msk [vmem:[%s226 + $0x30] sm:$0xf] %vm1210, %v1158
      %1224 = vst.msk [vmem:[%s226 + $0x34] sm:$0xf] %vm1210, %v1159
      %1225 = vst.msk [vmem:[%s226 + $0x38] sm:$0xf] %vm1210, %v1160
      %1226 = vst.msk [vmem:[%s226 + $0x3c] sm:$0xf] %vm1210, %v1161
      %1227 = vst.msk [vmem:[%s226 + $0x40] sm:$0xf] %vm1210, %v1162
      %1228 = vst.msk [vmem:[%s226 + $0x44] sm:$0xf] %vm1210, %v1163
      %1229 = vst.msk [vmem:[%s226 + $0x48] sm:$0xf] %vm1210, %v1164
      %1230 = vst.msk [vmem:[%s226 + $0x4c] sm:$0xf] %vm1210, %v1165
      %1231 = vst.msk [vmem:[%s226 + $0x50] sm:$0xf] %vm1210, %v1166
      %1232 = vst.msk [vmem:[%s226 + $0x54] sm:$0xf] %vm1210, %v1167
      %1233 = vst.msk [vmem:[%s226 + $0x58] sm:$0xf] %vm1210, %v1168
      %1234 = vst.msk [vmem:[%s226 + $0x5c] sm:$0xf] %vm1210, %v1169
      %1235 = vst.msk [vmem:[%s226 + $0x60] sm:$0xf] %vm1210, %v1170
      %1236 = vst.msk [vmem:[%s226 + $0x64] sm:$0xf] %vm1210, %v1171
      %1237 = vst.msk [vmem:[%s226 + $0x68] sm:$0xf] %vm1210, %v1172
      %1238 = vst.msk [vmem:[%s226 + $0x6c] sm:$0xf] %vm1210, %v1173
      %1239 = vst.msk [vmem:[%s226 + $0x70] sm:$0xf] %vm1210, %v1174
      %1240 = vst.msk [vmem:[%s226 + $0x74] sm:$0xf] %vm1210, %v1175
      %1241 = vst.msk [vmem:[%s226 + $0x78] sm:$0xf] %vm1210, %v1176
      %1242 = vst.msk [vmem:[%s226 + $0x7c] sm:$0xf] %vm1210, %v1177
      %1243 = vst.msk [vmem:[%s226 + $0x80] sm:$0xf] %vm1210, %v1178
      %1244 = vst.msk [vmem:[%s226 + $0x84] sm:$0xf] %vm1210, %v1179
      %1245 = vst.msk [vmem:[%s226 + $0x88] sm:$0xf] %vm1210, %v1180
      %1246 = vst.msk [vmem:[%s226 + $0x8c] sm:$0xf] %vm1210, %v1181
      %1247 = vst.msk [vmem:[%s226 + $0x90] sm:$0xf] %vm1210, %v1182
      %1248 = vst.msk [vmem:[%s226 + $0x94] sm:$0xf] %vm1210, %v1183
      %1249 = vst.msk [vmem:[%s226 + $0x98] sm:$0xf] %vm1210, %v1184
      %1250 = vst.msk [vmem:[%s226 + $0x9c] sm:$0xf] %vm1210, %v1185
      %1251 = vst.msk [vmem:[%s226 + $0xa0] sm:$0xf] %vm1210, %v1186
      %1252 = vst.msk [vmem:[%s226 + $0xa4] sm:$0xf] %vm1210, %v1187
      %1253 = vst.msk [vmem:[%s226 + $0xa8] sm:$0xf] %vm1210, %v1188
      %1254 = vst.msk [vmem:[%s226 + $0xac] sm:$0xf] %vm1210, %v1189
      %1255 = vst.msk [vmem:[%s226 + $0xb0] sm:$0xf] %vm1210, %v1190
      %1256 = vst.msk [vmem:[%s226 + $0xb4] sm:$0xf] %vm1210, %v1191
      %1257 = vst.msk [vmem:[%s226 + $0xb8] sm:$0xf] %vm1210, %v1192
      %1258 = vst.msk [vmem:[%s226 + $0xbc] sm:$0xf] %vm1210, %v1193
      %1259 = vst.msk [vmem:[%s226 + $0xc0] sm:$0xf] %vm1210, %v1194
      %1260 = vst.msk [vmem:[%s226 + $0xc4] sm:$0xf] %vm1210, %v1195
      %1261 = vst.msk [vmem:[%s226 + $0xc8] sm:$0xf] %vm1210, %v1196
      %1262 = vst.msk [vmem:[%s226 + $0xcc] sm:$0xf] %vm1210, %v1197
      %1263 = vst.msk [vmem:[%s226 + $0xd0] sm:$0xf] %vm1210, %v1198
      %1264 = vst.msk [vmem:[%s226 + $0xd4] sm:$0xf] %vm1210, %v1199
      %1265 = vst.msk [vmem:[%s226 + $0xd8] sm:$0xf] %vm1210, %v1200
      %1266 = vst.msk [vmem:[%s226 + $0xdc] sm:$0xf] %vm1210, %v1201
      %1267 = vst.msk [vmem:[%s226 + $0xe0] sm:$0xf] %vm1210, %v1202
      %1268 = vst.msk [vmem:[%s226 + $0xe4] sm:$0xf] %vm1210, %v1203
      %1269 = vst.msk [vmem:[%s226 + $0xe8] sm:$0xf] %vm1210, %v1204
      %1270 = vst.msk [vmem:[%s226 + $0xec] sm:$0xf] %vm1210, %v1205
      %1271 = vst.msk [vmem:[%s226 + $0xf0] sm:$0xf] %vm1210, %v1206
      %1272 = vst.msk [vmem:[%s226 + $0xf4] sm:$0xf] %vm1210, %v1207
      %1273 = vst.msk [vmem:[%s226 + $0xf8] sm:$0xf] %vm1210, %v1208
      %1274 = vst.msk [vmem:[%s226 + $0xfc] sm:$0xf] %vm1210, %v1209
      %s1275 = smul.u32 64, %s18
      %p1276 = scmp.lt.s32.totalorder %s1275, 255
      %s1277 = scalar_select %p1276, %s1275, 255
      %p1278 = scmp.lt.s32.totalorder %s19, 0
      %s1279 = scalar_select %p1278, %s19, 0
      %s1280 = sadd.s32 %s1279, %s1277
      %s1281 = smul.addr %s1280, 4
      %s1282 = scalar_lea.vmem %s3, %s1281
      // Predicated region
      $region33: #{front_fn.5} parent=31 // pred_check
        %p1283 = pneg %p124
      $region34: #{front_fn.5} parent=31 // pred_check_branch
        %1285 = sbr.rel (%p1283) target = $region36
      $region35: #{front_fn.5} parent=31 // pred_region
        %s1286 = smul.u32 64, %s18
      $region36: #{front_fn.5} parent=31 // pred_fallthru
        _
    $region32: #{front_fn.5} parent=5 // pred_fallthru
      _
    %p1287 = scmp.le.s32.totalorder 2, %s9
    // Predicated region
    $region37: #{front_fn.5} parent=5 // pred_check
      %p1288 = pneg %p1287
    $region38: #{front_fn.5} parent=5 // pred_check_branch
      %1290 = sbr.rel (%p1288) target = $region40
    $region39: #{front_fn.5} parent=5 // pred_region
      %s1291 = ssub.s32 %s9, 2
      // Predicated region
      $region41: #{front_fn.5} parent=39 // pred_check
        %p1292 = pneg %p130
      $region42: #{front_fn.5} parent=39 // pred_check_branch
        %1294 = sbr.rel (%p1292) target = $region44
      $region43: #{front_fn.5} parent=39 // pred_region
        %s1295 = smul.u32 64, %s20
        %p1296 = scmp.lt.s32.totalorder %s1295, 255
        %s1297 = scalar_select %p1296, %s1295, 255
        %p1298 = scmp.lt.s32.totalorder %s21, 0
        %s1299 = scalar_select %p1298, %s21, 0
        %s1300 = sadd.s32 %s1299, %s1297
        %s1301 = smul.addr %s1300, 4
        %s1302 = scalar_lea.vmem %s3, %s1301
      $region44: #{front_fn.5} parent=39 // pred_fallthru
        _
    $region40: #{front_fn.5} parent=5 // pred_fallthru
      _
  $region6: #{front_fn.5} parent=0 // loop_footer
    %s13 = sadd.s32 1, %s9
  $region7: #{front_fn.5} parent=0 // loop_footer_branch
    %8 = sbr.rel target = $region3
  $region8: #{front_fn.5} parent=0 // loop_exit
    _

// kernel: front_fn.6
$region0: #{front_fn.6}
  #allocation0 [shape = 'u32[]', space=smem, size = 0x4, offset = 0x4, fixed_abs, tag = 'smem constant byte address 0x4 - core index']
  #allocation1 [shape = 'u32[72,128]{1,0:T(1,128)}', space=vmem, size = 0x9000, scoped, tag = 'internal scratch']
  %s0 = inlined_call_operand.vmem [shape: bf16[512,640], index: 0, kind: input, shape index: {}]
  %s1 = inlined_call_operand.vmem [shape: bf16[640,64], index: 1, kind: input, shape index: {}]
  %s2 = inlined_call_operand.vmem [shape: f32[1,64], index: 2, kind: input, shape index: {}]
  %s3 = inlined_call_operand.vmem [shape: bf16[512,64], index: 3, kind: output, shape index: {}]
  %s4 = sld [smem:[#allocation0]]
  $region22: #{front_fn.6} parent=0
    _
  %s6 = ssub.s32 1, %s4
  %s7 = scalar_select 0, %s6, %s4
  // Predicated region
  $region2: #{front_fn.6} parent=0 // pred_check
    _
  $region3: #{front_fn.6} parent=0 // pred_check_branch
    %9 = sbr.rel (0) target = $region5
  $region4: #{front_fn.6} parent=0 // pred_region
    _
  $region5: #{front_fn.6} parent=0 // pred_fallthru
    _
  // Predicated region
  $region6: #{front_fn.6} parent=0 // pred_check
    _
  $region7: #{front_fn.6} parent=0 // pred_check_branch
    %11 = sbr.rel (0) target = $region9
  $region8: #{front_fn.6} parent=0 // pred_region
    _
  $region9: #{front_fn.6} parent=0 // pred_fallthru
    _
  // Predicated region
  $region10: #{front_fn.6} parent=0 // pred_check
    _
  $region11: #{front_fn.6} parent=0 // pred_check_branch
    %13 = sbr.rel (0) target = $region13
  $region12: #{front_fn.6} parent=0 // pred_region
    _
  $region13: #{front_fn.6} parent=0 // pred_fallthru
    _
  %v14 = vld [vmem:[%s0] sm:$0xff]
  %v15 = vld [vmem:[%s0 + $0x8] sm:$0xff]
  %v16 = vld [vmem:[%s0 + $0x10] sm:$0xf]
  %v17 = vld [vmem:[%s0 + $0x14] sm:$0xff]
  %v18 = vld [vmem:[%s0 + $0x1c] sm:$0xff]
  %v19 = vld [vmem:[%s0 + $0x24] sm:$0xf]
  %v20 = vld [vmem:[%s0 + $0x28] sm:$0xff]
  %v21 = vld [vmem:[%s0 + $0x30] sm:$0xff]
  %v22 = vld [vmem:[%s0 + $0x38] sm:$0xf]
  %v23 = vld [vmem:[%s0 + $0x3c] sm:$0xff]
  %v24 = vld [vmem:[%s0 + $0x44] sm:$0xff]
  %v25 = vld [vmem:[%s0 + $0x4c] sm:$0xf]
  %v26 = vld [vmem:[%s0 + $0x50] sm:$0xff]
  %v27 = vld [vmem:[%s0 + $0x58] sm:$0xff]
  %v28 = vld [vmem:[%s0 + $0x60] sm:$0xf]
  %v29 = vld [vmem:[%s0 + $0x64] sm:$0xff]
  %v30 = vld [vmem:[%s0 + $0x6c] sm:$0xff]
  %v31 = vld [vmem:[%s0 + $0x74] sm:$0xf]
  %v32 = vld [vmem:[%s0 + $0x78] sm:$0xff]
  %v33 = vld [vmem:[%s0 + $0x80] sm:$0xff]
  %v34 = vld [vmem:[%s0 + $0x88] sm:$0xf]
  %v35 = vld [vmem:[%s0 + $0x8c] sm:$0xff]
  %v36 = vld [vmem:[%s0 + $0x94] sm:$0xff]
  %v37 = vld [vmem:[%s0 + $0x9c] sm:$0xf]
  %v38 = vld [vmem:[%s0 + $0xa0] sm:$0xff]
  %v39 = vld [vmem:[%s0 + $0xa8] sm:$0xff]
  %v40 = vld [vmem:[%s0 + $0xb0] sm:$0xf]
  %v41 = vld [vmem:[%s0 + $0xb4] sm:$0xff]
  %v42 = vld [vmem:[%s0 + $0xbc] sm:$0xff]
  %v43 = vld [vmem:[%s0 + $0xc4] sm:$0xf]
  %v44 = vld [vmem:[%s0 + $0xc8] sm:$0xff]
  %v45 = vld [vmem:[%s0 + $0xd0] sm:$0xff]
  %v46 = vld [vmem:[%s0 + $0xd8] sm:$0xf]
  %v47 = vld [vmem:[%s0 + $0xdc] sm:$0xff]
  %v48 = vld [vmem:[%s0 + $0xe4] sm:$0xff]
  %v49 = vld [vmem:[%s0 + $0xec] sm:$0xf]
  %v50 = vld [vmem:[%s0 + $0xf0] sm:$0xff]
  %v51 = vld [vmem:[%s0 + $0xf8] sm:$0xff]
  %v52 = vld [vmem:[%s0 + $0x100] sm:$0xf]
  %v53 = vld [vmem:[%s0 + $0x104] sm:$0xff]
  %v54 = vld [vmem:[%s0 + $0x10c] sm:$0xff]
  %v55 = vld [vmem:[%s0 + $0x114] sm:$0xf]
  %v56 = vld [vmem:[%s0 + $0x118] sm:$0xff]
  %v57 = vld [vmem:[%s0 + $0x120] sm:$0xff]
  %v58 = vld [vmem:[%s0 + $0x128] sm:$0xf]
  %v59 = vld [vmem:[%s0 + $0x12c] sm:$0xff]
  %v60 = vld [vmem:[%s0 + $0x134] sm:$0xff]
  %v61 = vld [vmem:[%s0 + $0x13c] sm:$0xf]
  %v62 = vld [vmem:[%s0 + $0x140] sm:$0xff]
  %v63 = vld [vmem:[%s0 + $0x148] sm:$0xff]
  %v64 = vld [vmem:[%s0 + $0x150] sm:$0xf]
  %v65 = vld [vmem:[%s0 + $0x154] sm:$0xff]
  %v66 = vld [vmem:[%s0 + $0x15c] sm:$0xff]
  %v67 = vld [vmem:[%s0 + $0x164] sm:$0xf]
  %v68 = vld [vmem:[%s0 + $0x168] sm:$0xff]
  %v69 = vld [vmem:[%s0 + $0x170] sm:$0xff]
  %v70 = vld [vmem:[%s0 + $0x178] sm:$0xf]
  %v71 = vld [vmem:[%s0 + $0x17c] sm:$0xff]
  %v72 = vld [vmem:[%s0 + $0x184] sm:$0xff]
  %v73 = vld [vmem:[%s0 + $0x18c] sm:$0xf]
  %v74 = vld [vmem:[%s0 + $0x190] sm:$0xff]
  %v75 = vld [vmem:[%s0 + $0x198] sm:$0xff]
  %v76 = vld [vmem:[%s0 + $0x1a0] sm:$0xf]
  %v77 = vld [vmem:[%s0 + $0x1a4] sm:$0xff]
  %v78 = vld [vmem:[%s0 + $0x1ac] sm:$0xff]
  %v79 = vld [vmem:[%s0 + $0x1b4] sm:$0xf]
  %v80 = vld [vmem:[%s0 + $0x1b8] sm:$0xff]
  %v81 = vld [vmem:[%s0 + $0x1c0] sm:$0xff]
  %v82 = vld [vmem:[%s0 + $0x1c8] sm:$0xf]
  %v83 = vld [vmem:[%s0 + $0x1cc] sm:$0xff]
  %v84 = vld [vmem:[%s0 + $0x1d4] sm:$0xff]
  %v85 = vld [vmem:[%s0 + $0x1dc] sm:$0xf]
  %v86 = vld [vmem:[%s0 + $0x1e0] sm:$0xff]
  %v87 = vld [vmem:[%s0 + $0x1e8] sm:$0xff]
  %v88 = vld [vmem:[%s0 + $0x1f0] sm:$0xf]
  %v89 = vld [vmem:[%s0 + $0x1f4] sm:$0xff]
  %v90 = vld [vmem:[%s0 + $0x1fc] sm:$0xff]
  %v91 = vld [vmem:[%s0 + $0x204] sm:$0xf]
  %v92 = vld [vmem:[%s0 + $0x208] sm:$0xff]
  %v93 = vld [vmem:[%s0 + $0x210] sm:$0xff]
  %v94 = vld [vmem:[%s0 + $0x218] sm:$0xf]
  %v95 = vld [vmem:[%s0 + $0x21c] sm:$0xff]
  %v96 = vld [vmem:[%s0 + $0x224] sm:$0xff]
  %v97 = vld [vmem:[%s0 + $0x22c] sm:$0xf]
  %v98 = vld [vmem:[%s0 + $0x230] sm:$0xff]
  %v99 = vld [vmem:[%s0 + $0x238] sm:$0xff]
  %v100 = vld [vmem:[%s0 + $0x240] sm:$0xf]
  %v101 = vld [vmem:[%s0 + $0x244] sm:$0xff]
  %v102 = vld [vmem:[%s0 + $0x24c] sm:$0xff]
  %v103 = vld [vmem:[%s0 + $0x254] sm:$0xf]
  %v104 = vld [vmem:[%s0 + $0x258] sm:$0xff]
  %v105 = vld [vmem:[%s0 + $0x260] sm:$0xff]
  %v106 = vld [vmem:[%s0 + $0x268] sm:$0xf]
  %v107 = vld [vmem:[%s0 + $0x26c] sm:$0xff]
  %v108 = vld [vmem:[%s0 + $0x274] sm:$0xff]
  %v109 = vld [vmem:[%s0 + $0x27c] sm:$0xf]
  %v110 = vld [vmem:[%s0 + $0x280] sm:$0xff]
  %v111 = vld [vmem:[%s0 + $0x288] sm:$0xff]
  %v112 = vld [vmem:[%s0 + $0x290] sm:$0xf]
  %v113 = vld [vmem:[%s0 + $0x294] sm:$0xff]
  %v114 = vld [vmem:[%s0 + $0x29c] sm:$0xff]
  %v115 = vld [vmem:[%s0 + $0x2a4] sm:$0xf]
  %v116 = vld [vmem:[%s0 + $0x2a8] sm:$0xff]
  %v117 = vld [vmem:[%s0 + $0x2b0] sm:$0xff]
  %v118 = vld [vmem:[%s0 + $0x2b8] sm:$0xf]
  %v119 = vld [vmem:[%s0 + $0x2bc] sm:$0xff]
  %v120 = vld [vmem:[%s0 + $0x2c4] sm:$0xff]
  %v121 = vld [vmem:[%s0 + $0x2cc] sm:$0xf]
  %v122 = vld [vmem:[%s0 + $0x2d0] sm:$0xff]
  %v123 = vld [vmem:[%s0 + $0x2d8] sm:$0xff]
  %v124 = vld [vmem:[%s0 + $0x2e0] sm:$0xf]
  %v125 = vld [vmem:[%s0 + $0x2e4] sm:$0xff]
  %v126 = vld [vmem:[%s0 + $0x2ec] sm:$0xff]
  %v127 = vld [vmem:[%s0 + $0x2f4] sm:$0xf]
  %v128 = vld [vmem:[%s0 + $0x2f8] sm:$0xff]
  %v129 = vld [vmem:[%s0 + $0x300] sm:$0xff]
  %v130 = vld [vmem:[%s0 + $0x308] sm:$0xf]
  %v131 = vld [vmem:[%s0 + $0x30c] sm:$0xff]
  %v132 = vld [vmem:[%s0 + $0x314] sm:$0xff]
  %v133 = vld [vmem:[%s0 + $0x31c] sm:$0xf]
  %v134 = vld [vmem:[%s0 + $0x320] sm:$0xff]
  %v135 = vld [vmem:[%s0 + $0x328] sm:$0xff]
  %v136 = vld [vmem:[%s0 + $0x330] sm:$0xf]
  %v137 = vld [vmem:[%s0 + $0x334] sm:$0xff]
  %v138 = vld [vmem:[%s0 + $0x33c] sm:$0xff]
  %v139 = vld [vmem:[%s0 + $0x344] sm:$0xf]
  %v140 = vld [vmem:[%s0 + $0x348] sm:$0xff]
  %v141 = vld [vmem:[%s0 + $0x350] sm:$0xff]
  %v142 = vld [vmem:[%s0 + $0x358] sm:$0xf]
  %v143 = vld [vmem:[%s0 + $0x35c] sm:$0xff]
  %v144 = vld [vmem:[%s0 + $0x364] sm:$0xff]
  %v145 = vld [vmem:[%s0 + $0x36c] sm:$0xf]
  %v146 = vld [vmem:[%s0 + $0x370] sm:$0xff]
  %v147 = vld [vmem:[%s0 + $0x378] sm:$0xff]
  %v148 = vld [vmem:[%s0 + $0x380] sm:$0xf]
  %v149 = vld [vmem:[%s0 + $0x384] sm:$0xff]
  %v150 = vld [vmem:[%s0 + $0x38c] sm:$0xff]
  %v151 = vld [vmem:[%s0 + $0x394] sm:$0xf]
  %v152 = vld [vmem:[%s0 + $0x398] sm:$0xff]
  %v153 = vld [vmem:[%s0 + $0x3a0] sm:$0xff]
  %v154 = vld [vmem:[%s0 + $0x3a8] sm:$0xf]
  %v155 = vld [vmem:[%s0 + $0x3ac] sm:$0xff]
  %v156 = vld [vmem:[%s0 + $0x3b4] sm:$0xff]
  %v157 = vld [vmem:[%s0 + $0x3bc] sm:$0xf]
  %v158 = vld [vmem:[%s0 + $0x3c0] sm:$0xff]
  %v159 = vld [vmem:[%s0 + $0x3c8] sm:$0xff]
  %v160 = vld [vmem:[%s0 + $0x3d0] sm:$0xf]
  %v161 = vld [vmem:[%s0 + $0x3d4] sm:$0xff]
  %v162 = vld [vmem:[%s0 + $0x3dc] sm:$0xff]
  %v163 = vld [vmem:[%s0 + $0x3e4] sm:$0xf]
  %v164 = vld [vmem:[%s0 + $0x3e8] sm:$0xff]
  %v165 = vld [vmem:[%s0 + $0x3f0] sm:$0xff]
  %v166 = vld [vmem:[%s0 + $0x3f8] sm:$0xf]
  %v167 = vld [vmem:[%s0 + $0x3fc] sm:$0xff]
  %v168 = vld [vmem:[%s0 + $0x404] sm:$0xff]
  %v169 = vld [vmem:[%s0 + $0x40c] sm:$0xf]
  %v170 = vld [vmem:[%s0 + $0x410] sm:$0xff]
  %v171 = vld [vmem:[%s0 + $0x418] sm:$0xff]
  %v172 = vld [vmem:[%s0 + $0x420] sm:$0xf]
  %v173 = vld [vmem:[%s0 + $0x424] sm:$0xff]
  %v174 = vld [vmem:[%s0 + $0x42c] sm:$0xff]
  %v175 = vld [vmem:[%s0 + $0x434] sm:$0xf]
  %v176 = vld [vmem:[%s0 + $0x438] sm:$0xff]
  %v177 = vld [vmem:[%s0 + $0x440] sm:$0xff]
  %v178 = vld [vmem:[%s0 + $0x448] sm:$0xf]
  %v179 = vld [vmem:[%s0 + $0x44c] sm:$0xff]
  %v180 = vld [vmem:[%s0 + $0x454] sm:$0xff]
  %v181 = vld [vmem:[%s0 + $0x45c] sm:$0xf]
  %v182 = vld [vmem:[%s0 + $0x460] sm:$0xff]
  %v183 = vld [vmem:[%s0 + $0x468] sm:$0xff]
  %v184 = vld [vmem:[%s0 + $0x470] sm:$0xf]
  %v185 = vld [vmem:[%s0 + $0x474] sm:$0xff]
  %v186 = vld [vmem:[%s0 + $0x47c] sm:$0xff]
  %v187 = vld [vmem:[%s0 + $0x484] sm:$0xf]
  %v188 = vld [vmem:[%s0 + $0x488] sm:$0xff]
  %v189 = vld [vmem:[%s0 + $0x490] sm:$0xff]
  %v190 = vld [vmem:[%s0 + $0x498] sm:$0xf]
  %v191 = vld [vmem:[%s0 + $0x49c] sm:$0xff]
  %v192 = vld [vmem:[%s0 + $0x4a4] sm:$0xff]
  %v193 = vld [vmem:[%s0 + $0x4ac] sm:$0xf]
  %v194 = vld [vmem:[%s0 + $0x4b0] sm:$0xff]
  %v195 = vld [vmem:[%s0 + $0x4b8] sm:$0xff]
  %v196 = vld [vmem:[%s0 + $0x4c0] sm:$0xf]
  %v197 = vld [vmem:[%s0 + $0x4c4] sm:$0xff]
  %v198 = vld [vmem:[%s0 + $0x4cc] sm:$0xff]
  %v199 = vld [vmem:[%s0 + $0x4d4] sm:$0xf]
  %v200 = vld [vmem:[%s0 + $0x4d8] sm:$0xff]
  %v201 = vld [vmem:[%s0 + $0x4e0] sm:$0xff]
  %v202 = vld [vmem:[%s0 + $0x4e8] sm:$0xf]
  %v203 = vld [vmem:[%s0 + $0x4ec] sm:$0xff]
  %v204 = vld [vmem:[%s0 + $0x4f4] sm:$0xff]
  %v205 = vld [vmem:[%s0 + $0x4fc] sm:$0xf]
  %v206 = vld [vmem:[%s1] sm:$0xf]
  %v207 = vld [vmem:[%s1 + $0x4] sm:$0xf]
  %v208 = vld [vmem:[%s1 + $0x8] sm:$0xf]
  %v209 = vld [vmem:[%s1 + $0xc] sm:$0xf]
  %v210 = vld [vmem:[%s1 + $0x10] sm:$0xf]
  %v211 = vld [vmem:[%s1 + $0x14] sm:$0xf]
  %v212 = vld [vmem:[%s1 + $0x18] sm:$0xf]
  %v213 = vld [vmem:[%s1 + $0x1c] sm:$0xf]
  %v214 = vld [vmem:[%s1 + $0x20] sm:$0xf]
  %v215 = vld [vmem:[%s1 + $0x24] sm:$0xf]
  %v216 = vld [vmem:[%s1 + $0x28] sm:$0xf]
  %v217 = vld [vmem:[%s1 + $0x2c] sm:$0xf]
  %v218 = vld [vmem:[%s1 + $0x30] sm:$0xf]
  %v219 = vld [vmem:[%s1 + $0x34] sm:$0xf]
  %v220 = vld [vmem:[%s1 + $0x38] sm:$0xf]
  %v221 = vld [vmem:[%s1 + $0x3c] sm:$0xf]
  %v222 = vld [vmem:[%s1 + $0x40] sm:$0xf]
  %v223 = vld [vmem:[%s1 + $0x44] sm:$0xf]
  %v224 = vld [vmem:[%s1 + $0x48] sm:$0xf]
  %v225 = vld [vmem:[%s1 + $0x4c] sm:$0xf]
  %v226 = vld [vmem:[%s1 + $0x50] sm:$0xf]
  %v227 = vld [vmem:[%s1 + $0x54] sm:$0xf]
  %v228 = vld [vmem:[%s1 + $0x58] sm:$0xf]
  %v229 = vld [vmem:[%s1 + $0x5c] sm:$0xf]
  %v230 = vld [vmem:[%s1 + $0x60] sm:$0xf]
  %v231 = vld [vmem:[%s1 + $0x64] sm:$0xf]
  %v232 = vld [vmem:[%s1 + $0x68] sm:$0xf]
  %v233 = vld [vmem:[%s1 + $0x6c] sm:$0xf]
  %v234 = vld [vmem:[%s1 + $0x70] sm:$0xf]
  %v235 = vld [vmem:[%s1 + $0x74] sm:$0xf]
  %v236 = vld [vmem:[%s1 + $0x78] sm:$0xf]
  %v237 = vld [vmem:[%s1 + $0x7c] sm:$0xf]
  %v238 = vld [vmem:[%s1 + $0x80] sm:$0xf]
  %v239 = vld [vmem:[%s1 + $0x84] sm:$0xf]
  %v240 = vld [vmem:[%s1 + $0x88] sm:$0xf]
  %v241 = vld [vmem:[%s1 + $0x8c] sm:$0xf]
  %v242 = vld [vmem:[%s1 + $0x90] sm:$0xf]
  %v243 = vld [vmem:[%s1 + $0x94] sm:$0xf]
  %v244 = vld [vmem:[%s1 + $0x98] sm:$0xf]
  %v245 = vld [vmem:[%s1 + $0x9c] sm:$0xf]
  %v246 = vld [vmem:[%s1 + $0xa0] sm:$0xf]
  %v247 = vld [vmem:[%s1 + $0xa4] sm:$0xf]
  %v248 = vld [vmem:[%s1 + $0xa8] sm:$0xf]
  %v249 = vld [vmem:[%s1 + $0xac] sm:$0xf]
  %v250 = vld [vmem:[%s1 + $0xb0] sm:$0xf]
  %v251 = vld [vmem:[%s1 + $0xb4] sm:$0xf]
  %v252 = vld [vmem:[%s1 + $0xb8] sm:$0xf]
  %v253 = vld [vmem:[%s1 + $0xbc] sm:$0xf]
  %v254 = vld [vmem:[%s1 + $0xc0] sm:$0xf]
  %v255 = vld [vmem:[%s1 + $0xc4] sm:$0xf]
  %v256 = vld [vmem:[%s1 + $0xc8] sm:$0xf]
  %v257 = vld [vmem:[%s1 + $0xcc] sm:$0xf]
  %v258 = vld [vmem:[%s1 + $0xd0] sm:$0xf]
  %v259 = vld [vmem:[%s1 + $0xd4] sm:$0xf]
  %v260 = vld [vmem:[%s1 + $0xd8] sm:$0xf]
  %v261 = vld [vmem:[%s1 + $0xdc] sm:$0xf]
  %v262 = vld [vmem:[%s1 + $0xe0] sm:$0xf]
  %v263 = vld [vmem:[%s1 + $0xe4] sm:$0xf]
  %v264 = vld [vmem:[%s1 + $0xe8] sm:$0xf]
  %v265 = vld [vmem:[%s1 + $0xec] sm:$0xf]
  %v266 = vld [vmem:[%s1 + $0xf0] sm:$0xf]
  %v267 = vld [vmem:[%s1 + $0xf4] sm:$0xf]
  %v268 = vld [vmem:[%s1 + $0xf8] sm:$0xf]
  %v269 = vld [vmem:[%s1 + $0xfc] sm:$0xf]
  %v270 = vld [vmem:[%s1 + $0x100] sm:$0xf]
  %v271 = vld [vmem:[%s1 + $0x104] sm:$0xf]
  %v272 = vld [vmem:[%s1 + $0x108] sm:$0xf]
  %v273 = vld [vmem:[%s1 + $0x10c] sm:$0xf]
  %v274 = vld [vmem:[%s1 + $0x110] sm:$0xf]
  %v275 = vld [vmem:[%s1 + $0x114] sm:$0xf]
  %v276 = vld [vmem:[%s1 + $0x118] sm:$0xf]
  %v277 = vld [vmem:[%s1 + $0x11c] sm:$0xf]
  %v278 = vld [vmem:[%s1 + $0x120] sm:$0xf]
  %v279 = vld [vmem:[%s1 + $0x124] sm:$0xf]
  %v280 = vld [vmem:[%s1 + $0x128] sm:$0xf]
  %v281 = vld [vmem:[%s1 + $0x12c] sm:$0xf]
  %v282 = vld [vmem:[%s1 + $0x130] sm:$0xf]
  %v283 = vld [vmem:[%s1 + $0x134] sm:$0xf]
  %v284 = vld [vmem:[%s1 + $0x138] sm:$0xf]
  %v285 = vld [vmem:[%s1 + $0x13c] sm:$0xf]
  %v286 = vld [vmem:[%s2] sm:$0x1]
  %v288 = vperm.slane %v286, 0
  %v482 = vunpack.c.l.b16 %v14
  %v483 = vunpack.c.h.b16 %v14
  %v484 = vunpack.c.l.b16 %v15
  %v485 = vunpack.c.h.b16 %v15
  %v486 = vunpack.c.l.b16 %v16
  %v487 = vunpack.c.l.b16 %v17
  %v488 = vunpack.c.h.b16 %v17
  %v489 = vunpack.c.l.b16 %v18
  %v490 = vunpack.c.h.b16 %v18
  %v491 = vunpack.c.l.b16 %v19
  %v492 = vunpack.c.l.b16 %v20
  %v493 = vunpack.c.h.b16 %v20
  %v494 = vunpack.c.l.b16 %v21
  %v495 = vunpack.c.h.b16 %v21
  %v496 = vunpack.c.l.b16 %v22
  %v497 = vunpack.c.l.b16 %v23
  %v498 = vunpack.c.h.b16 %v23
  %v499 = vunpack.c.l.b16 %v24
  %v500 = vunpack.c.h.b16 %v24
  %v501 = vunpack.c.l.b16 %v25
  %v502 = vunpack.c.l.b16 %v26
  %v503 = vunpack.c.h.b16 %v26
  %v504 = vunpack.c.l.b16 %v27
  %v505 = vunpack.c.h.b16 %v27
  %v506 = vunpack.c.l.b16 %v28
  %v507 = vunpack.c.l.b16 %v29
  %v508 = vunpack.c.h.b16 %v29
  %v509 = vunpack.c.l.b16 %v30
  %v510 = vunpack.c.h.b16 %v30
  %v511 = vunpack.c.l.b16 %v31
  %v512 = vunpack.c.l.b16 %v32
  %v513 = vunpack.c.h.b16 %v32
  %v514 = vunpack.c.l.b16 %v33
  %v515 = vunpack.c.h.b16 %v33
  %v516 = vunpack.c.l.b16 %v34
  %v517 = vunpack.c.l.b16 %v35
  %v518 = vunpack.c.h.b16 %v35
  %v519 = vunpack.c.l.b16 %v36
  %v520 = vunpack.c.h.b16 %v36
  %v521 = vunpack.c.l.b16 %v37
  %v522 = vunpack.c.l.b16 %v38
  %v523 = vunpack.c.h.b16 %v38
  %v524 = vunpack.c.l.b16 %v39
  %v525 = vunpack.c.h.b16 %v39
  %v526 = vunpack.c.l.b16 %v40
  %v527 = vunpack.c.l.b16 %v41
  %v528 = vunpack.c.h.b16 %v41
  %v529 = vunpack.c.l.b16 %v42
  %v530 = vunpack.c.h.b16 %v42
  %v531 = vunpack.c.l.b16 %v43
  %v532 = vunpack.c.l.b16 %v44
  %v533 = vunpack.c.h.b16 %v44
  %v534 = vunpack.c.l.b16 %v45
  %v535 = vunpack.c.h.b16 %v45
  %v536 = vunpack.c.l.b16 %v46
  %v537 = vunpack.c.l.b16 %v47
  %v538 = vunpack.c.h.b16 %v47
  %v539 = vunpack.c.l.b16 %v48
  %v540 = vunpack.c.h.b16 %v48
  %v541 = vunpack.c.l.b16 %v49
  %v542 = vunpack.c.l.b16 %v50
  %v543 = vunpack.c.h.b16 %v50
  %v544 = vunpack.c.l.b16 %v51
  %v545 = vunpack.c.h.b16 %v51
  %v546 = vunpack.c.l.b16 %v52
  %v547 = vunpack.c.l.b16 %v53
  %v548 = vunpack.c.h.b16 %v53
  %v549 = vunpack.c.l.b16 %v54
  %v550 = vunpack.c.h.b16 %v54
  %v551 = vunpack.c.l.b16 %v55
  %v552 = vunpack.c.l.b16 %v56
  %v553 = vunpack.c.h.b16 %v56
  %v554 = vunpack.c.l.b16 %v57
  %v555 = vunpack.c.h.b16 %v57
  %v556 = vunpack.c.l.b16 %v58
  %v557 = vunpack.c.l.b16 %v59
  %v558 = vunpack.c.h.b16 %v59
  %v559 = vunpack.c.l.b16 %v60
  %v560 = vunpack.c.h.b16 %v60
  %v561 = vunpack.c.l.b16 %v61
  %v562 = vunpack.c.l.b16 %v62
  %v563 = vunpack.c.h.b16 %v62
  %v564 = vunpack.c.l.b16 %v63
  %v565 = vunpack.c.h.b16 %v63
  %v566 = vunpack.c.l.b16 %v64
  %v567 = vunpack.c.l.b16 %v65
  %v568 = vunpack.c.h.b16 %v65
  %v569 = vunpack.c.l.b16 %v66
  %v570 = vunpack.c.h.b16 %v66
  %v571 = vunpack.c.l.b16 %v67
  %v572 = vunpack.c.l.b16 %v68
  %v573 = vunpack.c.h.b16 %v68
  %v574 = vunpack.c.l.b16 %v69
  %v575 = vunpack.c.h.b16 %v69
  %v576 = vunpack.c.l.b16 %v70
  %v577 = vunpack.c.l.b16 %v71
  %v578 = vunpack.c.h.b16 %v71
  %v579 = vunpack.c.l.b16 %v72
  %v580 = vunpack.c.h.b16 %v72
  %v581 = vunpack.c.l.b16 %v73
  %v582 = vunpack.c.l.b16 %v74
  %v583 = vunpack.c.h.b16 %v74
  %v584 = vunpack.c.l.b16 %v75
  %v585 = vunpack.c.h.b16 %v75
  %v586 = vunpack.c.l.b16 %v76
  %v587 = vunpack.c.l.b16 %v77
  %v588 = vunpack.c.h.b16 %v77
  %v589 = vunpack.c.l.b16 %v78
  %v590 = vunpack.c.h.b16 %v78
  %v591 = vunpack.c.l.b16 %v79
  %v592 = vunpack.c.l.b16 %v80
  %v593 = vunpack.c.h.b16 %v80
  %v594 = vunpack.c.l.b16 %v81
  %v595 = vunpack.c.h.b16 %v81
  %v596 = vunpack.c.l.b16 %v82
  %v597 = vunpack.c.l.b16 %v83
  %v598 = vunpack.c.h.b16 %v83
  %v599 = vunpack.c.l.b16 %v84
  %v600 = vunpack.c.h.b16 %v84
  %v601 = vunpack.c.l.b16 %v85
  %v602 = vunpack.c.l.b16 %v86
  %v603 = vunpack.c.h.b16 %v86
  %v604 = vunpack.c.l.b16 %v87
  %v605 = vunpack.c.h.b16 %v87
  %v606 = vunpack.c.l.b16 %v88
  %v607 = vunpack.c.l.b16 %v89
  %v608 = vunpack.c.h.b16 %v89
  %v609 = vunpack.c.l.b16 %v90
  %v610 = vunpack.c.h.b16 %v90
  %v611 = vunpack.c.l.b16 %v91
  %v612 = vunpack.c.l.b16 %v92
  %v613 = vunpack.c.h.b16 %v92
  %v614 = vunpack.c.l.b16 %v93
  %v615 = vunpack.c.h.b16 %v93
  %v616 = vunpack.c.l.b16 %v94
  %v617 = vunpack.c.l.b16 %v95
  %v618 = vunpack.c.h.b16 %v95
  %v619 = vunpack.c.l.b16 %v96
  %v620 = vunpack.c.h.b16 %v96
  %v621 = vunpack.c.l.b16 %v97
  %v622 = vunpack.c.l.b16 %v98
  %v623 = vunpack.c.h.b16 %v98
  %v624 = vunpack.c.l.b16 %v99
  %v625 = vunpack.c.h.b16 %v99
  %v626 = vunpack.c.l.b16 %v100
  %v627 = vunpack.c.l.b16 %v101
  %v628 = vunpack.c.h.b16 %v101
  %v629 = vunpack.c.l.b16 %v102
  %v630 = vunpack.c.h.b16 %v102
  %v631 = vunpack.c.l.b16 %v103
  %v632 = vunpack.c.l.b16 %v104
  %v633 = vunpack.c.h.b16 %v104
  %v634 = vunpack.c.l.b16 %v105
  %v635 = vunpack.c.h.b16 %v105
  %v636 = vunpack.c.l.b16 %v106
  %v637 = vunpack.c.l.b16 %v107
  %v638 = vunpack.c.h.b16 %v107
  %v639 = vunpack.c.l.b16 %v108
  %v640 = vunpack.c.h.b16 %v108
  %v641 = vunpack.c.l.b16 %v109
  %v642 = vunpack.c.l.b16 %v110
  %v643 = vunpack.c.h.b16 %v110
  %v644 = vunpack.c.l.b16 %v111
  %v645 = vunpack.c.h.b16 %v111
  %v646 = vunpack.c.l.b16 %v112
  %v647 = vunpack.c.l.b16 %v113
  %v648 = vunpack.c.h.b16 %v113
  %v649 = vunpack.c.l.b16 %v114
  %v650 = vunpack.c.h.b16 %v114
  %v651 = vunpack.c.l.b16 %v115
  %v652 = vunpack.c.l.b16 %v116
  %v653 = vunpack.c.h.b16 %v116
  %v654 = vunpack.c.l.b16 %v117
  %v655 = vunpack.c.h.b16 %v117
  %v656 = vunpack.c.l.b16 %v118
  %v657 = vunpack.c.l.b16 %v119
  %v658 = vunpack.c.h.b16 %v119
  %v659 = vunpack.c.l.b16 %v120
  %v660 = vunpack.c.h.b16 %v120
  %v661 = vunpack.c.l.b16 %v121
  %v662 = vunpack.c.l.b16 %v122
  %v663 = vunpack.c.h.b16 %v122
  %v664 = vunpack.c.l.b16 %v123
  %v665 = vunpack.c.h.b16 %v123
  %v666 = vunpack.c.l.b16 %v124
  %v667 = vunpack.c.l.b16 %v125
  %v668 = vunpack.c.h.b16 %v125
  %v669 = vunpack.c.l.b16 %v126
  %v670 = vunpack.c.h.b16 %v126
  %v671 = vunpack.c.l.b16 %v127
  %v672 = vunpack.c.l.b16 %v128
  %v673 = vunpack.c.h.b16 %v128
  %v674 = vunpack.c.l.b16 %v129
  %v675 = vunpack.c.h.b16 %v129
  %v676 = vunpack.c.l.b16 %v130
  %v677 = vunpack.c.l.b16 %v131
  %v678 = vunpack.c.h.b16 %v131
  %v679 = vunpack.c.l.b16 %v132
  %v680 = vunpack.c.h.b16 %v132
  %v681 = vunpack.c.l.b16 %v133
  %v682 = vunpack.c.l.b16 %v134
  %v683 = vunpack.c.h.b16 %v134
  %v684 = vunpack.c.l.b16 %v135
  %v685 = vunpack.c.h.b16 %v135
  %v686 = vunpack.c.l.b16 %v136
  %v687 = vunpack.c.l.b16 %v137
  %v688 = vunpack.c.h.b16 %v137
  %v689 = vunpack.c.l.b16 %v138
  %v690 = vunpack.c.h.b16 %v138
  %v691 = vunpack.c.l.b16 %v139
  %v692 = vunpack.c.l.b16 %v140
  %v693 = vunpack.c.h.b16 %v140
  %v694 = vunpack.c.l.b16 %v141
  %v695 = vunpack.c.h.b16 %v141
  %v696 = vunpack.c.l.b16 %v142
  %v697 = vunpack.c.l.b16 %v143
  %v698 = vunpack.c.h.b16 %v143
  %v699 = vunpack.c.l.b16 %v144
  %v700 = vunpack.c.h.b16 %v144
  %v701 = vunpack.c.l.b16 %v145
  %v702 = vunpack.c.l.b16 %v146
  %v703 = vunpack.c.h.b16 %v146
  %v704 = vunpack.c.l.b16 %v147
  %v705 = vunpack.c.h.b16 %v147
  %v706 = vunpack.c.l.b16 %v148
  %v707 = vunpack.c.l.b16 %v149
  %v708 = vunpack.c.h.b16 %v149
  %v709 = vunpack.c.l.b16 %v150
  %v710 = vunpack.c.h.b16 %v150
  %v711 = vunpack.c.l.b16 %v151
  %v712 = vunpack.c.l.b16 %v152
  %v713 = vunpack.c.h.b16 %v152
  %v714 = vunpack.c.l.b16 %v153
  %v715 = vunpack.c.h.b16 %v153
  %v716 = vunpack.c.l.b16 %v154
  %v717 = vunpack.c.l.b16 %v155
  %v718 = vunpack.c.h.b16 %v155
  %v719 = vunpack.c.l.b16 %v156
  %v720 = vunpack.c.h.b16 %v156
  %v721 = vunpack.c.l.b16 %v157
  %v722 = vunpack.c.l.b16 %v158
  %v723 = vunpack.c.h.b16 %v158
  %v724 = vunpack.c.l.b16 %v159
  %v725 = vunpack.c.h.b16 %v159
  %v726 = vunpack.c.l.b16 %v160
  %v727 = vunpack.c.l.b16 %v161
  %v728 = vunpack.c.h.b16 %v161
  %v729 = vunpack.c.l.b16 %v162
  %v730 = vunpack.c.h.b16 %v162
  %v731 = vunpack.c.l.b16 %v163
  %v732 = vunpack.c.l.b16 %v164
  %v733 = vunpack.c.h.b16 %v164
  %v734 = vunpack.c.l.b16 %v165
  %v735 = vunpack.c.h.b16 %v165
  %v736 = vunpack.c.l.b16 %v166
  %v737 = vunpack.c.l.b16 %v167
  %v738 = vunpack.c.h.b16 %v167
  %v739 = vunpack.c.l.b16 %v168
  %v740 = vunpack.c.h.b16 %v168
  %v741 = vunpack.c.l.b16 %v169
  %v742 = vunpack.c.l.b16 %v170
  %v743 = vunpack.c.h.b16 %v170
  %v744 = vunpack.c.l.b16 %v171
  %v745 = vunpack.c.h.b16 %v171
  %v746 = vunpack.c.l.b16 %v172
  %v747 = vunpack.c.l.b16 %v173
  %v748 = vunpack.c.h.b16 %v173
  %v749 = vunpack.c.l.b16 %v174
  %v750 = vunpack.c.h.b16 %v174
  %v751 = vunpack.c.l.b16 %v175
  %v752 = vunpack.c.l.b16 %v176
  %v753 = vunpack.c.h.b16 %v176
  %v754 = vunpack.c.l.b16 %v177
  %v755 = vunpack.c.h.b16 %v177
  %v756 = vunpack.c.l.b16 %v178
  %v757 = vunpack.c.l.b16 %v179
  %v758 = vunpack.c.h.b16 %v179
  %v759 = vunpack.c.l.b16 %v180
  %v760 = vunpack.c.h.b16 %v180
  %v761 = vunpack.c.l.b16 %v181
  %v762 = vunpack.c.l.b16 %v182
  %v763 = vunpack.c.h.b16 %v182
  %v764 = vunpack.c.l.b16 %v183
  %v765 = vunpack.c.h.b16 %v183
  %v766 = vunpack.c.l.b16 %v184
  %v767 = vunpack.c.l.b16 %v185
  %v768 = vunpack.c.h.b16 %v185
  %v769 = vunpack.c.l.b16 %v186
  %v770 = vunpack.c.h.b16 %v186
  %v771 = vunpack.c.l.b16 %v187
  %v772 = vunpack.c.l.b16 %v188
  %v773 = vunpack.c.h.b16 %v188
  %v774 = vunpack.c.l.b16 %v189
  %v775 = vunpack.c.h.b16 %v189
  %v776 = vunpack.c.l.b16 %v190
  %v777 = vunpack.c.l.b16 %v191
  %v778 = vunpack.c.h.b16 %v191
  %v779 = vunpack.c.l.b16 %v192
  %v780 = vunpack.c.h.b16 %v192
  %v781 = vunpack.c.l.b16 %v193
  %v782 = vunpack.c.l.b16 %v194
  %v783 = vunpack.c.h.b16 %v194
  %v784 = vunpack.c.l.b16 %v195
  %v785 = vunpack.c.h.b16 %v195
  %v786 = vunpack.c.l.b16 %v196
  %v787 = vunpack.c.l.b16 %v197
  %v788 = vunpack.c.h.b16 %v197
  %v789 = vunpack.c.l.b16 %v198
  %v790 = vunpack.c.h.b16 %v198
  %v791 = vunpack.c.l.b16 %v199
  %v792 = vunpack.c.l.b16 %v200
  %v793 = vunpack.c.h.b16 %v200
  %v794 = vunpack.c.l.b16 %v201
  %v795 = vunpack.c.h.b16 %v201
  %v796 = vunpack.c.l.b16 %v202
  %v797 = vunpack.c.l.b16 %v203
  %v798 = vunpack.c.h.b16 %v203
  %v799 = vunpack.c.l.b16 %v204
  %v800 = vunpack.c.h.b16 %v204
  %v801 = vunpack.c.l.b16 %v205
  %v802 = vpack.c.b16 %v487, %v482
  %v803 = vpack.c.b16 %v488, %v483
  %v804 = vpack.c.b16 %v489, %v484
  %v805 = vpack.c.b16 %v490, %v485
  %v806 = vpack.c.b16 %v491, %v486
  %v807 = vpack.c.b16 %v497, %v492
  %v808 = vpack.c.b16 %v498, %v493
  %v809 = vpack.c.b16 %v499, %v494
  %v810 = vpack.c.b16 %v500, %v495
  %v811 = vpack.c.b16 %v501, %v496
  %v812 = vpack.c.b16 %v507, %v502
  %v813 = vpack.c.b16 %v508, %v503
  %v814 = vpack.c.b16 %v509, %v504
  %v815 = vpack.c.b16 %v510, %v505
  %v816 = vpack.c.b16 %v511, %v506
  %v817 = vpack.c.b16 %v517, %v512
  %v818 = vpack.c.b16 %v518, %v513
  %v819 = vpack.c.b16 %v519, %v514
  %v820 = vpack.c.b16 %v520, %v515
  %v821 = vpack.c.b16 %v521, %v516
  %v822 = vpack.c.b16 %v527, %v522
  %v823 = vpack.c.b16 %v528, %v523
  %v824 = vpack.c.b16 %v529, %v524
  %v825 = vpack.c.b16 %v530, %v525
  %v826 = vpack.c.b16 %v531, %v526
  %v827 = vpack.c.b16 %v537, %v532
  %v828 = vpack.c.b16 %v538, %v533
  %v829 = vpack.c.b16 %v539, %v534
  %v830 = vpack.c.b16 %v540, %v535
  %v831 = vpack.c.b16 %v541, %v536
  %v832 = vpack.c.b16 %v547, %v542
  %v833 = vpack.c.b16 %v548, %v543
  %v834 = vpack.c.b16 %v549, %v544
  %v835 = vpack.c.b16 %v550, %v545
  %v836 = vpack.c.b16 %v551, %v546
  %v837 = vpack.c.b16 %v557, %v552
  %v838 = vpack.c.b16 %v558, %v553
  %v839 = vpack.c.b16 %v559, %v554
  %v840 = vpack.c.b16 %v560, %v555
  %v841 = vpack.c.b16 %v561, %v556
  %v842 = vpack.c.b16 %v567, %v562
  %v843 = vpack.c.b16 %v568, %v563
  %v844 = vpack.c.b16 %v569, %v564
  %v845 = vpack.c.b16 %v570, %v565
  %v846 = vpack.c.b16 %v571, %v566
  %v847 = vpack.c.b16 %v577, %v572
  %v848 = vpack.c.b16 %v578, %v573
  %v849 = vpack.c.b16 %v579, %v574
  %v850 = vpack.c.b16 %v580, %v575
  %v851 = vpack.c.b16 %v581, %v576
  %v852 = vpack.c.b16 %v587, %v582
  %v853 = vpack.c.b16 %v588, %v583
  %v854 = vpack.c.b16 %v589, %v584
  %v855 = vpack.c.b16 %v590, %v585
  %v856 = vpack.c.b16 %v591, %v586
  %v857 = vpack.c.b16 %v597, %v592
  %v858 = vpack.c.b16 %v598, %v593
  %v859 = vpack.c.b16 %v599, %v594
  %v860 = vpack.c.b16 %v600, %v595
  %v861 = vpack.c.b16 %v601, %v596
  %v862 = vpack.c.b16 %v607, %v602
  %v863 = vpack.c.b16 %v608, %v603
  %v864 = vpack.c.b16 %v609, %v604
  %v865 = vpack.c.b16 %v610, %v605
  %v866 = vpack.c.b16 %v611, %v606
  %v867 = vpack.c.b16 %v617, %v612
  %v868 = vpack.c.b16 %v618, %v613
  %v869 = vpack.c.b16 %v619, %v614
  %v870 = vpack.c.b16 %v620, %v615
  %v871 = vpack.c.b16 %v621, %v616
  %v872 = vpack.c.b16 %v627, %v622
  %v873 = vpack.c.b16 %v628, %v623
  %v874 = vpack.c.b16 %v629, %v624
  %v875 = vpack.c.b16 %v630, %v625
  %v876 = vpack.c.b16 %v631, %v626
  %v877 = vpack.c.b16 %v637, %v632
  %v878 = vpack.c.b16 %v638, %v633
  %v879 = vpack.c.b16 %v639, %v634
  %v880 = vpack.c.b16 %v640, %v635
  %v881 = vpack.c.b16 %v641, %v636
  %v882 = vpack.c.b16 %v647, %v642
  %v883 = vpack.c.b16 %v648, %v643
  %v884 = vpack.c.b16 %v649, %v644
  %v885 = vpack.c.b16 %v650, %v645
  %v886 = vpack.c.b16 %v651, %v646
  %v887 = vpack.c.b16 %v657, %v652
  %v888 = vpack.c.b16 %v658, %v653
  %v889 = vpack.c.b16 %v659, %v654
  %v890 = vpack.c.b16 %v660, %v655
  %v891 = vpack.c.b16 %v661, %v656
  %v892 = vpack.c.b16 %v667, %v662
  %v893 = vpack.c.b16 %v668, %v663
  %v894 = vpack.c.b16 %v669, %v664
  %v895 = vpack.c.b16 %v670, %v665
  %v896 = vpack.c.b16 %v671, %v666
  %v897 = vpack.c.b16 %v677, %v672
  %v898 = vpack.c.b16 %v678, %v673
  %v899 = vpack.c.b16 %v679, %v674
  %v900 = vpack.c.b16 %v680, %v675
  %v901 = vpack.c.b16 %v681, %v676
  %v902 = vpack.c.b16 %v687, %v682
  %v903 = vpack.c.b16 %v688, %v683
  %v904 = vpack.c.b16 %v689, %v684
  %v905 = vpack.c.b16 %v690, %v685
  %v906 = vpack.c.b16 %v691, %v686
  %v907 = vpack.c.b16 %v697, %v692
  %v908 = vpack.c.b16 %v698, %v693
  %v909 = vpack.c.b16 %v699, %v694
  %v910 = vpack.c.b16 %v700, %v695
  %v911 = vpack.c.b16 %v701, %v696
  %v912 = vpack.c.b16 %v707, %v702
  %v913 = vpack.c.b16 %v708, %v703
  %v914 = vpack.c.b16 %v709, %v704
  %v915 = vpack.c.b16 %v710, %v705
  %v916 = vpack.c.b16 %v711, %v706
  %v917 = vpack.c.b16 %v717, %v712
  %v918 = vpack.c.b16 %v718, %v713
  %v919 = vpack.c.b16 %v719, %v714
  %v920 = vpack.c.b16 %v720, %v715
  %v921 = vpack.c.b16 %v721, %v716
  %v922 = vpack.c.b16 %v727, %v722
  %v923 = vpack.c.b16 %v728, %v723
  %v924 = vpack.c.b16 %v729, %v724
  %v925 = vpack.c.b16 %v730, %v725
  %v926 = vpack.c.b16 %v731, %v726
  %v927 = vpack.c.b16 %v737, %v732
  %v928 = vpack.c.b16 %v738, %v733
  %v929 = vpack.c.b16 %v739, %v734
  %v930 = vpack.c.b16 %v740, %v735
  %v931 = vpack.c.b16 %v741, %v736
  %v932 = vpack.c.b16 %v747, %v742
  %v933 = vpack.c.b16 %v748, %v743
  %v934 = vpack.c.b16 %v749, %v744
  %v935 = vpack.c.b16 %v750, %v745
  %v936 = vpack.c.b16 %v751, %v746
  %v937 = vpack.c.b16 %v757, %v752
  %v938 = vpack.c.b16 %v758, %v753
  %v939 = vpack.c.b16 %v759, %v754
  %v940 = vpack.c.b16 %v760, %v755
  %v941 = vpack.c.b16 %v761, %v756
  %v942 = vpack.c.b16 %v767, %v762
  %v943 = vpack.c.b16 %v768, %v763
  %v944 = vpack.c.b16 %v769, %v764
  %v945 = vpack.c.b16 %v770, %v765
  %v946 = vpack.c.b16 %v771, %v766
  %v947 = vpack.c.b16 %v777, %v772
  %v948 = vpack.c.b16 %v778, %v773
  %v949 = vpack.c.b16 %v779, %v774
  %v950 = vpack.c.b16 %v780, %v775
  %v951 = vpack.c.b16 %v781, %v776
  %v952 = vpack.c.b16 %v787, %v782
  %v953 = vpack.c.b16 %v788, %v783
  %v954 = vpack.c.b16 %v789, %v784
  %v955 = vpack.c.b16 %v790, %v785
  %v956 = vpack.c.b16 %v791, %v786
  %v957 = vpack.c.b16 %v797, %v792
  %v958 = vpack.c.b16 %v798, %v793
  %v959 = vpack.c.b16 %v799, %v794
  %v960 = vpack.c.b16 %v800, %v795
  %v961 = vpack.c.b16 %v801, %v796
  %v1202 = vunpack.c.l.b16 %v206
  %v1203 = vunpack.c.l.b16 %v207
  %v1204 = vunpack.c.l.b16 %v208
  %v1205 = vunpack.c.l.b16 %v209
  %v1206 = vunpack.c.l.b16 %v210
  %v1207 = vunpack.c.l.b16 %v211
  %v1208 = vunpack.c.l.b16 %v212
  %v1209 = vunpack.c.l.b16 %v213
  %v1210 = vunpack.c.l.b16 %v214
  %v1211 = vunpack.c.l.b16 %v215
  %v1212 = vunpack.c.l.b16 %v216
  %v1213 = vunpack.c.l.b16 %v217
  %v1214 = vunpack.c.l.b16 %v218
  %v1215 = vunpack.c.l.b16 %v219
  %v1216 = vunpack.c.l.b16 %v220
  %v1217 = vunpack.c.l.b16 %v221
  %v1218 = vunpack.c.l.b16 %v222
  %v1219 = vunpack.c.l.b16 %v223
  %v1220 = vunpack.c.l.b16 %v224
  %v1221 = vunpack.c.l.b16 %v225
  %v1222 = vunpack.c.l.b16 %v226
  %v1223 = vunpack.c.l.b16 %v227
  %v1224 = vunpack.c.l.b16 %v228
  %v1225 = vunpack.c.l.b16 %v229
  %v1226 = vunpack.c.l.b16 %v230
  %v1227 = vunpack.c.l.b16 %v231
  %v1228 = vunpack.c.l.b16 %v232
  %v1229 = vunpack.c.l.b16 %v233
  %v1230 = vunpack.c.l.b16 %v234
  %v1231 = vunpack.c.l.b16 %v235
  %v1232 = vunpack.c.l.b16 %v236
  %v1233 = vunpack.c.l.b16 %v237
  %v1234 = vunpack.c.l.b16 %v238
  %v1235 = vunpack.c.l.b16 %v239
  %v1236 = vunpack.c.l.b16 %v240
  %v1237 = vunpack.c.l.b16 %v241
  %v1238 = vunpack.c.l.b16 %v242
  %v1239 = vunpack.c.l.b16 %v243
  %v1240 = vunpack.c.l.b16 %v244
  %v1241 = vunpack.c.l.b16 %v245
  %v1242 = vunpack.c.l.b16 %v246
  %v1243 = vunpack.c.l.b16 %v247
  %v1244 = vunpack.c.l.b16 %v248
  %v1245 = vunpack.c.l.b16 %v249
  %v1246 = vunpack.c.l.b16 %v250
  %v1247 = vunpack.c.l.b16 %v251
  %v1248 = vunpack.c.l.b16 %v252
  %v1249 = vunpack.c.l.b16 %v253
  %v1250 = vunpack.c.l.b16 %v254
  %v1251 = vunpack.c.l.b16 %v255
  %v1252 = vunpack.c.l.b16 %v256
  %v1253 = vunpack.c.l.b16 %v257
  %v1254 = vunpack.c.l.b16 %v258
  %v1255 = vunpack.c.l.b16 %v259
  %v1256 = vunpack.c.l.b16 %v260
  %v1257 = vunpack.c.l.b16 %v261
  %v1258 = vunpack.c.l.b16 %v262
  %v1259 = vunpack.c.l.b16 %v263
  %v1260 = vunpack.c.l.b16 %v264
  %v1261 = vunpack.c.l.b16 %v265
  %v1262 = vunpack.c.l.b16 %v266
  %v1263 = vunpack.c.l.b16 %v267
  %v1264 = vunpack.c.l.b16 %v268
  %v1265 = vunpack.c.l.b16 %v269
  %v1266 = vunpack.c.l.b16 %v270
  %v1267 = vunpack.c.l.b16 %v271
  %v1268 = vunpack.c.l.b16 %v272
  %v1269 = vunpack.c.l.b16 %v273
  %v1270 = vunpack.c.l.b16 %v274
  %v1271 = vunpack.c.l.b16 %v275
  %v1272 = vunpack.c.l.b16 %v276
  %v1273 = vunpack.c.l.b16 %v277
  %v1274 = vunpack.c.l.b16 %v278
  %v1275 = vunpack.c.l.b16 %v279
  %v1276 = vunpack.c.l.b16 %v280
  %v1277 = vunpack.c.l.b16 %v281
  %v1278 = vunpack.c.l.b16 %v282
  %v1279 = vunpack.c.l.b16 %v283
  %v1280 = vunpack.c.l.b16 %v284
  %v1281 = vunpack.c.l.b16 %v285
  %v1282 = vpack.c.b16 %v1203, %v1202
  %v1283 = vpack.c.b16 %v1205, %v1204
  %v1284 = vpack.c.b16 %v1207, %v1206
  %v1285 = vpack.c.b16 %v1209, %v1208
  %v1286 = vpack.c.b16 %v1211, %v1210
  %v1287 = vpack.c.b16 %v1213, %v1212
  %v1288 = vpack.c.b16 %v1215, %v1214
  %v1289 = vpack.c.b16 %v1217, %v1216
  %v1290 = vpack.c.b16 %v1219, %v1218
  %v1291 = vpack.c.b16 %v1221, %v1220
  %v1292 = vpack.c.b16 %v1223, %v1222
  %v1293 = vpack.c.b16 %v1225, %v1224
  %v1294 = vpack.c.b16 %v1227, %v1226
  %v1295 = vpack.c.b16 %v1229, %v1228
  %v1296 = vpack.c.b16 %v1231, %v1230
  %v1297 = vpack.c.b16 %v1233, %v1232
  %v1298 = vpack.c.b16 %v1235, %v1234
  %v1299 = vpack.c.b16 %v1237, %v1236
  %v1300 = vpack.c.b16 %v1239, %v1238
  %v1301 = vpack.c.b16 %v1241, %v1240
  %v1302 = vpack.c.b16 %v1243, %v1242
  %v1303 = vpack.c.b16 %v1245, %v1244
  %v1304 = vpack.c.b16 %v1247, %v1246
  %v1305 = vpack.c.b16 %v1249, %v1248
  %v1306 = vpack.c.b16 %v1251, %v1250
  %v1307 = vpack.c.b16 %v1253, %v1252
  %v1308 = vpack.c.b16 %v1255, %v1254
  %v1309 = vpack.c.b16 %v1257, %v1256
  %v1310 = vpack.c.b16 %v1259, %v1258
  %v1311 = vpack.c.b16 %v1261, %v1260
  %v1312 = vpack.c.b16 %v1263, %v1262
  %v1313 = vpack.c.b16 %v1265, %v1264
  %v1314 = vpack.c.b16 %v1267, %v1266
  %v1315 = vpack.c.b16 %v1269, %v1268
  %v1316 = vpack.c.b16 %v1271, %v1270
  %v1317 = vpack.c.b16 %v1273, %v1272
  %v1318 = vpack.c.b16 %v1275, %v1274
  %v1319 = vpack.c.b16 %v1277, %v1276
  %v1320 = vpack.c.b16 %v1279, %v1278
  %v1321 = vpack.c.b16 %v1281, %v1280
  %1362 = vmatpush.bf16.msra.mxu0 %v1289
  %1363 = vmatpush.bf16.msra.mxu0 %v1288
  %1364 = vmatpush.bf16.msra.mxu0 %v1287
  %1365 = vmatpush.bf16.msra.mxu0 %v1286
  %1366 = vmatpush.bf16.msra.mxu0 %v1285
  %1367 = vmatpush.bf16.msra.mxu0 %v1284
  %1368 = vmatpush.bf16.msra.mxu0 %v1283
  %1369 = vmatpush.bf16.msra.mxu0 %v1282
  %1370 = vmatmul.bf16.gmra.mxu0 %v802
  %v1371 = vpop.f32.mrf.mxu0
  %v1372 = vadd.f32 %v288, %v1371
  %v1373 = vpop.f32.mrf.mxu0
  %v1374 = vadd.f32 %v288, %v1373
  %1375 = vmatmul.bf16.gmra.mxu0 %v807
  %v1376 = vpop.f32.mrf.mxu0
  %v1377 = vadd.f32 %v288, %v1376
  %v1378 = vpop.f32.mrf.mxu0
  %v1379 = vadd.f32 %v288, %v1378
  %1380 = vmatmul.bf16.gmra.mxu0 %v812
  %v1381 = vpop.f32.mrf.mxu0
  %v1382 = vadd.f32 %v288, %v1381
  %v1383 = vpop.f32.mrf.mxu0
  %v1384 = vadd.f32 %v288, %v1383
  %1385 = vmatmul.bf16.gmra.mxu0 %v817
  %v1386 = vpop.f32.mrf.mxu0
  %v1387 = vadd.f32 %v288, %v1386
  %v1388 = vpop.f32.mrf.mxu0
  %v1389 = vadd.f32 %v288, %v1388
  %1390 = vmatmul.bf16.gmra.mxu0 %v822
  %v1391 = vpop.f32.mrf.mxu0
  %v1392 = vadd.f32 %v288, %v1391
  %v1393 = vpop.f32.mrf.mxu0
  %v1394 = vadd.f32 %v288, %v1393
  %1395 = vmatmul.bf16.gmra.mxu0 %v827
  %v1396 = vpop.f32.mrf.mxu0
  %v1397 = vadd.f32 %v288, %v1396
  %v1398 = vpop.f32.mrf.mxu0
  %v1399 = vadd.f32 %v288, %v1398
  %1400 = vmatmul.bf16.gmra.mxu0 %v832
  %v1401 = vpop.f32.mrf.mxu0
  %v1402 = vadd.f32 %v288, %v1401
  %v1403 = vpop.f32.mrf.mxu0
  %v1404 = vadd.f32 %v288, %v1403
  %1405 = vmatmul.bf16.gmra.mxu0 %v837
  %v1406 = vpop.f32.mrf.mxu0
  %v1407 = vadd.f32 %v288, %v1406
  %v1408 = vpop.f32.mrf.mxu0
  %v1409 = vadd.f32 %v288, %v1408
  %1410 = vmatmul.bf16.gmra.mxu0 %v842
  %v1411 = vpop.f32.mrf.mxu0
  %v1412 = vadd.f32 %v288, %v1411
  %v1413 = vpop.f32.mrf.mxu0
  %v1414 = vadd.f32 %v288, %v1413
  %1415 = vmatmul.bf16.gmra.mxu0 %v847
  %v1416 = vpop.f32.mrf.mxu0
  %v1417 = vadd.f32 %v288, %v1416
  %v1418 = vpop.f32.mrf.mxu0
  %v1419 = vadd.f32 %v288, %v1418
  %1420 = vmatmul.bf16.gmra.mxu0 %v852
  %v1421 = vpop.f32.mrf.mxu0
  %v1422 = vadd.f32 %v288, %v1421
  %v1423 = vpop.f32.mrf.mxu0
  %v1424 = vadd.f32 %v288, %v1423
  %1425 = vmatmul.bf16.gmra.mxu0 %v857
  %v1426 = vpop.f32.mrf.mxu0
  %v1427 = vadd.f32 %v288, %v1426
  %v1428 = vpop.f32.mrf.mxu0
  %v1429 = vadd.f32 %v288, %v1428
  %1430 = vmatmul.bf16.gmra.mxu0 %v862
  %v1431 = vpop.f32.mrf.mxu0
  %v1432 = vadd.f32 %v288, %v1431
  %v1433 = vpop.f32.mrf.mxu0
  %v1434 = vadd.f32 %v288, %v1433
  %1435 = vmatmul.bf16.gmra.mxu0 %v867
  %v1436 = vpop.f32.mrf.mxu0
  %v1437 = vadd.f32 %v288, %v1436
  %v1438 = vpop.f32.mrf.mxu0
  %v1439 = vadd.f32 %v288, %v1438
  %1440 = vmatmul.bf16.gmra.mxu0 %v872
  %v1441 = vpop.f32.mrf.mxu0
  %v1442 = vadd.f32 %v288, %v1441
  %v1443 = vpop.f32.mrf.mxu0
  %v1444 = vadd.f32 %v288, %v1443
  %1445 = vmatmul.bf16.gmra.mxu0 %v877
  %v1446 = vpop.f32.mrf.mxu0
  %v1447 = vadd.f32 %v288, %v1446
  %v1448 = vpop.f32.mrf.mxu0
  %v1449 = vadd.f32 %v288, %v1448
  %1450 = vmatmul.bf16.gmra.mxu0 %v882
  %v1451 = vpop.f32.mrf.mxu0
  %v1452 = vadd.f32 %v288, %v1451
  %v1453 = vpop.f32.mrf.mxu0
  %v1454 = vadd.f32 %v288, %v1453
  %1455 = vmatmul.bf16.gmra.mxu0 %v887
  %v1456 = vpop.f32.mrf.mxu0
  %v1457 = vadd.f32 %v288, %v1456
  %v1458 = vpop.f32.mrf.mxu0
  %v1459 = vadd.f32 %v288, %v1458
  %1460 = vmatmul.bf16.gmra.mxu0 %v892
  %v1461 = vpop.f32.mrf.mxu0
  %v1462 = vadd.f32 %v288, %v1461
  %v1463 = vpop.f32.mrf.mxu0
  %v1464 = vadd.f32 %v288, %v1463
  %1465 = vmatmul.bf16.gmra.mxu0 %v897
  %v1466 = vpop.f32.mrf.mxu0
  %v1467 = vadd.f32 %v288, %v1466
  %v1468 = vpop.f32.mrf.mxu0
  %v1469 = vadd.f32 %v288, %v1468
  %1470 = vmatmul.bf16.gmra.mxu0 %v902
  %v1471 = vpop.f32.mrf.mxu0
  %v1472 = vadd.f32 %v288, %v1471
  %v1473 = vpop.f32.mrf.mxu0
  %v1474 = vadd.f32 %v288, %v1473
  %1475 = vmatmul.bf16.gmra.mxu0 %v907
  %v1476 = vpop.f32.mrf.mxu0
  %v1477 = vadd.f32 %v288, %v1476
  %v1478 = vpop.f32.mrf.mxu0
  %v1479 = vadd.f32 %v288, %v1478
  %1480 = vmatmul.bf16.gmra.mxu0 %v912
  %v1481 = vpop.f32.mrf.mxu0
  %v1482 = vadd.f32 %v288, %v1481
  %v1483 = vpop.f32.mrf.mxu0
  %v1484 = vadd.f32 %v288, %v1483
  %1485 = vmatmul.bf16.gmra.mxu0 %v917
  %v1486 = vpop.f32.mrf.mxu0
  %v1487 = vadd.f32 %v288, %v1486
  %v1488 = vpop.f32.mrf.mxu0
  %v1489 = vadd.f32 %v288, %v1488
  %1490 = vmatmul.bf16.gmra.mxu0 %v922
  %v1491 = vpop.f32.mrf.mxu0
  %v1492 = vadd.f32 %v288, %v1491
  %v1493 = vpop.f32.mrf.mxu0
  %v1494 = vadd.f32 %v288, %v1493
  %1495 = vmatmul.bf16.gmra.mxu0 %v927
  %v1496 = vpop.f32.mrf.mxu0
  %v1497 = vadd.f32 %v288, %v1496
  %v1498 = vpop.f32.mrf.mxu0
  %v1499 = vadd.f32 %v288, %v1498
  %1500 = vmatmul.bf16.gmra.mxu0 %v932
  %v1501 = vpop.f32.mrf.mxu0
  %v1502 = vadd.f32 %v288, %v1501
  %v1503 = vpop.f32.mrf.mxu0
  %v1504 = vadd.f32 %v288, %v1503
  %1505 = vmatmul.bf16.gmra.mxu0 %v937
  %v1506 = vpop.f32.mrf.mxu0
  %v1507 = vadd.f32 %v288, %v1506
  %v1508 = vpop.f32.mrf.mxu0
  %v1509 = vadd.f32 %v288, %v1508
  %1510 = vmatmul.bf16.gmra.mxu0 %v942
  %v1511 = vpop.f32.mrf.mxu0
  %v1512 = vadd.f32 %v288, %v1511
  %v1513 = vpop.f32.mrf.mxu0
  %v1514 = vadd.f32 %v288, %v1513
  %1515 = vmatmul.bf16.gmra.mxu0 %v947
  %v1516 = vpop.f32.mrf.mxu0
  %v1517 = vadd.f32 %v288, %v1516
  %v1518 = vpop.f32.mrf.mxu0
  %v1519 = vadd.f32 %v288, %v1518
  %1520 = vmatmul.bf16.gmra.mxu0 %v952
  %v1521 = vpop.f32.mrf.mxu0
  %v1522 = vadd.f32 %v288, %v1521
  %v1523 = vpop.f32.mrf.mxu0
  %v1524 = vadd.f32 %v288, %v1523
  %1525 = vmatmul.bf16.gmra.mxu0 %v957
  %v1526 = vpop.f32.mrf.mxu0
  %v1527 = vadd.f32 %v288, %v1526
  %v1528 = vpop.f32.mrf.mxu0
  %v1529 = vadd.f32 %v288, %v1528
  %1530 = vdwg.mxu0
  %1531 = vmatpush.bf16.msra.mxu0 %v1297
  %1532 = vmatpush.bf16.msra.mxu0 %v1296
  %1533 = vmatpush.bf16.msra.mxu0 %v1295
  %1534 = vmatpush.bf16.msra.mxu0 %v1294
  %1535 = vmatpush.bf16.msra.mxu0 %v1293
  %1536 = vmatpush.bf16.msra.mxu0 %v1292
  %1537 = vmatpush.bf16.msra.mxu0 %v1291
  %1538 = vmatpush.bf16.msra.mxu0 %v1290
  %1539 = vmatmul.bf16.gmra.mxu0 %v803
  %v1540 = vpop.f32.mrf.mxu0
  %v1541 = vadd.f32 %v1372, %v1540
  %v1542 = vpop.f32.mrf.mxu0
  %v1543 = vadd.f32 %v1374, %v1542
  %1544 = vmatmul.bf16.gmra.mxu0 %v808
  %v1545 = vpop.f32.mrf.mxu0
  %v1546 = vadd.f32 %v1377, %v1545
  %v1547 = vpop.f32.mrf.mxu0
  %v1548 = vadd.f32 %v1379, %v1547
  %1549 = vmatmul.bf16.gmra.mxu0 %v813
  %v1550 = vpop.f32.mrf.mxu0
  %v1551 = vadd.f32 %v1382, %v1550
  %v1552 = vpop.f32.mrf.mxu0
  %v1553 = vadd.f32 %v1384, %v1552
  %1554 = vmatmul.bf16.gmra.mxu0 %v818
  %v1555 = vpop.f32.mrf.mxu0
  %v1556 = vadd.f32 %v1387, %v1555
  %v1557 = vpop.f32.mrf.mxu0
  %v1558 = vadd.f32 %v1389, %v1557
  %1559 = vmatmul.bf16.gmra.mxu0 %v823
  %v1560 = vpop.f32.mrf.mxu0
  %v1561 = vadd.f32 %v1392, %v1560
  %v1562 = vpop.f32.mrf.mxu0
  %v1563 = vadd.f32 %v1394, %v1562
  %1564 = vmatmul.bf16.gmra.mxu0 %v828
  %v1565 = vpop.f32.mrf.mxu0
  %v1566 = vadd.f32 %v1397, %v1565
  %v1567 = vpop.f32.mrf.mxu0
  %v1568 = vadd.f32 %v1399, %v1567
  %1569 = vmatmul.bf16.gmra.mxu0 %v833
  %v1570 = vpop.f32.mrf.mxu0
  %v1571 = vadd.f32 %v1402, %v1570
  %v1572 = vpop.f32.mrf.mxu0
  %v1573 = vadd.f32 %v1404, %v1572
  %1574 = vmatmul.bf16.gmra.mxu0 %v838
  %v1575 = vpop.f32.mrf.mxu0
  %v1576 = vadd.f32 %v1407, %v1575
  %v1577 = vpop.f32.mrf.mxu0
  %v1578 = vadd.f32 %v1409, %v1577
  %1579 = vmatmul.bf16.gmra.mxu0 %v843
  %v1580 = vpop.f32.mrf.mxu0
  %v1581 = vadd.f32 %v1412, %v1580
  %v1582 = vpop.f32.mrf.mxu0
  %v1583 = vadd.f32 %v1414, %v1582
  %1584 = vmatmul.bf16.gmra.mxu0 %v848
  %v1585 = vpop.f32.mrf.mxu0
  %v1586 = vadd.f32 %v1417, %v1585
  %v1587 = vpop.f32.mrf.mxu0
  %v1588 = vadd.f32 %v1419, %v1587
  %1589 = vmatmul.bf16.gmra.mxu0 %v853
  %v1590 = vpop.f32.mrf.mxu0
  %v1591 = vadd.f32 %v1422, %v1590
  %v1592 = vpop.f32.mrf.mxu0
  %v1593 = vadd.f32 %v1424, %v1592
  %1594 = vmatmul.bf16.gmra.mxu0 %v858
  %v1595 = vpop.f32.mrf.mxu0
  %v1596 = vadd.f32 %v1427, %v1595
  %v1597 = vpop.f32.mrf.mxu0
  %v1598 = vadd.f32 %v1429, %v1597
  %1599 = vmatmul.bf16.gmra.mxu0 %v863
  %v1600 = vpop.f32.mrf.mxu0
  %v1601 = vadd.f32 %v1432, %v1600
  %v1602 = vpop.f32.mrf.mxu0
  %v1603 = vadd.f32 %v1434, %v1602
  %1604 = vmatmul.bf16.gmra.mxu0 %v868
  %v1605 = vpop.f32.mrf.mxu0
  %v1606 = vadd.f32 %v1437, %v1605
  %v1607 = vpop.f32.mrf.mxu0
  %v1608 = vadd.f32 %v1439, %v1607
  %1609 = vmatmul.bf16.gmra.mxu0 %v873
  %v1610 = vpop.f32.mrf.mxu0
  %v1611 = vadd.f32 %v1442, %v1610
  %v1612 = vpop.f32.mrf.mxu0
  %v1613 = vadd.f32 %v1444, %v1612
  %1614 = vmatmul.bf16.gmra.mxu0 %v878
  %v1615 = vpop.f32.mrf.mxu0
  %v1616 = vadd.f32 %v1447, %v1615
  %v1617 = vpop.f32.mrf.mxu0
  %v1618 = vadd.f32 %v1449, %v1617
  %1619 = vmatmul.bf16.gmra.mxu0 %v883
  %v1620 = vpop.f32.mrf.mxu0
  %v1621 = vadd.f32 %v1452, %v1620
  %v1622 = vpop.f32.mrf.mxu0
  %v1623 = vadd.f32 %v1454, %v1622
  %1624 = vmatmul.bf16.gmra.mxu0 %v888
  %v1625 = vpop.f32.mrf.mxu0
  %v1626 = vadd.f32 %v1457, %v1625
  %v1627 = vpop.f32.mrf.mxu0
  %v1628 = vadd.f32 %v1459, %v1627
  %1629 = vmatmul.bf16.gmra.mxu0 %v893
  %v1630 = vpop.f32.mrf.mxu0
  %v1631 = vadd.f32 %v1462, %v1630
  %v1632 = vpop.f32.mrf.mxu0
  %v1633 = vadd.f32 %v1464, %v1632
  %1634 = vmatmul.bf16.gmra.mxu0 %v898
  %v1635 = vpop.f32.mrf.mxu0
  %v1636 = vadd.f32 %v1467, %v1635
  %v1637 = vpop.f32.mrf.mxu0
  %v1638 = vadd.f32 %v1469, %v1637
  %1639 = vmatmul.bf16.gmra.mxu0 %v903
  %v1640 = vpop.f32.mrf.mxu0
  %v1641 = vadd.f32 %v1472, %v1640
  %v1642 = vpop.f32.mrf.mxu0
  %v1643 = vadd.f32 %v1474, %v1642
  %1644 = vmatmul.bf16.gmra.mxu0 %v908
  %v1645 = vpop.f32.mrf.mxu0
  %v1646 = vadd.f32 %v1477, %v1645
  %v1647 = vpop.f32.mrf.mxu0
  %v1648 = vadd.f32 %v1479, %v1647
  %1649 = vmatmul.bf16.gmra.mxu0 %v913
  %v1650 = vpop.f32.mrf.mxu0
  %v1651 = vadd.f32 %v1482, %v1650
  %v1652 = vpop.f32.mrf.mxu0
  %v1653 = vadd.f32 %v1484, %v1652
  %1654 = vmatmul.bf16.gmra.mxu0 %v918
  %v1655 = vpop.f32.mrf.mxu0
  %v1656 = vadd.f32 %v1487, %v1655
  %v1657 = vpop.f32.mrf.mxu0
  %v1658 = vadd.f32 %v1489, %v1657
  %1659 = vmatmul.bf16.gmra.mxu0 %v923
  %v1660 = vpop.f32.mrf.mxu0
  %v1661 = vadd.f32 %v1492, %v1660
  %v1662 = vpop.f32.mrf.mxu0
  %v1663 = vadd.f32 %v1494, %v1662
  %1664 = vmatmul.bf16.gmra.mxu0 %v928
  %v1665 = vpop.f32.mrf.mxu0
  %v1666 = vadd.f32 %v1497, %v1665
  %v1667 = vpop.f32.mrf.mxu0
  %v1668 = vadd.f32 %v1499, %v1667
  %1669 = vmatmul.bf16.gmra.mxu0 %v933
  %v1670 = vpop.f32.mrf.mxu0
  %v1671 = vadd.f32 %v1502, %v1670
  %v1672 = vpop.f32.mrf.mxu0
  %v1673 = vadd.f32 %v1504, %v1672
  %1674 = vmatmul.bf16.gmra.mxu0 %v938
  %v1675 = vpop.f32.mrf.mxu0
  %v1676 = vadd.f32 %v1507, %v1675
  %v1677 = vpop.f32.mrf.mxu0
  %v1678 = vadd.f32 %v1509, %v1677
  %1679 = vmatmul.bf16.gmra.mxu0 %v943
  %v1680 = vpop.f32.mrf.mxu0
  %v1681 = vadd.f32 %v1512, %v1680
  %v1682 = vpop.f32.mrf.mxu0
  %v1683 = vadd.f32 %v1514, %v1682
  %1684 = vmatmul.bf16.gmra.mxu0 %v948
  %v1685 = vpop.f32.mrf.mxu0
  %v1686 = vadd.f32 %v1517, %v1685
  %v1687 = vpop.f32.mrf.mxu0
  %v1688 = vadd.f32 %v1519, %v1687
  %1689 = vmatmul.bf16.gmra.mxu0 %v953
  %v1690 = vpop.f32.mrf.mxu0
  %v1691 = vadd.f32 %v1522, %v1690
  %v1692 = vpop.f32.mrf.mxu0
  %v1693 = vadd.f32 %v1524, %v1692
  %1694 = vmatmul.bf16.gmra.mxu0 %v958
  %v1695 = vpop.f32.mrf.mxu0
  %v1696 = vadd.f32 %v1527, %v1695
  %v1697 = vpop.f32.mrf.mxu0
  %v1698 = vadd.f32 %v1529, %v1697
  %1699 = vdwg.mxu0
  %1700 = vmatpush.bf16.msra.mxu0 %v1305
  %1701 = vmatpush.bf16.msra.mxu0 %v1304
  %1702 = vmatpush.bf16.msra.mxu0 %v1303
  %1703 = vmatpush.bf16.msra.mxu0 %v1302
  %1704 = vmatpush.bf16.msra.mxu0 %v1301
  %1705 = vmatpush.bf16.msra.mxu0 %v1300
  %1706 = vmatpush.bf16.msra.mxu0 %v1299
  %1707 = vmatpush.bf16.msra.mxu0 %v1298
  %1708 = vmatmul.bf16.gmra.mxu0 %v804
  %v1709 = vpop.f32.mrf.mxu0
  %v1710 = vadd.f32 %v1541, %v1709
  %v1711 = vpop.f32.mrf.mxu0
  %v1712 = vadd.f32 %v1543, %v1711
  %1713 = vmatmul.bf16.gmra.mxu0 %v809
  %v1714 = vpop.f32.mrf.mxu0
  %v1715 = vadd.f32 %v1546, %v1714
  %v1716 = vpop.f32.mrf.mxu0
  %v1717 = vadd.f32 %v1548, %v1716
  %1718 = vmatmul.bf16.gmra.mxu0 %v814
  %v1719 = vpop.f32.mrf.mxu0
  %v1720 = vadd.f32 %v1551, %v1719
  %v1721 = vpop.f32.mrf.mxu0
  %v1722 = vadd.f32 %v1553, %v1721
  %1723 = vmatmul.bf16.gmra.mxu0 %v819
  %v1724 = vpop.f32.mrf.mxu0
  %v1725 = vadd.f32 %v1556, %v1724
  %v1726 = vpop.f32.mrf.mxu0
  %v1727 = vadd.f32 %v1558, %v1726
  %1728 = vmatmul.bf16.gmra.mxu0 %v824
  %v1729 = vpop.f32.mrf.mxu0
  %v1730 = vadd.f32 %v1561, %v1729
  %v1731 = vpop.f32.mrf.mxu0
  %v1732 = vadd.f32 %v1563, %v1731
  %1733 = vmatmul.bf16.gmra.mxu0 %v829
  %v1734 = vpop.f32.mrf.mxu0
  %v1735 = vadd.f32 %v1566, %v1734
  %v1736 = vpop.f32.mrf.mxu0
  %v1737 = vadd.f32 %v1568, %v1736
  %1738 = vmatmul.bf16.gmra.mxu0 %v834
  %v1739 = vpop.f32.mrf.mxu0
  %v1740 = vadd.f32 %v1571, %v1739
  %v1741 = vpop.f32.mrf.mxu0
  %v1742 = vadd.f32 %v1573, %v1741
  %1743 = vmatmul.bf16.gmra.mxu0 %v839
  %v1744 = vpop.f32.mrf.mxu0
  %v1745 = vadd.f32 %v1576, %v1744
  %v1746 = vpop.f32.mrf.mxu0
  %v1747 = vadd.f32 %v1578, %v1746
  %1748 = vmatmul.bf16.gmra.mxu0 %v844
  %v1749 = vpop.f32.mrf.mxu0
  %v1750 = vadd.f32 %v1581, %v1749
  %v1751 = vpop.f32.mrf.mxu0
  %v1752 = vadd.f32 %v1583, %v1751
  %1753 = vmatmul.bf16.gmra.mxu0 %v849
  %v1754 = vpop.f32.mrf.mxu0
  %v1755 = vadd.f32 %v1586, %v1754
  %v1756 = vpop.f32.mrf.mxu0
  %v1757 = vadd.f32 %v1588, %v1756
  %1758 = vmatmul.bf16.gmra.mxu0 %v854
  %v1759 = vpop.f32.mrf.mxu0
  %v1760 = vadd.f32 %v1591, %v1759
  %v1761 = vpop.f32.mrf.mxu0
  %v1762 = vadd.f32 %v1593, %v1761
  %1763 = vmatmul.bf16.gmra.mxu0 %v859
  %v1764 = vpop.f32.mrf.mxu0
  %v1765 = vadd.f32 %v1596, %v1764
  %v1766 = vpop.f32.mrf.mxu0
  %v1767 = vadd.f32 %v1598, %v1766
  %1768 = vmatmul.bf16.gmra.mxu0 %v864
  %v1769 = vpop.f32.mrf.mxu0
  %v1770 = vadd.f32 %v1601, %v1769
  %v1771 = vpop.f32.mrf.mxu0
  %v1772 = vadd.f32 %v1603, %v1771
  %1773 = vmatmul.bf16.gmra.mxu0 %v869
  %v1774 = vpop.f32.mrf.mxu0
  %v1775 = vadd.f32 %v1606, %v1774
  %v1776 = vpop.f32.mrf.mxu0
  %v1777 = vadd.f32 %v1608, %v1776
  %1778 = vmatmul.bf16.gmra.mxu0 %v874
  %v1779 = vpop.f32.mrf.mxu0
  %v1780 = vadd.f32 %v1611, %v1779
  %v1781 = vpop.f32.mrf.mxu0
  %v1782 = vadd.f32 %v1613, %v1781
  %1783 = vmatmul.bf16.gmra.mxu0 %v879
  %v1784 = vpop.f32.mrf.mxu0
  %v1785 = vadd.f32 %v1616, %v1784
  %v1786 = vpop.f32.mrf.mxu0
  %v1787 = vadd.f32 %v1618, %v1786
  %1788 = vmatmul.bf16.gmra.mxu0 %v884
  %v1789 = vpop.f32.mrf.mxu0
  %v1790 = vadd.f32 %v1621, %v1789
  %v1791 = vpop.f32.mrf.mxu0
  %v1792 = vadd.f32 %v1623, %v1791
  %1793 = vmatmul.bf16.gmra.mxu0 %v889
  %v1794 = vpop.f32.mrf.mxu0
  %v1795 = vadd.f32 %v1626, %v1794
  %v1796 = vpop.f32.mrf.mxu0
  %v1797 = vadd.f32 %v1628, %v1796
  %1798 = vmatmul.bf16.gmra.mxu0 %v894
  %v1799 = vpop.f32.mrf.mxu0
  %v1800 = vadd.f32 %v1631, %v1799
  %v1801 = vpop.f32.mrf.mxu0
  %v1802 = vadd.f32 %v1633, %v1801
  %1803 = vmatmul.bf16.gmra.mxu0 %v899
  %v1804 = vpop.f32.mrf.mxu0
  %v1805 = vadd.f32 %v1636, %v1804
  %v1806 = vpop.f32.mrf.mxu0
  %v1807 = vadd.f32 %v1638, %v1806
  %1808 = vmatmul.bf16.gmra.mxu0 %v904
  %v1809 = vpop.f32.mrf.mxu0
  %v1810 = vadd.f32 %v1641, %v1809
  %v1811 = vpop.f32.mrf.mxu0
  %v1812 = vadd.f32 %v1643, %v1811
  %1813 = vmatmul.bf16.gmra.mxu0 %v909
  %v1814 = vpop.f32.mrf.mxu0
  %v1815 = vadd.f32 %v1646, %v1814
  %v1816 = vpop.f32.mrf.mxu0
  %v1817 = vadd.f32 %v1648, %v1816
  %1818 = vmatmul.bf16.gmra.mxu0 %v914
  %v1819 = vpop.f32.mrf.mxu0
  %v1820 = vadd.f32 %v1651, %v1819
  %v1821 = vpop.f32.mrf.mxu0
  %v1822 = vadd.f32 %v1653, %v1821
  %1823 = vmatmul.bf16.gmra.mxu0 %v919
  %v1824 = vpop.f32.mrf.mxu0
  %v1825 = vadd.f32 %v1656, %v1824
  %v1826 = vpop.f32.mrf.mxu0
  %v1827 = vadd.f32 %v1658, %v1826
  %1828 = vmatmul.bf16.gmra.mxu0 %v924
  %v1829 = vpop.f32.mrf.mxu0
  %v1830 = vadd.f32 %v1661, %v1829
  %v1831 = vpop.f32.mrf.mxu0
  %v1832 = vadd.f32 %v1663, %v1831
  %1833 = vmatmul.bf16.gmra.mxu0 %v929
  %v1834 = vpop.f32.mrf.mxu0
  %v1835 = vadd.f32 %v1666, %v1834
  %v1836 = vpop.f32.mrf.mxu0
  %v1837 = vadd.f32 %v1668, %v1836
  %1838 = vmatmul.bf16.gmra.mxu0 %v934
  %v1839 = vpop.f32.mrf.mxu0
  %v1840 = vadd.f32 %v1671, %v1839
  %v1841 = vpop.f32.mrf.mxu0
  %v1842 = vadd.f32 %v1673, %v1841
  %1843 = vmatmul.bf16.gmra.mxu0 %v939
  %v1844 = vpop.f32.mrf.mxu0
  %v1845 = vadd.f32 %v1676, %v1844
  %v1846 = vpop.f32.mrf.mxu0
  %v1847 = vadd.f32 %v1678, %v1846
  %1848 = vmatmul.bf16.gmra.mxu0 %v944
  %v1849 = vpop.f32.mrf.mxu0
  %v1850 = vadd.f32 %v1681, %v1849
  %v1851 = vpop.f32.mrf.mxu0
  %v1852 = vadd.f32 %v1683, %v1851
  %1853 = vmatmul.bf16.gmra.mxu0 %v949
  %v1854 = vpop.f32.mrf.mxu0
  %v1855 = vadd.f32 %v1686, %v1854
  %v1856 = vpop.f32.mrf.mxu0
  %v1857 = vadd.f32 %v1688, %v1856
  %1858 = vmatmul.bf16.gmra.mxu0 %v954
  %v1859 = vpop.f32.mrf.mxu0
  %v1860 = vadd.f32 %v1691, %v1859
  %v1861 = vpop.f32.mrf.mxu0
  %v1862 = vadd.f32 %v1693, %v1861
  %1863 = vmatmul.bf16.gmra.mxu0 %v959
  %v1864 = vpop.f32.mrf.mxu0
  %v1865 = vadd.f32 %v1696, %v1864
  %v1866 = vpop.f32.mrf.mxu0
  %v1867 = vadd.f32 %v1698, %v1866
  %1868 = vdwg.mxu0
  %1869 = vmatpush.bf16.msra.mxu0 %v1313
  %1870 = vmatpush.bf16.msra.mxu0 %v1312
  %1871 = vmatpush.bf16.msra.mxu0 %v1311
  %1872 = vmatpush.bf16.msra.mxu0 %v1310
  %1873 = vmatpush.bf16.msra.mxu0 %v1309
  %1874 = vmatpush.bf16.msra.mxu0 %v1308
  %1875 = vmatpush.bf16.msra.mxu0 %v1307
  %1876 = vmatpush.bf16.msra.mxu0 %v1306
  %1877 = vmatmul.bf16.gmra.mxu0 %v805
  %v1878 = vpop.f32.mrf.mxu0
  %v1879 = vadd.f32 %v1710, %v1878
  %v1880 = vpop.f32.mrf.mxu0
  %v1881 = vadd.f32 %v1712, %v1880
  %1882 = vmatmul.bf16.gmra.mxu0 %v810
  %v1883 = vpop.f32.mrf.mxu0
  %v1884 = vadd.f32 %v1715, %v1883
  %v1885 = vpop.f32.mrf.mxu0
  %v1886 = vadd.f32 %v1717, %v1885
  %1887 = vmatmul.bf16.gmra.mxu0 %v815
  %v1888 = vpop.f32.mrf.mxu0
  %v1889 = vadd.f32 %v1720, %v1888
  %v1890 = vpop.f32.mrf.mxu0
  %v1891 = vadd.f32 %v1722, %v1890
  %1892 = vmatmul.bf16.gmra.mxu0 %v820
  %v1893 = vpop.f32.mrf.mxu0
  %v1894 = vadd.f32 %v1725, %v1893
  %v1895 = vpop.f32.mrf.mxu0
  %v1896 = vadd.f32 %v1727, %v1895
  %1897 = vmatmul.bf16.gmra.mxu0 %v825
  %v1898 = vpop.f32.mrf.mxu0
  %v1899 = vadd.f32 %v1730, %v1898
  %v1900 = vpop.f32.mrf.mxu0
  %v1901 = vadd.f32 %v1732, %v1900
  %1902 = vmatmul.bf16.gmra.mxu0 %v830
  %v1903 = vpop.f32.mrf.mxu0
  %v1904 = vadd.f32 %v1735, %v1903
  %v1905 = vpop.f32.mrf.mxu0
  %v1906 = vadd.f32 %v1737, %v1905
  %1907 = vmatmul.bf16.gmra.mxu0 %v835
  %v1908 = vpop.f32.mrf.mxu0
  %v1909 = vadd.f32 %v1740, %v1908
  %v1910 = vpop.f32.mrf.mxu0
  %v1911 = vadd.f32 %v1742, %v1910
  %1912 = vmatmul.bf16.gmra.mxu0 %v840
  %v1913 = vpop.f32.mrf.mxu0
  %v1914 = vadd.f32 %v1745, %v1913
  %v1915 = vpop.f32.mrf.mxu0
  %v1916 = vadd.f32 %v1747, %v1915
  %1917 = vmatmul.bf16.gmra.mxu0 %v845
  %v1918 = vpop.f32.mrf.mxu0
  %v1919 = vadd.f32 %v1750, %v1918
  %v1920 = vpop.f32.mrf.mxu0
  %v1921 = vadd.f32 %v1752, %v1920
  %1922 = vmatmul.bf16.gmra.mxu0 %v850
  %v1923 = vpop.f32.mrf.mxu0
  %v1924 = vadd.f32 %v1755, %v1923
  %v1925 = vpop.f32.mrf.mxu0
  %v1926 = vadd.f32 %v1757, %v1925
  %1927 = vmatmul.bf16.gmra.mxu0 %v855
  %v1928 = vpop.f32.mrf.mxu0
  %v1929 = vadd.f32 %v1760, %v1928
  %v1930 = vpop.f32.mrf.mxu0
  %v1931 = vadd.f32 %v1762, %v1930
  %1932 = vmatmul.bf16.gmra.mxu0 %v860
  %v1933 = vpop.f32.mrf.mxu0
  %v1934 = vadd.f32 %v1765, %v1933
  %v1935 = vpop.f32.mrf.mxu0
  %v1936 = vadd.f32 %v1767, %v1935
  %1937 = vmatmul.bf16.gmra.mxu0 %v865
  %v1938 = vpop.f32.mrf.mxu0
  %v1939 = vadd.f32 %v1770, %v1938
  %v1940 = vpop.f32.mrf.mxu0
  %v1941 = vadd.f32 %v1772, %v1940
  %1942 = vmatmul.bf16.gmra.mxu0 %v870
  %v1943 = vpop.f32.mrf.mxu0
  %v1944 = vadd.f32 %v1775, %v1943
  %v1945 = vpop.f32.mrf.mxu0
  %v1946 = vadd.f32 %v1777, %v1945
  %1947 = vmatmul.bf16.gmra.mxu0 %v875
  %v1948 = vpop.f32.mrf.mxu0
  %v1949 = vadd.f32 %v1780, %v1948
  %v1950 = vpop.f32.mrf.mxu0
  %v1951 = vadd.f32 %v1782, %v1950
  %1952 = vmatmul.bf16.gmra.mxu0 %v880
  %v1953 = vpop.f32.mrf.mxu0
  %v1954 = vadd.f32 %v1785, %v1953
  %v1955 = vpop.f32.mrf.mxu0
  %v1956 = vadd.f32 %v1787, %v1955
  %1957 = vmatmul.bf16.gmra.mxu0 %v885
  %v1958 = vpop.f32.mrf.mxu0
  %v1959 = vadd.f32 %v1790, %v1958
  %v1960 = vpop.f32.mrf.mxu0
  %v1961 = vadd.f32 %v1792, %v1960
  %1962 = vmatmul.bf16.gmra.mxu0 %v890
  %v1963 = vpop.f32.mrf.mxu0
  %v1964 = vadd.f32 %v1795, %v1963
  %v1965 = vpop.f32.mrf.mxu0
  %v1966 = vadd.f32 %v1797, %v1965
  %1967 = vmatmul.bf16.gmra.mxu0 %v895
  %v1968 = vpop.f32.mrf.mxu0
  %v1969 = vadd.f32 %v1800, %v1968
  %v1970 = vpop.f32.mrf.mxu0
  %v1971 = vadd.f32 %v1802, %v1970
  %1972 = vmatmul.bf16.gmra.mxu0 %v900
  %v1973 = vpop.f32.mrf.mxu0
  %v1974 = vadd.f32 %v1805, %v1973
  %v1975 = vpop.f32.mrf.mxu0
  %v1976 = vadd.f32 %v1807, %v1975
  %1977 = vmatmul.bf16.gmra.mxu0 %v905
  %v1978 = vpop.f32.mrf.mxu0
  %v1979 = vadd.f32 %v1810, %v1978
  %v1980 = vpop.f32.mrf.mxu0
  %v1981 = vadd.f32 %v1812, %v1980
  %1982 = vmatmul.bf16.gmra.mxu0 %v910
  %v1983 = vpop.f32.mrf.mxu0
  %v1984 = vadd.f32 %v1815, %v1983
  %v1985 = vpop.f32.mrf.mxu0
  %v1986 = vadd.f32 %v1817, %v1985
  %1987 = vmatmul.bf16.gmra.mxu0 %v915
  %v1988 = vpop.f32.mrf.mxu0
  %v1989 = vadd.f32 %v1820, %v1988
  %v1990 = vpop.f32.mrf.mxu0
  %v1991 = vadd.f32 %v1822, %v1990
  %1992 = vmatmul.bf16.gmra.mxu0 %v920
  %v1993 = vpop.f32.mrf.mxu0
  %v1994 = vadd.f32 %v1825, %v1993
  %v1995 = vpop.f32.mrf.mxu0
  %v1996 = vadd.f32 %v1827, %v1995
  %1997 = vmatmul.bf16.gmra.mxu0 %v925
  %v1998 = vpop.f32.mrf.mxu0
  %v1999 = vadd.f32 %v1830, %v1998
  %v2000 = vpop.f32.mrf.mxu0
  %v2001 = vadd.f32 %v1832, %v2000
  %2002 = vmatmul.bf16.gmra.mxu0 %v930
  %v2003 = vpop.f32.mrf.mxu0
  %v2004 = vadd.f32 %v1835, %v2003
  %v2005 = vpop.f32.mrf.mxu0
  %v2006 = vadd.f32 %v1837, %v2005
  %2007 = vmatmul.bf16.gmra.mxu0 %v935
  %v2008 = vpop.f32.mrf.mxu0
  %v2009 = vadd.f32 %v1840, %v2008
  %v2010 = vpop.f32.mrf.mxu0
  %v2011 = vadd.f32 %v1842, %v2010
  %2012 = vmatmul.bf16.gmra.mxu0 %v940
  %v2013 = vpop.f32.mrf.mxu0
  %v2014 = vadd.f32 %v1845, %v2013
  %v2015 = vpop.f32.mrf.mxu0
  %v2016 = vadd.f32 %v1847, %v2015
  %2017 = vmatmul.bf16.gmra.mxu0 %v945
  %v2018 = vpop.f32.mrf.mxu0
  %v2019 = vadd.f32 %v1850, %v2018
  %v2020 = vpop.f32.mrf.mxu0
  %v2021 = vadd.f32 %v1852, %v2020
  %2022 = vmatmul.bf16.gmra.mxu0 %v950
  %v2023 = vpop.f32.mrf.mxu0
  %v2024 = vadd.f32 %v1855, %v2023
  %v2025 = vpop.f32.mrf.mxu0
  %v2026 = vadd.f32 %v1857, %v2025
  %2027 = vmatmul.bf16.gmra.mxu0 %v955
  %v2028 = vpop.f32.mrf.mxu0
  %v2029 = vadd.f32 %v1860, %v2028
  %v2030 = vpop.f32.mrf.mxu0
  %v2031 = vadd.f32 %v1862, %v2030
  %2032 = vmatmul.bf16.gmra.mxu0 %v960
  %v2033 = vpop.f32.mrf.mxu0
  %v2034 = vadd.f32 %v1865, %v2033
  %v2035 = vpop.f32.mrf.mxu0
  %v2036 = vadd.f32 %v1867, %v2035
  %2037 = vdwg.mxu0
  %2038 = vmatpush.bf16.msra.mxu0 %v1321
  %2039 = vmatpush.bf16.msra.mxu0 %v1320
  %2040 = vmatpush.bf16.msra.mxu0 %v1319
  %2041 = vmatpush.bf16.msra.mxu0 %v1318
  %2042 = vmatpush.bf16.msra.mxu0 %v1317
  %2043 = vmatpush.bf16.msra.mxu0 %v1316
  %2044 = vmatpush.bf16.msra.mxu0 %v1315
  %2045 = vmatpush.bf16.msra.mxu0 %v1314
  %2046 = vmatmul.bf16.gmra.mxu0 %v806
  %v2047 = vpop.f32.mrf.mxu0
  %v2048 = vadd.f32 %v1879, %v2047
  %v2049 = vpop.f32.mrf.mxu0
  %v2050 = vadd.f32 %v1881, %v2049
  %2051 = vmatmul.bf16.gmra.mxu0 %v811
  %v2052 = vpop.f32.mrf.mxu0
  %v2053 = vadd.f32 %v1884, %v2052
  %v2054 = vpop.f32.mrf.mxu0
  %v2055 = vadd.f32 %v1886, %v2054
  %2056 = vmatmul.bf16.gmra.mxu0 %v816
  %v2057 = vpop.f32.mrf.mxu0
  %v2058 = vadd.f32 %v1889, %v2057
  %v2059 = vpop.f32.mrf.mxu0
  %v2060 = vadd.f32 %v1891, %v2059
  %2061 = vmatmul.bf16.gmra.mxu0 %v821
  %v2062 = vpop.f32.mrf.mxu0
  %v2063 = vadd.f32 %v1894, %v2062
  %v2064 = vpop.f32.mrf.mxu0
  %v2065 = vadd.f32 %v1896, %v2064
  %2066 = vmatmul.bf16.gmra.mxu0 %v826
  %v2067 = vpop.f32.mrf.mxu0
  %v2068 = vadd.f32 %v1899, %v2067
  %v2069 = vpop.f32.mrf.mxu0
  %v2070 = vadd.f32 %v1901, %v2069
  %2071 = vmatmul.bf16.gmra.mxu0 %v831
  %v2072 = vpop.f32.mrf.mxu0
  %v2073 = vadd.f32 %v1904, %v2072
  %v2074 = vpop.f32.mrf.mxu0
  %v2075 = vadd.f32 %v1906, %v2074
  %2076 = vmatmul.bf16.gmra.mxu0 %v836
  %v2077 = vpop.f32.mrf.mxu0
  %v2078 = vadd.f32 %v1909, %v2077
  %v2079 = vpop.f32.mrf.mxu0
  %v2080 = vadd.f32 %v1911, %v2079
  %2081 = vmatmul.bf16.gmra.mxu0 %v841
  %v2082 = vpop.f32.mrf.mxu0
  %v2083 = vadd.f32 %v1914, %v2082
  %v2084 = vpop.f32.mrf.mxu0
  %v2085 = vadd.f32 %v1916, %v2084
  %2086 = vmatmul.bf16.gmra.mxu0 %v846
  %v2087 = vpop.f32.mrf.mxu0
  %v2088 = vadd.f32 %v1919, %v2087
  %v2089 = vpop.f32.mrf.mxu0
  %v2090 = vadd.f32 %v1921, %v2089
  %2091 = vmatmul.bf16.gmra.mxu0 %v851
  %v2092 = vpop.f32.mrf.mxu0
  %v2093 = vadd.f32 %v1924, %v2092
  %v2094 = vpop.f32.mrf.mxu0
  %v2095 = vadd.f32 %v1926, %v2094
  %2096 = vmatmul.bf16.gmra.mxu0 %v856
  %v2097 = vpop.f32.mrf.mxu0
  %v2098 = vadd.f32 %v1929, %v2097
  %v2099 = vpop.f32.mrf.mxu0
  %v2100 = vadd.f32 %v1931, %v2099
  %2101 = vmatmul.bf16.gmra.mxu0 %v861
  %v2102 = vpop.f32.mrf.mxu0
  %v2103 = vadd.f32 %v1934, %v2102
  %v2104 = vpop.f32.mrf.mxu0
  %v2105 = vadd.f32 %v1936, %v2104
  %2106 = vmatmul.bf16.gmra.mxu0 %v866
  %v2107 = vpop.f32.mrf.mxu0
  %v2108 = vadd.f32 %v1939, %v2107
  %v2109 = vpop.f32.mrf.mxu0
  %v2110 = vadd.f32 %v1941, %v2109
  %2111 = vmatmul.bf16.gmra.mxu0 %v871
  %v2112 = vpop.f32.mrf.mxu0
  %v2113 = vadd.f32 %v1944, %v2112
  %v2114 = vpop.f32.mrf.mxu0
  %v2115 = vadd.f32 %v1946, %v2114
  %2116 = vmatmul.bf16.gmra.mxu0 %v876
  %v2117 = vpop.f32.mrf.mxu0
  %v2118 = vadd.f32 %v1949, %v2117
  %v2119 = vpop.f32.mrf.mxu0
  %v2120 = vadd.f32 %v1951, %v2119
  %2121 = vmatmul.bf16.gmra.mxu0 %v881
  %v2122 = vpop.f32.mrf.mxu0
  %v2123 = vadd.f32 %v1954, %v2122
  %v2124 = vpop.f32.mrf.mxu0
  %v2125 = vadd.f32 %v1956, %v2124
  %2126 = vmatmul.bf16.gmra.mxu0 %v886
  %v2127 = vpop.f32.mrf.mxu0
  %v2128 = vadd.f32 %v1959, %v2127
  %v2129 = vpop.f32.mrf.mxu0
  %v2130 = vadd.f32 %v1961, %v2129
  %2131 = vmatmul.bf16.gmra.mxu0 %v891
  %v2132 = vpop.f32.mrf.mxu0
  %v2133 = vadd.f32 %v1964, %v2132
  %v2134 = vpop.f32.mrf.mxu0
  %v2135 = vadd.f32 %v1966, %v2134
  %2136 = vmatmul.bf16.gmra.mxu0 %v896
  %v2137 = vpop.f32.mrf.mxu0
  %v2138 = vadd.f32 %v1969, %v2137
  %v2139 = vpop.f32.mrf.mxu0
  %v2140 = vadd.f32 %v1971, %v2139
  %2141 = vmatmul.bf16.gmra.mxu0 %v901
  %v2142 = vpop.f32.mrf.mxu0
  %v2143 = vadd.f32 %v1974, %v2142
  %v2144 = vpop.f32.mrf.mxu0
  %v2145 = vadd.f32 %v1976, %v2144
  %2146 = vmatmul.bf16.gmra.mxu0 %v906
  %v2147 = vpop.f32.mrf.mxu0
  %v2148 = vadd.f32 %v1979, %v2147
  %v2149 = vpop.f32.mrf.mxu0
  %v2150 = vadd.f32 %v1981, %v2149
  %2151 = vmatmul.bf16.gmra.mxu0 %v911
  %v2152 = vpop.f32.mrf.mxu0
  %v2153 = vadd.f32 %v1984, %v2152
  %v2154 = vpop.f32.mrf.mxu0
  %v2155 = vadd.f32 %v1986, %v2154
  %2156 = vmatmul.bf16.gmra.mxu0 %v916
  %v2157 = vpop.f32.mrf.mxu0
  %v2158 = vadd.f32 %v1989, %v2157
  %v2159 = vpop.f32.mrf.mxu0
  %v2160 = vadd.f32 %v1991, %v2159
  %2161 = vmatmul.bf16.gmra.mxu0 %v921
  %v2162 = vpop.f32.mrf.mxu0
  %v2163 = vadd.f32 %v1994, %v2162
  %v2164 = vpop.f32.mrf.mxu0
  %v2165 = vadd.f32 %v1996, %v2164
  %2166 = vmatmul.bf16.gmra.mxu0 %v926
  %v2167 = vpop.f32.mrf.mxu0
  %v2168 = vadd.f32 %v1999, %v2167
  %v2169 = vpop.f32.mrf.mxu0
  %v2170 = vadd.f32 %v2001, %v2169
  %2171 = vmatmul.bf16.gmra.mxu0 %v931
  %v2172 = vpop.f32.mrf.mxu0
  %v2173 = vadd.f32 %v2004, %v2172
  %v2174 = vpop.f32.mrf.mxu0
  %v2175 = vadd.f32 %v2006, %v2174
  %2176 = vmatmul.bf16.gmra.mxu0 %v936
  %v2177 = vpop.f32.mrf.mxu0
  %v2178 = vadd.f32 %v2009, %v2177
  %v2179 = vpop.f32.mrf.mxu0
  %v2180 = vadd.f32 %v2011, %v2179
  %2181 = vmatmul.bf16.gmra.mxu0 %v941
  %v2182 = vpop.f32.mrf.mxu0
  %v2183 = vadd.f32 %v2014, %v2182
  %v2184 = vpop.f32.mrf.mxu0
  %v2185 = vadd.f32 %v2016, %v2184
  %2186 = vmatmul.bf16.gmra.mxu0 %v946
  %v2187 = vpop.f32.mrf.mxu0
  %v2188 = vadd.f32 %v2019, %v2187
  %v2189 = vpop.f32.mrf.mxu0
  %v2190 = vadd.f32 %v2021, %v2189
  %2191 = vmatmul.bf16.gmra.mxu0 %v951
  %v2192 = vpop.f32.mrf.mxu0
  %v2193 = vadd.f32 %v2024, %v2192
  %v2194 = vpop.f32.mrf.mxu0
  %v2195 = vadd.f32 %v2026, %v2194
  %2196 = vmatmul.bf16.gmra.mxu0 %v956
  %v2197 = vpop.f32.mrf.mxu0
  %v2198 = vadd.f32 %v2029, %v2197
  %v2199 = vpop.f32.mrf.mxu0
  %v2200 = vadd.f32 %v2031, %v2199
  %2201 = vmatmul.bf16.gmra.mxu0 %v961
  %v2202 = vpop.f32.mrf.mxu0
  %v2203 = vadd.f32 %v2034, %v2202
  %v2204 = vpop.f32.mrf.mxu0
  %v2205 = vadd.f32 %v2036, %v2204
  %2206 = vdwg.mxu0
  %v2207 = vmax.f32 %v2048, 0.0
  %v2208 = vmax.f32 %v2050, 0.0
  %v2209 = vmax.f32 %v2053, 0.0
  %v2210 = vmax.f32 %v2055, 0.0
  %v2211 = vmax.f32 %v2058, 0.0
  %v2212 = vmax.f32 %v2060, 0.0
  %v2213 = vmax.f32 %v2063, 0.0
  %v2214 = vmax.f32 %v2065, 0.0
  %v2215 = vmax.f32 %v2068, 0.0
  %v2216 = vmax.f32 %v2070, 0.0
  %v2217 = vmax.f32 %v2073, 0.0
  %v2218 = vmax.f32 %v2075, 0.0
  %v2219 = vmax.f32 %v2078, 0.0
  %v2220 = vmax.f32 %v2080, 0.0
  %v2221 = vmax.f32 %v2083, 0.0
  %v2222 = vmax.f32 %v2085, 0.0
  %v2223 = vmax.f32 %v2088, 0.0
  %v2224 = vmax.f32 %v2090, 0.0
  %v2225 = vmax.f32 %v2093, 0.0
  %v2226 = vmax.f32 %v2095, 0.0
  %v2227 = vmax.f32 %v2098, 0.0
  %v2228 = vmax.f32 %v2100, 0.0
  %v2229 = vmax.f32 %v2103, 0.0
  %v2230 = vmax.f32 %v2105, 0.0
  %v2231 = vmax.f32 %v2108, 0.0
  %v2232 = vmax.f32 %v2110, 0.0
  %v2233 = vmax.f32 %v2113, 0.0
  %v2234 = vmax.f32 %v2115, 0.0
  %v2235 = vmax.f32 %v2118, 0.0
  %v2236 = vmax.f32 %v2120, 0.0
  %v2237 = vmax.f32 %v2123, 0.0
  %v2238 = vmax.f32 %v2125, 0.0
  %v2239 = vmax.f32 %v2128, 0.0
  %v2240 = vmax.f32 %v2130, 0.0
  %v2241 = vmax.f32 %v2133, 0.0
  %v2242 = vmax.f32 %v2135, 0.0
  %v2243 = vmax.f32 %v2138, 0.0
  %v2244 = vmax.f32 %v2140, 0.0
  %v2245 = vmax.f32 %v2143, 0.0
  %v2246 = vmax.f32 %v2145, 0.0
  %v2247 = vmax.f32 %v2148, 0.0
  %v2248 = vmax.f32 %v2150, 0.0
  %v2249 = vmax.f32 %v2153, 0.0
  %v2250 = vmax.f32 %v2155, 0.0
  %v2251 = vmax.f32 %v2158, 0.0
  %v2252 = vmax.f32 %v2160, 0.0
  %v2253 = vmax.f32 %v2163, 0.0
  %v2254 = vmax.f32 %v2165, 0.0
  %v2255 = vmax.f32 %v2168, 0.0
  %v2256 = vmax.f32 %v2170, 0.0
  %v2257 = vmax.f32 %v2173, 0.0
  %v2258 = vmax.f32 %v2175, 0.0
  %v2259 = vmax.f32 %v2178, 0.0
  %v2260 = vmax.f32 %v2180, 0.0
  %v2261 = vmax.f32 %v2183, 0.0
  %v2262 = vmax.f32 %v2185, 0.0
  %v2263 = vmax.f32 %v2188, 0.0
  %v2264 = vmax.f32 %v2190, 0.0
  %v2265 = vmax.f32 %v2193, 0.0
  %v2266 = vmax.f32 %v2195, 0.0
  %v2267 = vmax.f32 %v2198, 0.0
  %v2268 = vmax.f32 %v2200, 0.0
  %v2269 = vmax.f32 %v2203, 0.0
  %v2270 = vmax.f32 %v2205, 0.0
  %v2271 = vpack.c.bf16 %v2207, %v2207
  %v2272 = vpack.c.bf16 %v2208, %v2208
  %v2273 = vpack.c.bf16 %v2209, %v2209
  %v2274 = vpack.c.bf16 %v2210, %v2210
  %v2275 = vpack.c.bf16 %v2211, %v2211
  %v2276 = vpack.c.bf16 %v2212, %v2212
  %v2277 = vpack.c.bf16 %v2213, %v2213
  %v2278 = vpack.c.bf16 %v2214, %v2214
  %v2279 = vpack.c.bf16 %v2215, %v2215
  %v2280 = vpack.c.bf16 %v2216, %v2216
  %v2281 = vpack.c.bf16 %v2217, %v2217
  %v2282 = vpack.c.bf16 %v2218, %v2218
  %v2283 = vpack.c.bf16 %v2219, %v2219
  %v2284 = vpack.c.bf16 %v2220, %v2220
  %v2285 = vpack.c.bf16 %v2221, %v2221
  %v2286 = vpack.c.bf16 %v2222, %v2222
  %v2287 = vpack.c.bf16 %v2223, %v2223
  %v2288 = vpack.c.bf16 %v2224, %v2224
  %v2289 = vpack.c.bf16 %v2225, %v2225
  %v2290 = vpack.c.bf16 %v2226, %v2226
  %v2291 = vpack.c.bf16 %v2227, %v2227
  %v2292 = vpack.c.bf16 %v2228, %v2228
  %v2293 = vpack.c.bf16 %v2229, %v2229
  %v2294 = vpack.c.bf16 %v2230, %v2230
  %v2295 = vpack.c.bf16 %v2231, %v2231
  %v2296 = vpack.c.bf16 %v2232, %v2232
  %v2297 = vpack.c.bf16 %v2233, %v2233
  %v2298 = vpack.c.bf16 %v2234, %v2234
  %v2299 = vpack.c.bf16 %v2235, %v2235
  %v2300 = vpack.c.bf16 %v2236, %v2236
  %v2301 = vpack.c.bf16 %v2237, %v2237
  %v2302 = vpack.c.bf16 %v2238, %v2238
  %v2303 = vpack.c.bf16 %v2239, %v2239
  %v2304 = vpack.c.bf16 %v2240, %v2240
  %v2305 = vpack.c.bf16 %v2241, %v2241
  %v2306 = vpack.c.bf16 %v2242, %v2242
  %v2307 = vpack.c.bf16 %v2243, %v2243
  %v2308 = vpack.c.bf16 %v2244, %v2244
  %v2309 = vpack.c.bf16 %v2245, %v2245
  %v2310 = vpack.c.bf16 %v2246, %v2246
  %v2311 = vpack.c.bf16 %v2247, %v2247
  %v2312 = vpack.c.bf16 %v2248, %v2248
  %v2313 = vpack.c.bf16 %v2249, %v2249
  %v2314 = vpack.c.bf16 %v2250, %v2250
  %v2315 = vpack.c.bf16 %v2251, %v2251
  %v2316 = vpack.c.bf16 %v2252, %v2252
  %v2317 = vpack.c.bf16 %v2253, %v2253
  %v2318 = vpack.c.bf16 %v2254, %v2254
  %v2319 = vpack.c.bf16 %v2255, %v2255
  %v2320 = vpack.c.bf16 %v2256, %v2256
  %v2321 = vpack.c.bf16 %v2257, %v2257
  %v2322 = vpack.c.bf16 %v2258, %v2258
  %v2323 = vpack.c.bf16 %v2259, %v2259
  %v2324 = vpack.c.bf16 %v2260, %v2260
  %v2325 = vpack.c.bf16 %v2261, %v2261
  %v2326 = vpack.c.bf16 %v2262, %v2262
  %v2327 = vpack.c.bf16 %v2263, %v2263
  %v2328 = vpack.c.bf16 %v2264, %v2264
  %v2329 = vpack.c.bf16 %v2265, %v2265
  %v2330 = vpack.c.bf16 %v2266, %v2266
  %v2331 = vpack.c.bf16 %v2267, %v2267
  %v2332 = vpack.c.bf16 %v2268, %v2268
  %v2333 = vpack.c.bf16 %v2269, %v2269
  %v2334 = vpack.c.bf16 %v2270, %v2270
  %vm2335 = vcmask 519168
  %2336 = vst.msk [vmem:[%s3] sm:$0xf] %vm2335, %v2271
  %2337 = vst.msk [vmem:[%s3 + $0x4] sm:$0xf] %vm2335, %v2272
  %2338 = vst.msk [vmem:[%s3 + $0x8] sm:$0xf] %vm2335, %v2273
  %2339 = vst.msk [vmem:[%s3 + $0xc] sm:$0xf] %vm2335, %v2274
  %2340 = vst.msk [vmem:[%s3 + $0x10] sm:$0xf] %vm2335, %v2275
  %2341 = vst.msk [vmem:[%s3 + $0x14] sm:$0xf] %vm2335, %v2276
  %2342 = vst.msk [vmem:[%s3 + $0x18] sm:$0xf] %vm2335, %v2277
  %2343 = vst.msk [vmem:[%s3 + $0x1c] sm:$0xf] %vm2335, %v2278
  %2344 = vst.msk [vmem:[%s3 + $0x20] sm:$0xf] %vm2335, %v2279
  %2345 = vst.msk [vmem:[%s3 + $0x24] sm:$0xf] %vm2335, %v2280
  %2346 = vst.msk [vmem:[%s3 + $0x28] sm:$0xf] %vm2335, %v2281
  %2347 = vst.msk [vmem:[%s3 + $0x2c] sm:$0xf] %vm2335, %v2282
  %2348 = vst.msk [vmem:[%s3 + $0x30] sm:$0xf] %vm2335, %v2283
  %2349 = vst.msk [vmem:[%s3 + $0x34] sm:$0xf] %vm2335, %v2284
  %2350 = vst.msk [vmem:[%s3 + $0x38] sm:$0xf] %vm2335, %v2285
  %2351 = vst.msk [vmem:[%s3 + $0x3c] sm:$0xf] %vm2335, %v2286
  %2352 = vst.msk [vmem:[%s3 + $0x40] sm:$0xf] %vm2335, %v2287
  %2353 = vst.msk [vmem:[%s3 + $0x44] sm:$0xf] %vm2335, %v2288
  %2354 = vst.msk [vmem:[%s3 + $0x48] sm:$0xf] %vm2335, %v2289
  %2355 = vst.msk [vmem:[%s3 + $0x4c] sm:$0xf] %vm2335, %v2290
  %2356 = vst.msk [vmem:[%s3 + $0x50] sm:$0xf] %vm2335, %v2291
  %2357 = vst.msk [vmem:[%s3 + $0x54] sm:$0xf] %vm2335, %v2292
  %2358 = vst.msk [vmem:[%s3 + $0x58] sm:$0xf] %vm2335, %v2293
  %2359 = vst.msk [vmem:[%s3 + $0x5c] sm:$0xf] %vm2335, %v2294
  %2360 = vst.msk [vmem:[%s3 + $0x60] sm:$0xf] %vm2335, %v2295
  %2361 = vst.msk [vmem:[%s3 + $0x64] sm:$0xf] %vm2335, %v2296
  %2362 = vst.msk [vmem:[%s3 + $0x68] sm:$0xf] %vm2335, %v2297
  %2363 = vst.msk [vmem:[%s3 + $0x6c] sm:$0xf] %vm2335, %v2298
  %2364 = vst.msk [vmem:[%s3 + $0x70] sm:$0xf] %vm2335, %v2299
  %2365 = vst.msk [vmem:[%s3 + $0x74] sm:$0xf] %vm2335, %v2300
  %2366 = vst.msk [vmem:[%s3 + $0x78] sm:$0xf] %vm2335, %v2301
  %2367 = vst.msk [vmem:[%s3 + $0x7c] sm:$0xf] %vm2335, %v2302
  %2368 = vst.msk [vmem:[%s3 + $0x80] sm:$0xf] %vm2335, %v2303
  %2369 = vst.msk [vmem:[%s3 + $0x84] sm:$0xf] %vm2335, %v2304
  %2370 = vst.msk [vmem:[%s3 + $0x88] sm:$0xf] %vm2335, %v2305
  %2371 = vst.msk [vmem:[%s3 + $0x8c] sm:$0xf] %vm2335, %v2306
  %2372 = vst.msk [vmem:[%s3 + $0x90] sm:$0xf] %vm2335, %v2307
  %2373 = vst.msk [vmem:[%s3 + $0x94] sm:$0xf] %vm2335, %v2308
  %2374 = vst.msk [vmem:[%s3 + $0x98] sm:$0xf] %vm2335, %v2309
  %2375 = vst.msk [vmem:[%s3 + $0x9c] sm:$0xf] %vm2335, %v2310
  %2376 = vst.msk [vmem:[%s3 + $0xa0] sm:$0xf] %vm2335, %v2311
  %2377 = vst.msk [vmem:[%s3 + $0xa4] sm:$0xf] %vm2335, %v2312
  %2378 = vst.msk [vmem:[%s3 + $0xa8] sm:$0xf] %vm2335, %v2313
  %2379 = vst.msk [vmem:[%s3 + $0xac] sm:$0xf] %vm2335, %v2314
  %2380 = vst.msk [vmem:[%s3 + $0xb0] sm:$0xf] %vm2335, %v2315
  %2381 = vst.msk [vmem:[%s3 + $0xb4] sm:$0xf] %vm2335, %v2316
  %2382 = vst.msk [vmem:[%s3 + $0xb8] sm:$0xf] %vm2335, %v2317
  %2383 = vst.msk [vmem:[%s3 + $0xbc] sm:$0xf] %vm2335, %v2318
  %2384 = vst.msk [vmem:[%s3 + $0xc0] sm:$0xf] %vm2335, %v2319
  %2385 = vst.msk [vmem:[%s3 + $0xc4] sm:$0xf] %vm2335, %v2320
  %2386 = vst.msk [vmem:[%s3 + $0xc8] sm:$0xf] %vm2335, %v2321
  %2387 = vst.msk [vmem:[%s3 + $0xcc] sm:$0xf] %vm2335, %v2322
  %2388 = vst.msk [vmem:[%s3 + $0xd0] sm:$0xf] %vm2335, %v2323
  %2389 = vst.msk [vmem:[%s3 + $0xd4] sm:$0xf] %vm2335, %v2324
  %2390 = vst.msk [vmem:[%s3 + $0xd8] sm:$0xf] %vm2335, %v2325
  %2391 = vst.msk [vmem:[%s3 + $0xdc] sm:$0xf] %vm2335, %v2326
  %2392 = vst.msk [vmem:[%s3 + $0xe0] sm:$0xf] %vm2335, %v2327
  %2393 = vst.msk [vmem:[%s3 + $0xe4] sm:$0xf] %vm2335, %v2328
  %2394 = vst.msk [vmem:[%s3 + $0xe8] sm:$0xf] %vm2335, %v2329
  %2395 = vst.msk [vmem:[%s3 + $0xec] sm:$0xf] %vm2335, %v2330
  %2396 = vst.msk [vmem:[%s3 + $0xf0] sm:$0xf] %vm2335, %v2331
  %2397 = vst.msk [vmem:[%s3 + $0xf4] sm:$0xf] %vm2335, %v2332
  %2398 = vst.msk [vmem:[%s3 + $0xf8] sm:$0xf] %vm2335, %v2333
  %2399 = vst.msk [vmem:[%s3 + $0xfc] sm:$0xf] %vm2335, %v2334
  // Predicated region
  $region14: #{front_fn.6} parent=0 // pred_check
    _
  $region15: #{front_fn.6} parent=0 // pred_check_branch
    %2401 = sbr.rel (0) target = $region17
  $region16: #{front_fn.6} parent=0 // pred_region
    _
  $region17: #{front_fn.6} parent=0 // pred_fallthru
    _
  // Predicated region
  $region18: #{front_fn.6} parent=0 // pred_check
    _
  $region19: #{front_fn.6} parent=0 // pred_check_branch
    %2403 = sbr.rel (0) target = $region21
  $region20: #{front_fn.6} parent=0 // pred_region
    _
  $region21: #{front_fn.6} parent=0 // pred_fallthru
    _

// kernel: front_fn.7
$region0: #{front_fn.7}
  #allocation0 [shape = 'u32[]', space=smem, size = 0x4, offset = 0x4, fixed_abs, tag = 'smem constant byte address 0x4 - core index']
  #allocation1 [shape = 'u32[72,128]{1,0:T(1,128)}', space=vmem, size = 0x9000, scoped, tag = 'internal scratch']
  %s0 = inlined_call_operand.vmem [shape: bf16[512,640], index: 0, kind: input, shape index: {}]
  %s1 = inlined_call_operand.vmem [shape: bf16[640,64], index: 1, kind: input, shape index: {}]
  %s2 = inlined_call_operand.vmem [shape: f32[1,64], index: 2, kind: input, shape index: {}]
  %s3 = inlined_call_operand.vmem [shape: bf16[512,64], index: 3, kind: input, shape index: {}]
  %s4 = inlined_call_operand.vmem [shape: bf16[512,64], index: 4, kind: output, shape index: {}]
  %s5 = sld [smem:[#allocation0]]
  $region26: #{front_fn.7} parent=0
    _
  %s7 = ssub.s32 1, %s5
  %s8 = scalar_select 0, %s7, %s5
  // Predicated region
  $region2: #{front_fn.7} parent=0 // pred_check
    _
  $region3: #{front_fn.7} parent=0 // pred_check_branch
    %10 = sbr.rel (0) target = $region5
  $region4: #{front_fn.7} parent=0 // pred_region
    _
  $region5: #{front_fn.7} parent=0 // pred_fallthru
    _
  // Predicated region
  $region6: #{front_fn.7} parent=0 // pred_check
    _
  $region7: #{front_fn.7} parent=0 // pred_check_branch
    %12 = sbr.rel (0) target = $region9
  $region8: #{front_fn.7} parent=0 // pred_region
    _
  $region9: #{front_fn.7} parent=0 // pred_fallthru
    _
  // Predicated region
  $region10: #{front_fn.7} parent=0 // pred_check
    _
  $region11: #{front_fn.7} parent=0 // pred_check_branch
    %14 = sbr.rel (0) target = $region13
  $region12: #{front_fn.7} parent=0 // pred_region
    _
  $region13: #{front_fn.7} parent=0 // pred_fallthru
    _
  // Predicated region
  $region14: #{front_fn.7} parent=0 // pred_check
    _
  $region15: #{front_fn.7} parent=0 // pred_check_branch
    %16 = sbr.rel (0) target = $region17
  $region16: #{front_fn.7} parent=0 // pred_region
    _
  $region17: #{front_fn.7} parent=0 // pred_fallthru
    _
  %v17 = vld [vmem:[%s0] sm:$0xff]
  %v18 = vld [vmem:[%s0 + $0x8] sm:$0xff]
  %v19 = vld [vmem:[%s0 + $0x10] sm:$0xf]
  %v20 = vld [vmem:[%s0 + $0x14] sm:$0xff]
  %v21 = vld [vmem:[%s0 + $0x1c] sm:$0xff]
  %v22 = vld [vmem:[%s0 + $0x24] sm:$0xf]
  %v23 = vld [vmem:[%s0 + $0x28] sm:$0xff]
  %v24 = vld [vmem:[%s0 + $0x30] sm:$0xff]
  %v25 = vld [vmem:[%s0 + $0x38] sm:$0xf]
  %v26 = vld [vmem:[%s0 + $0x3c] sm:$0xff]
  %v27 = vld [vmem:[%s0 + $0x44] sm:$0xff]
  %v28 = vld [vmem:[%s0 + $0x4c] sm:$0xf]
  %v29 = vld [vmem:[%s0 + $0x50] sm:$0xff]
  %v30 = vld [vmem:[%s0 + $0x58] sm:$0xff]
  %v31 = vld [vmem:[%s0 + $0x60] sm:$0xf]
  %v32 = vld [vmem:[%s0 + $0x64] sm:$0xff]
  %v33 = vld [vmem:[%s0 + $0x6c] sm:$0xff]
  %v34 = vld [vmem:[%s0 + $0x74] sm:$0xf]
  %v35 = vld [vmem:[%s0 + $0x78] sm:$0xff]
  %v36 = vld [vmem:[%s0 + $0x80] sm:$0xff]
  %v37 = vld [vmem:[%s0 + $0x88] sm:$0xf]
  %v38 = vld [vmem:[%s0 + $0x8c] sm:$0xff]
  %v39 = vld [vmem:[%s0 + $0x94] sm:$0xff]
  %v40 = vld [vmem:[%s0 + $0x9c] sm:$0xf]
  %v41 = vld [vmem:[%s0 + $0xa0] sm:$0xff]
  %v42 = vld [vmem:[%s0 + $0xa8] sm:$0xff]
  %v43 = vld [vmem:[%s0 + $0xb0] sm:$0xf]
  %v44 = vld [vmem:[%s0 + $0xb4] sm:$0xff]
  %v45 = vld [vmem:[%s0 + $0xbc] sm:$0xff]
  %v46 = vld [vmem:[%s0 + $0xc4] sm:$0xf]
  %v47 = vld [vmem:[%s0 + $0xc8] sm:$0xff]
  %v48 = vld [vmem:[%s0 + $0xd0] sm:$0xff]
  %v49 = vld [vmem:[%s0 + $0xd8] sm:$0xf]
  %v50 = vld [vmem:[%s0 + $0xdc] sm:$0xff]
  %v51 = vld [vmem:[%s0 + $0xe4] sm:$0xff]
  %v52 = vld [vmem:[%s0 + $0xec] sm:$0xf]
  %v53 = vld [vmem:[%s0 + $0xf0] sm:$0xff]
  %v54 = vld [vmem:[%s0 + $0xf8] sm:$0xff]
  %v55 = vld [vmem:[%s0 + $0x100] sm:$0xf]
  %v56 = vld [vmem:[%s0 + $0x104] sm:$0xff]
  %v57 = vld [vmem:[%s0 + $0x10c] sm:$0xff]
  %v58 = vld [vmem:[%s0 + $0x114] sm:$0xf]
  %v59 = vld [vmem:[%s0 + $0x118] sm:$0xff]
  %v60 = vld [vmem:[%s0 + $0x120] sm:$0xff]
  %v61 = vld [vmem:[%s0 + $0x128] sm:$0xf]
  %v62 = vld [vmem:[%s0 + $0x12c] sm:$0xff]
  %v63 = vld [vmem:[%s0 + $0x134] sm:$0xff]
  %v64 = vld [vmem:[%s0 + $0x13c] sm:$0xf]
  %v65 = vld [vmem:[%s0 + $0x140] sm:$0xff]
  %v66 = vld [vmem:[%s0 + $0x148] sm:$0xff]
  %v67 = vld [vmem:[%s0 + $0x150] sm:$0xf]
  %v68 = vld [vmem:[%s0 + $0x154] sm:$0xff]
  %v69 = vld [vmem:[%s0 + $0x15c] sm:$0xff]
  %v70 = vld [vmem:[%s0 + $0x164] sm:$0xf]
  %v71 = vld [vmem:[%s0 + $0x168] sm:$0xff]
  %v72 = vld [vmem:[%s0 + $0x170] sm:$0xff]
  %v73 = vld [vmem:[%s0 + $0x178] sm:$0xf]
  %v74 = vld [vmem:[%s0 + $0x17c] sm:$0xff]
  %v75 = vld [vmem:[%s0 + $0x184] sm:$0xff]
  %v76 = vld [vmem:[%s0 + $0x18c] sm:$0xf]
  %v77 = vld [vmem:[%s0 + $0x190] sm:$0xff]
  %v78 = vld [vmem:[%s0 + $0x198] sm:$0xff]
  %v79 = vld [vmem:[%s0 + $0x1a0] sm:$0xf]
  %v80 = vld [vmem:[%s0 + $0x1a4] sm:$0xff]
  %v81 = vld [vmem:[%s0 + $0x1ac] sm:$0xff]
  %v82 = vld [vmem:[%s0 + $0x1b4] sm:$0xf]
  %v83 = vld [vmem:[%s0 + $0x1b8] sm:$0xff]
  %v84 = vld [vmem:[%s0 + $0x1c0] sm:$0xff]
  %v85 = vld [vmem:[%s0 + $0x1c8] sm:$0xf]
  %v86 = vld [vmem:[%s0 + $0x1cc] sm:$0xff]
  %v87 = vld [vmem:[%s0 + $0x1d4] sm:$0xff]
  %v88 = vld [vmem:[%s0 + $0x1dc] sm:$0xf]
  %v89 = vld [vmem:[%s0 + $0x1e0] sm:$0xff]
  %v90 = vld [vmem:[%s0 + $0x1e8] sm:$0xff]
  %v91 = vld [vmem:[%s0 + $0x1f0] sm:$0xf]
  %v92 = vld [vmem:[%s0 + $0x1f4] sm:$0xff]
  %v93 = vld [vmem:[%s0 + $0x1fc] sm:$0xff]
  %v94 = vld [vmem:[%s0 + $0x204] sm:$0xf]
  %v95 = vld [vmem:[%s0 + $0x208] sm:$0xff]
  %v96 = vld [vmem:[%s0 + $0x210] sm:$0xff]
  %v97 = vld [vmem:[%s0 + $0x218] sm:$0xf]
  %v98 = vld [vmem:[%s0 + $0x21c] sm:$0xff]
  %v99 = vld [vmem:[%s0 + $0x224] sm:$0xff]
  %v100 = vld [vmem:[%s0 + $0x22c] sm:$0xf]
  %v101 = vld [vmem:[%s0 + $0x230] sm:$0xff]
  %v102 = vld [vmem:[%s0 + $0x238] sm:$0xff]
  %v103 = vld [vmem:[%s0 + $0x240] sm:$0xf]
  %v104 = vld [vmem:[%s0 + $0x244] sm:$0xff]
  %v105 = vld [vmem:[%s0 + $0x24c] sm:$0xff]
  %v106 = vld [vmem:[%s0 + $0x254] sm:$0xf]
  %v107 = vld [vmem:[%s0 + $0x258] sm:$0xff]
  %v108 = vld [vmem:[%s0 + $0x260] sm:$0xff]
  %v109 = vld [vmem:[%s0 + $0x268] sm:$0xf]
  %v110 = vld [vmem:[%s0 + $0x26c] sm:$0xff]
  %v111 = vld [vmem:[%s0 + $0x274] sm:$0xff]
  %v112 = vld [vmem:[%s0 + $0x27c] sm:$0xf]
  %v113 = vld [vmem:[%s0 + $0x280] sm:$0xff]
  %v114 = vld [vmem:[%s0 + $0x288] sm:$0xff]
  %v115 = vld [vmem:[%s0 + $0x290] sm:$0xf]
  %v116 = vld [vmem:[%s0 + $0x294] sm:$0xff]
  %v117 = vld [vmem:[%s0 + $0x29c] sm:$0xff]
  %v118 = vld [vmem:[%s0 + $0x2a4] sm:$0xf]
  %v119 = vld [vmem:[%s0 + $0x2a8] sm:$0xff]
  %v120 = vld [vmem:[%s0 + $0x2b0] sm:$0xff]
  %v121 = vld [vmem:[%s0 + $0x2b8] sm:$0xf]
  %v122 = vld [vmem:[%s0 + $0x2bc] sm:$0xff]
  %v123 = vld [vmem:[%s0 + $0x2c4] sm:$0xff]
  %v124 = vld [vmem:[%s0 + $0x2cc] sm:$0xf]
  %v125 = vld [vmem:[%s0 + $0x2d0] sm:$0xff]
  %v126 = vld [vmem:[%s0 + $0x2d8] sm:$0xff]
  %v127 = vld [vmem:[%s0 + $0x2e0] sm:$0xf]
  %v128 = vld [vmem:[%s0 + $0x2e4] sm:$0xff]
  %v129 = vld [vmem:[%s0 + $0x2ec] sm:$0xff]
  %v130 = vld [vmem:[%s0 + $0x2f4] sm:$0xf]
  %v131 = vld [vmem:[%s0 + $0x2f8] sm:$0xff]
  %v132 = vld [vmem:[%s0 + $0x300] sm:$0xff]
  %v133 = vld [vmem:[%s0 + $0x308] sm:$0xf]
  %v134 = vld [vmem:[%s0 + $0x30c] sm:$0xff]
  %v135 = vld [vmem:[%s0 + $0x314] sm:$0xff]
  %v136 = vld [vmem:[%s0 + $0x31c] sm:$0xf]
  %v137 = vld [vmem:[%s0 + $0x320] sm:$0xff]
  %v138 = vld [vmem:[%s0 + $0x328] sm:$0xff]
  %v139 = vld [vmem:[%s0 + $0x330] sm:$0xf]
  %v140 = vld [vmem:[%s0 + $0x334] sm:$0xff]
  %v141 = vld [vmem:[%s0 + $0x33c] sm:$0xff]
  %v142 = vld [vmem:[%s0 + $0x344] sm:$0xf]
  %v143 = vld [vmem:[%s0 + $0x348] sm:$0xff]
  %v144 = vld [vmem:[%s0 + $0x350] sm:$0xff]
  %v145 = vld [vmem:[%s0 + $0x358] sm:$0xf]
  %v146 = vld [vmem:[%s0 + $0x35c] sm:$0xff]
  %v147 = vld [vmem:[%s0 + $0x364] sm:$0xff]
  %v148 = vld [vmem:[%s0 + $0x36c] sm:$0xf]
  %v149 = vld [vmem:[%s0 + $0x370] sm:$0xff]
  %v150 = vld [vmem:[%s0 + $0x378] sm:$0xff]
  %v151 = vld [vmem:[%s0 + $0x380] sm:$0xf]
  %v152 = vld [vmem:[%s0 + $0x384] sm:$0xff]
  %v153 = vld [vmem:[%s0 + $0x38c] sm:$0xff]
  %v154 = vld [vmem:[%s0 + $0x394] sm:$0xf]
  %v155 = vld [vmem:[%s0 + $0x398] sm:$0xff]
  %v156 = vld [vmem:[%s0 + $0x3a0] sm:$0xff]
  %v157 = vld [vmem:[%s0 + $0x3a8] sm:$0xf]
  %v158 = vld [vmem:[%s0 + $0x3ac] sm:$0xff]
  %v159 = vld [vmem:[%s0 + $0x3b4] sm:$0xff]
  %v160 = vld [vmem:[%s0 + $0x3bc] sm:$0xf]
  %v161 = vld [vmem:[%s0 + $0x3c0] sm:$0xff]
  %v162 = vld [vmem:[%s0 + $0x3c8] sm:$0xff]
  %v163 = vld [vmem:[%s0 + $0x3d0] sm:$0xf]
  %v164 = vld [vmem:[%s0 + $0x3d4] sm:$0xff]
  %v165 = vld [vmem:[%s0 + $0x3dc] sm:$0xff]
  %v166 = vld [vmem:[%s0 + $0x3e4] sm:$0xf]
  %v167 = vld [vmem:[%s0 + $0x3e8] sm:$0xff]
  %v168 = vld [vmem:[%s0 + $0x3f0] sm:$0xff]
  %v169 = vld [vmem:[%s0 + $0x3f8] sm:$0xf]
  %v170 = vld [vmem:[%s0 + $0x3fc] sm:$0xff]
  %v171 = vld [vmem:[%s0 + $0x404] sm:$0xff]
  %v172 = vld [vmem:[%s0 + $0x40c] sm:$0xf]
  %v173 = vld [vmem:[%s0 + $0x410] sm:$0xff]
  %v174 = vld [vmem:[%s0 + $0x418] sm:$0xff]
  %v175 = vld [vmem:[%s0 + $0x420] sm:$0xf]
  %v176 = vld [vmem:[%s0 + $0x424] sm:$0xff]
  %v177 = vld [vmem:[%s0 + $0x42c] sm:$0xff]
  %v178 = vld [vmem:[%s0 + $0x434] sm:$0xf]
  %v179 = vld [vmem:[%s0 + $0x438] sm:$0xff]
  %v180 = vld [vmem:[%s0 + $0x440] sm:$0xff]
  %v181 = vld [vmem:[%s0 + $0x448] sm:$0xf]
  %v182 = vld [vmem:[%s0 + $0x44c] sm:$0xff]
  %v183 = vld [vmem:[%s0 + $0x454] sm:$0xff]
  %v184 = vld [vmem:[%s0 + $0x45c] sm:$0xf]
  %v185 = vld [vmem:[%s0 + $0x460] sm:$0xff]
  %v186 = vld [vmem:[%s0 + $0x468] sm:$0xff]
  %v187 = vld [vmem:[%s0 + $0x470] sm:$0xf]
  %v188 = vld [vmem:[%s0 + $0x474] sm:$0xff]
  %v189 = vld [vmem:[%s0 + $0x47c] sm:$0xff]
  %v190 = vld [vmem:[%s0 + $0x484] sm:$0xf]
  %v191 = vld [vmem:[%s0 + $0x488] sm:$0xff]
  %v192 = vld [vmem:[%s0 + $0x490] sm:$0xff]
  %v193 = vld [vmem:[%s0 + $0x498] sm:$0xf]
  %v194 = vld [vmem:[%s0 + $0x49c] sm:$0xff]
  %v195 = vld [vmem:[%s0 + $0x4a4] sm:$0xff]
  %v196 = vld [vmem:[%s0 + $0x4ac] sm:$0xf]
  %v197 = vld [vmem:[%s0 + $0x4b0] sm:$0xff]
  %v198 = vld [vmem:[%s0 + $0x4b8] sm:$0xff]
  %v199 = vld [vmem:[%s0 + $0x4c0] sm:$0xf]
  %v200 = vld [vmem:[%s0 + $0x4c4] sm:$0xff]
  %v201 = vld [vmem:[%s0 + $0x4cc] sm:$0xff]
  %v202 = vld [vmem:[%s0 + $0x4d4] sm:$0xf]
  %v203 = vld [vmem:[%s0 + $0x4d8] sm:$0xff]
  %v204 = vld [vmem:[%s0 + $0x4e0] sm:$0xff]
  %v205 = vld [vmem:[%s0 + $0x4e8] sm:$0xf]
  %v206 = vld [vmem:[%s0 + $0x4ec] sm:$0xff]
  %v207 = vld [vmem:[%s0 + $0x4f4] sm:$0xff]
  %v208 = vld [vmem:[%s0 + $0x4fc] sm:$0xf]
  %v209 = vld [vmem:[%s1] sm:$0xf]
  %v210 = vld [vmem:[%s1 + $0x4] sm:$0xf]
  %v211 = vld [vmem:[%s1 + $0x8] sm:$0xf]
  %v212 = vld [vmem:[%s1 + $0xc] sm:$0xf]
  %v213 = vld [vmem:[%s1 + $0x10] sm:$0xf]
  %v214 = vld [vmem:[%s1 + $0x14] sm:$0xf]
  %v215 = vld [vmem:[%s1 + $0x18] sm:$0xf]
  %v216 = vld [vmem:[%s1 + $0x1c] sm:$0xf]
  %v217 = vld [vmem:[%s1 + $0x20] sm:$0xf]
  %v218 = vld [vmem:[%s1 + $0x24] sm:$0xf]
  %v219 = vld [vmem:[%s1 + $0x28] sm:$0xf]
  %v220 = vld [vmem:[%s1 + $0x2c] sm:$0xf]
  %v221 = vld [vmem:[%s1 + $0x30] sm:$0xf]
  %v222 = vld [vmem:[%s1 + $0x34] sm:$0xf]
  %v223 = vld [vmem:[%s1 + $0x38] sm:$0xf]
  %v224 = vld [vmem:[%s1 + $0x3c] sm:$0xf]
  %v225 = vld [vmem:[%s1 + $0x40] sm:$0xf]
  %v226 = vld [vmem:[%s1 + $0x44] sm:$0xf]
  %v227 = vld [vmem:[%s1 + $0x48] sm:$0xf]
  %v228 = vld [vmem:[%s1 + $0x4c] sm:$0xf]
  %v229 = vld [vmem:[%s1 + $0x50] sm:$0xf]
  %v230 = vld [vmem:[%s1 + $0x54] sm:$0xf]
  %v231 = vld [vmem:[%s1 + $0x58] sm:$0xf]
  %v232 = vld [vmem:[%s1 + $0x5c] sm:$0xf]
  %v233 = vld [vmem:[%s1 + $0x60] sm:$0xf]
  %v234 = vld [vmem:[%s1 + $0x64] sm:$0xf]
  %v235 = vld [vmem:[%s1 + $0x68] sm:$0xf]
  %v236 = vld [vmem:[%s1 + $0x6c] sm:$0xf]
  %v237 = vld [vmem:[%s1 + $0x70] sm:$0xf]
  %v238 = vld [vmem:[%s1 + $0x74] sm:$0xf]
  %v239 = vld [vmem:[%s1 + $0x78] sm:$0xf]
  %v240 = vld [vmem:[%s1 + $0x7c] sm:$0xf]
  %v241 = vld [vmem:[%s1 + $0x80] sm:$0xf]
  %v242 = vld [vmem:[%s1 + $0x84] sm:$0xf]
  %v243 = vld [vmem:[%s1 + $0x88] sm:$0xf]
  %v244 = vld [vmem:[%s1 + $0x8c] sm:$0xf]
  %v245 = vld [vmem:[%s1 + $0x90] sm:$0xf]
  %v246 = vld [vmem:[%s1 + $0x94] sm:$0xf]
  %v247 = vld [vmem:[%s1 + $0x98] sm:$0xf]
  %v248 = vld [vmem:[%s1 + $0x9c] sm:$0xf]
  %v249 = vld [vmem:[%s1 + $0xa0] sm:$0xf]
  %v250 = vld [vmem:[%s1 + $0xa4] sm:$0xf]
  %v251 = vld [vmem:[%s1 + $0xa8] sm:$0xf]
  %v252 = vld [vmem:[%s1 + $0xac] sm:$0xf]
  %v253 = vld [vmem:[%s1 + $0xb0] sm:$0xf]
  %v254 = vld [vmem:[%s1 + $0xb4] sm:$0xf]
  %v255 = vld [vmem:[%s1 + $0xb8] sm:$0xf]
  %v256 = vld [vmem:[%s1 + $0xbc] sm:$0xf]
  %v257 = vld [vmem:[%s1 + $0xc0] sm:$0xf]
  %v258 = vld [vmem:[%s1 + $0xc4] sm:$0xf]
  %v259 = vld [vmem:[%s1 + $0xc8] sm:$0xf]
  %v260 = vld [vmem:[%s1 + $0xcc] sm:$0xf]
  %v261 = vld [vmem:[%s1 + $0xd0] sm:$0xf]
  %v262 = vld [vmem:[%s1 + $0xd4] sm:$0xf]
  %v263 = vld [vmem:[%s1 + $0xd8] sm:$0xf]
  %v264 = vld [vmem:[%s1 + $0xdc] sm:$0xf]
  %v265 = vld [vmem:[%s1 + $0xe0] sm:$0xf]
  %v266 = vld [vmem:[%s1 + $0xe4] sm:$0xf]
  %v267 = vld [vmem:[%s1 + $0xe8] sm:$0xf]
  %v268 = vld [vmem:[%s1 + $0xec] sm:$0xf]
  %v269 = vld [vmem:[%s1 + $0xf0] sm:$0xf]
  %v270 = vld [vmem:[%s1 + $0xf4] sm:$0xf]
  %v271 = vld [vmem:[%s1 + $0xf8] sm:$0xf]
  %v272 = vld [vmem:[%s1 + $0xfc] sm:$0xf]
  %v273 = vld [vmem:[%s1 + $0x100] sm:$0xf]
  %v274 = vld [vmem:[%s1 + $0x104] sm:$0xf]
  %v275 = vld [vmem:[%s1 + $0x108] sm:$0xf]
  %v276 = vld [vmem:[%s1 + $0x10c] sm:$0xf]
  %v277 = vld [vmem:[%s1 + $0x110] sm:$0xf]
  %v278 = vld [vmem:[%s1 + $0x114] sm:$0xf]
  %v279 = vld [vmem:[%s1 + $0x118] sm:$0xf]
  %v280 = vld [vmem:[%s1 + $0x11c] sm:$0xf]
  %v281 = vld [vmem:[%s1 + $0x120] sm:$0xf]
  %v282 = vld [vmem:[%s1 + $0x124] sm:$0xf]
  %v283 = vld [vmem:[%s1 + $0x128] sm:$0xf]
  %v284 = vld [vmem:[%s1 + $0x12c] sm:$0xf]
  %v285 = vld [vmem:[%s1 + $0x130] sm:$0xf]
  %v286 = vld [vmem:[%s1 + $0x134] sm:$0xf]
  %v287 = vld [vmem:[%s1 + $0x138] sm:$0xf]
  %v288 = vld [vmem:[%s1 + $0x13c] sm:$0xf]
  %v289 = vld [vmem:[%s2] sm:$0x1]
  %v291 = vperm.slane %v289, 0
  %v485 = vunpack.c.l.b16 %v17
  %v486 = vunpack.c.h.b16 %v17
  %v487 = vunpack.c.l.b16 %v18
  %v488 = vunpack.c.h.b16 %v18
  %v489 = vunpack.c.l.b16 %v19
  %v490 = vunpack.c.l.b16 %v20
  %v491 = vunpack.c.h.b16 %v20
  %v492 = vunpack.c.l.b16 %v21
  %v493 = vunpack.c.h.b16 %v21
  %v494 = vunpack.c.l.b16 %v22
  %v495 = vunpack.c.l.b16 %v23
  %v496 = vunpack.c.h.b16 %v23
  %v497 = vunpack.c.l.b16 %v24
  %v498 = vunpack.c.h.b16 %v24
  %v499 = vunpack.c.l.b16 %v25
  %v500 = vunpack.c.l.b16 %v26
  %v501 = vunpack.c.h.b16 %v26
  %v502 = vunpack.c.l.b16 %v27
  %v503 = vunpack.c.h.b16 %v27
  %v504 = vunpack.c.l.b16 %v28
  %v505 = vunpack.c.l.b16 %v29
  %v506 = vunpack.c.h.b16 %v29
  %v507 = vunpack.c.l.b16 %v30
  %v508 = vunpack.c.h.b16 %v30
  %v509 = vunpack.c.l.b16 %v31
  %v510 = vunpack.c.l.b16 %v32
  %v511 = vunpack.c.h.b16 %v32
  %v512 = vunpack.c.l.b16 %v33
  %v513 = vunpack.c.h.b16 %v33
  %v514 = vunpack.c.l.b16 %v34
  %v515 = vunpack.c.l.b16 %v35
  %v516 = vunpack.c.h.b16 %v35
  %v517 = vunpack.c.l.b16 %v36
  %v518 = vunpack.c.h.b16 %v36
  %v519 = vunpack.c.l.b16 %v37
  %v520 = vunpack.c.l.b16 %v38
  %v521 = vunpack.c.h.b16 %v38
  %v522 = vunpack.c.l.b16 %v39
  %v523 = vunpack.c.h.b16 %v39
  %v524 = vunpack.c.l.b16 %v40
  %v525 = vunpack.c.l.b16 %v41
  %v526 = vunpack.c.h.b16 %v41
  %v527 = vunpack.c.l.b16 %v42
  %v528 = vunpack.c.h.b16 %v42
  %v529 = vunpack.c.l.b16 %v43
  %v530 = vunpack.c.l.b16 %v44
  %v531 = vunpack.c.h.b16 %v44
  %v532 = vunpack.c.l.b16 %v45
  %v533 = vunpack.c.h.b16 %v45
  %v534 = vunpack.c.l.b16 %v46
  %v535 = vunpack.c.l.b16 %v47
  %v536 = vunpack.c.h.b16 %v47
  %v537 = vunpack.c.l.b16 %v48
  %v538 = vunpack.c.h.b16 %v48
  %v539 = vunpack.c.l.b16 %v49
  %v540 = vunpack.c.l.b16 %v50
  %v541 = vunpack.c.h.b16 %v50
  %v542 = vunpack.c.l.b16 %v51
  %v543 = vunpack.c.h.b16 %v51
  %v544 = vunpack.c.l.b16 %v52
  %v545 = vunpack.c.l.b16 %v53
  %v546 = vunpack.c.h.b16 %v53
  %v547 = vunpack.c.l.b16 %v54
  %v548 = vunpack.c.h.b16 %v54
  %v549 = vunpack.c.l.b16 %v55
  %v550 = vunpack.c.l.b16 %v56
  %v551 = vunpack.c.h.b16 %v56
  %v552 = vunpack.c.l.b16 %v57
  %v553 = vunpack.c.h.b16 %v57
  %v554 = vunpack.c.l.b16 %v58
  %v555 = vunpack.c.l.b16 %v59
  %v556 = vunpack.c.h.b16 %v59
  %v557 = vunpack.c.l.b16 %v60
  %v558 = vunpack.c.h.b16 %v60
  %v559 = vunpack.c.l.b16 %v61
  %v560 = vunpack.c.l.b16 %v62
  %v561 = vunpack.c.h.b16 %v62
  %v562 = vunpack.c.l.b16 %v63
  %v563 = vunpack.c.h.b16 %v63
  %v564 = vunpack.c.l.b16 %v64
  %v565 = vunpack.c.l.b16 %v65
  %v566 = vunpack.c.h.b16 %v65
  %v567 = vunpack.c.l.b16 %v66
  %v568 = vunpack.c.h.b16 %v66
  %v569 = vunpack.c.l.b16 %v67
  %v570 = vunpack.c.l.b16 %v68
  %v571 = vunpack.c.h.b16 %v68
  %v572 = vunpack.c.l.b16 %v69
  %v573 = vunpack.c.h.b16 %v69
  %v574 = vunpack.c.l.b16 %v70
  %v575 = vunpack.c.l.b16 %v71
  %v576 = vunpack.c.h.b16 %v71
  %v577 = vunpack.c.l.b16 %v72
  %v578 = vunpack.c.h.b16 %v72
  %v579 = vunpack.c.l.b16 %v73
  %v580 = vunpack.c.l.b16 %v74
  %v581 = vunpack.c.h.b16 %v74
  %v582 = vunpack.c.l.b16 %v75
  %v583 = vunpack.c.h.b16 %v75
  %v584 = vunpack.c.l.b16 %v76
  %v585 = vunpack.c.l.b16 %v77
  %v586 = vunpack.c.h.b16 %v77
  %v587 = vunpack.c.l.b16 %v78
  %v588 = vunpack.c.h.b16 %v78
  %v589 = vunpack.c.l.b16 %v79
  %v590 = vunpack.c.l.b16 %v80
  %v591 = vunpack.c.h.b16 %v80
  %v592 = vunpack.c.l.b16 %v81
  %v593 = vunpack.c.h.b16 %v81
  %v594 = vunpack.c.l.b16 %v82
  %v595 = vunpack.c.l.b16 %v83
  %v596 = vunpack.c.h.b16 %v83
  %v597 = vunpack.c.l.b16 %v84
  %v598 = vunpack.c.h.b16 %v84
  %v599 = vunpack.c.l.b16 %v85
  %v600 = vunpack.c.l.b16 %v86
  %v601 = vunpack.c.h.b16 %v86
  %v602 = vunpack.c.l.b16 %v87
  %v603 = vunpack.c.h.b16 %v87
  %v604 = vunpack.c.l.b16 %v88
  %v605 = vunpack.c.l.b16 %v89
  %v606 = vunpack.c.h.b16 %v89
  %v607 = vunpack.c.l.b16 %v90
  %v608 = vunpack.c.h.b16 %v90
  %v609 = vunpack.c.l.b16 %v91
  %v610 = vunpack.c.l.b16 %v92
  %v611 = vunpack.c.h.b16 %v92
  %v612 = vunpack.c.l.b16 %v93
  %v613 = vunpack.c.h.b16 %v93
  %v614 = vunpack.c.l.b16 %v94
  %v615 = vunpack.c.l.b16 %v95
  %v616 = vunpack.c.h.b16 %v95
  %v617 = vunpack.c.l.b16 %v96
  %v618 = vunpack.c.h.b16 %v96
  %v619 = vunpack.c.l.b16 %v97
  %v620 = vunpack.c.l.b16 %v98
  %v621 = vunpack.c.h.b16 %v98
  %v622 = vunpack.c.l.b16 %v99
  %v623 = vunpack.c.h.b16 %v99
  %v624 = vunpack.c.l.b16 %v100
  %v625 = vunpack.c.l.b16 %v101
  %v626 = vunpack.c.h.b16 %v101
  %v627 = vunpack.c.l.b16 %v102
  %v628 = vunpack.c.h.b16 %v102
  %v629 = vunpack.c.l.b16 %v103
  %v630 = vunpack.c.l.b16 %v104
  %v631 = vunpack.c.h.b16 %v104
  %v632 = vunpack.c.l.b16 %v105
  %v633 = vunpack.c.h.b16 %v105
  %v634 = vunpack.c.l.b16 %v106
  %v635 = vunpack.c.l.b16 %v107
  %v636 = vunpack.c.h.b16 %v107
  %v637 = vunpack.c.l.b16 %v108
  %v638 = vunpack.c.h.b16 %v108
  %v639 = vunpack.c.l.b16 %v109
  %v640 = vunpack.c.l.b16 %v110
  %v641 = vunpack.c.h.b16 %v110
  %v642 = vunpack.c.l.b16 %v111
  %v643 = vunpack.c.h.b16 %v111
  %v644 = vunpack.c.l.b16 %v112
  %v645 = vunpack.c.l.b16 %v113
  %v646 = vunpack.c.h.b16 %v113
  %v647 = vunpack.c.l.b16 %v114
  %v648 = vunpack.c.h.b16 %v114
  %v649 = vunpack.c.l.b16 %v115
  %v650 = vunpack.c.l.b16 %v116
  %v651 = vunpack.c.h.b16 %v116
  %v652 = vunpack.c.l.b16 %v117
  %v653 = vunpack.c.h.b16 %v117
  %v654 = vunpack.c.l.b16 %v118
  %v655 = vunpack.c.l.b16 %v119
  %v656 = vunpack.c.h.b16 %v119
  %v657 = vunpack.c.l.b16 %v120
  %v658 = vunpack.c.h.b16 %v120
  %v659 = vunpack.c.l.b16 %v121
  %v660 = vunpack.c.l.b16 %v122
  %v661 = vunpack.c.h.b16 %v122
  %v662 = vunpack.c.l.b16 %v123
  %v663 = vunpack.c.h.b16 %v123
  %v664 = vunpack.c.l.b16 %v124
  %v665 = vunpack.c.l.b16 %v125
  %v666 = vunpack.c.h.b16 %v125
  %v667 = vunpack.c.l.b16 %v126
  %v668 = vunpack.c.h.b16 %v126
  %v669 = vunpack.c.l.b16 %v127
  %v670 = vunpack.c.l.b16 %v128
  %v671 = vunpack.c.h.b16 %v128
  %v672 = vunpack.c.l.b16 %v129
  %v673 = vunpack.c.h.b16 %v129
  %v674 = vunpack.c.l.b16 %v130
  %v675 = vunpack.c.l.b16 %v131
  %v676 = vunpack.c.h.b16 %v131
  %v677 = vunpack.c.l.b16 %v132
  %v678 = vunpack.c.h.b16 %v132
  %v679 = vunpack.c.l.b16 %v133
  %v680 = vunpack.c.l.b16 %v134
  %v681 = vunpack.c.h.b16 %v134
  %v682 = vunpack.c.l.b16 %v135
  %v683 = vunpack.c.h.b16 %v135
  %v684 = vunpack.c.l.b16 %v136
  %v685 = vunpack.c.l.b16 %v137
  %v686 = vunpack.c.h.b16 %v137
  %v687 = vunpack.c.l.b16 %v138
  %v688 = vunpack.c.h.b16 %v138
  %v689 = vunpack.c.l.b16 %v139
  %v690 = vunpack.c.l.b16 %v140
  %v691 = vunpack.c.h.b16 %v140
  %v692 = vunpack.c.l.b16 %v141
  %v693 = vunpack.c.h.b16 %v141
  %v694 = vunpack.c.l.b16 %v142
  %v695 = vunpack.c.l.b16 %v143
  %v696 = vunpack.c.h.b16 %v143
  %v697 = vunpack.c.l.b16 %v144
  %v698 = vunpack.c.h.b16 %v144
  %v699 = vunpack.c.l.b16 %v145
  %v700 = vunpack.c.l.b16 %v146
  %v701 = vunpack.c.h.b16 %v146
  %v702 = vunpack.c.l.b16 %v147
  %v703 = vunpack.c.h.b16 %v147
  %v704 = vunpack.c.l.b16 %v148
  %v705 = vunpack.c.l.b16 %v149
  %v706 = vunpack.c.h.b16 %v149
  %v707 = vunpack.c.l.b16 %v150
  %v708 = vunpack.c.h.b16 %v150
  %v709 = vunpack.c.l.b16 %v151
  %v710 = vunpack.c.l.b16 %v152
  %v711 = vunpack.c.h.b16 %v152
  %v712 = vunpack.c.l.b16 %v153
  %v713 = vunpack.c.h.b16 %v153
  %v714 = vunpack.c.l.b16 %v154
  %v715 = vunpack.c.l.b16 %v155
  %v716 = vunpack.c.h.b16 %v155
  %v717 = vunpack.c.l.b16 %v156
  %v718 = vunpack.c.h.b16 %v156
  %v719 = vunpack.c.l.b16 %v157
  %v720 = vunpack.c.l.b16 %v158
  %v721 = vunpack.c.h.b16 %v158
  %v722 = vunpack.c.l.b16 %v159
  %v723 = vunpack.c.h.b16 %v159
  %v724 = vunpack.c.l.b16 %v160
  %v725 = vunpack.c.l.b16 %v161
  %v726 = vunpack.c.h.b16 %v161
  %v727 = vunpack.c.l.b16 %v162
  %v728 = vunpack.c.h.b16 %v162
  %v729 = vunpack.c.l.b16 %v163
  %v730 = vunpack.c.l.b16 %v164
  %v731 = vunpack.c.h.b16 %v164
  %v732 = vunpack.c.l.b16 %v165
  %v733 = vunpack.c.h.b16 %v165
  %v734 = vunpack.c.l.b16 %v166
  %v735 = vunpack.c.l.b16 %v167
  %v736 = vunpack.c.h.b16 %v167
  %v737 = vunpack.c.l.b16 %v168
  %v738 = vunpack.c.h.b16 %v168
  %v739 = vunpack.c.l.b16 %v169
  %v740 = vunpack.c.l.b16 %v170
  %v741 = vunpack.c.h.b16 %v170
  %v742 = vunpack.c.l.b16 %v171
  %v743 = vunpack.c.h.b16 %v171
  %v744 = vunpack.c.l.b16 %v172
  %v745 = vunpack.c.l.b16 %v173
  %v746 = vunpack.c.h.b16 %v173
  %v747 = vunpack.c.l.b16 %v174
  %v748 = vunpack.c.h.b16 %v174
  %v749 = vunpack.c.l.b16 %v175
  %v750 = vunpack.c.l.b16 %v176
  %v751 = vunpack.c.h.b16 %v176
  %v752 = vunpack.c.l.b16 %v177
  %v753 = vunpack.c.h.b16 %v177
  %v754 = vunpack.c.l.b16 %v178
  %v755 = vunpack.c.l.b16 %v179
  %v756 = vunpack.c.h.b16 %v179
  %v757 = vunpack.c.l.b16 %v180
  %v758 = vunpack.c.h.b16 %v180
  %v759 = vunpack.c.l.b16 %v181
  %v760 = vunpack.c.l.b16 %v182
  %v761 = vunpack.c.h.b16 %v182
  %v762 = vunpack.c.l.b16 %v183
  %v763 = vunpack.c.h.b16 %v183
  %v764 = vunpack.c.l.b16 %v184
  %v765 = vunpack.c.l.b16 %v185
  %v766 = vunpack.c.h.b16 %v185
  %v767 = vunpack.c.l.b16 %v186
  %v768 = vunpack.c.h.b16 %v186
  %v769 = vunpack.c.l.b16 %v187
  %v770 = vunpack.c.l.b16 %v188
  %v771 = vunpack.c.h.b16 %v188
  %v772 = vunpack.c.l.b16 %v189
  %v773 = vunpack.c.h.b16 %v189
  %v774 = vunpack.c.l.b16 %v190
  %v775 = vunpack.c.l.b16 %v191
  %v776 = vunpack.c.h.b16 %v191
  %v777 = vunpack.c.l.b16 %v192
  %v778 = vunpack.c.h.b16 %v192
  %v779 = vunpack.c.l.b16 %v193
  %v780 = vunpack.c.l.b16 %v194
  %v781 = vunpack.c.h.b16 %v194
  %v782 = vunpack.c.l.b16 %v195
  %v783 = vunpack.c.h.b16 %v195
  %v784 = vunpack.c.l.b16 %v196
  %v785 = vunpack.c.l.b16 %v197
  %v786 = vunpack.c.h.b16 %v197
  %v787 = vunpack.c.l.b16 %v198
  %v788 = vunpack.c.h.b16 %v198
  %v789 = vunpack.c.l.b16 %v199
  %v790 = vunpack.c.l.b16 %v200
  %v791 = vunpack.c.h.b16 %v200
  %v792 = vunpack.c.l.b16 %v201
  %v793 = vunpack.c.h.b16 %v201
  %v794 = vunpack.c.l.b16 %v202
  %v795 = vunpack.c.l.b16 %v203
  %v796 = vunpack.c.h.b16 %v203
  %v797 = vunpack.c.l.b16 %v204
  %v798 = vunpack.c.h.b16 %v204
  %v799 = vunpack.c.l.b16 %v205
  %v800 = vunpack.c.l.b16 %v206
  %v801 = vunpack.c.h.b16 %v206
  %v802 = vunpack.c.l.b16 %v207
  %v803 = vunpack.c.h.b16 %v207
  %v804 = vunpack.c.l.b16 %v208
  %v805 = vpack.c.b16 %v490, %v485
  %v806 = vpack.c.b16 %v491, %v486
  %v807 = vpack.c.b16 %v492, %v487
  %v808 = vpack.c.b16 %v493, %v488
  %v809 = vpack.c.b16 %v494, %v489
  %v810 = vpack.c.b16 %v500, %v495
  %v811 = vpack.c.b16 %v501, %v496
  %v812 = vpack.c.b16 %v502, %v497
  %v813 = vpack.c.b16 %v503, %v498
  %v814 = vpack.c.b16 %v504, %v499
  %v815 = vpack.c.b16 %v510, %v505
  %v816 = vpack.c.b16 %v511, %v506
  %v817 = vpack.c.b16 %v512, %v507
  %v818 = vpack.c.b16 %v513, %v508
  %v819 = vpack.c.b16 %v514, %v509
  %v820 = vpack.c.b16 %v520, %v515
  %v821 = vpack.c.b16 %v521, %v516
  %v822 = vpack.c.b16 %v522, %v517
  %v823 = vpack.c.b16 %v523, %v518
  %v824 = vpack.c.b16 %v524, %v519
  %v825 = vpack.c.b16 %v530, %v525
  %v826 = vpack.c.b16 %v531, %v526
  %v827 = vpack.c.b16 %v532, %v527
  %v828 = vpack.c.b16 %v533, %v528
  %v829 = vpack.c.b16 %v534, %v529
  %v830 = vpack.c.b16 %v540, %v535
  %v831 = vpack.c.b16 %v541, %v536
  %v832 = vpack.c.b16 %v542, %v537
  %v833 = vpack.c.b16 %v543, %v538
  %v834 = vpack.c.b16 %v544, %v539
  %v835 = vpack.c.b16 %v550, %v545
  %v836 = vpack.c.b16 %v551, %v546
  %v837 = vpack.c.b16 %v552, %v547
  %v838 = vpack.c.b16 %v553, %v548
  %v839 = vpack.c.b16 %v554, %v549
  %v840 = vpack.c.b16 %v560, %v555
  %v841 = vpack.c.b16 %v561, %v556
  %v842 = vpack.c.b16 %v562, %v557
  %v843 = vpack.c.b16 %v563, %v558
  %v844 = vpack.c.b16 %v564, %v559
  %v845 = vpack.c.b16 %v570, %v565
  %v846 = vpack.c.b16 %v571, %v566
  %v847 = vpack.c.b16 %v572, %v567
  %v848 = vpack.c.b16 %v573, %v568
  %v849 = vpack.c.b16 %v574, %v569
  %v850 = vpack.c.b16 %v580, %v575
  %v851 = vpack.c.b16 %v581, %v576
  %v852 = vpack.c.b16 %v582, %v577
  %v853 = vpack.c.b16 %v583, %v578
  %v854 = vpack.c.b16 %v584, %v579
  %v855 = vpack.c.b16 %v590, %v585
  %v856 = vpack.c.b16 %v591, %v586
  %v857 = vpack.c.b16 %v592, %v587
  %v858 = vpack.c.b16 %v593, %v588
  %v859 = vpack.c.b16 %v594, %v589
  %v860 = vpack.c.b16 %v600, %v595
  %v861 = vpack.c.b16 %v601, %v596
  %v862 = vpack.c.b16 %v602, %v597
  %v863 = vpack.c.b16 %v603, %v598
  %v864 = vpack.c.b16 %v604, %v599
  %v865 = vpack.c.b16 %v610, %v605
  %v866 = vpack.c.b16 %v611, %v606
  %v867 = vpack.c.b16 %v612, %v607
  %v868 = vpack.c.b16 %v613, %v608
  %v869 = vpack.c.b16 %v614, %v609
  %v870 = vpack.c.b16 %v620, %v615
  %v871 = vpack.c.b16 %v621, %v616
  %v872 = vpack.c.b16 %v622, %v617
  %v873 = vpack.c.b16 %v623, %v618
  %v874 = vpack.c.b16 %v624, %v619
  %v875 = vpack.c.b16 %v630, %v625
  %v876 = vpack.c.b16 %v631, %v626
  %v877 = vpack.c.b16 %v632, %v627
  %v878 = vpack.c.b16 %v633, %v628
  %v879 = vpack.c.b16 %v634, %v629
  %v880 = vpack.c.b16 %v640, %v635
  %v881 = vpack.c.b16 %v641, %v636
  %v882 = vpack.c.b16 %v642, %v637
  %v883 = vpack.c.b16 %v643, %v638
  %v884 = vpack.c.b16 %v644, %v639
  %v885 = vpack.c.b16 %v650, %v645
  %v886 = vpack.c.b16 %v651, %v646
  %v887 = vpack.c.b16 %v652, %v647
  %v888 = vpack.c.b16 %v653, %v648
  %v889 = vpack.c.b16 %v654, %v649
  %v890 = vpack.c.b16 %v660, %v655
  %v891 = vpack.c.b16 %v661, %v656
  %v892 = vpack.c.b16 %v662, %v657
  %v893 = vpack.c.b16 %v663, %v658
  %v894 = vpack.c.b16 %v664, %v659
  %v895 = vpack.c.b16 %v670, %v665
  %v896 = vpack.c.b16 %v671, %v666
  %v897 = vpack.c.b16 %v672, %v667
  %v898 = vpack.c.b16 %v673, %v668
  %v899 = vpack.c.b16 %v674, %v669
  %v900 = vpack.c.b16 %v680, %v675
  %v901 = vpack.c.b16 %v681, %v676
  %v902 = vpack.c.b16 %v682, %v677
  %v903 = vpack.c.b16 %v683, %v678
  %v904 = vpack.c.b16 %v684, %v679
  %v905 = vpack.c.b16 %v690, %v685
  %v906 = vpack.c.b16 %v691, %v686
  %v907 = vpack.c.b16 %v692, %v687
  %v908 = vpack.c.b16 %v693, %v688
  %v909 = vpack.c.b16 %v694, %v689
  %v910 = vpack.c.b16 %v700, %v695
  %v911 = vpack.c.b16 %v701, %v696
  %v912 = vpack.c.b16 %v702, %v697
  %v913 = vpack.c.b16 %v703, %v698
  %v914 = vpack.c.b16 %v704, %v699
  %v915 = vpack.c.b16 %v710, %v705
  %v916 = vpack.c.b16 %v711, %v706
  %v917 = vpack.c.b16 %v712, %v707
  %v918 = vpack.c.b16 %v713, %v708
  %v919 = vpack.c.b16 %v714, %v709
  %v920 = vpack.c.b16 %v720, %v715
  %v921 = vpack.c.b16 %v721, %v716
  %v922 = vpack.c.b16 %v722, %v717
  %v923 = vpack.c.b16 %v723, %v718
  %v924 = vpack.c.b16 %v724, %v719
  %v925 = vpack.c.b16 %v730, %v725
  %v926 = vpack.c.b16 %v731, %v726
  %v927 = vpack.c.b16 %v732, %v727
  %v928 = vpack.c.b16 %v733, %v728
  %v929 = vpack.c.b16 %v734, %v729
  %v930 = vpack.c.b16 %v740, %v735
  %v931 = vpack.c.b16 %v741, %v736
  %v932 = vpack.c.b16 %v742, %v737
  %v933 = vpack.c.b16 %v743, %v738
  %v934 = vpack.c.b16 %v744, %v739
  %v935 = vpack.c.b16 %v750, %v745
  %v936 = vpack.c.b16 %v751, %v746
  %v937 = vpack.c.b16 %v752, %v747
  %v938 = vpack.c.b16 %v753, %v748
  %v939 = vpack.c.b16 %v754, %v749
  %v940 = vpack.c.b16 %v760, %v755
  %v941 = vpack.c.b16 %v761, %v756
  %v942 = vpack.c.b16 %v762, %v757
  %v943 = vpack.c.b16 %v763, %v758
  %v944 = vpack.c.b16 %v764, %v759
  %v945 = vpack.c.b16 %v770, %v765
  %v946 = vpack.c.b16 %v771, %v766
  %v947 = vpack.c.b16 %v772, %v767
  %v948 = vpack.c.b16 %v773, %v768
  %v949 = vpack.c.b16 %v774, %v769
  %v950 = vpack.c.b16 %v780, %v775
  %v951 = vpack.c.b16 %v781, %v776
  %v952 = vpack.c.b16 %v782, %v777
  %v953 = vpack.c.b16 %v783, %v778
  %v954 = vpack.c.b16 %v784, %v779
  %v955 = vpack.c.b16 %v790, %v785
  %v956 = vpack.c.b16 %v791, %v786
  %v957 = vpack.c.b16 %v792, %v787
  %v958 = vpack.c.b16 %v793, %v788
  %v959 = vpack.c.b16 %v794, %v789
  %v960 = vpack.c.b16 %v800, %v795
  %v961 = vpack.c.b16 %v801, %v796
  %v962 = vpack.c.b16 %v802, %v797
  %v963 = vpack.c.b16 %v803, %v798
  %v964 = vpack.c.b16 %v804, %v799
  %v1205 = vunpack.c.l.b16 %v209
  %v1206 = vunpack.c.l.b16 %v210
  %v1207 = vunpack.c.l.b16 %v211
  %v1208 = vunpack.c.l.b16 %v212
  %v1209 = vunpack.c.l.b16 %v213
  %v1210 = vunpack.c.l.b16 %v214
  %v1211 = vunpack.c.l.b16 %v215
  %v1212 = vunpack.c.l.b16 %v216
  %v1213 = vunpack.c.l.b16 %v217
  %v1214 = vunpack.c.l.b16 %v218
  %v1215 = vunpack.c.l.b16 %v219
  %v1216 = vunpack.c.l.b16 %v220
  %v1217 = vunpack.c.l.b16 %v221
  %v1218 = vunpack.c.l.b16 %v222
  %v1219 = vunpack.c.l.b16 %v223
  %v1220 = vunpack.c.l.b16 %v224
  %v1221 = vunpack.c.l.b16 %v225
  %v1222 = vunpack.c.l.b16 %v226
  %v1223 = vunpack.c.l.b16 %v227
  %v1224 = vunpack.c.l.b16 %v228
  %v1225 = vunpack.c.l.b16 %v229
  %v1226 = vunpack.c.l.b16 %v230
  %v1227 = vunpack.c.l.b16 %v231
  %v1228 = vunpack.c.l.b16 %v232
  %v1229 = vunpack.c.l.b16 %v233
  %v1230 = vunpack.c.l.b16 %v234
  %v1231 = vunpack.c.l.b16 %v235
  %v1232 = vunpack.c.l.b16 %v236
  %v1233 = vunpack.c.l.b16 %v237
  %v1234 = vunpack.c.l.b16 %v238
  %v1235 = vunpack.c.l.b16 %v239
  %v1236 = vunpack.c.l.b16 %v240
  %v1237 = vunpack.c.l.b16 %v241
  %v1238 = vunpack.c.l.b16 %v242
  %v1239 = vunpack.c.l.b16 %v243
  %v1240 = vunpack.c.l.b16 %v244
  %v1241 = vunpack.c.l.b16 %v245
  %v1242 = vunpack.c.l.b16 %v246
  %v1243 = vunpack.c.l.b16 %v247
  %v1244 = vunpack.c.l.b16 %v248
  %v1245 = vunpack.c.l.b16 %v249
  %v1246 = vunpack.c.l.b16 %v250
  %v1247 = vunpack.c.l.b16 %v251
  %v1248 = vunpack.c.l.b16 %v252
  %v1249 = vunpack.c.l.b16 %v253
  %v1250 = vunpack.c.l.b16 %v254
  %v1251 = vunpack.c.l.b16 %v255
  %v1252 = vunpack.c.l.b16 %v256
  %v1253 = vunpack.c.l.b16 %v257
  %v1254 = vunpack.c.l.b16 %v258
  %v1255 = vunpack.c.l.b16 %v259
  %v1256 = vunpack.c.l.b16 %v260
  %v1257 = vunpack.c.l.b16 %v261
  %v1258 = vunpack.c.l.b16 %v262
  %v1259 = vunpack.c.l.b16 %v263
  %v1260 = vunpack.c.l.b16 %v264
  %v1261 = vunpack.c.l.b16 %v265
  %v1262 = vunpack.c.l.b16 %v266
  %v1263 = vunpack.c.l.b16 %v267
  %v1264 = vunpack.c.l.b16 %v268
  %v1265 = vunpack.c.l.b16 %v269
  %v1266 = vunpack.c.l.b16 %v270
  %v1267 = vunpack.c.l.b16 %v271
  %v1268 = vunpack.c.l.b16 %v272
  %v1269 = vunpack.c.l.b16 %v273
  %v1270 = vunpack.c.l.b16 %v274
  %v1271 = vunpack.c.l.b16 %v275
  %v1272 = vunpack.c.l.b16 %v276
  %v1273 = vunpack.c.l.b16 %v277
  %v1274 = vunpack.c.l.b16 %v278
  %v1275 = vunpack.c.l.b16 %v279
  %v1276 = vunpack.c.l.b16 %v280
  %v1277 = vunpack.c.l.b16 %v281
  %v1278 = vunpack.c.l.b16 %v282
  %v1279 = vunpack.c.l.b16 %v283
  %v1280 = vunpack.c.l.b16 %v284
  %v1281 = vunpack.c.l.b16 %v285
  %v1282 = vunpack.c.l.b16 %v286
  %v1283 = vunpack.c.l.b16 %v287
  %v1284 = vunpack.c.l.b16 %v288
  %v1285 = vpack.c.b16 %v1206, %v1205
  %v1286 = vpack.c.b16 %v1208, %v1207
  %v1287 = vpack.c.b16 %v1210, %v1209
  %v1288 = vpack.c.b16 %v1212, %v1211
  %v1289 = vpack.c.b16 %v1214, %v1213
  %v1290 = vpack.c.b16 %v1216, %v1215
  %v1291 = vpack.c.b16 %v1218, %v1217
  %v1292 = vpack.c.b16 %v1220, %v1219
  %v1293 = vpack.c.b16 %v1222, %v1221
  %v1294 = vpack.c.b16 %v1224, %v1223
  %v1295 = vpack.c.b16 %v1226, %v1225
  %v1296 = vpack.c.b16 %v1228, %v1227
  %v1297 = vpack.c.b16 %v1230, %v1229
  %v1298 = vpack.c.b16 %v1232, %v1231
  %v1299 = vpack.c.b16 %v1234, %v1233
  %v1300 = vpack.c.b16 %v1236, %v1235
  %v1301 = vpack.c.b16 %v1238, %v1237
  %v1302 = vpack.c.b16 %v1240, %v1239
  %v1303 = vpack.c.b16 %v1242, %v1241
  %v1304 = vpack.c.b16 %v1244, %v1243
  %v1305 = vpack.c.b16 %v1246, %v1245
  %v1306 = vpack.c.b16 %v1248, %v1247
  %v1307 = vpack.c.b16 %v1250, %v1249
  %v1308 = vpack.c.b16 %v1252, %v1251
  %v1309 = vpack.c.b16 %v1254, %v1253
  %v1310 = vpack.c.b16 %v1256, %v1255
  %v1311 = vpack.c.b16 %v1258, %v1257
  %v1312 = vpack.c.b16 %v1260, %v1259
  %v1313 = vpack.c.b16 %v1262, %v1261
  %v1314 = vpack.c.b16 %v1264, %v1263
  %v1315 = vpack.c.b16 %v1266, %v1265
  %v1316 = vpack.c.b16 %v1268, %v1267
  %v1317 = vpack.c.b16 %v1270, %v1269
  %v1318 = vpack.c.b16 %v1272, %v1271
  %v1319 = vpack.c.b16 %v1274, %v1273
  %v1320 = vpack.c.b16 %v1276, %v1275
  %v1321 = vpack.c.b16 %v1278, %v1277
  %v1322 = vpack.c.b16 %v1280, %v1279
  %v1323 = vpack.c.b16 %v1282, %v1281
  %v1324 = vpack.c.b16 %v1284, %v1283
  %1365 = vmatpush.bf16.msra.mxu0 %v1292
  %1366 = vmatpush.bf16.msra.mxu0 %v1291
  %1367 = vmatpush.bf16.msra.mxu0 %v1290
  %1368 = vmatpush.bf16.msra.mxu0 %v1289
  %1369 = vmatpush.bf16.msra.mxu0 %v1288
  %1370 = vmatpush.bf16.msra.mxu0 %v1287
  %1371 = vmatpush.bf16.msra.mxu0 %v1286
  %1372 = vmatpush.bf16.msra.mxu0 %v1285
  %1373 = vmatmul.bf16.gmra.mxu0 %v805
  %v1374 = vpop.f32.mrf.mxu0
  %v1375 = vadd.f32 %v291, %v1374
  %v1376 = vpop.f32.mrf.mxu0
  %v1377 = vadd.f32 %v291, %v1376
  %1378 = vmatmul.bf16.gmra.mxu0 %v810
  %v1379 = vpop.f32.mrf.mxu0
  %v1380 = vadd.f32 %v291, %v1379
  %v1381 = vpop.f32.mrf.mxu0
  %v1382 = vadd.f32 %v291, %v1381
  %1383 = vmatmul.bf16.gmra.mxu0 %v815
  %v1384 = vpop.f32.mrf.mxu0
  %v1385 = vadd.f32 %v291, %v1384
  %v1386 = vpop.f32.mrf.mxu0
  %v1387 = vadd.f32 %v291, %v1386
  %1388 = vmatmul.bf16.gmra.mxu0 %v820
  %v1389 = vpop.f32.mrf.mxu0
  %v1390 = vadd.f32 %v291, %v1389
  %v1391 = vpop.f32.mrf.mxu0
  %v1392 = vadd.f32 %v291, %v1391
  %1393 = vmatmul.bf16.gmra.mxu0 %v825
  %v1394 = vpop.f32.mrf.mxu0
  %v1395 = vadd.f32 %v291, %v1394
  %v1396 = vpop.f32.mrf.mxu0
  %v1397 = vadd.f32 %v291, %v1396
  %1398 = vmatmul.bf16.gmra.mxu0 %v830
  %v1399 = vpop.f32.mrf.mxu0
  %v1400 = vadd.f32 %v291, %v1399
  %v1401 = vpop.f32.mrf.mxu0
  %v1402 = vadd.f32 %v291, %v1401
  %1403 = vmatmul.bf16.gmra.mxu0 %v835
  %v1404 = vpop.f32.mrf.mxu0
  %v1405 = vadd.f32 %v291, %v1404
  %v1406 = vpop.f32.mrf.mxu0
  %v1407 = vadd.f32 %v291, %v1406
  %1408 = vmatmul.bf16.gmra.mxu0 %v840
  %v1409 = vpop.f32.mrf.mxu0
  %v1410 = vadd.f32 %v291, %v1409
  %v1411 = vpop.f32.mrf.mxu0
  %v1412 = vadd.f32 %v291, %v1411
  %1413 = vmatmul.bf16.gmra.mxu0 %v845
  %v1414 = vpop.f32.mrf.mxu0
  %v1415 = vadd.f32 %v291, %v1414
  %v1416 = vpop.f32.mrf.mxu0
  %v1417 = vadd.f32 %v291, %v1416
  %1418 = vmatmul.bf16.gmra.mxu0 %v850
  %v1419 = vpop.f32.mrf.mxu0
  %v1420 = vadd.f32 %v291, %v1419
  %v1421 = vpop.f32.mrf.mxu0
  %v1422 = vadd.f32 %v291, %v1421
  %1423 = vmatmul.bf16.gmra.mxu0 %v855
  %v1424 = vpop.f32.mrf.mxu0
  %v1425 = vadd.f32 %v291, %v1424
  %v1426 = vpop.f32.mrf.mxu0
  %v1427 = vadd.f32 %v291, %v1426
  %1428 = vmatmul.bf16.gmra.mxu0 %v860
  %v1429 = vpop.f32.mrf.mxu0
  %v1430 = vadd.f32 %v291, %v1429
  %v1431 = vpop.f32.mrf.mxu0
  %v1432 = vadd.f32 %v291, %v1431
  %1433 = vmatmul.bf16.gmra.mxu0 %v865
  %v1434 = vpop.f32.mrf.mxu0
  %v1435 = vadd.f32 %v291, %v1434
  %v1436 = vpop.f32.mrf.mxu0
  %v1437 = vadd.f32 %v291, %v1436
  %1438 = vmatmul.bf16.gmra.mxu0 %v870
  %v1439 = vpop.f32.mrf.mxu0
  %v1440 = vadd.f32 %v291, %v1439
  %v1441 = vpop.f32.mrf.mxu0
  %v1442 = vadd.f32 %v291, %v1441
  %1443 = vmatmul.bf16.gmra.mxu0 %v875
  %v1444 = vpop.f32.mrf.mxu0
  %v1445 = vadd.f32 %v291, %v1444
  %v1446 = vpop.f32.mrf.mxu0
  %v1447 = vadd.f32 %v291, %v1446
  %1448 = vmatmul.bf16.gmra.mxu0 %v880
  %v1449 = vpop.f32.mrf.mxu0
  %v1450 = vadd.f32 %v291, %v1449
  %v1451 = vpop.f32.mrf.mxu0
  %v1452 = vadd.f32 %v291, %v1451
  %1453 = vmatmul.bf16.gmra.mxu0 %v885
  %v1454 = vpop.f32.mrf.mxu0
  %v1455 = vadd.f32 %v291, %v1454
  %v1456 = vpop.f32.mrf.mxu0
  %v1457 = vadd.f32 %v291, %v1456
  %1458 = vmatmul.bf16.gmra.mxu0 %v890
  %v1459 = vpop.f32.mrf.mxu0
  %v1460 = vadd.f32 %v291, %v1459
  %v1461 = vpop.f32.mrf.mxu0
  %v1462 = vadd.f32 %v291, %v1461
  %1463 = vmatmul.bf16.gmra.mxu0 %v895
  %v1464 = vpop.f32.mrf.mxu0
  %v1465 = vadd.f32 %v291, %v1464
  %v1466 = vpop.f32.mrf.mxu0
  %v1467 = vadd.f32 %v291, %v1466
  %1468 = vmatmul.bf16.gmra.mxu0 %v900
  %v1469 = vpop.f32.mrf.mxu0
  %v1470 = vadd.f32 %v291, %v1469
  %v1471 = vpop.f32.mrf.mxu0
  %v1472 = vadd.f32 %v291, %v1471
  %1473 = vmatmul.bf16.gmra.mxu0 %v905
  %v1474 = vpop.f32.mrf.mxu0
  %v1475 = vadd.f32 %v291, %v1474
  %v1476 = vpop.f32.mrf.mxu0
  %v1477 = vadd.f32 %v291, %v1476
  %1478 = vmatmul.bf16.gmra.mxu0 %v910
  %v1479 = vpop.f32.mrf.mxu0
  %v1480 = vadd.f32 %v291, %v1479
  %v1481 = vpop.f32.mrf.mxu0
  %v1482 = vadd.f32 %v291, %v1481
  %1483 = vmatmul.bf16.gmra.mxu0 %v915
  %v1484 = vpop.f32.mrf.mxu0
  %v1485 = vadd.f32 %v291, %v1484
  %v1486 = vpop.f32.mrf.mxu0
  %v1487 = vadd.f32 %v291, %v1486
  %1488 = vmatmul.bf16.gmra.mxu0 %v920
  %v1489 = vpop.f32.mrf.mxu0
  %v1490 = vadd.f32 %v291, %v1489
  %v1491 = vpop.f32.mrf.mxu0
  %v1492 = vadd.f32 %v291, %v1491
  %1493 = vmatmul.bf16.gmra.mxu0 %v925
  %v1494 = vpop.f32.mrf.mxu0
  %v1495 = vadd.f32 %v291, %v1494
  %v1496 = vpop.f32.mrf.mxu0
  %v1497 = vadd.f32 %v291, %v1496
  %1498 = vmatmul.bf16.gmra.mxu0 %v930
  %v1499 = vpop.f32.mrf.mxu0
  %v1500 = vadd.f32 %v291, %v1499
  %v1501 = vpop.f32.mrf.mxu0
  %v1502 = vadd.f32 %v291, %v1501
  %1503 = vmatmul.bf16.gmra.mxu0 %v935
  %v1504 = vpop.f32.mrf.mxu0
  %v1505 = vadd.f32 %v291, %v1504
  %v1506 = vpop.f32.mrf.mxu0
  %v1507 = vadd.f32 %v291, %v1506
  %1508 = vmatmul.bf16.gmra.mxu0 %v940
  %v1509 = vpop.f32.mrf.mxu0
  %v1510 = vadd.f32 %v291, %v1509
  %v1511 = vpop.f32.mrf.mxu0
  %v1512 = vadd.f32 %v291, %v1511
  %1513 = vmatmul.bf16.gmra.mxu0 %v945
  %v1514 = vpop.f32.mrf.mxu0
  %v1515 = vadd.f32 %v291, %v1514
  %v1516 = vpop.f32.mrf.mxu0
  %v1517 = vadd.f32 %v291, %v1516
  %1518 = vmatmul.bf16.gmra.mxu0 %v950
  %v1519 = vpop.f32.mrf.mxu0
  %v1520 = vadd.f32 %v291, %v1519
  %v1521 = vpop.f32.mrf.mxu0
  %v1522 = vadd.f32 %v291, %v1521
  %1523 = vmatmul.bf16.gmra.mxu0 %v955
  %v1524 = vpop.f32.mrf.mxu0
  %v1525 = vadd.f32 %v291, %v1524
  %v1526 = vpop.f32.mrf.mxu0
  %v1527 = vadd.f32 %v291, %v1526
  %1528 = vmatmul.bf16.gmra.mxu0 %v960
  %v1529 = vpop.f32.mrf.mxu0
  %v1530 = vadd.f32 %v291, %v1529
  %v1531 = vpop.f32.mrf.mxu0
  %v1532 = vadd.f32 %v291, %v1531
  %1533 = vdwg.mxu0
  %1534 = vmatpush.bf16.msra.mxu0 %v1300
  %1535 = vmatpush.bf16.msra.mxu0 %v1299
  %1536 = vmatpush.bf16.msra.mxu0 %v1298
  %1537 = vmatpush.bf16.msra.mxu0 %v1297
  %1538 = vmatpush.bf16.msra.mxu0 %v1296
  %1539 = vmatpush.bf16.msra.mxu0 %v1295
  %1540 = vmatpush.bf16.msra.mxu0 %v1294
  %1541 = vmatpush.bf16.msra.mxu0 %v1293
  %1542 = vmatmul.bf16.gmra.mxu0 %v806
  %v1543 = vpop.f32.mrf.mxu0
  %v1544 = vadd.f32 %v1375, %v1543
  %v1545 = vpop.f32.mrf.mxu0
  %v1546 = vadd.f32 %v1377, %v1545
  %1547 = vmatmul.bf16.gmra.mxu0 %v811
  %v1548 = vpop.f32.mrf.mxu0
  %v1549 = vadd.f32 %v1380, %v1548
  %v1550 = vpop.f32.mrf.mxu0
  %v1551 = vadd.f32 %v1382, %v1550
  %1552 = vmatmul.bf16.gmra.mxu0 %v816
  %v1553 = vpop.f32.mrf.mxu0
  %v1554 = vadd.f32 %v1385, %v1553
  %v1555 = vpop.f32.mrf.mxu0
  %v1556 = vadd.f32 %v1387, %v1555
  %1557 = vmatmul.bf16.gmra.mxu0 %v821
  %v1558 = vpop.f32.mrf.mxu0
  %v1559 = vadd.f32 %v1390, %v1558
  %v1560 = vpop.f32.mrf.mxu0
  %v1561 = vadd.f32 %v1392, %v1560
  %1562 = vmatmul.bf16.gmra.mxu0 %v826
  %v1563 = vpop.f32.mrf.mxu0
  %v1564 = vadd.f32 %v1395, %v1563
  %v1565 = vpop.f32.mrf.mxu0
  %v1566 = vadd.f32 %v1397, %v1565
  %1567 = vmatmul.bf16.gmra.mxu0 %v831
  %v1568 = vpop.f32.mrf.mxu0
  %v1569 = vadd.f32 %v1400, %v1568
  %v1570 = vpop.f32.mrf.mxu0
  %v1571 = vadd.f32 %v1402, %v1570
  %1572 = vmatmul.bf16.gmra.mxu0 %v836
  %v1573 = vpop.f32.mrf.mxu0
  %v1574 = vadd.f32 %v1405, %v1573
  %v1575 = vpop.f32.mrf.mxu0
  %v1576 = vadd.f32 %v1407, %v1575
  %1577 = vmatmul.bf16.gmra.mxu0 %v841
  %v1578 = vpop.f32.mrf.mxu0
  %v1579 = vadd.f32 %v1410, %v1578
  %v1580 = vpop.f32.mrf.mxu0
  %v1581 = vadd.f32 %v1412, %v1580
  %1582 = vmatmul.bf16.gmra.mxu0 %v846
  %v1583 = vpop.f32.mrf.mxu0
  %v1584 = vadd.f32 %v1415, %v1583
  %v1585 = vpop.f32.mrf.mxu0
  %v1586 = vadd.f32 %v1417, %v1585
  %1587 = vmatmul.bf16.gmra.mxu0 %v851
  %v1588 = vpop.f32.mrf.mxu0
  %v1589 = vadd.f32 %v1420, %v1588
  %v1590 = vpop.f32.mrf.mxu0
  %v1591 = vadd.f32 %v1422, %v1590
  %1592 = vmatmul.bf16.gmra.mxu0 %v856
  %v1593 = vpop.f32.mrf.mxu0
  %v1594 = vadd.f32 %v1425, %v1593
  %v1595 = vpop.f32.mrf.mxu0
  %v1596 = vadd.f32 %v1427, %v1595
  %1597 = vmatmul.bf16.gmra.mxu0 %v861
  %v1598 = vpop.f32.mrf.mxu0
  %v1599 = vadd.f32 %v1430, %v1598
  %v1600 = vpop.f32.mrf.mxu0
  %v1601 = vadd.f32 %v1432, %v1600
  %1602 = vmatmul.bf16.gmra.mxu0 %v866
  %v1603 = vpop.f32.mrf.mxu0
  %v1604 = vadd.f32 %v1435, %v1603
  %v1605 = vpop.f32.mrf.mxu0
  %v1606 = vadd.f32 %v1437, %v1605
  %1607 = vmatmul.bf16.gmra.mxu0 %v871
  %v1608 = vpop.f32.mrf.mxu0
  %v1609 = vadd.f32 %v1440, %v1608
  %v1610 = vpop.f32.mrf.mxu0
  %v1611 = vadd.f32 %v1442, %v1610
  %1612 = vmatmul.bf16.gmra.mxu0 %v876
  %v1613 = vpop.f32.mrf.mxu0
  %v1614 = vadd.f32 %v1445, %v1613
  %v1615 = vpop.f32.mrf.mxu0
  %v1616 = vadd.f32 %v1447, %v1615
  %1617 = vmatmul.bf16.gmra.mxu0 %v881
  %v1618 = vpop.f32.mrf.mxu0
  %v1619 = vadd.f32 %v1450, %v1618
  %v1620 = vpop.f32.mrf.mxu0
  %v1621 = vadd.f32 %v1452, %v1620
  %1622 = vmatmul.bf16.gmra.mxu0 %v886
  %v1623 = vpop.f32.mrf.mxu0
  %v1624 = vadd.f32 %v1455, %v1623
  %v1625 = vpop.f32.mrf.mxu0
  %v1626 = vadd.f32 %v1457, %v1625
  %1627 = vmatmul.bf16.gmra.mxu0 %v891
  %v1628 = vpop.f32.mrf.mxu0
  %v1629 = vadd.f32 %v1460, %v1628
  %v1630 = vpop.f32.mrf.mxu0
  %v1631 = vadd.f32 %v1462, %v1630
  %1632 = vmatmul.bf16.gmra.mxu0 %v896
  %v1633 = vpop.f32.mrf.mxu0
  %v1634 = vadd.f32 %v1465, %v1633
  %v1635 = vpop.f32.mrf.mxu0
  %v1636 = vadd.f32 %v1467, %v1635
  %1637 = vmatmul.bf16.gmra.mxu0 %v901
  %v1638 = vpop.f32.mrf.mxu0
  %v1639 = vadd.f32 %v1470, %v1638
  %v1640 = vpop.f32.mrf.mxu0
  %v1641 = vadd.f32 %v1472, %v1640
  %1642 = vmatmul.bf16.gmra.mxu0 %v906
  %v1643 = vpop.f32.mrf.mxu0
  %v1644 = vadd.f32 %v1475, %v1643
  %v1645 = vpop.f32.mrf.mxu0
  %v1646 = vadd.f32 %v1477, %v1645
  %1647 = vmatmul.bf16.gmra.mxu0 %v911
  %v1648 = vpop.f32.mrf.mxu0
  %v1649 = vadd.f32 %v1480, %v1648
  %v1650 = vpop.f32.mrf.mxu0
  %v1651 = vadd.f32 %v1482, %v1650
  %1652 = vmatmul.bf16.gmra.mxu0 %v916
  %v1653 = vpop.f32.mrf.mxu0
  %v1654 = vadd.f32 %v1485, %v1653
  %v1655 = vpop.f32.mrf.mxu0
  %v1656 = vadd.f32 %v1487, %v1655
  %1657 = vmatmul.bf16.gmra.mxu0 %v921
  %v1658 = vpop.f32.mrf.mxu0
  %v1659 = vadd.f32 %v1490, %v1658
  %v1660 = vpop.f32.mrf.mxu0
  %v1661 = vadd.f32 %v1492, %v1660
  %1662 = vmatmul.bf16.gmra.mxu0 %v926
  %v1663 = vpop.f32.mrf.mxu0
  %v1664 = vadd.f32 %v1495, %v1663
  %v1665 = vpop.f32.mrf.mxu0
  %v1666 = vadd.f32 %v1497, %v1665
  %1667 = vmatmul.bf16.gmra.mxu0 %v931
  %v1668 = vpop.f32.mrf.mxu0
  %v1669 = vadd.f32 %v1500, %v1668
  %v1670 = vpop.f32.mrf.mxu0
  %v1671 = vadd.f32 %v1502, %v1670
  %1672 = vmatmul.bf16.gmra.mxu0 %v936
  %v1673 = vpop.f32.mrf.mxu0
  %v1674 = vadd.f32 %v1505, %v1673
  %v1675 = vpop.f32.mrf.mxu0
  %v1676 = vadd.f32 %v1507, %v1675
  %1677 = vmatmul.bf16.gmra.mxu0 %v941
  %v1678 = vpop.f32.mrf.mxu0
  %v1679 = vadd.f32 %v1510, %v1678
  %v1680 = vpop.f32.mrf.mxu0
  %v1681 = vadd.f32 %v1512, %v1680
  %1682 = vmatmul.bf16.gmra.mxu0 %v946
  %v1683 = vpop.f32.mrf.mxu0
  %v1684 = vadd.f32 %v1515, %v1683
  %v1685 = vpop.f32.mrf.mxu0
  %v1686 = vadd.f32 %v1517, %v1685
  %1687 = vmatmul.bf16.gmra.mxu0 %v951
  %v1688 = vpop.f32.mrf.mxu0
  %v1689 = vadd.f32 %v1520, %v1688
  %v1690 = vpop.f32.mrf.mxu0
  %v1691 = vadd.f32 %v1522, %v1690
  %1692 = vmatmul.bf16.gmra.mxu0 %v956
  %v1693 = vpop.f32.mrf.mxu0
  %v1694 = vadd.f32 %v1525, %v1693
  %v1695 = vpop.f32.mrf.mxu0
  %v1696 = vadd.f32 %v1527, %v1695
  %1697 = vmatmul.bf16.gmra.mxu0 %v961
  %v1698 = vpop.f32.mrf.mxu0
  %v1699 = vadd.f32 %v1530, %v1698
  %v1700 = vpop.f32.mrf.mxu0
  %v1701 = vadd.f32 %v1532, %v1700
  %1702 = vdwg.mxu0
  %1703 = vmatpush.bf16.msra.mxu0 %v1308
  %1704 = vmatpush.bf16.msra.mxu0 %v1307
  %1705 = vmatpush.bf16.msra.mxu0 %v1306
  %1706 = vmatpush.bf16.msra.mxu0 %v1305
  %1707 = vmatpush.bf16.msra.mxu0 %v1304
  %1708 = vmatpush.bf16.msra.mxu0 %v1303
  %1709 = vmatpush.bf16.msra.mxu0 %v1302
  %1710 = vmatpush.bf16.msra.mxu0 %v1301
  %1711 = vmatmul.bf16.gmra.mxu0 %v807
  %v1712 = vpop.f32.mrf.mxu0
  %v1713 = vadd.f32 %v1544, %v1712
  %v1714 = vpop.f32.mrf.mxu0
  %v1715 = vadd.f32 %v1546, %v1714
  %1716 = vmatmul.bf16.gmra.mxu0 %v812
  %v1717 = vpop.f32.mrf.mxu0
  %v1718 = vadd.f32 %v1549, %v1717
  %v1719 = vpop.f32.mrf.mxu0
  %v1720 = vadd.f32 %v1551, %v1719
  %1721 = vmatmul.bf16.gmra.mxu0 %v817
  %v1722 = vpop.f32.mrf.mxu0
  %v1723 = vadd.f32 %v1554, %v1722
  %v1724 = vpop.f32.mrf.mxu0
  %v1725 = vadd.f32 %v1556, %v1724
  %1726 = vmatmul.bf16.gmra.mxu0 %v822
  %v1727 = vpop.f32.mrf.mxu0
  %v1728 = vadd.f32 %v1559, %v1727
  %v1729 = vpop.f32.mrf.mxu0
  %v1730 = vadd.f32 %v1561, %v1729
  %1731 = vmatmul.bf16.gmra.mxu0 %v827
  %v1732 = vpop.f32.mrf.mxu0
  %v1733 = vadd.f32 %v1564, %v1732
  %v1734 = vpop.f32.mrf.mxu0
  %v1735 = vadd.f32 %v1566, %v1734
  %1736 = vmatmul.bf16.gmra.mxu0 %v832
  %v1737 = vpop.f32.mrf.mxu0
  %v1738 = vadd.f32 %v1569, %v1737
  %v1739 = vpop.f32.mrf.mxu0
  %v1740 = vadd.f32 %v1571, %v1739
  %1741 = vmatmul.bf16.gmra.mxu0 %v837
  %v1742 = vpop.f32.mrf.mxu0
  %v1743 = vadd.f32 %v1574, %v1742
  %v1744 = vpop.f32.mrf.mxu0
  %v1745 = vadd.f32 %v1576, %v1744
  %1746 = vmatmul.bf16.gmra.mxu0 %v842
  %v1747 = vpop.f32.mrf.mxu0
  %v1748 = vadd.f32 %v1579, %v1747
  %v1749 = vpop.f32.mrf.mxu0
  %v1750 = vadd.f32 %v1581, %v1749
  %1751 = vmatmul.bf16.gmra.mxu0 %v847
  %v1752 = vpop.f32.mrf.mxu0
  %v1753 = vadd.f32 %v1584, %v1752
  %v1754 = vpop.f32.mrf.mxu0
  %v1755 = vadd.f32 %v1586, %v1754
  %1756 = vmatmul.bf16.gmra.mxu0 %v852
  %v1757 = vpop.f32.mrf.mxu0
  %v1758 = vadd.f32 %v1589, %v1757
  %v1759 = vpop.f32.mrf.mxu0
  %v1760 = vadd.f32 %v1591, %v1759
  %1761 = vmatmul.bf16.gmra.mxu0 %v857
  %v1762 = vpop.f32.mrf.mxu0
  %v1763 = vadd.f32 %v1594, %v1762
  %v1764 = vpop.f32.mrf.mxu0
  %v1765 = vadd.f32 %v1596, %v1764
  %1766 = vmatmul.bf16.gmra.mxu0 %v862
  %v1767 = vpop.f32.mrf.mxu0
  %v1768 = vadd.f32 %v1599, %v1767
  %v1769 = vpop.f32.mrf.mxu0
  %v1770 = vadd.f32 %v1601, %v1769
  %1771 = vmatmul.bf16.gmra.mxu0 %v867
  %v1772 = vpop.f32.mrf.mxu0
  %v1773 = vadd.f32 %v1604, %v1772
  %v1774 = vpop.f32.mrf.mxu0
  %v1775 = vadd.f32 %v1606, %v1774
  %1776 = vmatmul.bf16.gmra.mxu0 %v872
  %v1777 = vpop.f32.mrf.mxu0
  %v1778 = vadd.f32 %v1609, %v1777
  %v1779 = vpop.f32.mrf.mxu0
  %v1780 = vadd.f32 %v1611, %v1779
  %1781 = vmatmul.bf16.gmra.mxu0 %v877
  %v1782 = vpop.f32.mrf.mxu0
  %v1783 = vadd.f32 %v1614, %v1782
  %v1784 = vpop.f32.mrf.mxu0
  %v1785 = vadd.f32 %v1616, %v1784
  %1786 = vmatmul.bf16.gmra.mxu0 %v882
  %v1787 = vpop.f32.mrf.mxu0
  %v1788 = vadd.f32 %v1619, %v1787
  %v1789 = vpop.f32.mrf.mxu0
  %v1790 = vadd.f32 %v1621, %v1789
  %1791 = vmatmul.bf16.gmra.mxu0 %v887
  %v1792 = vpop.f32.mrf.mxu0
  %v1793 = vadd.f32 %v1624, %v1792
  %v1794 = vpop.f32.mrf.mxu0
  %v1795 = vadd.f32 %v1626, %v1794
  %1796 = vmatmul.bf16.gmra.mxu0 %v892
  %v1797 = vpop.f32.mrf.mxu0
  %v1798 = vadd.f32 %v1629, %v1797
  %v1799 = vpop.f32.mrf.mxu0
  %v1800 = vadd.f32 %v1631, %v1799
  %1801 = vmatmul.bf16.gmra.mxu0 %v897
  %v1802 = vpop.f32.mrf.mxu0
  %v1803 = vadd.f32 %v1634, %v1802
  %v1804 = vpop.f32.mrf.mxu0
  %v1805 = vadd.f32 %v1636, %v1804
  %1806 = vmatmul.bf16.gmra.mxu0 %v902
  %v1807 = vpop.f32.mrf.mxu0
  %v1808 = vadd.f32 %v1639, %v1807
  %v1809 = vpop.f32.mrf.mxu0
  %v1810 = vadd.f32 %v1641, %v1809
  %1811 = vmatmul.bf16.gmra.mxu0 %v907
  %v1812 = vpop.f32.mrf.mxu0
  %v1813 = vadd.f32 %v1644, %v1812
  %v1814 = vpop.f32.mrf.mxu0
  %v1815 = vadd.f32 %v1646, %v1814
  %1816 = vmatmul.bf16.gmra.mxu0 %v912
  %v1817 = vpop.f32.mrf.mxu0
  %v1818 = vadd.f32 %v1649, %v1817
  %v1819 = vpop.f32.mrf.mxu0
  %v1820 = vadd.f32 %v1651, %v1819
  %1821 = vmatmul.bf16.gmra.mxu0 %v917
  %v1822 = vpop.f32.mrf.mxu0
  %v1823 = vadd.f32 %v1654, %v1822
  %v1824 = vpop.f32.mrf.mxu0
  %v1825 = vadd.f32 %v1656, %v1824
  %1826 = vmatmul.bf16.gmra.mxu0 %v922
  %v1827 = vpop.f32.mrf.mxu0
  %v1828 = vadd.f32 %v1659, %v1827
  %v1829 = vpop.f32.mrf.mxu0
  %v1830 = vadd.f32 %v1661, %v1829
  %1831 = vmatmul.bf16.gmra.mxu0 %v927
  %v1832 = vpop.f32.mrf.mxu0
  %v1833 = vadd.f32 %v1664, %v1832
  %v1834 = vpop.f32.mrf.mxu0
  %v1835 = vadd.f32 %v1666, %v1834
  %1836 = vmatmul.bf16.gmra.mxu0 %v932
  %v1837 = vpop.f32.mrf.mxu0
  %v1838 = vadd.f32 %v1669, %v1837
  %v1839 = vpop.f32.mrf.mxu0
  %v1840 = vadd.f32 %v1671, %v1839
  %1841 = vmatmul.bf16.gmra.mxu0 %v937
  %v1842 = vpop.f32.mrf.mxu0
  %v1843 = vadd.f32 %v1674, %v1842
  %v1844 = vpop.f32.mrf.mxu0
  %v1845 = vadd.f32 %v1676, %v1844
  %1846 = vmatmul.bf16.gmra.mxu0 %v942
  %v1847 = vpop.f32.mrf.mxu0
  %v1848 = vadd.f32 %v1679, %v1847
  %v1849 = vpop.f32.mrf.mxu0
  %v1850 = vadd.f32 %v1681, %v1849
  %1851 = vmatmul.bf16.gmra.mxu0 %v947
  %v1852 = vpop.f32.mrf.mxu0
  %v1853 = vadd.f32 %v1684, %v1852
  %v1854 = vpop.f32.mrf.mxu0
  %v1855 = vadd.f32 %v1686, %v1854
  %1856 = vmatmul.bf16.gmra.mxu0 %v952
  %v1857 = vpop.f32.mrf.mxu0
  %v1858 = vadd.f32 %v1689, %v1857
  %v1859 = vpop.f32.mrf.mxu0
  %v1860 = vadd.f32 %v1691, %v1859
  %1861 = vmatmul.bf16.gmra.mxu0 %v957
  %v1862 = vpop.f32.mrf.mxu0
  %v1863 = vadd.f32 %v1694, %v1862
  %v1864 = vpop.f32.mrf.mxu0
  %v1865 = vadd.f32 %v1696, %v1864
  %1866 = vmatmul.bf16.gmra.mxu0 %v962
  %v1867 = vpop.f32.mrf.mxu0
  %v1868 = vadd.f32 %v1699, %v1867
  %v1869 = vpop.f32.mrf.mxu0
  %v1870 = vadd.f32 %v1701, %v1869
  %1871 = vdwg.mxu0
  %1872 = vmatpush.bf16.msra.mxu0 %v1316
  %1873 = vmatpush.bf16.msra.mxu0 %v1315
  %1874 = vmatpush.bf16.msra.mxu0 %v1314
  %1875 = vmatpush.bf16.msra.mxu0 %v1313
  %1876 = vmatpush.bf16.msra.mxu0 %v1312
  %1877 = vmatpush.bf16.msra.mxu0 %v1311
  %1878 = vmatpush.bf16.msra.mxu0 %v1310
  %1879 = vmatpush.bf16.msra.mxu0 %v1309
  %1880 = vmatmul.bf16.gmra.mxu0 %v808
  %v1881 = vpop.f32.mrf.mxu0
  %v1882 = vadd.f32 %v1713, %v1881
  %v1883 = vpop.f32.mrf.mxu0
  %v1884 = vadd.f32 %v1715, %v1883
  %1885 = vmatmul.bf16.gmra.mxu0 %v813
  %v1886 = vpop.f32.mrf.mxu0
  %v1887 = vadd.f32 %v1718, %v1886
  %v1888 = vpop.f32.mrf.mxu0
  %v1889 = vadd.f32 %v1720, %v1888
  %1890 = vmatmul.bf16.gmra.mxu0 %v818
  %v1891 = vpop.f32.mrf.mxu0
  %v1892 = vadd.f32 %v1723, %v1891
  %v1893 = vpop.f32.mrf.mxu0
  %v1894 = vadd.f32 %v1725, %v1893
  %1895 = vmatmul.bf16.gmra.mxu0 %v823
  %v1896 = vpop.f32.mrf.mxu0
  %v1897 = vadd.f32 %v1728, %v1896
  %v1898 = vpop.f32.mrf.mxu0
  %v1899 = vadd.f32 %v1730, %v1898
  %1900 = vmatmul.bf16.gmra.mxu0 %v828
  %v1901 = vpop.f32.mrf.mxu0
  %v1902 = vadd.f32 %v1733, %v1901
  %v1903 = vpop.f32.mrf.mxu0
  %v1904 = vadd.f32 %v1735, %v1903
  %1905 = vmatmul.bf16.gmra.mxu0 %v833
  %v1906 = vpop.f32.mrf.mxu0
  %v1907 = vadd.f32 %v1738, %v1906
  %v1908 = vpop.f32.mrf.mxu0
  %v1909 = vadd.f32 %v1740, %v1908
  %1910 = vmatmul.bf16.gmra.mxu0 %v838
  %v1911 = vpop.f32.mrf.mxu0
  %v1912 = vadd.f32 %v1743, %v1911
  %v1913 = vpop.f32.mrf.mxu0
  %v1914 = vadd.f32 %v1745, %v1913
  %1915 = vmatmul.bf16.gmra.mxu0 %v843
  %v1916 = vpop.f32.mrf.mxu0
  %v1917 = vadd.f32 %v1748, %v1916
  %v1918 = vpop.f32.mrf.mxu0
  %v1919 = vadd.f32 %v1750, %v1918
  %1920 = vmatmul.bf16.gmra.mxu0 %v848
  %v1921 = vpop.f32.mrf.mxu0
  %v1922 = vadd.f32 %v1753, %v1921
  %v1923 = vpop.f32.mrf.mxu0
  %v1924 = vadd.f32 %v1755, %v1923
  %1925 = vmatmul.bf16.gmra.mxu0 %v853
  %v1926 = vpop.f32.mrf.mxu0
  %v1927 = vadd.f32 %v1758, %v1926
  %v1928 = vpop.f32.mrf.mxu0
  %v1929 = vadd.f32 %v1760, %v1928
  %1930 = vmatmul.bf16.gmra.mxu0 %v858
  %v1931 = vpop.f32.mrf.mxu0
  %v1932 = vadd.f32 %v1763, %v1931
  %v1933 = vpop.f32.mrf.mxu0
  %v1934 = vadd.f32 %v1765, %v1933
  %1935 = vmatmul.bf16.gmra.mxu0 %v863
  %v1936 = vpop.f32.mrf.mxu0
  %v1937 = vadd.f32 %v1768, %v1936
  %v1938 = vpop.f32.mrf.mxu0
  %v1939 = vadd.f32 %v1770, %v1938
  %1940 = vmatmul.bf16.gmra.mxu0 %v868
  %v1941 = vpop.f32.mrf.mxu0
  %v1942 = vadd.f32 %v1773, %v1941
  %v1943 = vpop.f32.mrf.mxu0
  %v1944 = vadd.f32 %v1775, %v1943
  %1945 = vmatmul.bf16.gmra.mxu0 %v873
  %v1946 = vpop.f32.mrf.mxu0
  %v1947 = vadd.f32 %v1778, %v1946
  %v1948 = vpop.f32.mrf.mxu0
  %v1949 = vadd.f32 %v1780, %v1948
  %1950 = vmatmul.bf16.gmra.mxu0 %v878
  %v1951 = vpop.f32.mrf.mxu0
  %v1952 = vadd.f32 %v1783, %v1951
  %v1953 = vpop.f32.mrf.mxu0
  %v1954 = vadd.f32 %v1785, %v1953
  %1955 = vmatmul.bf16.gmra.mxu0 %v883
  %v1956 = vpop.f32.mrf.mxu0
  %v1957 = vadd.f32 %v1788, %v1956
  %v1958 = vpop.f32.mrf.mxu0
  %v1959 = vadd.f32 %v1790, %v1958
  %1960 = vmatmul.bf16.gmra.mxu0 %v888
  %v1961 = vpop.f32.mrf.mxu0
  %v1962 = vadd.f32 %v1793, %v1961
  %v1963 = vpop.f32.mrf.mxu0
  %v1964 = vadd.f32 %v1795, %v1963
  %1965 = vmatmul.bf16.gmra.mxu0 %v893
  %v1966 = vpop.f32.mrf.mxu0
  %v1967 = vadd.f32 %v1798, %v1966
  %v1968 = vpop.f32.mrf.mxu0
  %v1969 = vadd.f32 %v1800, %v1968
  %1970 = vmatmul.bf16.gmra.mxu0 %v898
  %v1971 = vpop.f32.mrf.mxu0
  %v1972 = vadd.f32 %v1803, %v1971
  %v1973 = vpop.f32.mrf.mxu0
  %v1974 = vadd.f32 %v1805, %v1973
  %1975 = vmatmul.bf16.gmra.mxu0 %v903
  %v1976 = vpop.f32.mrf.mxu0
  %v1977 = vadd.f32 %v1808, %v1976
  %v1978 = vpop.f32.mrf.mxu0
  %v1979 = vadd.f32 %v1810, %v1978
  %1980 = vmatmul.bf16.gmra.mxu0 %v908
  %v1981 = vpop.f32.mrf.mxu0
  %v1982 = vadd.f32 %v1813, %v1981
  %v1983 = vpop.f32.mrf.mxu0
  %v1984 = vadd.f32 %v1815, %v1983
  %1985 = vmatmul.bf16.gmra.mxu0 %v913
  %v1986 = vpop.f32.mrf.mxu0
  %v1987 = vadd.f32 %v1818, %v1986
  %v1988 = vpop.f32.mrf.mxu0
  %v1989 = vadd.f32 %v1820, %v1988
  %1990 = vmatmul.bf16.gmra.mxu0 %v918
  %v1991 = vpop.f32.mrf.mxu0
  %v1992 = vadd.f32 %v1823, %v1991
  %v1993 = vpop.f32.mrf.mxu0
  %v1994 = vadd.f32 %v1825, %v1993
  %1995 = vmatmul.bf16.gmra.mxu0 %v923
  %v1996 = vpop.f32.mrf.mxu0
  %v1997 = vadd.f32 %v1828, %v1996
  %v1998 = vpop.f32.mrf.mxu0
  %v1999 = vadd.f32 %v1830, %v1998
  %2000 = vmatmul.bf16.gmra.mxu0 %v928
  %v2001 = vpop.f32.mrf.mxu0
  %v2002 = vadd.f32 %v1833, %v2001
  %v2003 = vpop.f32.mrf.mxu0
  %v2004 = vadd.f32 %v1835, %v2003
  %2005 = vmatmul.bf16.gmra.mxu0 %v933
  %v2006 = vpop.f32.mrf.mxu0
  %v2007 = vadd.f32 %v1838, %v2006
  %v2008 = vpop.f32.mrf.mxu0
  %v2009 = vadd.f32 %v1840, %v2008
  %2010 = vmatmul.bf16.gmra.mxu0 %v938
  %v2011 = vpop.f32.mrf.mxu0
  %v2012 = vadd.f32 %v1843, %v2011
  %v2013 = vpop.f32.mrf.mxu0
  %v2014 = vadd.f32 %v1845, %v2013
  %2015 = vmatmul.bf16.gmra.mxu0 %v943
  %v2016 = vpop.f32.mrf.mxu0
  %v2017 = vadd.f32 %v1848, %v2016
  %v2018 = vpop.f32.mrf.mxu0
  %v2019 = vadd.f32 %v1850, %v2018
  %2020 = vmatmul.bf16.gmra.mxu0 %v948
  %v2021 = vpop.f32.mrf.mxu0
  %v2022 = vadd.f32 %v1853, %v2021
  %v2023 = vpop.f32.mrf.mxu0
  %v2024 = vadd.f32 %v1855, %v2023
  %2025 = vmatmul.bf16.gmra.mxu0 %v953
  %v2026 = vpop.f32.mrf.mxu0
  %v2027 = vadd.f32 %v1858, %v2026
  %v2028 = vpop.f32.mrf.mxu0
  %v2029 = vadd.f32 %v1860, %v2028
  %2030 = vmatmul.bf16.gmra.mxu0 %v958
  %v2031 = vpop.f32.mrf.mxu0
  %v2032 = vadd.f32 %v1863, %v2031
  %v2033 = vpop.f32.mrf.mxu0
  %v2034 = vadd.f32 %v1865, %v2033
  %2035 = vmatmul.bf16.gmra.mxu0 %v963
  %v2036 = vpop.f32.mrf.mxu0
  %v2037 = vadd.f32 %v1868, %v2036
  %v2038 = vpop.f32.mrf.mxu0
  %v2039 = vadd.f32 %v1870, %v2038
  %2040 = vdwg.mxu0
  %2041 = vmatpush.bf16.msra.mxu0 %v1324
  %2042 = vmatpush.bf16.msra.mxu0 %v1323
  %2043 = vmatpush.bf16.msra.mxu0 %v1322
  %2044 = vmatpush.bf16.msra.mxu0 %v1321
  %2045 = vmatpush.bf16.msra.mxu0 %v1320
  %2046 = vmatpush.bf16.msra.mxu0 %v1319
  %2047 = vmatpush.bf16.msra.mxu0 %v1318
  %2048 = vmatpush.bf16.msra.mxu0 %v1317
  %2049 = vmatmul.bf16.gmra.mxu0 %v809
  %v2050 = vpop.f32.mrf.mxu0
  %v2051 = vadd.f32 %v1882, %v2050
  %v2052 = vpop.f32.mrf.mxu0
  %v2053 = vadd.f32 %v1884, %v2052
  %2054 = vmatmul.bf16.gmra.mxu0 %v814
  %v2055 = vpop.f32.mrf.mxu0
  %v2056 = vadd.f32 %v1887, %v2055
  %v2057 = vpop.f32.mrf.mxu0
  %v2058 = vadd.f32 %v1889, %v2057
  %2059 = vmatmul.bf16.gmra.mxu0 %v819
  %v2060 = vpop.f32.mrf.mxu0
  %v2061 = vadd.f32 %v1892, %v2060
  %v2062 = vpop.f32.mrf.mxu0
  %v2063 = vadd.f32 %v1894, %v2062
  %2064 = vmatmul.bf16.gmra.mxu0 %v824
  %v2065 = vpop.f32.mrf.mxu0
  %v2066 = vadd.f32 %v1897, %v2065
  %v2067 = vpop.f32.mrf.mxu0
  %v2068 = vadd.f32 %v1899, %v2067
  %2069 = vmatmul.bf16.gmra.mxu0 %v829
  %v2070 = vpop.f32.mrf.mxu0
  %v2071 = vadd.f32 %v1902, %v2070
  %v2072 = vpop.f32.mrf.mxu0
  %v2073 = vadd.f32 %v1904, %v2072
  %2074 = vmatmul.bf16.gmra.mxu0 %v834
  %v2075 = vpop.f32.mrf.mxu0
  %v2076 = vadd.f32 %v1907, %v2075
  %v2077 = vpop.f32.mrf.mxu0
  %v2078 = vadd.f32 %v1909, %v2077
  %2079 = vmatmul.bf16.gmra.mxu0 %v839
  %v2080 = vpop.f32.mrf.mxu0
  %v2081 = vadd.f32 %v1912, %v2080
  %v2082 = vpop.f32.mrf.mxu0
  %v2083 = vadd.f32 %v1914, %v2082
  %2084 = vmatmul.bf16.gmra.mxu0 %v844
  %v2085 = vpop.f32.mrf.mxu0
  %v2086 = vadd.f32 %v1917, %v2085
  %v2087 = vpop.f32.mrf.mxu0
  %v2088 = vadd.f32 %v1919, %v2087
  %2089 = vmatmul.bf16.gmra.mxu0 %v849
  %v2090 = vpop.f32.mrf.mxu0
  %v2091 = vadd.f32 %v1922, %v2090
  %v2092 = vpop.f32.mrf.mxu0
  %v2093 = vadd.f32 %v1924, %v2092
  %2094 = vmatmul.bf16.gmra.mxu0 %v854
  %v2095 = vpop.f32.mrf.mxu0
  %v2096 = vadd.f32 %v1927, %v2095
  %v2097 = vpop.f32.mrf.mxu0
  %v2098 = vadd.f32 %v1929, %v2097
  %2099 = vmatmul.bf16.gmra.mxu0 %v859
  %v2100 = vpop.f32.mrf.mxu0
  %v2101 = vadd.f32 %v1932, %v2100
  %v2102 = vpop.f32.mrf.mxu0
  %v2103 = vadd.f32 %v1934, %v2102
  %2104 = vmatmul.bf16.gmra.mxu0 %v864
  %v2105 = vpop.f32.mrf.mxu0
  %v2106 = vadd.f32 %v1937, %v2105
  %v2107 = vpop.f32.mrf.mxu0
  %v2108 = vadd.f32 %v1939, %v2107
  %2109 = vmatmul.bf16.gmra.mxu0 %v869
  %v2110 = vpop.f32.mrf.mxu0
  %v2111 = vadd.f32 %v1942, %v2110
  %v2112 = vpop.f32.mrf.mxu0
  %v2113 = vadd.f32 %v1944, %v2112
  %2114 = vmatmul.bf16.gmra.mxu0 %v874
  %v2115 = vpop.f32.mrf.mxu0
  %v2116 = vadd.f32 %v1947, %v2115
  %v2117 = vpop.f32.mrf.mxu0
  %v2118 = vadd.f32 %v1949, %v2117
  %2119 = vmatmul.bf16.gmra.mxu0 %v879
  %v2120 = vpop.f32.mrf.mxu0
  %v2121 = vadd.f32 %v1952, %v2120
  %v2122 = vpop.f32.mrf.mxu0
  %v2123 = vadd.f32 %v1954, %v2122
  %2124 = vmatmul.bf16.gmra.mxu0 %v884
  %v2125 = vpop.f32.mrf.mxu0
  %v2126 = vadd.f32 %v1957, %v2125
  %v2127 = vpop.f32.mrf.mxu0
  %v2128 = vadd.f32 %v1959, %v2127
  %2129 = vmatmul.bf16.gmra.mxu0 %v889
  %v2130 = vpop.f32.mrf.mxu0
  %v2131 = vadd.f32 %v1962, %v2130
  %v2132 = vpop.f32.mrf.mxu0
  %v2133 = vadd.f32 %v1964, %v2132
  %2134 = vmatmul.bf16.gmra.mxu0 %v894
  %v2135 = vpop.f32.mrf.mxu0
  %v2136 = vadd.f32 %v1967, %v2135
  %v2137 = vpop.f32.mrf.mxu0
  %v2138 = vadd.f32 %v1969, %v2137
  %2139 = vmatmul.bf16.gmra.mxu0 %v899
  %v2140 = vpop.f32.mrf.mxu0
  %v2141 = vadd.f32 %v1972, %v2140
  %v2142 = vpop.f32.mrf.mxu0
  %v2143 = vadd.f32 %v1974, %v2142
  %2144 = vmatmul.bf16.gmra.mxu0 %v904
  %v2145 = vpop.f32.mrf.mxu0
  %v2146 = vadd.f32 %v1977, %v2145
  %v2147 = vpop.f32.mrf.mxu0
  %v2148 = vadd.f32 %v1979, %v2147
  %2149 = vmatmul.bf16.gmra.mxu0 %v909
  %v2150 = vpop.f32.mrf.mxu0
  %v2151 = vadd.f32 %v1982, %v2150
  %v2152 = vpop.f32.mrf.mxu0
  %v2153 = vadd.f32 %v1984, %v2152
  %2154 = vmatmul.bf16.gmra.mxu0 %v914
  %v2155 = vpop.f32.mrf.mxu0
  %v2156 = vadd.f32 %v1987, %v2155
  %v2157 = vpop.f32.mrf.mxu0
  %v2158 = vadd.f32 %v1989, %v2157
  %2159 = vmatmul.bf16.gmra.mxu0 %v919
  %v2160 = vpop.f32.mrf.mxu0
  %v2161 = vadd.f32 %v1992, %v2160
  %v2162 = vpop.f32.mrf.mxu0
  %v2163 = vadd.f32 %v1994, %v2162
  %2164 = vmatmul.bf16.gmra.mxu0 %v924
  %v2165 = vpop.f32.mrf.mxu0
  %v2166 = vadd.f32 %v1997, %v2165
  %v2167 = vpop.f32.mrf.mxu0
  %v2168 = vadd.f32 %v1999, %v2167
  %2169 = vmatmul.bf16.gmra.mxu0 %v929
  %v2170 = vpop.f32.mrf.mxu0
  %v2171 = vadd.f32 %v2002, %v2170
  %v2172 = vpop.f32.mrf.mxu0
  %v2173 = vadd.f32 %v2004, %v2172
  %2174 = vmatmul.bf16.gmra.mxu0 %v934
  %v2175 = vpop.f32.mrf.mxu0
  %v2176 = vadd.f32 %v2007, %v2175
  %v2177 = vpop.f32.mrf.mxu0
  %v2178 = vadd.f32 %v2009, %v2177
  %2179 = vmatmul.bf16.gmra.mxu0 %v939
  %v2180 = vpop.f32.mrf.mxu0
  %v2181 = vadd.f32 %v2012, %v2180
  %v2182 = vpop.f32.mrf.mxu0
  %v2183 = vadd.f32 %v2014, %v2182
  %2184 = vmatmul.bf16.gmra.mxu0 %v944
  %v2185 = vpop.f32.mrf.mxu0
  %v2186 = vadd.f32 %v2017, %v2185
  %v2187 = vpop.f32.mrf.mxu0
  %v2188 = vadd.f32 %v2019, %v2187
  %2189 = vmatmul.bf16.gmra.mxu0 %v949
  %v2190 = vpop.f32.mrf.mxu0
  %v2191 = vadd.f32 %v2022, %v2190
  %v2192 = vpop.f32.mrf.mxu0
  %v2193 = vadd.f32 %v2024, %v2192
  %2194 = vmatmul.bf16.gmra.mxu0 %v954
  %v2195 = vpop.f32.mrf.mxu0
  %v2196 = vadd.f32 %v2027, %v2195
  %v2197 = vpop.f32.mrf.mxu0
  %v2198 = vadd.f32 %v2029, %v2197
  %2199 = vmatmul.bf16.gmra.mxu0 %v959
  %v2200 = vpop.f32.mrf.mxu0
  %v2201 = vadd.f32 %v2032, %v2200
  %v2202 = vpop.f32.mrf.mxu0
  %v2203 = vadd.f32 %v2034, %v2202
  %2204 = vmatmul.bf16.gmra.mxu0 %v964
  %v2205 = vpop.f32.mrf.mxu0
  %v2206 = vadd.f32 %v2037, %v2205
  %v2207 = vpop.f32.mrf.mxu0
  %v2208 = vadd.f32 %v2039, %v2207
  %2209 = vdwg.mxu0
  %v2210 = vld [vmem:[%s3] sm:$0xf]
  %v2211 = vld [vmem:[%s3 + $0x4] sm:$0xf]
  %v2212 = vld [vmem:[%s3 + $0x8] sm:$0xf]
  %v2213 = vld [vmem:[%s3 + $0xc] sm:$0xf]
  %v2214 = vld [vmem:[%s3 + $0x10] sm:$0xf]
  %v2215 = vld [vmem:[%s3 + $0x14] sm:$0xf]
  %v2216 = vld [vmem:[%s3 + $0x18] sm:$0xf]
  %v2217 = vld [vmem:[%s3 + $0x1c] sm:$0xf]
  %v2218 = vld [vmem:[%s3 + $0x20] sm:$0xf]
  %v2219 = vld [vmem:[%s3 + $0x24] sm:$0xf]
  %v2220 = vld [vmem:[%s3 + $0x28] sm:$0xf]
  %v2221 = vld [vmem:[%s3 + $0x2c] sm:$0xf]
  %v2222 = vld [vmem:[%s3 + $0x30] sm:$0xf]
  %v2223 = vld [vmem:[%s3 + $0x34] sm:$0xf]
  %v2224 = vld [vmem:[%s3 + $0x38] sm:$0xf]
  %v2225 = vld [vmem:[%s3 + $0x3c] sm:$0xf]
  %v2226 = vld [vmem:[%s3 + $0x40] sm:$0xf]
  %v2227 = vld [vmem:[%s3 + $0x44] sm:$0xf]
  %v2228 = vld [vmem:[%s3 + $0x48] sm:$0xf]
  %v2229 = vld [vmem:[%s3 + $0x4c] sm:$0xf]
  %v2230 = vld [vmem:[%s3 + $0x50] sm:$0xf]
  %v2231 = vld [vmem:[%s3 + $0x54] sm:$0xf]
  %v2232 = vld [vmem:[%s3 + $0x58] sm:$0xf]
  %v2233 = vld [vmem:[%s3 + $0x5c] sm:$0xf]
  %v2234 = vld [vmem:[%s3 + $0x60] sm:$0xf]
  %v2235 = vld [vmem:[%s3 + $0x64] sm:$0xf]
  %v2236 = vld [vmem:[%s3 + $0x68] sm:$0xf]
  %v2237 = vld [vmem:[%s3 + $0x6c] sm:$0xf]
  %v2238 = vld [vmem:[%s3 + $0x70] sm:$0xf]
  %v2239 = vld [vmem:[%s3 + $0x74] sm:$0xf]
  %v2240 = vld [vmem:[%s3 + $0x78] sm:$0xf]
  %v2241 = vld [vmem:[%s3 + $0x7c] sm:$0xf]
  %v2242 = vld [vmem:[%s3 + $0x80] sm:$0xf]
  %v2243 = vld [vmem:[%s3 + $0x84] sm:$0xf]
  %v2244 = vld [vmem:[%s3 + $0x88] sm:$0xf]
  %v2245 = vld [vmem:[%s3 + $0x8c] sm:$0xf]
  %v2246 = vld [vmem:[%s3 + $0x90] sm:$0xf]
  %v2247 = vld [vmem:[%s3 + $0x94] sm:$0xf]
  %v2248 = vld [vmem:[%s3 + $0x98] sm:$0xf]
  %v2249 = vld [vmem:[%s3 + $0x9c] sm:$0xf]
  %v2250 = vld [vmem:[%s3 + $0xa0] sm:$0xf]
  %v2251 = vld [vmem:[%s3 + $0xa4] sm:$0xf]
  %v2252 = vld [vmem:[%s3 + $0xa8] sm:$0xf]
  %v2253 = vld [vmem:[%s3 + $0xac] sm:$0xf]
  %v2254 = vld [vmem:[%s3 + $0xb0] sm:$0xf]
  %v2255 = vld [vmem:[%s3 + $0xb4] sm:$0xf]
  %v2256 = vld [vmem:[%s3 + $0xb8] sm:$0xf]
  %v2257 = vld [vmem:[%s3 + $0xbc] sm:$0xf]
  %v2258 = vld [vmem:[%s3 + $0xc0] sm:$0xf]
  %v2259 = vld [vmem:[%s3 + $0xc4] sm:$0xf]
  %v2260 = vld [vmem:[%s3 + $0xc8] sm:$0xf]
  %v2261 = vld [vmem:[%s3 + $0xcc] sm:$0xf]
  %v2262 = vld [vmem:[%s3 + $0xd0] sm:$0xf]
  %v2263 = vld [vmem:[%s3 + $0xd4] sm:$0xf]
  %v2264 = vld [vmem:[%s3 + $0xd8] sm:$0xf]
  %v2265 = vld [vmem:[%s3 + $0xdc] sm:$0xf]
  %v2266 = vld [vmem:[%s3 + $0xe0] sm:$0xf]
  %v2267 = vld [vmem:[%s3 + $0xe4] sm:$0xf]
  %v2268 = vld [vmem:[%s3 + $0xe8] sm:$0xf]
  %v2269 = vld [vmem:[%s3 + $0xec] sm:$0xf]
  %v2270 = vld [vmem:[%s3 + $0xf0] sm:$0xf]
  %v2271 = vld [vmem:[%s3 + $0xf4] sm:$0xf]
  %v2272 = vld [vmem:[%s3 + $0xf8] sm:$0xf]
  %v2273 = vld [vmem:[%s3 + $0xfc] sm:$0xf]
  %v2274 = vunpack.c.l.bf16 %v2210
  %v2275 = vunpack.c.l.bf16 %v2211
  %v2276 = vunpack.c.l.bf16 %v2212
  %v2277 = vunpack.c.l.bf16 %v2213
  %v2278 = vunpack.c.l.bf16 %v2214
  %v2279 = vunpack.c.l.bf16 %v2215
  %v2280 = vunpack.c.l.bf16 %v2216
  %v2281 = vunpack.c.l.bf16 %v2217
  %v2282 = vunpack.c.l.bf16 %v2218
  %v2283 = vunpack.c.l.bf16 %v2219
  %v2284 = vunpack.c.l.bf16 %v2220
  %v2285 = vunpack.c.l.bf16 %v2221
  %v2286 = vunpack.c.l.bf16 %v2222
  %v2287 = vunpack.c.l.bf16 %v2223
  %v2288 = vunpack.c.l.bf16 %v2224
  %v2289 = vunpack.c.l.bf16 %v2225
  %v2290 = vunpack.c.l.bf16 %v2226
  %v2291 = vunpack.c.l.bf16 %v2227
  %v2292 = vunpack.c.l.bf16 %v2228
  %v2293 = vunpack.c.l.bf16 %v2229
  %v2294 = vunpack.c.l.bf16 %v2230
  %v2295 = vunpack.c.l.bf16 %v2231
  %v2296 = vunpack.c.l.bf16 %v2232
  %v2297 = vunpack.c.l.bf16 %v2233
  %v2298 = vunpack.c.l.bf16 %v2234
  %v2299 = vunpack.c.l.bf16 %v2235
  %v2300 = vunpack.c.l.bf16 %v2236
  %v2301 = vunpack.c.l.bf16 %v2237
  %v2302 = vunpack.c.l.bf16 %v2238
  %v2303 = vunpack.c.l.bf16 %v2239
  %v2304 = vunpack.c.l.bf16 %v2240
  %v2305 = vunpack.c.l.bf16 %v2241
  %v2306 = vunpack.c.l.bf16 %v2242
  %v2307 = vunpack.c.l.bf16 %v2243
  %v2308 = vunpack.c.l.bf16 %v2244
  %v2309 = vunpack.c.l.bf16 %v2245
  %v2310 = vunpack.c.l.bf16 %v2246
  %v2311 = vunpack.c.l.bf16 %v2247
  %v2312 = vunpack.c.l.bf16 %v2248
  %v2313 = vunpack.c.l.bf16 %v2249
  %v2314 = vunpack.c.l.bf16 %v2250
  %v2315 = vunpack.c.l.bf16 %v2251
  %v2316 = vunpack.c.l.bf16 %v2252
  %v2317 = vunpack.c.l.bf16 %v2253
  %v2318 = vunpack.c.l.bf16 %v2254
  %v2319 = vunpack.c.l.bf16 %v2255
  %v2320 = vunpack.c.l.bf16 %v2256
  %v2321 = vunpack.c.l.bf16 %v2257
  %v2322 = vunpack.c.l.bf16 %v2258
  %v2323 = vunpack.c.l.bf16 %v2259
  %v2324 = vunpack.c.l.bf16 %v2260
  %v2325 = vunpack.c.l.bf16 %v2261
  %v2326 = vunpack.c.l.bf16 %v2262
  %v2327 = vunpack.c.l.bf16 %v2263
  %v2328 = vunpack.c.l.bf16 %v2264
  %v2329 = vunpack.c.l.bf16 %v2265
  %v2330 = vunpack.c.l.bf16 %v2266
  %v2331 = vunpack.c.l.bf16 %v2267
  %v2332 = vunpack.c.l.bf16 %v2268
  %v2333 = vunpack.c.l.bf16 %v2269
  %v2334 = vunpack.c.l.bf16 %v2270
  %v2335 = vunpack.c.l.bf16 %v2271
  %v2336 = vunpack.c.l.bf16 %v2272
  %v2337 = vunpack.c.l.bf16 %v2273
  %v2338 = vadd.f32 %v2051, %v2274
  %v2339 = vadd.f32 %v2053, %v2275
  %v2340 = vadd.f32 %v2056, %v2276
  %v2341 = vadd.f32 %v2058, %v2277
  %v2342 = vadd.f32 %v2061, %v2278
  %v2343 = vadd.f32 %v2063, %v2279
  %v2344 = vadd.f32 %v2066, %v2280
  %v2345 = vadd.f32 %v2068, %v2281
  %v2346 = vadd.f32 %v2071, %v2282
  %v2347 = vadd.f32 %v2073, %v2283
  %v2348 = vadd.f32 %v2076, %v2284
  %v2349 = vadd.f32 %v2078, %v2285
  %v2350 = vadd.f32 %v2081, %v2286
  %v2351 = vadd.f32 %v2083, %v2287
  %v2352 = vadd.f32 %v2086, %v2288
  %v2353 = vadd.f32 %v2088, %v2289
  %v2354 = vadd.f32 %v2091, %v2290
  %v2355 = vadd.f32 %v2093, %v2291
  %v2356 = vadd.f32 %v2096, %v2292
  %v2357 = vadd.f32 %v2098, %v2293
  %v2358 = vadd.f32 %v2101, %v2294
  %v2359 = vadd.f32 %v2103, %v2295
  %v2360 = vadd.f32 %v2106, %v2296
  %v2361 = vadd.f32 %v2108, %v2297
  %v2362 = vadd.f32 %v2111, %v2298
  %v2363 = vadd.f32 %v2113, %v2299
  %v2364 = vadd.f32 %v2116, %v2300
  %v2365 = vadd.f32 %v2118, %v2301
  %v2366 = vadd.f32 %v2121, %v2302
  %v2367 = vadd.f32 %v2123, %v2303
  %v2368 = vadd.f32 %v2126, %v2304
  %v2369 = vadd.f32 %v2128, %v2305
  %v2370 = vadd.f32 %v2131, %v2306
  %v2371 = vadd.f32 %v2133, %v2307
  %v2372 = vadd.f32 %v2136, %v2308
  %v2373 = vadd.f32 %v2138, %v2309
  %v2374 = vadd.f32 %v2141, %v2310
  %v2375 = vadd.f32 %v2143, %v2311
  %v2376 = vadd.f32 %v2146, %v2312
  %v2377 = vadd.f32 %v2148, %v2313
  %v2378 = vadd.f32 %v2151, %v2314
  %v2379 = vadd.f32 %v2153, %v2315
  %v2380 = vadd.f32 %v2156, %v2316
  %v2381 = vadd.f32 %v2158, %v2317
  %v2382 = vadd.f32 %v2161, %v2318
  %v2383 = vadd.f32 %v2163, %v2319
  %v2384 = vadd.f32 %v2166, %v2320
  %v2385 = vadd.f32 %v2168, %v2321
  %v2386 = vadd.f32 %v2171, %v2322
  %v2387 = vadd.f32 %v2173, %v2323
  %v2388 = vadd.f32 %v2176, %v2324
  %v2389 = vadd.f32 %v2178, %v2325
  %v2390 = vadd.f32 %v2181, %v2326
  %v2391 = vadd.f32 %v2183, %v2327
  %v2392 = vadd.f32 %v2186, %v2328
  %v2393 = vadd.f32 %v2188, %v2329
  %v2394 = vadd.f32 %v2191, %v2330
  %v2395 = vadd.f32 %v2193, %v2331
  %v2396 = vadd.f32 %v2196, %v2332
  %v2397 = vadd.f32 %v2198, %v2333
  %v2398 = vadd.f32 %v2201, %v2334
  %v2399 = vadd.f32 %v2203, %v2335
  %v2400 = vadd.f32 %v2206, %v2336
  %v2401 = vadd.f32 %v2208, %v2337
  %v2402 = vmax.f32 %v2338, 0.0
  %v2403 = vmax.f32 %v2339, 0.0
  %v2404 = vmax.f32 %v2340, 0.0
  %v2405 = vmax.f32 %v2341, 0.0
  %v2406 = vmax.f32 %v2342, 0.0
  %v2407 = vmax.f32 %v2343, 0.0
  %v2408 = vmax.f32 %v2344, 0.0
  %v2409 = vmax.f32 %v2345, 0.0
  %v2410 = vmax.f32 %v2346, 0.0
  %v2411 = vmax.f32 %v2347, 0.0
  %v2412 = vmax.f32 %v2348, 0.0
  %v2413 = vmax.f32 %v2349, 0.0
  %v2414 = vmax.f32 %v2350, 0.0
  %v2415 = vmax.f32 %v2351, 0.0
  %v2416 = vmax.f32 %v2352, 0.0
  %v2417 = vmax.f32 %v2353, 0.0
  %v2418 = vmax.f32 %v2354, 0.0
  %v2419 = vmax.f32 %v2355, 0.0
  %v2420 = vmax.f32 %v2356, 0.0
  %v2421 = vmax.f32 %v2357, 0.0
  %v2422 = vmax.f32 %v2358, 0.0
  %v2423 = vmax.f32 %v2359, 0.0
  %v2424 = vmax.f32 %v2360, 0.0
  %v2425 = vmax.f32 %v2361, 0.0
  %v2426 = vmax.f32 %v2362, 0.0
  %v2427 = vmax.f32 %v2363, 0.0
  %v2428 = vmax.f32 %v2364, 0.0
  %v2429 = vmax.f32 %v2365, 0.0
  %v2430 = vmax.f32 %v2366, 0.0
  %v2431 = vmax.f32 %v2367, 0.0
  %v2432 = vmax.f32 %v2368, 0.0
  %v2433 = vmax.f32 %v2369, 0.0
  %v2434 = vmax.f32 %v2370, 0.0
  %v2435 = vmax.f32 %v2371, 0.0
  %v2436 = vmax.f32 %v2372, 0.0
  %v2437 = vmax.f32 %v2373, 0.0
  %v2438 = vmax.f32 %v2374, 0.0
  %v2439 = vmax.f32 %v2375, 0.0
  %v2440 = vmax.f32 %v2376, 0.0
  %v2441 = vmax.f32 %v2377, 0.0
  %v2442 = vmax.f32 %v2378, 0.0
  %v2443 = vmax.f32 %v2379, 0.0
  %v2444 = vmax.f32 %v2380, 0.0
  %v2445 = vmax.f32 %v2381, 0.0
  %v2446 = vmax.f32 %v2382, 0.0
  %v2447 = vmax.f32 %v2383, 0.0
  %v2448 = vmax.f32 %v2384, 0.0
  %v2449 = vmax.f32 %v2385, 0.0
  %v2450 = vmax.f32 %v2386, 0.0
  %v2451 = vmax.f32 %v2387, 0.0
  %v2452 = vmax.f32 %v2388, 0.0
  %v2453 = vmax.f32 %v2389, 0.0
  %v2454 = vmax.f32 %v2390, 0.0
  %v2455 = vmax.f32 %v2391, 0.0
  %v2456 = vmax.f32 %v2392, 0.0
  %v2457 = vmax.f32 %v2393, 0.0
  %v2458 = vmax.f32 %v2394, 0.0
  %v2459 = vmax.f32 %v2395, 0.0
  %v2460 = vmax.f32 %v2396, 0.0
  %v2461 = vmax.f32 %v2397, 0.0
  %v2462 = vmax.f32 %v2398, 0.0
  %v2463 = vmax.f32 %v2399, 0.0
  %v2464 = vmax.f32 %v2400, 0.0
  %v2465 = vmax.f32 %v2401, 0.0
  %v2466 = vpack.c.bf16 %v2402, %v2402
  %v2467 = vpack.c.bf16 %v2403, %v2403
  %v2468 = vpack.c.bf16 %v2404, %v2404
  %v2469 = vpack.c.bf16 %v2405, %v2405
  %v2470 = vpack.c.bf16 %v2406, %v2406
  %v2471 = vpack.c.bf16 %v2407, %v2407
  %v2472 = vpack.c.bf16 %v2408, %v2408
  %v2473 = vpack.c.bf16 %v2409, %v2409
  %v2474 = vpack.c.bf16 %v2410, %v2410
  %v2475 = vpack.c.bf16 %v2411, %v2411
  %v2476 = vpack.c.bf16 %v2412, %v2412
  %v2477 = vpack.c.bf16 %v2413, %v2413
  %v2478 = vpack.c.bf16 %v2414, %v2414
  %v2479 = vpack.c.bf16 %v2415, %v2415
  %v2480 = vpack.c.bf16 %v2416, %v2416
  %v2481 = vpack.c.bf16 %v2417, %v2417
  %v2482 = vpack.c.bf16 %v2418, %v2418
  %v2483 = vpack.c.bf16 %v2419, %v2419
  %v2484 = vpack.c.bf16 %v2420, %v2420
  %v2485 = vpack.c.bf16 %v2421, %v2421
  %v2486 = vpack.c.bf16 %v2422, %v2422
  %v2487 = vpack.c.bf16 %v2423, %v2423
  %v2488 = vpack.c.bf16 %v2424, %v2424
  %v2489 = vpack.c.bf16 %v2425, %v2425
  %v2490 = vpack.c.bf16 %v2426, %v2426
  %v2491 = vpack.c.bf16 %v2427, %v2427
  %v2492 = vpack.c.bf16 %v2428, %v2428
  %v2493 = vpack.c.bf16 %v2429, %v2429
  %v2494 = vpack.c.bf16 %v2430, %v2430
  %v2495 = vpack.c.bf16 %v2431, %v2431
  %v2496 = vpack.c.bf16 %v2432, %v2432
  %v2497 = vpack.c.bf16 %v2433, %v2433
  %v2498 = vpack.c.bf16 %v2434, %v2434
  %v2499 = vpack.c.bf16 %v2435, %v2435
  %v2500 = vpack.c.bf16 %v2436, %v2436
  %v2501 = vpack.c.bf16 %v2437, %v2437
  %v2502 = vpack.c.bf16 %v2438, %v2438
  %v2503 = vpack.c.bf16 %v2439, %v2439
  %v2504 = vpack.c.bf16 %v2440, %v2440
  %v2505 = vpack.c.bf16 %v2441, %v2441
  %v2506 = vpack.c.bf16 %v2442, %v2442
  %v2507 = vpack.c.bf16 %v2443, %v2443
  %v2508 = vpack.c.bf16 %v2444, %v2444
  %v2509 = vpack.c.bf16 %v2445, %v2445
  %v2510 = vpack.c.bf16 %v2446, %v2446
  %v2511 = vpack.c.bf16 %v2447, %v2447
  %v2512 = vpack.c.bf16 %v2448, %v2448
  %v2513 = vpack.c.bf16 %v2449, %v2449
  %v2514 = vpack.c.bf16 %v2450, %v2450
  %v2515 = vpack.c.bf16 %v2451, %v2451
  %v2516 = vpack.c.bf16 %v2452, %v2452
  %v2517 = vpack.c.bf16 %v2453, %v2453
  %v2518 = vpack.c.bf16 %v2454, %v2454
  %v2519 = vpack.c.bf16 %v2455, %v2455
  %v2520 = vpack.c.bf16 %v2456, %v2456
  %v2521 = vpack.c.bf16 %v2457, %v2457
  %v2522 = vpack.c.bf16 %v2458, %v2458
  %v2523 = vpack.c.bf16 %v2459, %v2459
  %v2524 = vpack.c.bf16 %v2460, %v2460
  %v2525 = vpack.c.bf16 %v2461, %v2461
  %v2526 = vpack.c.bf16 %v2462, %v2462
  %v2527 = vpack.c.bf16 %v2463, %v2463
  %v2528 = vpack.c.bf16 %v2464, %v2464
  %v2529 = vpack.c.bf16 %v2465, %v2465
  %vm2530 = vcmask 519168
  %2531 = vst.msk [vmem:[%s4] sm:$0xf] %vm2530, %v2466
  %2532 = vst.msk [vmem:[%s4 + $0x4] sm:$0xf] %vm2530, %v2467
  %2533 = vst.msk [vmem:[%s4 + $0x8] sm:$0xf] %vm2530, %v2468
  %2534 = vst.msk [vmem:[%s4 + $0xc] sm:$0xf] %vm2530, %v2469
  %2535 = vst.msk [vmem:[%s4 + $0x10] sm:$0xf] %vm2530, %v2470
  %2536 = vst.msk [vmem:[%s4 + $0x14] sm:$0xf] %vm2530, %v2471
  %2537 = vst.msk [vmem:[%s4 + $0x18] sm:$0xf] %vm2530, %v2472
  %2538 = vst.msk [vmem:[%s4 + $0x1c] sm:$0xf] %vm2530, %v2473
  %2539 = vst.msk [vmem:[%s4 + $0x20] sm:$0xf] %vm2530, %v2474
  %2540 = vst.msk [vmem:[%s4 + $0x24] sm:$0xf] %vm2530, %v2475
  %2541 = vst.msk [vmem:[%s4 + $0x28] sm:$0xf] %vm2530, %v2476
  %2542 = vst.msk [vmem:[%s4 + $0x2c] sm:$0xf] %vm2530, %v2477
  %2543 = vst.msk [vmem:[%s4 + $0x30] sm:$0xf] %vm2530, %v2478
  %2544 = vst.msk [vmem:[%s4 + $0x34] sm:$0xf] %vm2530, %v2479
  %2545 = vst.msk [vmem:[%s4 + $0x38] sm:$0xf] %vm2530, %v2480
  %2546 = vst.msk [vmem:[%s4 + $0x3c] sm:$0xf] %vm2530, %v2481
  %2547 = vst.msk [vmem:[%s4 + $0x40] sm:$0xf] %vm2530, %v2482
  %2548 = vst.msk [vmem:[%s4 + $0x44] sm:$0xf] %vm2530, %v2483
  %2549 = vst.msk [vmem:[%s4 + $0x48] sm:$0xf] %vm2530, %v2484
  %2550 = vst.msk [vmem:[%s4 + $0x4c] sm:$0xf] %vm2530, %v2485
  %2551 = vst.msk [vmem:[%s4 + $0x50] sm:$0xf] %vm2530, %v2486
  %2552 = vst.msk [vmem:[%s4 + $0x54] sm:$0xf] %vm2530, %v2487
  %2553 = vst.msk [vmem:[%s4 + $0x58] sm:$0xf] %vm2530, %v2488
  %2554 = vst.msk [vmem:[%s4 + $0x5c] sm:$0xf] %vm2530, %v2489
  %2555 = vst.msk [vmem:[%s4 + $0x60] sm:$0xf] %vm2530, %v2490
  %2556 = vst.msk [vmem:[%s4 + $0x64] sm:$0xf] %vm2530, %v2491
  %2557 = vst.msk [vmem:[%s4 + $0x68] sm:$0xf] %vm2530, %v2492
  %2558 = vst.msk [vmem:[%s4 + $0x6c] sm:$0xf] %vm2530, %v2493
  %2559 = vst.msk [vmem:[%s4 + $0x70] sm:$0xf] %vm2530, %v2494
  %2560 = vst.msk [vmem:[%s4 + $0x74] sm:$0xf] %vm2530, %v2495
  %2561 = vst.msk [vmem:[%s4 + $0x78] sm:$0xf] %vm2530, %v2496
  %2562 = vst.msk [vmem:[%s4 + $0x7c] sm:$0xf] %vm2530, %v2497
  %2563 = vst.msk [vmem:[%s4 + $0x80] sm:$0xf] %vm2530, %v2498
  %2564 = vst.msk [vmem:[%s4 + $0x84] sm:$0xf] %vm2530, %v2499
  %2565 = vst.msk [vmem:[%s4 + $0x88] sm:$0xf] %vm2530, %v2500
  %2566 = vst.msk [vmem:[%s4 + $0x8c] sm:$0xf] %vm2530, %v2501
  %2567 = vst.msk [vmem:[%s4 + $0x90] sm:$0xf] %vm2530, %v2502
  %2568 = vst.msk [vmem:[%s4 + $0x94] sm:$0xf] %vm2530, %v2503
  %2569 = vst.msk [vmem:[%s4 + $0x98] sm:$0xf] %vm2530, %v2504
  %2570 = vst.msk [vmem:[%s4 + $0x9c] sm:$0xf] %vm2530, %v2505
  %2571 = vst.msk [vmem:[%s4 + $0xa0] sm:$0xf] %vm2530, %v2506
  %2572 = vst.msk [vmem:[%s4 + $0xa4] sm:$0xf] %vm2530, %v2507
  %2573 = vst.msk [vmem:[%s4 + $0xa8] sm:$0xf] %vm2530, %v2508
  %2574 = vst.msk [vmem:[%s4 + $0xac] sm:$0xf] %vm2530, %v2509
  %2575 = vst.msk [vmem:[%s4 + $0xb0] sm:$0xf] %vm2530, %v2510
  %2576 = vst.msk [vmem:[%s4 + $0xb4] sm:$0xf] %vm2530, %v2511
  %2577 = vst.msk [vmem:[%s4 + $0xb8] sm:$0xf] %vm2530, %v2512
  %2578 = vst.msk [vmem:[%s4 + $0xbc] sm:$0xf] %vm2530, %v2513
  %2579 = vst.msk [vmem:[%s4 + $0xc0] sm:$0xf] %vm2530, %v2514
  %2580 = vst.msk [vmem:[%s4 + $0xc4] sm:$0xf] %vm2530, %v2515
  %2581 = vst.msk [vmem:[%s4 + $0xc8] sm:$0xf] %vm2530, %v2516
  %2582 = vst.msk [vmem:[%s4 + $0xcc] sm:$0xf] %vm2530, %v2517
  %2583 = vst.msk [vmem:[%s4 + $0xd0] sm:$0xf] %vm2530, %v2518
  %2584 = vst.msk [vmem:[%s4 + $0xd4] sm:$0xf] %vm2530, %v2519
  %2585 = vst.msk [vmem:[%s4 + $0xd8] sm:$0xf] %vm2530, %v2520
  %2586 = vst.msk [vmem:[%s4 + $0xdc] sm:$0xf] %vm2530, %v2521
  %2587 = vst.msk [vmem:[%s4 + $0xe0] sm:$0xf] %vm2530, %v2522
  %2588 = vst.msk [vmem:[%s4 + $0xe4] sm:$0xf] %vm2530, %v2523
  %2589 = vst.msk [vmem:[%s4 + $0xe8] sm:$0xf] %vm2530, %v2524
  %2590 = vst.msk [vmem:[%s4 + $0xec] sm:$0xf] %vm2530, %v2525
  %2591 = vst.msk [vmem:[%s4 + $0xf0] sm:$0xf] %vm2530, %v2526
  %2592 = vst.msk [vmem:[%s4 + $0xf4] sm:$0xf] %vm2530, %v2527
  %2593 = vst.msk [vmem:[%s4 + $0xf8] sm:$0xf] %vm2530, %v2528
  %2594 = vst.msk [vmem:[%s4 + $0xfc] sm:$0xf] %vm2530, %v2529
  // Predicated region
  $region18: #{front_fn.7} parent=0 // pred_check
    _
  $region19: #{front_fn.7} parent=0 // pred_check_branch
    %2596 = sbr.rel (0) target = $region21
  $region20: #{front_fn.7} parent=0 // pred_region
    _
  $region21: #{front_fn.7} parent=0 // pred_fallthru
    _
  // Predicated region
  $region22: #{front_fn.7} parent=0 // pred_check
    _
  $region23: #{front_fn.7} parent=0 // pred_check_branch
    %2598 = sbr.rel (0) target = $region25
  $region24: #{front_fn.7} parent=0 // pred_region
    _
  $region25: #{front_fn.7} parent=0 // pred_fallthru
    _

// kernel: front_fn.9
$region0: #{front_fn.9}
  #allocation0 [shape = 'u32[]', space=smem, size = 0x4, offset = 0x4, fixed_abs, tag = 'smem constant byte address 0x4 - core index']
  #allocation1 [shape = 'u32[72,128]{1,0:T(1,128)}', space=vmem, size = 0x9000, scoped, tag = 'internal scratch']
  %s0 = inlined_call_operand.vmem [shape: bf16[512,640], index: 0, kind: input, shape index: {}]
  %s1 = inlined_call_operand.vmem [shape: bf16[640,64], index: 1, kind: input, shape index: {}]
  %s2 = inlined_call_operand.vmem [shape: f32[1,64], index: 2, kind: input, shape index: {}]
  %s3 = inlined_call_operand.vmem [shape: bf16[512,64], index: 3, kind: input, shape index: {}]
  %s4 = inlined_call_operand.hbm [shape: bf16[512,64], index: 4, kind: output, shape index: {}]
  %s5 = sld [smem:[#allocation0]]
  $region26: #{front_fn.9} parent=0
    _
  %s7 = ssub.s32 1, %s5
  %s8 = scalar_select 0, %s7, %s5
  $region1: #{front_fn.9} parent=0
    #allocation2 [shape = 'u8[131072]{0}', space=vmem, size = 0x20000, scoped, tag = 'output window, operand 0, single buffered']
    #allocation3 [shape = 's32[1]{0}', space=sflag, size = 0x4, scoped, tag = 'scoped memory for front_fn.9']
    %9 = vsyncpa [#allocation3], 0
    // Predicated region
    $region2: #{front_fn.9} parent=1 // pred_check
      _
    $region3: #{front_fn.9} parent=1 // pred_check_branch
      %11 = sbr.rel (0) target = $region5
    $region4: #{front_fn.9} parent=1 // pred_region
      _
    $region5: #{front_fn.9} parent=1 // pred_fallthru
      _
    // Predicated region
    $region6: #{front_fn.9} parent=1 // pred_check
      _
    $region7: #{front_fn.9} parent=1 // pred_check_branch
      %13 = sbr.rel (0) target = $region9
    $region8: #{front_fn.9} parent=1 // pred_region
      _
    $region9: #{front_fn.9} parent=1 // pred_fallthru
      _
    // Predicated region
    $region10: #{front_fn.9} parent=1 // pred_check
      _
    $region11: #{front_fn.9} parent=1 // pred_check_branch
      %15 = sbr.rel (0) target = $region13
    $region12: #{front_fn.9} parent=1 // pred_region
      _
    $region13: #{front_fn.9} parent=1 // pred_fallthru
      _
    // Predicated region
    $region14: #{front_fn.9} parent=1 // pred_check
      _
    $region15: #{front_fn.9} parent=1 // pred_check_branch
      %17 = sbr.rel (0) target = $region17
    $region16: #{front_fn.9} parent=1 // pred_region
      _
    $region17: #{front_fn.9} parent=1 // pred_fallthru
      _
    %v18 = vld [vmem:[%s0] sm:$0xff]
    %v19 = vld [vmem:[%s0 + $0x8] sm:$0xff]
    %v20 = vld [vmem:[%s0 + $0x10] sm:$0xf]
    %v21 = vld [vmem:[%s0 + $0x14] sm:$0xff]
    %v22 = vld [vmem:[%s0 + $0x1c] sm:$0xff]
    %v23 = vld [vmem:[%s0 + $0x24] sm:$0xf]
    %v24 = vld [vmem:[%s0 + $0x28] sm:$0xff]
    %v25 = vld [vmem:[%s0 + $0x30] sm:$0xff]
    %v26 = vld [vmem:[%s0 + $0x38] sm:$0xf]
    %v27 = vld [vmem:[%s0 + $0x3c] sm:$0xff]
    %v28 = vld [vmem:[%s0 + $0x44] sm:$0xff]
    %v29 = vld [vmem:[%s0 + $0x4c] sm:$0xf]
    %v30 = vld [vmem:[%s0 + $0x50] sm:$0xff]
    %v31 = vld [vmem:[%s0 + $0x58] sm:$0xff]
    %v32 = vld [vmem:[%s0 + $0x60] sm:$0xf]
    %v33 = vld [vmem:[%s0 + $0x64] sm:$0xff]
    %v34 = vld [vmem:[%s0 + $0x6c] sm:$0xff]
    %v35 = vld [vmem:[%s0 + $0x74] sm:$0xf]
    %v36 = vld [vmem:[%s0 + $0x78] sm:$0xff]
    %v37 = vld [vmem:[%s0 + $0x80] sm:$0xff]
    %v38 = vld [vmem:[%s0 + $0x88] sm:$0xf]
    %v39 = vld [vmem:[%s0 + $0x8c] sm:$0xff]
    %v40 = vld [vmem:[%s0 + $0x94] sm:$0xff]
    %v41 = vld [vmem:[%s0 + $0x9c] sm:$0xf]
    %v42 = vld [vmem:[%s0 + $0xa0] sm:$0xff]
    %v43 = vld [vmem:[%s0 + $0xa8] sm:$0xff]
    %v44 = vld [vmem:[%s0 + $0xb0] sm:$0xf]
    %v45 = vld [vmem:[%s0 + $0xb4] sm:$0xff]
    %v46 = vld [vmem:[%s0 + $0xbc] sm:$0xff]
    %v47 = vld [vmem:[%s0 + $0xc4] sm:$0xf]
    %v48 = vld [vmem:[%s0 + $0xc8] sm:$0xff]
    %v49 = vld [vmem:[%s0 + $0xd0] sm:$0xff]
    %v50 = vld [vmem:[%s0 + $0xd8] sm:$0xf]
    %v51 = vld [vmem:[%s0 + $0xdc] sm:$0xff]
    %v52 = vld [vmem:[%s0 + $0xe4] sm:$0xff]
    %v53 = vld [vmem:[%s0 + $0xec] sm:$0xf]
    %v54 = vld [vmem:[%s0 + $0xf0] sm:$0xff]
    %v55 = vld [vmem:[%s0 + $0xf8] sm:$0xff]
    %v56 = vld [vmem:[%s0 + $0x100] sm:$0xf]
    %v57 = vld [vmem:[%s0 + $0x104] sm:$0xff]
    %v58 = vld [vmem:[%s0 + $0x10c] sm:$0xff]
    %v59 = vld [vmem:[%s0 + $0x114] sm:$0xf]
    %v60 = vld [vmem:[%s0 + $0x118] sm:$0xff]
    %v61 = vld [vmem:[%s0 + $0x120] sm:$0xff]
    %v62 = vld [vmem:[%s0 + $0x128] sm:$0xf]
    %v63 = vld [vmem:[%s0 + $0x12c] sm:$0xff]
    %v64 = vld [vmem:[%s0 + $0x134] sm:$0xff]
    %v65 = vld [vmem:[%s0 + $0x13c] sm:$0xf]
    %v66 = vld [vmem:[%s0 + $0x140] sm:$0xff]
    %v67 = vld [vmem:[%s0 + $0x148] sm:$0xff]
    %v68 = vld [vmem:[%s0 + $0x150] sm:$0xf]
    %v69 = vld [vmem:[%s0 + $0x154] sm:$0xff]
    %v70 = vld [vmem:[%s0 + $0x15c] sm:$0xff]
    %v71 = vld [vmem:[%s0 + $0x164] sm:$0xf]
    %v72 = vld [vmem:[%s0 + $0x168] sm:$0xff]
    %v73 = vld [vmem:[%s0 + $0x170] sm:$0xff]
    %v74 = vld [vmem:[%s0 + $0x178] sm:$0xf]
    %v75 = vld [vmem:[%s0 + $0x17c] sm:$0xff]
    %v76 = vld [vmem:[%s0 + $0x184] sm:$0xff]
    %v77 = vld [vmem:[%s0 + $0x18c] sm:$0xf]
    %v78 = vld [vmem:[%s0 + $0x190] sm:$0xff]
    %v79 = vld [vmem:[%s0 + $0x198] sm:$0xff]
    %v80 = vld [vmem:[%s0 + $0x1a0] sm:$0xf]
    %v81 = vld [vmem:[%s0 + $0x1a4] sm:$0xff]
    %v82 = vld [vmem:[%s0 + $0x1ac] sm:$0xff]
    %v83 = vld [vmem:[%s0 + $0x1b4] sm:$0xf]
    %v84 = vld [vmem:[%s0 + $0x1b8] sm:$0xff]
    %v85 = vld [vmem:[%s0 + $0x1c0] sm:$0xff]
    %v86 = vld [vmem:[%s0 + $0x1c8] sm:$0xf]
    %v87 = vld [vmem:[%s0 + $0x1cc] sm:$0xff]
    %v88 = vld [vmem:[%s0 + $0x1d4] sm:$0xff]
    %v89 = vld [vmem:[%s0 + $0x1dc] sm:$0xf]
    %v90 = vld [vmem:[%s0 + $0x1e0] sm:$0xff]
    %v91 = vld [vmem:[%s0 + $0x1e8] sm:$0xff]
    %v92 = vld [vmem:[%s0 + $0x1f0] sm:$0xf]
    %v93 = vld [vmem:[%s0 + $0x1f4] sm:$0xff]
    %v94 = vld [vmem:[%s0 + $0x1fc] sm:$0xff]
    %v95 = vld [vmem:[%s0 + $0x204] sm:$0xf]
    %v96 = vld [vmem:[%s0 + $0x208] sm:$0xff]
    %v97 = vld [vmem:[%s0 + $0x210] sm:$0xff]
    %v98 = vld [vmem:[%s0 + $0x218] sm:$0xf]
    %v99 = vld [vmem:[%s0 + $0x21c] sm:$0xff]
    %v100 = vld [vmem:[%s0 + $0x224] sm:$0xff]
    %v101 = vld [vmem:[%s0 + $0x22c] sm:$0xf]
    %v102 = vld [vmem:[%s0 + $0x230] sm:$0xff]
    %v103 = vld [vmem:[%s0 + $0x238] sm:$0xff]
    %v104 = vld [vmem:[%s0 + $0x240] sm:$0xf]
    %v105 = vld [vmem:[%s0 + $0x244] sm:$0xff]
    %v106 = vld [vmem:[%s0 + $0x24c] sm:$0xff]
    %v107 = vld [vmem:[%s0 + $0x254] sm:$0xf]
    %v108 = vld [vmem:[%s0 + $0x258] sm:$0xff]
    %v109 = vld [vmem:[%s0 + $0x260] sm:$0xff]
    %v110 = vld [vmem:[%s0 + $0x268] sm:$0xf]
    %v111 = vld [vmem:[%s0 + $0x26c] sm:$0xff]
    %v112 = vld [vmem:[%s0 + $0x274] sm:$0xff]
    %v113 = vld [vmem:[%s0 + $0x27c] sm:$0xf]
    %v114 = vld [vmem:[%s0 + $0x280] sm:$0xff]
    %v115 = vld [vmem:[%s0 + $0x288] sm:$0xff]
    %v116 = vld [vmem:[%s0 + $0x290] sm:$0xf]
    %v117 = vld [vmem:[%s0 + $0x294] sm:$0xff]
    %v118 = vld [vmem:[%s0 + $0x29c] sm:$0xff]
    %v119 = vld [vmem:[%s0 + $0x2a4] sm:$0xf]
    %v120 = vld [vmem:[%s0 + $0x2a8] sm:$0xff]
    %v121 = vld [vmem:[%s0 + $0x2b0] sm:$0xff]
    %v122 = vld [vmem:[%s0 + $0x2b8] sm:$0xf]
    %v123 = vld [vmem:[%s0 + $0x2bc] sm:$0xff]
    %v124 = vld [vmem:[%s0 + $0x2c4] sm:$0xff]
    %v125 = vld [vmem:[%s0 + $0x2cc] sm:$0xf]
    %v126 = vld [vmem:[%s0 + $0x2d0] sm:$0xff]
    %v127 = vld [vmem:[%s0 + $0x2d8] sm:$0xff]
    %v128 = vld [vmem:[%s0 + $0x2e0] sm:$0xf]
    %v129 = vld [vmem:[%s0 + $0x2e4] sm:$0xff]
    %v130 = vld [vmem:[%s0 + $0x2ec] sm:$0xff]
    %v131 = vld [vmem:[%s0 + $0x2f4] sm:$0xf]
    %v132 = vld [vmem:[%s0 + $0x2f8] sm:$0xff]
    %v133 = vld [vmem:[%s0 + $0x300] sm:$0xff]
    %v134 = vld [vmem:[%s0 + $0x308] sm:$0xf]
    %v135 = vld [vmem:[%s0 + $0x30c] sm:$0xff]
    %v136 = vld [vmem:[%s0 + $0x314] sm:$0xff]
    %v137 = vld [vmem:[%s0 + $0x31c] sm:$0xf]
    %v138 = vld [vmem:[%s0 + $0x320] sm:$0xff]
    %v139 = vld [vmem:[%s0 + $0x328] sm:$0xff]
    %v140 = vld [vmem:[%s0 + $0x330] sm:$0xf]
    %v141 = vld [vmem:[%s0 + $0x334] sm:$0xff]
    %v142 = vld [vmem:[%s0 + $0x33c] sm:$0xff]
    %v143 = vld [vmem:[%s0 + $0x344] sm:$0xf]
    %v144 = vld [vmem:[%s0 + $0x348] sm:$0xff]
    %v145 = vld [vmem:[%s0 + $0x350] sm:$0xff]
    %v146 = vld [vmem:[%s0 + $0x358] sm:$0xf]
    %v147 = vld [vmem:[%s0 + $0x35c] sm:$0xff]
    %v148 = vld [vmem:[%s0 + $0x364] sm:$0xff]
    %v149 = vld [vmem:[%s0 + $0x36c] sm:$0xf]
    %v150 = vld [vmem:[%s0 + $0x370] sm:$0xff]
    %v151 = vld [vmem:[%s0 + $0x378] sm:$0xff]
    %v152 = vld [vmem:[%s0 + $0x380] sm:$0xf]
    %v153 = vld [vmem:[%s0 + $0x384] sm:$0xff]
    %v154 = vld [vmem:[%s0 + $0x38c] sm:$0xff]
    %v155 = vld [vmem:[%s0 + $0x394] sm:$0xf]
    %v156 = vld [vmem:[%s0 + $0x398] sm:$0xff]
    %v157 = vld [vmem:[%s0 + $0x3a0] sm:$0xff]
    %v158 = vld [vmem:[%s0 + $0x3a8] sm:$0xf]
    %v159 = vld [vmem:[%s0 + $0x3ac] sm:$0xff]
    %v160 = vld [vmem:[%s0 + $0x3b4] sm:$0xff]
    %v161 = vld [vmem:[%s0 + $0x3bc] sm:$0xf]
    %v162 = vld [vmem:[%s0 + $0x3c0] sm:$0xff]
    %v163 = vld [vmem:[%s0 + $0x3c8] sm:$0xff]
    %v164 = vld [vmem:[%s0 + $0x3d0] sm:$0xf]
    %v165 = vld [vmem:[%s0 + $0x3d4] sm:$0xff]
    %v166 = vld [vmem:[%s0 + $0x3dc] sm:$0xff]
    %v167 = vld [vmem:[%s0 + $0x3e4] sm:$0xf]
    %v168 = vld [vmem:[%s0 + $0x3e8] sm:$0xff]
    %v169 = vld [vmem:[%s0 + $0x3f0] sm:$0xff]
    %v170 = vld [vmem:[%s0 + $0x3f8] sm:$0xf]
    %v171 = vld [vmem:[%s0 + $0x3fc] sm:$0xff]
    %v172 = vld [vmem:[%s0 + $0x404] sm:$0xff]
    %v173 = vld [vmem:[%s0 + $0x40c] sm:$0xf]
    %v174 = vld [vmem:[%s0 + $0x410] sm:$0xff]
    %v175 = vld [vmem:[%s0 + $0x418] sm:$0xff]
    %v176 = vld [vmem:[%s0 + $0x420] sm:$0xf]
    %v177 = vld [vmem:[%s0 + $0x424] sm:$0xff]
    %v178 = vld [vmem:[%s0 + $0x42c] sm:$0xff]
    %v179 = vld [vmem:[%s0 + $0x434] sm:$0xf]
    %v180 = vld [vmem:[%s0 + $0x438] sm:$0xff]
    %v181 = vld [vmem:[%s0 + $0x440] sm:$0xff]
    %v182 = vld [vmem:[%s0 + $0x448] sm:$0xf]
    %v183 = vld [vmem:[%s0 + $0x44c] sm:$0xff]
    %v184 = vld [vmem:[%s0 + $0x454] sm:$0xff]
    %v185 = vld [vmem:[%s0 + $0x45c] sm:$0xf]
    %v186 = vld [vmem:[%s0 + $0x460] sm:$0xff]
    %v187 = vld [vmem:[%s0 + $0x468] sm:$0xff]
    %v188 = vld [vmem:[%s0 + $0x470] sm:$0xf]
    %v189 = vld [vmem:[%s0 + $0x474] sm:$0xff]
    %v190 = vld [vmem:[%s0 + $0x47c] sm:$0xff]
    %v191 = vld [vmem:[%s0 + $0x484] sm:$0xf]
    %v192 = vld [vmem:[%s0 + $0x488] sm:$0xff]
    %v193 = vld [vmem:[%s0 + $0x490] sm:$0xff]
    %v194 = vld [vmem:[%s0 + $0x498] sm:$0xf]
    %v195 = vld [vmem:[%s0 + $0x49c] sm:$0xff]
    %v196 = vld [vmem:[%s0 + $0x4a4] sm:$0xff]
    %v197 = vld [vmem:[%s0 + $0x4ac] sm:$0xf]
    %v198 = vld [vmem:[%s0 + $0x4b0] sm:$0xff]
    %v199 = vld [vmem:[%s0 + $0x4b8] sm:$0xff]
    %v200 = vld [vmem:[%s0 + $0x4c0] sm:$0xf]
    %v201 = vld [vmem:[%s0 + $0x4c4] sm:$0xff]
    %v202 = vld [vmem:[%s0 + $0x4cc] sm:$0xff]
    %v203 = vld [vmem:[%s0 + $0x4d4] sm:$0xf]
    %v204 = vld [vmem:[%s0 + $0x4d8] sm:$0xff]
    %v205 = vld [vmem:[%s0 + $0x4e0] sm:$0xff]
    %v206 = vld [vmem:[%s0 + $0x4e8] sm:$0xf]
    %v207 = vld [vmem:[%s0 + $0x4ec] sm:$0xff]
    %v208 = vld [vmem:[%s0 + $0x4f4] sm:$0xff]
    %v209 = vld [vmem:[%s0 + $0x4fc] sm:$0xf]
    %v210 = vld [vmem:[%s1] sm:$0xf]
    %v211 = vld [vmem:[%s1 + $0x4] sm:$0xf]
    %v212 = vld [vmem:[%s1 + $0x8] sm:$0xf]
    %v213 = vld [vmem:[%s1 + $0xc] sm:$0xf]
    %v214 = vld [vmem:[%s1 + $0x10] sm:$0xf]
    %v215 = vld [vmem:[%s1 + $0x14] sm:$0xf]
    %v216 = vld [vmem:[%s1 + $0x18] sm:$0xf]
    %v217 = vld [vmem:[%s1 + $0x1c] sm:$0xf]
    %v218 = vld [vmem:[%s1 + $0x20] sm:$0xf]
    %v219 = vld [vmem:[%s1 + $0x24] sm:$0xf]
    %v220 = vld [vmem:[%s1 + $0x28] sm:$0xf]
    %v221 = vld [vmem:[%s1 + $0x2c] sm:$0xf]
    %v222 = vld [vmem:[%s1 + $0x30] sm:$0xf]
    %v223 = vld [vmem:[%s1 + $0x34] sm:$0xf]
    %v224 = vld [vmem:[%s1 + $0x38] sm:$0xf]
    %v225 = vld [vmem:[%s1 + $0x3c] sm:$0xf]
    %v226 = vld [vmem:[%s1 + $0x40] sm:$0xf]
    %v227 = vld [vmem:[%s1 + $0x44] sm:$0xf]
    %v228 = vld [vmem:[%s1 + $0x48] sm:$0xf]
    %v229 = vld [vmem:[%s1 + $0x4c] sm:$0xf]
    %v230 = vld [vmem:[%s1 + $0x50] sm:$0xf]
    %v231 = vld [vmem:[%s1 + $0x54] sm:$0xf]
    %v232 = vld [vmem:[%s1 + $0x58] sm:$0xf]
    %v233 = vld [vmem:[%s1 + $0x5c] sm:$0xf]
    %v234 = vld [vmem:[%s1 + $0x60] sm:$0xf]
    %v235 = vld [vmem:[%s1 + $0x64] sm:$0xf]
    %v236 = vld [vmem:[%s1 + $0x68] sm:$0xf]
    %v237 = vld [vmem:[%s1 + $0x6c] sm:$0xf]
    %v238 = vld [vmem:[%s1 + $0x70] sm:$0xf]
    %v239 = vld [vmem:[%s1 + $0x74] sm:$0xf]
    %v240 = vld [vmem:[%s1 + $0x78] sm:$0xf]
    %v241 = vld [vmem:[%s1 + $0x7c] sm:$0xf]
    %v242 = vld [vmem:[%s1 + $0x80] sm:$0xf]
    %v243 = vld [vmem:[%s1 + $0x84] sm:$0xf]
    %v244 = vld [vmem:[%s1 + $0x88] sm:$0xf]
    %v245 = vld [vmem:[%s1 + $0x8c] sm:$0xf]
    %v246 = vld [vmem:[%s1 + $0x90] sm:$0xf]
    %v247 = vld [vmem:[%s1 + $0x94] sm:$0xf]
    %v248 = vld [vmem:[%s1 + $0x98] sm:$0xf]
    %v249 = vld [vmem:[%s1 + $0x9c] sm:$0xf]
    %v250 = vld [vmem:[%s1 + $0xa0] sm:$0xf]
    %v251 = vld [vmem:[%s1 + $0xa4] sm:$0xf]
    %v252 = vld [vmem:[%s1 + $0xa8] sm:$0xf]
    %v253 = vld [vmem:[%s1 + $0xac] sm:$0xf]
    %v254 = vld [vmem:[%s1 + $0xb0] sm:$0xf]
    %v255 = vld [vmem:[%s1 + $0xb4] sm:$0xf]
    %v256 = vld [vmem:[%s1 + $0xb8] sm:$0xf]
    %v257 = vld [vmem:[%s1 + $0xbc] sm:$0xf]
    %v258 = vld [vmem:[%s1 + $0xc0] sm:$0xf]
    %v259 = vld [vmem:[%s1 + $0xc4] sm:$0xf]
    %v260 = vld [vmem:[%s1 + $0xc8] sm:$0xf]
    %v261 = vld [vmem:[%s1 + $0xcc] sm:$0xf]
    %v262 = vld [vmem:[%s1 + $0xd0] sm:$0xf]
    %v263 = vld [vmem:[%s1 + $0xd4] sm:$0xf]
    %v264 = vld [vmem:[%s1 + $0xd8] sm:$0xf]
    %v265 = vld [vmem:[%s1 + $0xdc] sm:$0xf]
    %v266 = vld [vmem:[%s1 + $0xe0] sm:$0xf]
    %v267 = vld [vmem:[%s1 + $0xe4] sm:$0xf]
    %v268 = vld [vmem:[%s1 + $0xe8] sm:$0xf]
    %v269 = vld [vmem:[%s1 + $0xec] sm:$0xf]
    %v270 = vld [vmem:[%s1 + $0xf0] sm:$0xf]
    %v271 = vld [vmem:[%s1 + $0xf4] sm:$0xf]
    %v272 = vld [vmem:[%s1 + $0xf8] sm:$0xf]
    %v273 = vld [vmem:[%s1 + $0xfc] sm:$0xf]
    %v274 = vld [vmem:[%s1 + $0x100] sm:$0xf]
    %v275 = vld [vmem:[%s1 + $0x104] sm:$0xf]
    %v276 = vld [vmem:[%s1 + $0x108] sm:$0xf]
    %v277 = vld [vmem:[%s1 + $0x10c] sm:$0xf]
    %v278 = vld [vmem:[%s1 + $0x110] sm:$0xf]
    %v279 = vld [vmem:[%s1 + $0x114] sm:$0xf]
    %v280 = vld [vmem:[%s1 + $0x118] sm:$0xf]
    %v281 = vld [vmem:[%s1 + $0x11c] sm:$0xf]
    %v282 = vld [vmem:[%s1 + $0x120] sm:$0xf]
    %v283 = vld [vmem:[%s1 + $0x124] sm:$0xf]
    %v284 = vld [vmem:[%s1 + $0x128] sm:$0xf]
    %v285 = vld [vmem:[%s1 + $0x12c] sm:$0xf]
    %v286 = vld [vmem:[%s1 + $0x130] sm:$0xf]
    %v287 = vld [vmem:[%s1 + $0x134] sm:$0xf]
    %v288 = vld [vmem:[%s1 + $0x138] sm:$0xf]
    %v289 = vld [vmem:[%s1 + $0x13c] sm:$0xf]
    %v290 = vld [vmem:[%s2] sm:$0x1]
    %v292 = vperm.slane %v290, 0
    %v486 = vunpack.c.l.b16 %v18
    %v487 = vunpack.c.h.b16 %v18
    %v488 = vunpack.c.l.b16 %v19
    %v489 = vunpack.c.h.b16 %v19
    %v490 = vunpack.c.l.b16 %v20
    %v491 = vunpack.c.l.b16 %v21
    %v492 = vunpack.c.h.b16 %v21
    %v493 = vunpack.c.l.b16 %v22
    %v494 = vunpack.c.h.b16 %v22
    %v495 = vunpack.c.l.b16 %v23
    %v496 = vunpack.c.l.b16 %v24
    %v497 = vunpack.c.h.b16 %v24
    %v498 = vunpack.c.l.b16 %v25
    %v499 = vunpack.c.h.b16 %v25
    %v500 = vunpack.c.l.b16 %v26
    %v501 = vunpack.c.l.b16 %v27
    %v502 = vunpack.c.h.b16 %v27
    %v503 = vunpack.c.l.b16 %v28
    %v504 = vunpack.c.h.b16 %v28
    %v505 = vunpack.c.l.b16 %v29
    %v506 = vunpack.c.l.b16 %v30
    %v507 = vunpack.c.h.b16 %v30
    %v508 = vunpack.c.l.b16 %v31
    %v509 = vunpack.c.h.b16 %v31
    %v510 = vunpack.c.l.b16 %v32
    %v511 = vunpack.c.l.b16 %v33
    %v512 = vunpack.c.h.b16 %v33
    %v513 = vunpack.c.l.b16 %v34
    %v514 = vunpack.c.h.b16 %v34
    %v515 = vunpack.c.l.b16 %v35
    %v516 = vunpack.c.l.b16 %v36
    %v517 = vunpack.c.h.b16 %v36
    %v518 = vunpack.c.l.b16 %v37
    %v519 = vunpack.c.h.b16 %v37
    %v520 = vunpack.c.l.b16 %v38
    %v521 = vunpack.c.l.b16 %v39
    %v522 = vunpack.c.h.b16 %v39
    %v523 = vunpack.c.l.b16 %v40
    %v524 = vunpack.c.h.b16 %v40
    %v525 = vunpack.c.l.b16 %v41
    %v526 = vunpack.c.l.b16 %v42
    %v527 = vunpack.c.h.b16 %v42
    %v528 = vunpack.c.l.b16 %v43
    %v529 = vunpack.c.h.b16 %v43
    %v530 = vunpack.c.l.b16 %v44
    %v531 = vunpack.c.l.b16 %v45
    %v532 = vunpack.c.h.b16 %v45
    %v533 = vunpack.c.l.b16 %v46
    %v534 = vunpack.c.h.b16 %v46
    %v535 = vunpack.c.l.b16 %v47
    %v536 = vunpack.c.l.b16 %v48
    %v537 = vunpack.c.h.b16 %v48
    %v538 = vunpack.c.l.b16 %v49
    %v539 = vunpack.c.h.b16 %v49
    %v540 = vunpack.c.l.b16 %v50
    %v541 = vunpack.c.l.b16 %v51
    %v542 = vunpack.c.h.b16 %v51
    %v543 = vunpack.c.l.b16 %v52
    %v544 = vunpack.c.h.b16 %v52
    %v545 = vunpack.c.l.b16 %v53
    %v546 = vunpack.c.l.b16 %v54
    %v547 = vunpack.c.h.b16 %v54
    %v548 = vunpack.c.l.b16 %v55
    %v549 = vunpack.c.h.b16 %v55
    %v550 = vunpack.c.l.b16 %v56
    %v551 = vunpack.c.l.b16 %v57
    %v552 = vunpack.c.h.b16 %v57
    %v553 = vunpack.c.l.b16 %v58
    %v554 = vunpack.c.h.b16 %v58
    %v555 = vunpack.c.l.b16 %v59
    %v556 = vunpack.c.l.b16 %v60
    %v557 = vunpack.c.h.b16 %v60
    %v558 = vunpack.c.l.b16 %v61
    %v559 = vunpack.c.h.b16 %v61
    %v560 = vunpack.c.l.b16 %v62
    %v561 = vunpack.c.l.b16 %v63
    %v562 = vunpack.c.h.b16 %v63
    %v563 = vunpack.c.l.b16 %v64
    %v564 = vunpack.c.h.b16 %v64
    %v565 = vunpack.c.l.b16 %v65
    %v566 = vunpack.c.l.b16 %v66
    %v567 = vunpack.c.h.b16 %v66
    %v568 = vunpack.c.l.b16 %v67
    %v569 = vunpack.c.h.b16 %v67
    %v570 = vunpack.c.l.b16 %v68
    %v571 = vunpack.c.l.b16 %v69
    %v572 = vunpack.c.h.b16 %v69
    %v573 = vunpack.c.l.b16 %v70
    %v574 = vunpack.c.h.b16 %v70
    %v575 = vunpack.c.l.b16 %v71
    %v576 = vunpack.c.l.b16 %v72
    %v577 = vunpack.c.h.b16 %v72
    %v578 = vunpack.c.l.b16 %v73
    %v579 = vunpack.c.h.b16 %v73
    %v580 = vunpack.c.l.b16 %v74
    %v581 = vunpack.c.l.b16 %v75
    %v582 = vunpack.c.h.b16 %v75
    %v583 = vunpack.c.l.b16 %v76
    %v584 = vunpack.c.h.b16 %v76
    %v585 = vunpack.c.l.b16 %v77
    %v586 = vunpack.c.l.b16 %v78
    %v587 = vunpack.c.h.b16 %v78
    %v588 = vunpack.c.l.b16 %v79
    %v589 = vunpack.c.h.b16 %v79
    %v590 = vunpack.c.l.b16 %v80
    %v591 = vunpack.c.l.b16 %v81
    %v592 = vunpack.c.h.b16 %v81
    %v593 = vunpack.c.l.b16 %v82
    %v594 = vunpack.c.h.b16 %v82
    %v595 = vunpack.c.l.b16 %v83
    %v596 = vunpack.c.l.b16 %v84
    %v597 = vunpack.c.h.b16 %v84
    %v598 = vunpack.c.l.b16 %v85
    %v599 = vunpack.c.h.b16 %v85
    %v600 = vunpack.c.l.b16 %v86
    %v601 = vunpack.c.l.b16 %v87
    %v602 = vunpack.c.h.b16 %v87
    %v603 = vunpack.c.l.b16 %v88
    %v604 = vunpack.c.h.b16 %v88
    %v605 = vunpack.c.l.b16 %v89
    %v606 = vunpack.c.l.b16 %v90
    %v607 = vunpack.c.h.b16 %v90
    %v608 = vunpack.c.l.b16 %v91
    %v609 = vunpack.c.h.b16 %v91
    %v610 = vunpack.c.l.b16 %v92
    %v611 = vunpack.c.l.b16 %v93
    %v612 = vunpack.c.h.b16 %v93
    %v613 = vunpack.c.l.b16 %v94
    %v614 = vunpack.c.h.b16 %v94
    %v615 = vunpack.c.l.b16 %v95
    %v616 = vunpack.c.l.b16 %v96
    %v617 = vunpack.c.h.b16 %v96
    %v618 = vunpack.c.l.b16 %v97
    %v619 = vunpack.c.h.b16 %v97
    %v620 = vunpack.c.l.b16 %v98
    %v621 = vunpack.c.l.b16 %v99
    %v622 = vunpack.c.h.b16 %v99
    %v623 = vunpack.c.l.b16 %v100
    %v624 = vunpack.c.h.b16 %v100
    %v625 = vunpack.c.l.b16 %v101
    %v626 = vunpack.c.l.b16 %v102
    %v627 = vunpack.c.h.b16 %v102
    %v628 = vunpack.c.l.b16 %v103
    %v629 = vunpack.c.h.b16 %v103
    %v630 = vunpack.c.l.b16 %v104
    %v631 = vunpack.c.l.b16 %v105
    %v632 = vunpack.c.h.b16 %v105
    %v633 = vunpack.c.l.b16 %v106
    %v634 = vunpack.c.h.b16 %v106
    %v635 = vunpack.c.l.b16 %v107
    %v636 = vunpack.c.l.b16 %v108
    %v637 = vunpack.c.h.b16 %v108
    %v638 = vunpack.c.l.b16 %v109
    %v639 = vunpack.c.h.b16 %v109
    %v640 = vunpack.c.l.b16 %v110
    %v641 = vunpack.c.l.b16 %v111
    %v642 = vunpack.c.h.b16 %v111
    %v643 = vunpack.c.l.b16 %v112
    %v644 = vunpack.c.h.b16 %v112
    %v645 = vunpack.c.l.b16 %v113
    %v646 = vunpack.c.l.b16 %v114
    %v647 = vunpack.c.h.b16 %v114
    %v648 = vunpack.c.l.b16 %v115
    %v649 = vunpack.c.h.b16 %v115
    %v650 = vunpack.c.l.b16 %v116
    %v651 = vunpack.c.l.b16 %v117
    %v652 = vunpack.c.h.b16 %v117
    %v653 = vunpack.c.l.b16 %v118
    %v654 = vunpack.c.h.b16 %v118
    %v655 = vunpack.c.l.b16 %v119
    %v656 = vunpack.c.l.b16 %v120
    %v657 = vunpack.c.h.b16 %v120
    %v658 = vunpack.c.l.b16 %v121
    %v659 = vunpack.c.h.b16 %v121
    %v660 = vunpack.c.l.b16 %v122
    %v661 = vunpack.c.l.b16 %v123
    %v662 = vunpack.c.h.b16 %v123
    %v663 = vunpack.c.l.b16 %v124
    %v664 = vunpack.c.h.b16 %v124
    %v665 = vunpack.c.l.b16 %v125
    %v666 = vunpack.c.l.b16 %v126
    %v667 = vunpack.c.h.b16 %v126
    %v668 = vunpack.c.l.b16 %v127
    %v669 = vunpack.c.h.b16 %v127
    %v670 = vunpack.c.l.b16 %v128
    %v671 = vunpack.c.l.b16 %v129
    %v672 = vunpack.c.h.b16 %v129
    %v673 = vunpack.c.l.b16 %v130
    %v674 = vunpack.c.h.b16 %v130
    %v675 = vunpack.c.l.b16 %v131
    %v676 = vunpack.c.l.b16 %v132
    %v677 = vunpack.c.h.b16 %v132
    %v678 = vunpack.c.l.b16 %v133
    %v679 = vunpack.c.h.b16 %v133
    %v680 = vunpack.c.l.b16 %v134
    %v681 = vunpack.c.l.b16 %v135
    %v682 = vunpack.c.h.b16 %v135
    %v683 = vunpack.c.l.b16 %v136
    %v684 = vunpack.c.h.b16 %v136
    %v685 = vunpack.c.l.b16 %v137
    %v686 = vunpack.c.l.b16 %v138
    %v687 = vunpack.c.h.b16 %v138
    %v688 = vunpack.c.l.b16 %v139
    %v689 = vunpack.c.h.b16 %v139
    %v690 = vunpack.c.l.b16 %v140
    %v691 = vunpack.c.l.b16 %v141
    %v692 = vunpack.c.h.b16 %v141
    %v693 = vunpack.c.l.b16 %v142
    %v694 = vunpack.c.h.b16 %v142
    %v695 = vunpack.c.l.b16 %v143
    %v696 = vunpack.c.l.b16 %v144
    %v697 = vunpack.c.h.b16 %v144
    %v698 = vunpack.c.l.b16 %v145
    %v699 = vunpack.c.h.b16 %v145
    %v700 = vunpack.c.l.b16 %v146
    %v701 = vunpack.c.l.b16 %v147
    %v702 = vunpack.c.h.b16 %v147
    %v703 = vunpack.c.l.b16 %v148
    %v704 = vunpack.c.h.b16 %v148
    %v705 = vunpack.c.l.b16 %v149
    %v706 = vunpack.c.l.b16 %v150
    %v707 = vunpack.c.h.b16 %v150
    %v708 = vunpack.c.l.b16 %v151
    %v709 = vunpack.c.h.b16 %v151
    %v710 = vunpack.c.l.b16 %v152
    %v711 = vunpack.c.l.b16 %v153
    %v712 = vunpack.c.h.b16 %v153
    %v713 = vunpack.c.l.b16 %v154
    %v714 = vunpack.c.h.b16 %v154
    %v715 = vunpack.c.l.b16 %v155
    %v716 = vunpack.c.l.b16 %v156
    %v717 = vunpack.c.h.b16 %v156
    %v718 = vunpack.c.l.b16 %v157
    %v719 = vunpack.c.h.b16 %v157
    %v720 = vunpack.c.l.b16 %v158
    %v721 = vunpack.c.l.b16 %v159
    %v722 = vunpack.c.h.b16 %v159
    %v723 = vunpack.c.l.b16 %v160
    %v724 = vunpack.c.h.b16 %v160
    %v725 = vunpack.c.l.b16 %v161
    %v726 = vunpack.c.l.b16 %v162
    %v727 = vunpack.c.h.b16 %v162
    %v728 = vunpack.c.l.b16 %v163
    %v729 = vunpack.c.h.b16 %v163
    %v730 = vunpack.c.l.b16 %v164
    %v731 = vunpack.c.l.b16 %v165
    %v732 = vunpack.c.h.b16 %v165
    %v733 = vunpack.c.l.b16 %v166
    %v734 = vunpack.c.h.b16 %v166
    %v735 = vunpack.c.l.b16 %v167
    %v736 = vunpack.c.l.b16 %v168
    %v737 = vunpack.c.h.b16 %v168
    %v738 = vunpack.c.l.b16 %v169
    %v739 = vunpack.c.h.b16 %v169
    %v740 = vunpack.c.l.b16 %v170
    %v741 = vunpack.c.l.b16 %v171
    %v742 = vunpack.c.h.b16 %v171
    %v743 = vunpack.c.l.b16 %v172
    %v744 = vunpack.c.h.b16 %v172
    %v745 = vunpack.c.l.b16 %v173
    %v746 = vunpack.c.l.b16 %v174
    %v747 = vunpack.c.h.b16 %v174
    %v748 = vunpack.c.l.b16 %v175
    %v749 = vunpack.c.h.b16 %v175
    %v750 = vunpack.c.l.b16 %v176
    %v751 = vunpack.c.l.b16 %v177
    %v752 = vunpack.c.h.b16 %v177
    %v753 = vunpack.c.l.b16 %v178
    %v754 = vunpack.c.h.b16 %v178
    %v755 = vunpack.c.l.b16 %v179
    %v756 = vunpack.c.l.b16 %v180
    %v757 = vunpack.c.h.b16 %v180
    %v758 = vunpack.c.l.b16 %v181
    %v759 = vunpack.c.h.b16 %v181
    %v760 = vunpack.c.l.b16 %v182
    %v761 = vunpack.c.l.b16 %v183
    %v762 = vunpack.c.h.b16 %v183
    %v763 = vunpack.c.l.b16 %v184
    %v764 = vunpack.c.h.b16 %v184
    %v765 = vunpack.c.l.b16 %v185
    %v766 = vunpack.c.l.b16 %v186
    %v767 = vunpack.c.h.b16 %v186
    %v768 = vunpack.c.l.b16 %v187
    %v769 = vunpack.c.h.b16 %v187
    %v770 = vunpack.c.l.b16 %v188
    %v771 = vunpack.c.l.b16 %v189
    %v772 = vunpack.c.h.b16 %v189
    %v773 = vunpack.c.l.b16 %v190
    %v774 = vunpack.c.h.b16 %v190
    %v775 = vunpack.c.l.b16 %v191
    %v776 = vunpack.c.l.b16 %v192
    %v777 = vunpack.c.h.b16 %v192
    %v778 = vunpack.c.l.b16 %v193
    %v779 = vunpack.c.h.b16 %v193
    %v780 = vunpack.c.l.b16 %v194
    %v781 = vunpack.c.l.b16 %v195
    %v782 = vunpack.c.h.b16 %v195
    %v783 = vunpack.c.l.b16 %v196
    %v784 = vunpack.c.h.b16 %v196
    %v785 = vunpack.c.l.b16 %v197
    %v786 = vunpack.c.l.b16 %v198
    %v787 = vunpack.c.h.b16 %v198
    %v788 = vunpack.c.l.b16 %v199
    %v789 = vunpack.c.h.b16 %v199
    %v790 = vunpack.c.l.b16 %v200
    %v791 = vunpack.c.l.b16 %v201
    %v792 = vunpack.c.h.b16 %v201
    %v793 = vunpack.c.l.b16 %v202
    %v794 = vunpack.c.h.b16 %v202
    %v795 = vunpack.c.l.b16 %v203
    %v796 = vunpack.c.l.b16 %v204
    %v797 = vunpack.c.h.b16 %v204
    %v798 = vunpack.c.l.b16 %v205
    %v799 = vunpack.c.h.b16 %v205
    %v800 = vunpack.c.l.b16 %v206
    %v801 = vunpack.c.l.b16 %v207
    %v802 = vunpack.c.h.b16 %v207
    %v803 = vunpack.c.l.b16 %v208
    %v804 = vunpack.c.h.b16 %v208
    %v805 = vunpack.c.l.b16 %v209
    %v806 = vpack.c.b16 %v491, %v486
    %v807 = vpack.c.b16 %v492, %v487
    %v808 = vpack.c.b16 %v493, %v488
    %v809 = vpack.c.b16 %v494, %v489
    %v810 = vpack.c.b16 %v495, %v490
    %v811 = vpack.c.b16 %v501, %v496
    %v812 = vpack.c.b16 %v502, %v497
    %v813 = vpack.c.b16 %v503, %v498
    %v814 = vpack.c.b16 %v504, %v499
    %v815 = vpack.c.b16 %v505, %v500
    %v816 = vpack.c.b16 %v511, %v506
    %v817 = vpack.c.b16 %v512, %v507
    %v818 = vpack.c.b16 %v513, %v508
    %v819 = vpack.c.b16 %v514, %v509
    %v820 = vpack.c.b16 %v515, %v510
    %v821 = vpack.c.b16 %v521, %v516
    %v822 = vpack.c.b16 %v522, %v517
    %v823 = vpack.c.b16 %v523, %v518
    %v824 = vpack.c.b16 %v524, %v519
    %v825 = vpack.c.b16 %v525, %v520
    %v826 = vpack.c.b16 %v531, %v526
    %v827 = vpack.c.b16 %v532, %v527
    %v828 = vpack.c.b16 %v533, %v528
    %v829 = vpack.c.b16 %v534, %v529
    %v830 = vpack.c.b16 %v535, %v530
    %v831 = vpack.c.b16 %v541, %v536
    %v832 = vpack.c.b16 %v542, %v537
    %v833 = vpack.c.b16 %v543, %v538
    %v834 = vpack.c.b16 %v544, %v539
    %v835 = vpack.c.b16 %v545, %v540
    %v836 = vpack.c.b16 %v551, %v546
    %v837 = vpack.c.b16 %v552, %v547
    %v838 = vpack.c.b16 %v553, %v548
    %v839 = vpack.c.b16 %v554, %v549
    %v840 = vpack.c.b16 %v555, %v550
    %v841 = vpack.c.b16 %v561, %v556
    %v842 = vpack.c.b16 %v562, %v557
    %v843 = vpack.c.b16 %v563, %v558
    %v844 = vpack.c.b16 %v564, %v559
    %v845 = vpack.c.b16 %v565, %v560
    %v846 = vpack.c.b16 %v571, %v566
    %v847 = vpack.c.b16 %v572, %v567
    %v848 = vpack.c.b16 %v573, %v568
    %v849 = vpack.c.b16 %v574, %v569
    %v850 = vpack.c.b16 %v575, %v570
    %v851 = vpack.c.b16 %v581, %v576
    %v852 = vpack.c.b16 %v582, %v577
    %v853 = vpack.c.b16 %v583, %v578
    %v854 = vpack.c.b16 %v584, %v579
    %v855 = vpack.c.b16 %v585, %v580
    %v856 = vpack.c.b16 %v591, %v586
    %v857 = vpack.c.b16 %v592, %v587
    %v858 = vpack.c.b16 %v593, %v588
    %v859 = vpack.c.b16 %v594, %v589
    %v860 = vpack.c.b16 %v595, %v590
    %v861 = vpack.c.b16 %v601, %v596
    %v862 = vpack.c.b16 %v602, %v597
    %v863 = vpack.c.b16 %v603, %v598
    %v864 = vpack.c.b16 %v604, %v599
    %v865 = vpack.c.b16 %v605, %v600
    %v866 = vpack.c.b16 %v611, %v606
    %v867 = vpack.c.b16 %v612, %v607
    %v868 = vpack.c.b16 %v613, %v608
    %v869 = vpack.c.b16 %v614, %v609
    %v870 = vpack.c.b16 %v615, %v610
    %v871 = vpack.c.b16 %v621, %v616
    %v872 = vpack.c.b16 %v622, %v617
    %v873 = vpack.c.b16 %v623, %v618
    %v874 = vpack.c.b16 %v624, %v619
    %v875 = vpack.c.b16 %v625, %v620
    %v876 = vpack.c.b16 %v631, %v626
    %v877 = vpack.c.b16 %v632, %v627
    %v878 = vpack.c.b16 %v633, %v628
    %v879 = vpack.c.b16 %v634, %v629
    %v880 = vpack.c.b16 %v635, %v630
    %v881 = vpack.c.b16 %v641, %v636
    %v882 = vpack.c.b16 %v642, %v637
    %v883 = vpack.c.b16 %v643, %v638
    %v884 = vpack.c.b16 %v644, %v639
    %v885 = vpack.c.b16 %v645, %v640
    %v886 = vpack.c.b16 %v651, %v646
    %v887 = vpack.c.b16 %v652, %v647
    %v888 = vpack.c.b16 %v653, %v648
    %v889 = vpack.c.b16 %v654, %v649
    %v890 = vpack.c.b16 %v655, %v650
    %v891 = vpack.c.b16 %v661, %v656
    %v892 = vpack.c.b16 %v662, %v657
    %v893 = vpack.c.b16 %v663, %v658
    %v894 = vpack.c.b16 %v664, %v659
    %v895 = vpack.c.b16 %v665, %v660
    %v896 = vpack.c.b16 %v671, %v666
    %v897 = vpack.c.b16 %v672, %v667
    %v898 = vpack.c.b16 %v673, %v668
    %v899 = vpack.c.b16 %v674, %v669
    %v900 = vpack.c.b16 %v675, %v670
    %v901 = vpack.c.b16 %v681, %v676
    %v902 = vpack.c.b16 %v682, %v677
    %v903 = vpack.c.b16 %v683, %v678
    %v904 = vpack.c.b16 %v684, %v679
    %v905 = vpack.c.b16 %v685, %v680
    %v906 = vpack.c.b16 %v691, %v686
    %v907 = vpack.c.b16 %v692, %v687
    %v908 = vpack.c.b16 %v693, %v688
    %v909 = vpack.c.b16 %v694, %v689
    %v910 = vpack.c.b16 %v695, %v690
    %v911 = vpack.c.b16 %v701, %v696
    %v912 = vpack.c.b16 %v702, %v697
    %v913 = vpack.c.b16 %v703, %v698
    %v914 = vpack.c.b16 %v704, %v699
    %v915 = vpack.c.b16 %v705, %v700
    %v916 = vpack.c.b16 %v711, %v706
    %v917 = vpack.c.b16 %v712, %v707
    %v918 = vpack.c.b16 %v713, %v708
    %v919 = vpack.c.b16 %v714, %v709
    %v920 = vpack.c.b16 %v715, %v710
    %v921 = vpack.c.b16 %v721, %v716
    %v922 = vpack.c.b16 %v722, %v717
    %v923 = vpack.c.b16 %v723, %v718
    %v924 = vpack.c.b16 %v724, %v719
    %v925 = vpack.c.b16 %v725, %v720
    %v926 = vpack.c.b16 %v731, %v726
    %v927 = vpack.c.b16 %v732, %v727
    %v928 = vpack.c.b16 %v733, %v728
    %v929 = vpack.c.b16 %v734, %v729
    %v930 = vpack.c.b16 %v735, %v730
    %v931 = vpack.c.b16 %v741, %v736
    %v932 = vpack.c.b16 %v742, %v737
    %v933 = vpack.c.b16 %v743, %v738
    %v934 = vpack.c.b16 %v744, %v739
    %v935 = vpack.c.b16 %v745, %v740
    %v936 = vpack.c.b16 %v751, %v746
    %v937 = vpack.c.b16 %v752, %v747
    %v938 = vpack.c.b16 %v753, %v748
    %v939 = vpack.c.b16 %v754, %v749
    %v940 = vpack.c.b16 %v755, %v750
    %v941 = vpack.c.b16 %v761, %v756
    %v942 = vpack.c.b16 %v762, %v757
    %v943 = vpack.c.b16 %v763, %v758
    %v944 = vpack.c.b16 %v764, %v759
    %v945 = vpack.c.b16 %v765, %v760
    %v946 = vpack.c.b16 %v771, %v766
    %v947 = vpack.c.b16 %v772, %v767
    %v948 = vpack.c.b16 %v773, %v768
    %v949 = vpack.c.b16 %v774, %v769
    %v950 = vpack.c.b16 %v775, %v770
    %v951 = vpack.c.b16 %v781, %v776
    %v952 = vpack.c.b16 %v782, %v777
    %v953 = vpack.c.b16 %v783, %v778
    %v954 = vpack.c.b16 %v784, %v779
    %v955 = vpack.c.b16 %v785, %v780
    %v956 = vpack.c.b16 %v791, %v786
    %v957 = vpack.c.b16 %v792, %v787
    %v958 = vpack.c.b16 %v793, %v788
    %v959 = vpack.c.b16 %v794, %v789
    %v960 = vpack.c.b16 %v795, %v790
    %v961 = vpack.c.b16 %v801, %v796
    %v962 = vpack.c.b16 %v802, %v797
    %v963 = vpack.c.b16 %v803, %v798
    %v964 = vpack.c.b16 %v804, %v799
    %v965 = vpack.c.b16 %v805, %v800
    %v1206 = vunpack.c.l.b16 %v210
    %v1207 = vunpack.c.l.b16 %v211
    %v1208 = vunpack.c.l.b16 %v212
    %v1209 = vunpack.c.l.b16 %v213
    %v1210 = vunpack.c.l.b16 %v214
    %v1211 = vunpack.c.l.b16 %v215
    %v1212 = vunpack.c.l.b16 %v216
    %v1213 = vunpack.c.l.b16 %v217
    %v1214 = vunpack.c.l.b16 %v218
    %v1215 = vunpack.c.l.b16 %v219
    %v1216 = vunpack.c.l.b16 %v220
    %v1217 = vunpack.c.l.b16 %v221
    %v1218 = vunpack.c.l.b16 %v222
    %v1219 = vunpack.c.l.b16 %v223
    %v1220 = vunpack.c.l.b16 %v224
    %v1221 = vunpack.c.l.b16 %v225
    %v1222 = vunpack.c.l.b16 %v226
    %v1223 = vunpack.c.l.b16 %v227
    %v1224 = vunpack.c.l.b16 %v228
    %v1225 = vunpack.c.l.b16 %v229
    %v1226 = vunpack.c.l.b16 %v230
    %v1227 = vunpack.c.l.b16 %v231
    %v1228 = vunpack.c.l.b16 %v232
    %v1229 = vunpack.c.l.b16 %v233
    %v1230 = vunpack.c.l.b16 %v234
    %v1231 = vunpack.c.l.b16 %v235
    %v1232 = vunpack.c.l.b16 %v236
    %v1233 = vunpack.c.l.b16 %v237
    %v1234 = vunpack.c.l.b16 %v238
    %v1235 = vunpack.c.l.b16 %v239
    %v1236 = vunpack.c.l.b16 %v240
    %v1237 = vunpack.c.l.b16 %v241
    %v1238 = vunpack.c.l.b16 %v242
    %v1239 = vunpack.c.l.b16 %v243
    %v1240 = vunpack.c.l.b16 %v244
    %v1241 = vunpack.c.l.b16 %v245
    %v1242 = vunpack.c.l.b16 %v246
    %v1243 = vunpack.c.l.b16 %v247
    %v1244 = vunpack.c.l.b16 %v248
    %v1245 = vunpack.c.l.b16 %v249
    %v1246 = vunpack.c.l.b16 %v250
    %v1247 = vunpack.c.l.b16 %v251
    %v1248 = vunpack.c.l.b16 %v252
    %v1249 = vunpack.c.l.b16 %v253
    %v1250 = vunpack.c.l.b16 %v254
    %v1251 = vunpack.c.l.b16 %v255
    %v1252 = vunpack.c.l.b16 %v256
    %v1253 = vunpack.c.l.b16 %v257
    %v1254 = vunpack.c.l.b16 %v258
    %v1255 = vunpack.c.l.b16 %v259
    %v1256 = vunpack.c.l.b16 %v260
    %v1257 = vunpack.c.l.b16 %v261
    %v1258 = vunpack.c.l.b16 %v262
    %v1259 = vunpack.c.l.b16 %v263
    %v1260 = vunpack.c.l.b16 %v264
    %v1261 = vunpack.c.l.b16 %v265
    %v1262 = vunpack.c.l.b16 %v266
    %v1263 = vunpack.c.l.b16 %v267
    %v1264 = vunpack.c.l.b16 %v268
    %v1265 = vunpack.c.l.b16 %v269
    %v1266 = vunpack.c.l.b16 %v270
    %v1267 = vunpack.c.l.b16 %v271
    %v1268 = vunpack.c.l.b16 %v272
    %v1269 = vunpack.c.l.b16 %v273
    %v1270 = vunpack.c.l.b16 %v274
    %v1271 = vunpack.c.l.b16 %v275
    %v1272 = vunpack.c.l.b16 %v276
    %v1273 = vunpack.c.l.b16 %v277
    %v1274 = vunpack.c.l.b16 %v278
    %v1275 = vunpack.c.l.b16 %v279
    %v1276 = vunpack.c.l.b16 %v280
    %v1277 = vunpack.c.l.b16 %v281
    %v1278 = vunpack.c.l.b16 %v282
    %v1279 = vunpack.c.l.b16 %v283
    %v1280 = vunpack.c.l.b16 %v284
    %v1281 = vunpack.c.l.b16 %v285
    %v1282 = vunpack.c.l.b16 %v286
    %v1283 = vunpack.c.l.b16 %v287
    %v1284 = vunpack.c.l.b16 %v288
    %v1285 = vunpack.c.l.b16 %v289
    %v1286 = vpack.c.b16 %v1207, %v1206
    %v1287 = vpack.c.b16 %v1209, %v1208
    %v1288 = vpack.c.b16 %v1211, %v1210
    %v1289 = vpack.c.b16 %v1213, %v1212
    %v1290 = vpack.c.b16 %v1215, %v1214
    %v1291 = vpack.c.b16 %v1217, %v1216
    %v1292 = vpack.c.b16 %v1219, %v1218
    %v1293 = vpack.c.b16 %v1221, %v1220
    %v1294 = vpack.c.b16 %v1223, %v1222
    %v1295 = vpack.c.b16 %v1225, %v1224
    %v1296 = vpack.c.b16 %v1227, %v1226
    %v1297 = vpack.c.b16 %v1229, %v1228
    %v1298 = vpack.c.b16 %v1231, %v1230
    %v1299 = vpack.c.b16 %v1233, %v1232
    %v1300 = vpack.c.b16 %v1235, %v1234
    %v1301 = vpack.c.b16 %v1237, %v1236
    %v1302 = vpack.c.b16 %v1239, %v1238
    %v1303 = vpack.c.b16 %v1241, %v1240
    %v1304 = vpack.c.b16 %v1243, %v1242
    %v1305 = vpack.c.b16 %v1245, %v1244
    %v1306 = vpack.c.b16 %v1247, %v1246
    %v1307 = vpack.c.b16 %v1249, %v1248
    %v1308 = vpack.c.b16 %v1251, %v1250
    %v1309 = vpack.c.b16 %v1253, %v1252
    %v1310 = vpack.c.b16 %v1255, %v1254
    %v1311 = vpack.c.b16 %v1257, %v1256
    %v1312 = vpack.c.b16 %v1259, %v1258
    %v1313 = vpack.c.b16 %v1261, %v1260
    %v1314 = vpack.c.b16 %v1263, %v1262
    %v1315 = vpack.c.b16 %v1265, %v1264
    %v1316 = vpack.c.b16 %v1267, %v1266
    %v1317 = vpack.c.b16 %v1269, %v1268
    %v1318 = vpack.c.b16 %v1271, %v1270
    %v1319 = vpack.c.b16 %v1273, %v1272
    %v1320 = vpack.c.b16 %v1275, %v1274
    %v1321 = vpack.c.b16 %v1277, %v1276
    %v1322 = vpack.c.b16 %v1279, %v1278
    %v1323 = vpack.c.b16 %v1281, %v1280
    %v1324 = vpack.c.b16 %v1283, %v1282
    %v1325 = vpack.c.b16 %v1285, %v1284
    %1366 = vmatpush.bf16.msra.mxu0 %v1293
    %1367 = vmatpush.bf16.msra.mxu0 %v1292
    %1368 = vmatpush.bf16.msra.mxu0 %v1291
    %1369 = vmatpush.bf16.msra.mxu0 %v1290
    %1370 = vmatpush.bf16.msra.mxu0 %v1289
    %1371 = vmatpush.bf16.msra.mxu0 %v1288
    %1372 = vmatpush.bf16.msra.mxu0 %v1287
    %1373 = vmatpush.bf16.msra.mxu0 %v1286
    %1374 = vmatmul.bf16.gmra.mxu0 %v806
    %v1375 = vpop.f32.mrf.mxu0
    %v1376 = vadd.f32 %v292, %v1375
    %v1377 = vpop.f32.mrf.mxu0
    %v1378 = vadd.f32 %v292, %v1377
    %1379 = vmatmul.bf16.gmra.mxu0 %v811
    %v1380 = vpop.f32.mrf.mxu0
    %v1381 = vadd.f32 %v292, %v1380
    %v1382 = vpop.f32.mrf.mxu0
    %v1383 = vadd.f32 %v292, %v1382
    %1384 = vmatmul.bf16.gmra.mxu0 %v816
    %v1385 = vpop.f32.mrf.mxu0
    %v1386 = vadd.f32 %v292, %v1385
    %v1387 = vpop.f32.mrf.mxu0
    %v1388 = vadd.f32 %v292, %v1387
    %1389 = vmatmul.bf16.gmra.mxu0 %v821
    %v1390 = vpop.f32.mrf.mxu0
    %v1391 = vadd.f32 %v292, %v1390
    %v1392 = vpop.f32.mrf.mxu0
    %v1393 = vadd.f32 %v292, %v1392
    %1394 = vmatmul.bf16.gmra.mxu0 %v826
    %v1395 = vpop.f32.mrf.mxu0
    %v1396 = vadd.f32 %v292, %v1395
    %v1397 = vpop.f32.mrf.mxu0
    %v1398 = vadd.f32 %v292, %v1397
    %1399 = vmatmul.bf16.gmra.mxu0 %v831
    %v1400 = vpop.f32.mrf.mxu0
    %v1401 = vadd.f32 %v292, %v1400
    %v1402 = vpop.f32.mrf.mxu0
    %v1403 = vadd.f32 %v292, %v1402
    %1404 = vmatmul.bf16.gmra.mxu0 %v836
    %v1405 = vpop.f32.mrf.mxu0
    %v1406 = vadd.f32 %v292, %v1405
    %v1407 = vpop.f32.mrf.mxu0
    %v1408 = vadd.f32 %v292, %v1407
    %1409 = vmatmul.bf16.gmra.mxu0 %v841
    %v1410 = vpop.f32.mrf.mxu0
    %v1411 = vadd.f32 %v292, %v1410
    %v1412 = vpop.f32.mrf.mxu0
    %v1413 = vadd.f32 %v292, %v1412
    %1414 = vmatmul.bf16.gmra.mxu0 %v846
    %v1415 = vpop.f32.mrf.mxu0
    %v1416 = vadd.f32 %v292, %v1415
    %v1417 = vpop.f32.mrf.mxu0
    %v1418 = vadd.f32 %v292, %v1417
    %1419 = vmatmul.bf16.gmra.mxu0 %v851
    %v1420 = vpop.f32.mrf.mxu0
    %v1421 = vadd.f32 %v292, %v1420
    %v1422 = vpop.f32.mrf.mxu0
    %v1423 = vadd.f32 %v292, %v1422
    %1424 = vmatmul.bf16.gmra.mxu0 %v856
    %v1425 = vpop.f32.mrf.mxu0
    %v1426 = vadd.f32 %v292, %v1425
    %v1427 = vpop.f32.mrf.mxu0
    %v1428 = vadd.f32 %v292, %v1427
    %1429 = vmatmul.bf16.gmra.mxu0 %v861
    %v1430 = vpop.f32.mrf.mxu0
    %v1431 = vadd.f32 %v292, %v1430
    %v1432 = vpop.f32.mrf.mxu0
    %v1433 = vadd.f32 %v292, %v1432
    %1434 = vmatmul.bf16.gmra.mxu0 %v866
    %v1435 = vpop.f32.mrf.mxu0
    %v1436 = vadd.f32 %v292, %v1435
    %v1437 = vpop.f32.mrf.mxu0
    %v1438 = vadd.f32 %v292, %v1437
    %1439 = vmatmul.bf16.gmra.mxu0 %v871
    %v1440 = vpop.f32.mrf.mxu0
    %v1441 = vadd.f32 %v292, %v1440
    %v1442 = vpop.f32.mrf.mxu0
    %v1443 = vadd.f32 %v292, %v1442
    %1444 = vmatmul.bf16.gmra.mxu0 %v876
    %v1445 = vpop.f32.mrf.mxu0
    %v1446 = vadd.f32 %v292, %v1445
    %v1447 = vpop.f32.mrf.mxu0
    %v1448 = vadd.f32 %v292, %v1447
    %1449 = vmatmul.bf16.gmra.mxu0 %v881
    %v1450 = vpop.f32.mrf.mxu0
    %v1451 = vadd.f32 %v292, %v1450
    %v1452 = vpop.f32.mrf.mxu0
    %v1453 = vadd.f32 %v292, %v1452
    %1454 = vmatmul.bf16.gmra.mxu0 %v886
    %v1455 = vpop.f32.mrf.mxu0
    %v1456 = vadd.f32 %v292, %v1455
    %v1457 = vpop.f32.mrf.mxu0
    %v1458 = vadd.f32 %v292, %v1457
    %1459 = vmatmul.bf16.gmra.mxu0 %v891
    %v1460 = vpop.f32.mrf.mxu0
    %v1461 = vadd.f32 %v292, %v1460
    %v1462 = vpop.f32.mrf.mxu0
    %v1463 = vadd.f32 %v292, %v1462
    %1464 = vmatmul.bf16.gmra.mxu0 %v896
    %v1465 = vpop.f32.mrf.mxu0
    %v1466 = vadd.f32 %v292, %v1465
    %v1467 = vpop.f32.mrf.mxu0
    %v1468 = vadd.f32 %v292, %v1467
    %1469 = vmatmul.bf16.gmra.mxu0 %v901
    %v1470 = vpop.f32.mrf.mxu0
    %v1471 = vadd.f32 %v292, %v1470
    %v1472 = vpop.f32.mrf.mxu0
    %v1473 = vadd.f32 %v292, %v1472
    %1474 = vmatmul.bf16.gmra.mxu0 %v906
    %v1475 = vpop.f32.mrf.mxu0
    %v1476 = vadd.f32 %v292, %v1475
    %v1477 = vpop.f32.mrf.mxu0
    %v1478 = vadd.f32 %v292, %v1477
    %1479 = vmatmul.bf16.gmra.mxu0 %v911
    %v1480 = vpop.f32.mrf.mxu0
    %v1481 = vadd.f32 %v292, %v1480
    %v1482 = vpop.f32.mrf.mxu0
    %v1483 = vadd.f32 %v292, %v1482
    %1484 = vmatmul.bf16.gmra.mxu0 %v916
    %v1485 = vpop.f32.mrf.mxu0
    %v1486 = vadd.f32 %v292, %v1485
    %v1487 = vpop.f32.mrf.mxu0
    %v1488 = vadd.f32 %v292, %v1487
    %1489 = vmatmul.bf16.gmra.mxu0 %v921
    %v1490 = vpop.f32.mrf.mxu0
    %v1491 = vadd.f32 %v292, %v1490
    %v1492 = vpop.f32.mrf.mxu0
    %v1493 = vadd.f32 %v292, %v1492
    %1494 = vmatmul.bf16.gmra.mxu0 %v926
    %v1495 = vpop.f32.mrf.mxu0
    %v1496 = vadd.f32 %v292, %v1495
    %v1497 = vpop.f32.mrf.mxu0
    %v1498 = vadd.f32 %v292, %v1497
    %1499 = vmatmul.bf16.gmra.mxu0 %v931
    %v1500 = vpop.f32.mrf.mxu0
    %v1501 = vadd.f32 %v292, %v1500
    %v1502 = vpop.f32.mrf.mxu0
    %v1503 = vadd.f32 %v292, %v1502
    %1504 = vmatmul.bf16.gmra.mxu0 %v936
    %v1505 = vpop.f32.mrf.mxu0
    %v1506 = vadd.f32 %v292, %v1505
    %v1507 = vpop.f32.mrf.mxu0
    %v1508 = vadd.f32 %v292, %v1507
    %1509 = vmatmul.bf16.gmra.mxu0 %v941
    %v1510 = vpop.f32.mrf.mxu0
    %v1511 = vadd.f32 %v292, %v1510
    %v1512 = vpop.f32.mrf.mxu0
    %v1513 = vadd.f32 %v292, %v1512
    %1514 = vmatmul.bf16.gmra.mxu0 %v946
    %v1515 = vpop.f32.mrf.mxu0
    %v1516 = vadd.f32 %v292, %v1515
    %v1517 = vpop.f32.mrf.mxu0
    %v1518 = vadd.f32 %v292, %v1517
    %1519 = vmatmul.bf16.gmra.mxu0 %v951
    %v1520 = vpop.f32.mrf.mxu0
    %v1521 = vadd.f32 %v292, %v1520
    %v1522 = vpop.f32.mrf.mxu0
    %v1523 = vadd.f32 %v292, %v1522
    %1524 = vmatmul.bf16.gmra.mxu0 %v956
    %v1525 = vpop.f32.mrf.mxu0
    %v1526 = vadd.f32 %v292, %v1525
    %v1527 = vpop.f32.mrf.mxu0
    %v1528 = vadd.f32 %v292, %v1527
    %1529 = vmatmul.bf16.gmra.mxu0 %v961
    %v1530 = vpop.f32.mrf.mxu0
    %v1531 = vadd.f32 %v292, %v1530
    %v1532 = vpop.f32.mrf.mxu0
    %v1533 = vadd.f32 %v292, %v1532
    %1534 = vdwg.mxu0
    %1535 = vmatpush.bf16.msra.mxu0 %v1301
    %1536 = vmatpush.bf16.msra.mxu0 %v1300
    %1537 = vmatpush.bf16.msra.mxu0 %v1299
    %1538 = vmatpush.bf16.msra.mxu0 %v1298
    %1539 = vmatpush.bf16.msra.mxu0 %v1297
    %1540 = vmatpush.bf16.msra.mxu0 %v1296
    %1541 = vmatpush.bf16.msra.mxu0 %v1295
    %1542 = vmatpush.bf16.msra.mxu0 %v1294
    %1543 = vmatmul.bf16.gmra.mxu0 %v807
    %v1544 = vpop.f32.mrf.mxu0
    %v1545 = vadd.f32 %v1376, %v1544
    %v1546 = vpop.f32.mrf.mxu0
    %v1547 = vadd.f32 %v1378, %v1546
    %1548 = vmatmul.bf16.gmra.mxu0 %v812
    %v1549 = vpop.f32.mrf.mxu0
    %v1550 = vadd.f32 %v1381, %v1549
    %v1551 = vpop.f32.mrf.mxu0
    %v1552 = vadd.f32 %v1383, %v1551
    %1553 = vmatmul.bf16.gmra.mxu0 %v817
    %v1554 = vpop.f32.mrf.mxu0
    %v1555 = vadd.f32 %v1386, %v1554
    %v1556 = vpop.f32.mrf.mxu0
    %v1557 = vadd.f32 %v1388, %v1556
    %1558 = vmatmul.bf16.gmra.mxu0 %v822
    %v1559 = vpop.f32.mrf.mxu0
    %v1560 = vadd.f32 %v1391, %v1559
    %v1561 = vpop.f32.mrf.mxu0
    %v1562 = vadd.f32 %v1393, %v1561
    %1563 = vmatmul.bf16.gmra.mxu0 %v827
    %v1564 = vpop.f32.mrf.mxu0
    %v1565 = vadd.f32 %v1396, %v1564
    %v1566 = vpop.f32.mrf.mxu0
    %v1567 = vadd.f32 %v1398, %v1566
    %1568 = vmatmul.bf16.gmra.mxu0 %v832
    %v1569 = vpop.f32.mrf.mxu0
    %v1570 = vadd.f32 %v1401, %v1569
    %v1571 = vpop.f32.mrf.mxu0
    %v1572 = vadd.f32 %v1403, %v1571
    %1573 = vmatmul.bf16.gmra.mxu0 %v837
    %v1574 = vpop.f32.mrf.mxu0
    %v1575 = vadd.f32 %v1406, %v1574
    %v1576 = vpop.f32.mrf.mxu0
    %v1577 = vadd.f32 %v1408, %v1576
    %1578 = vmatmul.bf16.gmra.mxu0 %v842
    %v1579 = vpop.f32.mrf.mxu0
    %v1580 = vadd.f32 %v1411, %v1579
    %v1581 = vpop.f32.mrf.mxu0
    %v1582 = vadd.f32 %v1413, %v1581
    %1583 = vmatmul.bf16.gmra.mxu0 %v847
    %v1584 = vpop.f32.mrf.mxu0
    %v1585 = vadd.f32 %v1416, %v1584
    %v1586 = vpop.f32.mrf.mxu0
    %v1587 = vadd.f32 %v1418, %v1586
    %1588 = vmatmul.bf16.gmra.mxu0 %v852
    %v1589 = vpop.f32.mrf.mxu0
    %v1590 = vadd.f32 %v1421, %v1589
    %v1591 = vpop.f32.mrf.mxu0
    %v1592 = vadd.f32 %v1423, %v1591
    %1593 = vmatmul.bf16.gmra.mxu0 %v857
    %v1594 = vpop.f32.mrf.mxu0
    %v1595 = vadd.f32 %v1426, %v1594
    %v1596 = vpop.f32.mrf.mxu0
    %v1597 = vadd.f32 %v1428, %v1596
    %1598 = vmatmul.bf16.gmra.mxu0 %v862
    %v1599 = vpop.f32.mrf.mxu0
    %v1600 = vadd.f32 %v1431, %v1599
    %v1601 = vpop.f32.mrf.mxu0
    %v1602 = vadd.f32 %v1433, %v1601
    %1603 = vmatmul.bf16.gmra.mxu0 %v867
    %v1604 = vpop.f32.mrf.mxu0
    %v1605 = vadd.f32 %v1436, %v1604
    %v1606 = vpop.f32.mrf.mxu0
    %v1607 = vadd.f32 %v1438, %v1606
    %1608 = vmatmul.bf16.gmra.mxu0 %v872
    %v1609 = vpop.f32.mrf.mxu0
    %v1610 = vadd.f32 %v1441, %v1609
    %v1611 = vpop.f32.mrf.mxu0
    %v1612 = vadd.f32 %v1443, %v1611
    %1613 = vmatmul.bf16.gmra.mxu0 %v877
    %v1614 = vpop.f32.mrf.mxu0
    %v1615 = vadd.f32 %v1446, %v1614
    %v1616 = vpop.f32.mrf.mxu0
    %v1617 = vadd.f32 %v1448, %v1616
    %1618 = vmatmul.bf16.gmra.mxu0 %v882
    %v1619 = vpop.f32.mrf.mxu0
    %v1620 = vadd.f32 %v1451, %v1619
    %v1621 = vpop.f32.mrf.mxu0
    %v1622 = vadd.f32 %v1453, %v1621
    %1623 = vmatmul.bf16.gmra.mxu0 %v887
    %v1624 = vpop.f32.mrf.mxu0
    %v1625 = vadd.f32 %v1456, %v1624
    %v1626 = vpop.f32.mrf.mxu0
    %v1627 = vadd.f32 %v1458, %v1626
    %1628 = vmatmul.bf16.gmra.mxu0 %v892
    %v1629 = vpop.f32.mrf.mxu0
    %v1630 = vadd.f32 %v1461, %v1629
    %v1631 = vpop.f32.mrf.mxu0
    %v1632 = vadd.f32 %v1463, %v1631
    %1633 = vmatmul.bf16.gmra.mxu0 %v897
    %v1634 = vpop.f32.mrf.mxu0
    %v1635 = vadd.f32 %v1466, %v1634
    %v1636 = vpop.f32.mrf.mxu0
    %v1637 = vadd.f32 %v1468, %v1636
    %1638 = vmatmul.bf16.gmra.mxu0 %v902
    %v1639 = vpop.f32.mrf.mxu0
    %v1640 = vadd.f32 %v1471, %v1639
    %v1641 = vpop.f32.mrf.mxu0
    %v1642 = vadd.f32 %v1473, %v1641
    %1643 = vmatmul.bf16.gmra.mxu0 %v907
    %v1644 = vpop.f32.mrf.mxu0
    %v1645 = vadd.f32 %v1476, %v1644
    %v1646 = vpop.f32.mrf.mxu0
    %v1647 = vadd.f32 %v1478, %v1646
    %1648 = vmatmul.bf16.gmra.mxu0 %v912
    %v1649 = vpop.f32.mrf.mxu0
    %v1650 = vadd.f32 %v1481, %v1649
    %v1651 = vpop.f32.mrf.mxu0
    %v1652 = vadd.f32 %v1483, %v1651
    %1653 = vmatmul.bf16.gmra.mxu0 %v917
    %v1654 = vpop.f32.mrf.mxu0
    %v1655 = vadd.f32 %v1486, %v1654
    %v1656 = vpop.f32.mrf.mxu0
    %v1657 = vadd.f32 %v1488, %v1656
    %1658 = vmatmul.bf16.gmra.mxu0 %v922
    %v1659 = vpop.f32.mrf.mxu0
    %v1660 = vadd.f32 %v1491, %v1659
    %v1661 = vpop.f32.mrf.mxu0
    %v1662 = vadd.f32 %v1493, %v1661
    %1663 = vmatmul.bf16.gmra.mxu0 %v927
    %v1664 = vpop.f32.mrf.mxu0
    %v1665 = vadd.f32 %v1496, %v1664
    %v1666 = vpop.f32.mrf.mxu0
    %v1667 = vadd.f32 %v1498, %v1666
    %1668 = vmatmul.bf16.gmra.mxu0 %v932
    %v1669 = vpop.f32.mrf.mxu0
    %v1670 = vadd.f32 %v1501, %v1669
    %v1671 = vpop.f32.mrf.mxu0
    %v1672 = vadd.f32 %v1503, %v1671
    %1673 = vmatmul.bf16.gmra.mxu0 %v937
    %v1674 = vpop.f32.mrf.mxu0
    %v1675 = vadd.f32 %v1506, %v1674
    %v1676 = vpop.f32.mrf.mxu0
    %v1677 = vadd.f32 %v1508, %v1676
    %1678 = vmatmul.bf16.gmra.mxu0 %v942
    %v1679 = vpop.f32.mrf.mxu0
    %v1680 = vadd.f32 %v1511, %v1679
    %v1681 = vpop.f32.mrf.mxu0
    %v1682 = vadd.f32 %v1513, %v1681
    %1683 = vmatmul.bf16.gmra.mxu0 %v947
    %v1684 = vpop.f32.mrf.mxu0
    %v1685 = vadd.f32 %v1516, %v1684
    %v1686 = vpop.f32.mrf.mxu0
    %v1687 = vadd.f32 %v1518, %v1686
    %1688 = vmatmul.bf16.gmra.mxu0 %v952
    %v1689 = vpop.f32.mrf.mxu0
    %v1690 = vadd.f32 %v1521, %v1689
    %v1691 = vpop.f32.mrf.mxu0
    %v1692 = vadd.f32 %v1523, %v1691
    %1693 = vmatmul.bf16.gmra.mxu0 %v957
    %v1694 = vpop.f32.mrf.mxu0
    %v1695 = vadd.f32 %v1526, %v1694
    %v1696 = vpop.f32.mrf.mxu0
    %v1697 = vadd.f32 %v1528, %v1696
    %1698 = vmatmul.bf16.gmra.mxu0 %v962
    %v1699 = vpop.f32.mrf.mxu0
    %v1700 = vadd.f32 %v1531, %v1699
    %v1701 = vpop.f32.mrf.mxu0
    %v1702 = vadd.f32 %v1533, %v1701
    %1703 = vdwg.mxu0
    %1704 = vmatpush.bf16.msra.mxu0 %v1309
    %1705 = vmatpush.bf16.msra.mxu0 %v1308
    %1706 = vmatpush.bf16.msra.mxu0 %v1307
    %1707 = vmatpush.bf16.msra.mxu0 %v1306
    %1708 = vmatpush.bf16.msra.mxu0 %v1305
    %1709 = vmatpush.bf16.msra.mxu0 %v1304
    %1710 = vmatpush.bf16.msra.mxu0 %v1303
    %1711 = vmatpush.bf16.msra.mxu0 %v1302
    %1712 = vmatmul.bf16.gmra.mxu0 %v808
    %v1713 = vpop.f32.mrf.mxu0
    %v1714 = vadd.f32 %v1545, %v1713
    %v1715 = vpop.f32.mrf.mxu0
    %v1716 = vadd.f32 %v1547, %v1715
    %1717 = vmatmul.bf16.gmra.mxu0 %v813
    %v1718 = vpop.f32.mrf.mxu0
    %v1719 = vadd.f32 %v1550, %v1718
    %v1720 = vpop.f32.mrf.mxu0
    %v1721 = vadd.f32 %v1552, %v1720
    %1722 = vmatmul.bf16.gmra.mxu0 %v818
    %v1723 = vpop.f32.mrf.mxu0
    %v1724 = vadd.f32 %v1555, %v1723
    %v1725 = vpop.f32.mrf.mxu0
    %v1726 = vadd.f32 %v1557, %v1725
    %1727 = vmatmul.bf16.gmra.mxu0 %v823
    %v1728 = vpop.f32.mrf.mxu0
    %v1729 = vadd.f32 %v1560, %v1728
    %v1730 = vpop.f32.mrf.mxu0
    %v1731 = vadd.f32 %v1562, %v1730
    %1732 = vmatmul.bf16.gmra.mxu0 %v828
    %v1733 = vpop.f32.mrf.mxu0
    %v1734 = vadd.f32 %v1565, %v1733
    %v1735 = vpop.f32.mrf.mxu0
    %v1736 = vadd.f32 %v1567, %v1735
    %1737 = vmatmul.bf16.gmra.mxu0 %v833
    %v1738 = vpop.f32.mrf.mxu0
    %v1739 = vadd.f32 %v1570, %v1738
    %v1740 = vpop.f32.mrf.mxu0
    %v1741 = vadd.f32 %v1572, %v1740
    %1742 = vmatmul.bf16.gmra.mxu0 %v838
    %v1743 = vpop.f32.mrf.mxu0
    %v1744 = vadd.f32 %v1575, %v1743
    %v1745 = vpop.f32.mrf.mxu0
    %v1746 = vadd.f32 %v1577, %v1745
    %1747 = vmatmul.bf16.gmra.mxu0 %v843
    %v1748 = vpop.f32.mrf.mxu0
    %v1749 = vadd.f32 %v1580, %v1748
    %v1750 = vpop.f32.mrf.mxu0
    %v1751 = vadd.f32 %v1582, %v1750
    %1752 = vmatmul.bf16.gmra.mxu0 %v848
    %v1753 = vpop.f32.mrf.mxu0
    %v1754 = vadd.f32 %v1585, %v1753
    %v1755 = vpop.f32.mrf.mxu0
    %v1756 = vadd.f32 %v1587, %v1755
    %1757 = vmatmul.bf16.gmra.mxu0 %v853
    %v1758 = vpop.f32.mrf.mxu0
    %v1759 = vadd.f32 %v1590, %v1758
    %v1760 = vpop.f32.mrf.mxu0
    %v1761 = vadd.f32 %v1592, %v1760
    %1762 = vmatmul.bf16.gmra.mxu0 %v858
    %v1763 = vpop.f32.mrf.mxu0
    %v1764 = vadd.f32 %v1595, %v1763
    %v1765 = vpop.f32.mrf.mxu0
    %v1766 = vadd.f32 %v1597, %v1765
    %1767 = vmatmul.bf16.gmra.mxu0 %v863
    %v1768 = vpop.f32.mrf.mxu0
    %v1769 = vadd.f32 %v1600, %v1768
    %v1770 = vpop.f32.mrf.mxu0
    %v1771 = vadd.f32 %v1602, %v1770
    %1772 = vmatmul.bf16.gmra.mxu0 %v868
    %v1773 = vpop.f32.mrf.mxu0
    %v1774 = vadd.f32 %v1605, %v1773
    %v1775 = vpop.f32.mrf.mxu0
    %v1776 = vadd.f32 %v1607, %v1775
    %1777 = vmatmul.bf16.gmra.mxu0 %v873
    %v1778 = vpop.f32.mrf.mxu0
    %v1779 = vadd.f32 %v1610, %v1778
    %v1780 = vpop.f32.mrf.mxu0
    %v1781 = vadd.f32 %v1612, %v1780
    %1782 = vmatmul.bf16.gmra.mxu0 %v878
    %v1783 = vpop.f32.mrf.mxu0
    %v1784 = vadd.f32 %v1615, %v1783
    %v1785 = vpop.f32.mrf.mxu0
    %v1786 = vadd.f32 %v1617, %v1785
    %1787 = vmatmul.bf16.gmra.mxu0 %v883
    %v1788 = vpop.f32.mrf.mxu0
    %v1789 = vadd.f32 %v1620, %v1788
    %v1790 = vpop.f32.mrf.mxu0
    %v1791 = vadd.f32 %v1622, %v1790
    %1792 = vmatmul.bf16.gmra.mxu0 %v888
    %v1793 = vpop.f32.mrf.mxu0
    %v1794 = vadd.f32 %v1625, %v1793
    %v1795 = vpop.f32.mrf.mxu0
    %v1796 = vadd.f32 %v1627, %v1795
    %1797 = vmatmul.bf16.gmra.mxu0 %v893
    %v1798 = vpop.f32.mrf.mxu0
    %v1799 = vadd.f32 %v1630, %v1798
    %v1800 = vpop.f32.mrf.mxu0
    %v1801 = vadd.f32 %v1632, %v1800
    %1802 = vmatmul.bf16.gmra.mxu0 %v898
    %v1803 = vpop.f32.mrf.mxu0
    %v1804 = vadd.f32 %v1635, %v1803
    %v1805 = vpop.f32.mrf.mxu0
    %v1806 = vadd.f32 %v1637, %v1805
    %1807 = vmatmul.bf16.gmra.mxu0 %v903
    %v1808 = vpop.f32.mrf.mxu0
    %v1809 = vadd.f32 %v1640, %v1808
    %v1810 = vpop.f32.mrf.mxu0
    %v1811 = vadd.f32 %v1642, %v1810
    %1812 = vmatmul.bf16.gmra.mxu0 %v908
    %v1813 = vpop.f32.mrf.mxu0
    %v1814 = vadd.f32 %v1645, %v1813
    %v1815 = vpop.f32.mrf.mxu0
    %v1816 = vadd.f32 %v1647, %v1815
    %1817 = vmatmul.bf16.gmra.mxu0 %v913
    %v1818 = vpop.f32.mrf.mxu0
    %v1819 = vadd.f32 %v1650, %v1818
    %v1820 = vpop.f32.mrf.mxu0
    %v1821 = vadd.f32 %v1652, %v1820
    %1822 = vmatmul.bf16.gmra.mxu0 %v918
    %v1823 = vpop.f32.mrf.mxu0
    %v1824 = vadd.f32 %v1655, %v1823
    %v1825 = vpop.f32.mrf.mxu0
    %v1826 = vadd.f32 %v1657, %v1825
    %1827 = vmatmul.bf16.gmra.mxu0 %v923
    %v1828 = vpop.f32.mrf.mxu0
    %v1829 = vadd.f32 %v1660, %v1828
    %v1830 = vpop.f32.mrf.mxu0
    %v1831 = vadd.f32 %v1662, %v1830
    %1832 = vmatmul.bf16.gmra.mxu0 %v928
    %v1833 = vpop.f32.mrf.mxu0
    %v1834 = vadd.f32 %v1665, %v1833
    %v1835 = vpop.f32.mrf.mxu0
    %v1836 = vadd.f32 %v1667, %v1835
    %1837 = vmatmul.bf16.gmra.mxu0 %v933
    %v1838 = vpop.f32.mrf.mxu0
    %v1839 = vadd.f32 %v1670, %v1838
    %v1840 = vpop.f32.mrf.mxu0
    %v1841 = vadd.f32 %v1672, %v1840
    %1842 = vmatmul.bf16.gmra.mxu0 %v938
    %v1843 = vpop.f32.mrf.mxu0
    %v1844 = vadd.f32 %v1675, %v1843
    %v1845 = vpop.f32.mrf.mxu0
    %v1846 = vadd.f32 %v1677, %v1845
    %1847 = vmatmul.bf16.gmra.mxu0 %v943
    %v1848 = vpop.f32.mrf.mxu0
    %v1849 = vadd.f32 %v1680, %v1848
    %v1850 = vpop.f32.mrf.mxu0
    %v1851 = vadd.f32 %v1682, %v1850
    %1852 = vmatmul.bf16.gmra.mxu0 %v948
    %v1853 = vpop.f32.mrf.mxu0
    %v1854 = vadd.f32 %v1685, %v1853
    %v1855 = vpop.f32.mrf.mxu0
    %v1856 = vadd.f32 %v1687, %v1855
    %1857 = vmatmul.bf16.gmra.mxu0 %v953
    %v1858 = vpop.f32.mrf.mxu0
    %v1859 = vadd.f32 %v1690, %v1858
    %v1860 = vpop.f32.mrf.mxu0
    %v1861 = vadd.f32 %v1692, %v1860
    %1862 = vmatmul.bf16.gmra.mxu0 %v958
    %v1863 = vpop.f32.mrf.mxu0
    %v1864 = vadd.f32 %v1695, %v1863
    %v1865 = vpop.f32.mrf.mxu0
    %v1866 = vadd.f32 %v1697, %v1865
    %1867 = vmatmul.bf16.gmra.mxu0 %v963
    %v1868 = vpop.f32.mrf.mxu0
    %v1869 = vadd.f32 %v1700, %v1868
    %v1870 = vpop.f32.mrf.mxu0
    %v1871 = vadd.f32 %v1702, %v1870
    %1872 = vdwg.mxu0
    %1873 = vmatpush.bf16.msra.mxu0 %v1317
    %1874 = vmatpush.bf16.msra.mxu0 %v1316
    %1875 = vmatpush.bf16.msra.mxu0 %v1315
    %1876 = vmatpush.bf16.msra.mxu0 %v1314
    %1877 = vmatpush.bf16.msra.mxu0 %v1313
    %1878 = vmatpush.bf16.msra.mxu0 %v1312
    %1879 = vmatpush.bf16.msra.mxu0 %v1311
    %1880 = vmatpush.bf16.msra.mxu0 %v1310
    %1881 = vmatmul.bf16.gmra.mxu0 %v809
    %v1882 = vpop.f32.mrf.mxu0
    %v1883 = vadd.f32 %v1714, %v1882
    %v1884 = vpop.f32.mrf.mxu0
    %v1885 = vadd.f32 %v1716, %v1884
    %1886 = vmatmul.bf16.gmra.mxu0 %v814
    %v1887 = vpop.f32.mrf.mxu0
    %v1888 = vadd.f32 %v1719, %v1887
    %v1889 = vpop.f32.mrf.mxu0
    %v1890 = vadd.f32 %v1721, %v1889
    %1891 = vmatmul.bf16.gmra.mxu0 %v819
    %v1892 = vpop.f32.mrf.mxu0
    %v1893 = vadd.f32 %v1724, %v1892
    %v1894 = vpop.f32.mrf.mxu0
    %v1895 = vadd.f32 %v1726, %v1894
    %1896 = vmatmul.bf16.gmra.mxu0 %v824
    %v1897 = vpop.f32.mrf.mxu0
    %v1898 = vadd.f32 %v1729, %v1897
    %v1899 = vpop.f32.mrf.mxu0
    %v1900 = vadd.f32 %v1731, %v1899
    %1901 = vmatmul.bf16.gmra.mxu0 %v829
    %v1902 = vpop.f32.mrf.mxu0
    %v1903 = vadd.f32 %v1734, %v1902
    %v1904 = vpop.f32.mrf.mxu0
    %v1905 = vadd.f32 %v1736, %v1904
    %1906 = vmatmul.bf16.gmra.mxu0 %v834
    %v1907 = vpop.f32.mrf.mxu0
    %v1908 = vadd.f32 %v1739, %v1907
    %v1909 = vpop.f32.mrf.mxu0
    %v1910 = vadd.f32 %v1741, %v1909
    %1911 = vmatmul.bf16.gmra.mxu0 %v839
    %v1912 = vpop.f32.mrf.mxu0
    %v1913 = vadd.f32 %v1744, %v1912
    %v1914 = vpop.f32.mrf.mxu0
    %v1915 = vadd.f32 %v1746, %v1914
    %1916 = vmatmul.bf16.gmra.mxu0 %v844
    %v1917 = vpop.f32.mrf.mxu0
    %v1918 = vadd.f32 %v1749, %v1917
    %v1919 = vpop.f32.mrf.mxu0
    %v1920 = vadd.f32 %v1751, %v1919
    %1921 = vmatmul.bf16.gmra.mxu0 %v849
    %v1922 = vpop.f32.mrf.mxu0
    %v1923 = vadd.f32 %v1754, %v1922
    %v1924 = vpop.f32.mrf.mxu0
    %v1925 = vadd.f32 %v1756, %v1924
    %1926 = vmatmul.bf16.gmra.mxu0 %v854
    %v1927 = vpop.f32.mrf.mxu0
    %v1928 = vadd.f32 %v1759, %v1927
    %v1929 = vpop.f32.mrf.mxu0
    %v1930 = vadd.f32 %v1761, %v1929
    %1931 = vmatmul.bf16.gmra.mxu0 %v859
    %v1932 = vpop.f32.mrf.mxu0
    %v1933 = vadd.f32 %v1764, %v1932
    %v1934 = vpop.f32.mrf.mxu0
    %v1935 = vadd.f32 %v1766, %v1934
    %1936 = vmatmul.bf16.gmra.mxu0 %v864
    %v1937 = vpop.f32.mrf.mxu0
    %v1938 = vadd.f32 %v1769, %v1937
    %v1939 = vpop.f32.mrf.mxu0
    %v1940 = vadd.f32 %v1771, %v1939
    %1941 = vmatmul.bf16.gmra.mxu0 %v869
    %v1942 = vpop.f32.mrf.mxu0
    %v1943 = vadd.f32 %v1774, %v1942
    %v1944 = vpop.f32.mrf.mxu0
    %v1945 = vadd.f32 %v1776, %v1944
    %1946 = vmatmul.bf16.gmra.mxu0 %v874
    %v1947 = vpop.f32.mrf.mxu0
    %v1948 = vadd.f32 %v1779, %v1947
    %v1949 = vpop.f32.mrf.mxu0
    %v1950 = vadd.f32 %v1781, %v1949
    %1951 = vmatmul.bf16.gmra.mxu0 %v879
    %v1952 = vpop.f32.mrf.mxu0
    %v1953 = vadd.f32 %v1784, %v1952
    %v1954 = vpop.f32.mrf.mxu0
    %v1955 = vadd.f32 %v1786, %v1954
    %1956 = vmatmul.bf16.gmra.mxu0 %v884
    %v1957 = vpop.f32.mrf.mxu0
    %v1958 = vadd.f32 %v1789, %v1957
    %v1959 = vpop.f32.mrf.mxu0
    %v1960 = vadd.f32 %v1791, %v1959
    %1961 = vmatmul.bf16.gmra.mxu0 %v889
    %v1962 = vpop.f32.mrf.mxu0
    %v1963 = vadd.f32 %v1794, %v1962
    %v1964 = vpop.f32.mrf.mxu0
    %v1965 = vadd.f32 %v1796, %v1964
    %1966 = vmatmul.bf16.gmra.mxu0 %v894
    %v1967 = vpop.f32.mrf.mxu0
    %v1968 = vadd.f32 %v1799, %v1967
    %v1969 = vpop.f32.mrf.mxu0
    %v1970 = vadd.f32 %v1801, %v1969
    %1971 = vmatmul.bf16.gmra.mxu0 %v899
    %v1972 = vpop.f32.mrf.mxu0
    %v1973 = vadd.f32 %v1804, %v1972
    %v1974 = vpop.f32.mrf.mxu0
    %v1975 = vadd.f32 %v1806, %v1974
    %1976 = vmatmul.bf16.gmra.mxu0 %v904
    %v1977 = vpop.f32.mrf.mxu0
    %v1978 = vadd.f32 %v1809, %v1977
    %v1979 = vpop.f32.mrf.mxu0
    %v1980 = vadd.f32 %v1811, %v1979
    %1981 = vmatmul.bf16.gmra.mxu0 %v909
    %v1982 = vpop.f32.mrf.mxu0
    %v1983 = vadd.f32 %v1814, %v1982
    %v1984 = vpop.f32.mrf.mxu0
    %v1985 = vadd.f32 %v1816, %v1984
    %1986 = vmatmul.bf16.gmra.mxu0 %v914
    %v1987 = vpop.f32.mrf.mxu0
    %v1988 = vadd.f32 %v1819, %v1987
    %v1989 = vpop.f32.mrf.mxu0
    %v1990 = vadd.f32 %v1821, %v1989
    %1991 = vmatmul.bf16.gmra.mxu0 %v919
    %v1992 = vpop.f32.mrf.mxu0
    %v1993 = vadd.f32 %v1824, %v1992
    %v1994 = vpop.f32.mrf.mxu0
    %v1995 = vadd.f32 %v1826, %v1994
    %1996 = vmatmul.bf16.gmra.mxu0 %v924
    %v1997 = vpop.f32.mrf.mxu0
    %v1998 = vadd.f32 %v1829, %v1997
    %v1999 = vpop.f32.mrf.mxu0
    %v2000 = vadd.f32 %v1831, %v1999
    %2001 = vmatmul.bf16.gmra.mxu0 %v929
    %v2002 = vpop.f32.mrf.mxu0
    %v2003 = vadd.f32 %v1834, %v2002
    %v2004 = vpop.f32.mrf.mxu0
    %v2005 = vadd.f32 %v1836, %v2004
    %2006 = vmatmul.bf16.gmra.mxu0 %v934
    %v2007 = vpop.f32.mrf.mxu0
    %v2008 = vadd.f32 %v1839, %v2007
    %v2009 = vpop.f32.mrf.mxu0
    %v2010 = vadd.f32 %v1841, %v2009
    %2011 = vmatmul.bf16.gmra.mxu0 %v939
    %v2012 = vpop.f32.mrf.mxu0
    %v2013 = vadd.f32 %v1844, %v2012
    %v2014 = vpop.f32.mrf.mxu0
    %v2015 = vadd.f32 %v1846, %v2014
    %2016 = vmatmul.bf16.gmra.mxu0 %v944
    %v2017 = vpop.f32.mrf.mxu0
    %v2018 = vadd.f32 %v1849, %v2017
    %v2019 = vpop.f32.mrf.mxu0
    %v2020 = vadd.f32 %v1851, %v2019
    %2021 = vmatmul.bf16.gmra.mxu0 %v949
    %v2022 = vpop.f32.mrf.mxu0
    %v2023 = vadd.f32 %v1854, %v2022
    %v2024 = vpop.f32.mrf.mxu0
    %v2025 = vadd.f32 %v1856, %v2024
    %2026 = vmatmul.bf16.gmra.mxu0 %v954
    %v2027 = vpop.f32.mrf.mxu0
    %v2028 = vadd.f32 %v1859, %v2027
    %v2029 = vpop.f32.mrf.mxu0
    %v2030 = vadd.f32 %v1861, %v2029
    %2031 = vmatmul.bf16.gmra.mxu0 %v959
    %v2032 = vpop.f32.mrf.mxu0
    %v2033 = vadd.f32 %v1864, %v2032
    %v2034 = vpop.f32.mrf.mxu0
    %v2035 = vadd.f32 %v1866, %v2034
    %2036 = vmatmul.bf16.gmra.mxu0 %v964
    %v2037 = vpop.f32.mrf.mxu0
    %v2038 = vadd.f32 %v1869, %v2037
    %v2039 = vpop.f32.mrf.mxu0
    %v2040 = vadd.f32 %v1871, %v2039
    %2041 = vdwg.mxu0
    %2042 = vmatpush.bf16.msra.mxu0 %v1325
    %2043 = vmatpush.bf16.msra.mxu0 %v1324
    %2044 = vmatpush.bf16.msra.mxu0 %v1323
    %2045 = vmatpush.bf16.msra.mxu0 %v1322
    %2046 = vmatpush.bf16.msra.mxu0 %v1321
    %2047 = vmatpush.bf16.msra.mxu0 %v1320
    %2048 = vmatpush.bf16.msra.mxu0 %v1319
    %2049 = vmatpush.bf16.msra.mxu0 %v1318
    %2050 = vmatmul.bf16.gmra.mxu0 %v810
    %v2051 = vpop.f32.mrf.mxu0
    %v2052 = vadd.f32 %v1883, %v2051
    %v2053 = vpop.f32.mrf.mxu0
    %v2054 = vadd.f32 %v1885, %v2053
    %2055 = vmatmul.bf16.gmra.mxu0 %v815
    %v2056 = vpop.f32.mrf.mxu0
    %v2057 = vadd.f32 %v1888, %v2056
    %v2058 = vpop.f32.mrf.mxu0
    %v2059 = vadd.f32 %v1890, %v2058
    %2060 = vmatmul.bf16.gmra.mxu0 %v820
    %v2061 = vpop.f32.mrf.mxu0
    %v2062 = vadd.f32 %v1893, %v2061
    %v2063 = vpop.f32.mrf.mxu0
    %v2064 = vadd.f32 %v1895, %v2063
    %2065 = vmatmul.bf16.gmra.mxu0 %v825
    %v2066 = vpop.f32.mrf.mxu0
    %v2067 = vadd.f32 %v1898, %v2066
    %v2068 = vpop.f32.mrf.mxu0
    %v2069 = vadd.f32 %v1900, %v2068
    %2070 = vmatmul.bf16.gmra.mxu0 %v830
    %v2071 = vpop.f32.mrf.mxu0
    %v2072 = vadd.f32 %v1903, %v2071
    %v2073 = vpop.f32.mrf.mxu0
    %v2074 = vadd.f32 %v1905, %v2073
    %2075 = vmatmul.bf16.gmra.mxu0 %v835
    %v2076 = vpop.f32.mrf.mxu0
    %v2077 = vadd.f32 %v1908, %v2076
    %v2078 = vpop.f32.mrf.mxu0
    %v2079 = vadd.f32 %v1910, %v2078
    %2080 = vmatmul.bf16.gmra.mxu0 %v840
    %v2081 = vpop.f32.mrf.mxu0
    %v2082 = vadd.f32 %v1913, %v2081
    %v2083 = vpop.f32.mrf.mxu0
    %v2084 = vadd.f32 %v1915, %v2083
    %2085 = vmatmul.bf16.gmra.mxu0 %v845
    %v2086 = vpop.f32.mrf.mxu0
    %v2087 = vadd.f32 %v1918, %v2086
    %v2088 = vpop.f32.mrf.mxu0
    %v2089 = vadd.f32 %v1920, %v2088
    %2090 = vmatmul.bf16.gmra.mxu0 %v850
    %v2091 = vpop.f32.mrf.mxu0
    %v2092 = vadd.f32 %v1923, %v2091
    %v2093 = vpop.f32.mrf.mxu0
    %v2094 = vadd.f32 %v1925, %v2093
    %2095 = vmatmul.bf16.gmra.mxu0 %v855
    %v2096 = vpop.f32.mrf.mxu0
    %v2097 = vadd.f32 %v1928, %v2096
    %v2098 = vpop.f32.mrf.mxu0
    %v2099 = vadd.f32 %v1930, %v2098
    %2100 = vmatmul.bf16.gmra.mxu0 %v860
    %v2101 = vpop.f32.mrf.mxu0
    %v2102 = vadd.f32 %v1933, %v2101
    %v2103 = vpop.f32.mrf.mxu0
    %v2104 = vadd.f32 %v1935, %v2103
    %2105 = vmatmul.bf16.gmra.mxu0 %v865
    %v2106 = vpop.f32.mrf.mxu0
    %v2107 = vadd.f32 %v1938, %v2106
    %v2108 = vpop.f32.mrf.mxu0
    %v2109 = vadd.f32 %v1940, %v2108
    %2110 = vmatmul.bf16.gmra.mxu0 %v870
    %v2111 = vpop.f32.mrf.mxu0
    %v2112 = vadd.f32 %v1943, %v2111
    %v2113 = vpop.f32.mrf.mxu0
    %v2114 = vadd.f32 %v1945, %v2113
    %2115 = vmatmul.bf16.gmra.mxu0 %v875
    %v2116 = vpop.f32.mrf.mxu0
    %v2117 = vadd.f32 %v1948, %v2116
    %v2118 = vpop.f32.mrf.mxu0
    %v2119 = vadd.f32 %v1950, %v2118
    %2120 = vmatmul.bf16.gmra.mxu0 %v880
    %v2121 = vpop.f32.mrf.mxu0
    %v2122 = vadd.f32 %v1953, %v2121
    %v2123 = vpop.f32.mrf.mxu0
    %v2124 = vadd.f32 %v1955, %v2123
    %2125 = vmatmul.bf16.gmra.mxu0 %v885
    %v2126 = vpop.f32.mrf.mxu0
    %v2127 = vadd.f32 %v1958, %v2126
    %v2128 = vpop.f32.mrf.mxu0
    %v2129 = vadd.f32 %v1960, %v2128
    %2130 = vmatmul.bf16.gmra.mxu0 %v890
    %v2131 = vpop.f32.mrf.mxu0
    %v2132 = vadd.f32 %v1963, %v2131
    %v2133 = vpop.f32.mrf.mxu0
    %v2134 = vadd.f32 %v1965, %v2133
    %2135 = vmatmul.bf16.gmra.mxu0 %v895
    %v2136 = vpop.f32.mrf.mxu0
    %v2137 = vadd.f32 %v1968, %v2136
    %v2138 = vpop.f32.mrf.mxu0
    %v2139 = vadd.f32 %v1970, %v2138
    %2140 = vmatmul.bf16.gmra.mxu0 %v900
    %v2141 = vpop.f32.mrf.mxu0
    %v2142 = vadd.f32 %v1973, %v2141
    %v2143 = vpop.f32.mrf.mxu0
    %v2144 = vadd.f32 %v1975, %v2143
    %2145 = vmatmul.bf16.gmra.mxu0 %v905
    %v2146 = vpop.f32.mrf.mxu0
    %v2147 = vadd.f32 %v1978, %v2146
    %v2148 = vpop.f32.mrf.mxu0
    %v2149 = vadd.f32 %v1980, %v2148
    %2150 = vmatmul.bf16.gmra.mxu0 %v910
    %v2151 = vpop.f32.mrf.mxu0
    %v2152 = vadd.f32 %v1983, %v2151
    %v2153 = vpop.f32.mrf.mxu0
    %v2154 = vadd.f32 %v1985, %v2153
    %2155 = vmatmul.bf16.gmra.mxu0 %v915
    %v2156 = vpop.f32.mrf.mxu0
    %v2157 = vadd.f32 %v1988, %v2156
    %v2158 = vpop.f32.mrf.mxu0
    %v2159 = vadd.f32 %v1990, %v2158
    %2160 = vmatmul.bf16.gmra.mxu0 %v920
    %v2161 = vpop.f32.mrf.mxu0
    %v2162 = vadd.f32 %v1993, %v2161
    %v2163 = vpop.f32.mrf.mxu0
    %v2164 = vadd.f32 %v1995, %v2163
    %2165 = vmatmul.bf16.gmra.mxu0 %v925
    %v2166 = vpop.f32.mrf.mxu0
    %v2167 = vadd.f32 %v1998, %v2166
    %v2168 = vpop.f32.mrf.mxu0
    %v2169 = vadd.f32 %v2000, %v2168
    %2170 = vmatmul.bf16.gmra.mxu0 %v930
    %v2171 = vpop.f32.mrf.mxu0
    %v2172 = vadd.f32 %v2003, %v2171
    %v2173 = vpop.f32.mrf.mxu0
    %v2174 = vadd.f32 %v2005, %v2173
    %2175 = vmatmul.bf16.gmra.mxu0 %v935
    %v2176 = vpop.f32.mrf.mxu0
    %v2177 = vadd.f32 %v2008, %v2176
    %v2178 = vpop.f32.mrf.mxu0
    %v2179 = vadd.f32 %v2010, %v2178
    %2180 = vmatmul.bf16.gmra.mxu0 %v940
    %v2181 = vpop.f32.mrf.mxu0
    %v2182 = vadd.f32 %v2013, %v2181
    %v2183 = vpop.f32.mrf.mxu0
    %v2184 = vadd.f32 %v2015, %v2183
    %2185 = vmatmul.bf16.gmra.mxu0 %v945
    %v2186 = vpop.f32.mrf.mxu0
    %v2187 = vadd.f32 %v2018, %v2186
    %v2188 = vpop.f32.mrf.mxu0
    %v2189 = vadd.f32 %v2020, %v2188
    %2190 = vmatmul.bf16.gmra.mxu0 %v950
    %v2191 = vpop.f32.mrf.mxu0
    %v2192 = vadd.f32 %v2023, %v2191
    %v2193 = vpop.f32.mrf.mxu0
    %v2194 = vadd.f32 %v2025, %v2193
    %2195 = vmatmul.bf16.gmra.mxu0 %v955
    %v2196 = vpop.f32.mrf.mxu0
    %v2197 = vadd.f32 %v2028, %v2196
    %v2198 = vpop.f32.mrf.mxu0
    %v2199 = vadd.f32 %v2030, %v2198
    %2200 = vmatmul.bf16.gmra.mxu0 %v960
    %v2201 = vpop.f32.mrf.mxu0
    %v2202 = vadd.f32 %v2033, %v2201
    %v2203 = vpop.f32.mrf.mxu0
    %v2204 = vadd.f32 %v2035, %v2203
    %2205 = vmatmul.bf16.gmra.mxu0 %v965
    %v2206 = vpop.f32.mrf.mxu0
    %v2207 = vadd.f32 %v2038, %v2206
    %v2208 = vpop.f32.mrf.mxu0
    %v2209 = vadd.f32 %v2040, %v2208
    %2210 = vdwg.mxu0
    %v2211 = vld [vmem:[%s3] sm:$0xf]
    %v2212 = vld [vmem:[%s3 + $0x4] sm:$0xf]
    %v2213 = vld [vmem:[%s3 + $0x8] sm:$0xf]
    %v2214 = vld [vmem:[%s3 + $0xc] sm:$0xf]
    %v2215 = vld [vmem:[%s3 + $0x10] sm:$0xf]
    %v2216 = vld [vmem:[%s3 + $0x14] sm:$0xf]
    %v2217 = vld [vmem:[%s3 + $0x18] sm:$0xf]
    %v2218 = vld [vmem:[%s3 + $0x1c] sm:$0xf]
    %v2219 = vld [vmem:[%s3 + $0x20] sm:$0xf]
    %v2220 = vld [vmem:[%s3 + $0x24] sm:$0xf]
    %v2221 = vld [vmem:[%s3 + $0x28] sm:$0xf]
    %v2222 = vld [vmem:[%s3 + $0x2c] sm:$0xf]
    %v2223 = vld [vmem:[%s3 + $0x30] sm:$0xf]
    %v2224 = vld [vmem:[%s3 + $0x34] sm:$0xf]
    %v2225 = vld [vmem:[%s3 + $0x38] sm:$0xf]
    %v2226 = vld [vmem:[%s3 + $0x3c] sm:$0xf]
    %v2227 = vld [vmem:[%s3 + $0x40] sm:$0xf]
    %v2228 = vld [vmem:[%s3 + $0x44] sm:$0xf]
    %v2229 = vld [vmem:[%s3 + $0x48] sm:$0xf]
    %v2230 = vld [vmem:[%s3 + $0x4c] sm:$0xf]
    %v2231 = vld [vmem:[%s3 + $0x50] sm:$0xf]
    %v2232 = vld [vmem:[%s3 + $0x54] sm:$0xf]
    %v2233 = vld [vmem:[%s3 + $0x58] sm:$0xf]
    %v2234 = vld [vmem:[%s3 + $0x5c] sm:$0xf]
    %v2235 = vld [vmem:[%s3 + $0x60] sm:$0xf]
    %v2236 = vld [vmem:[%s3 + $0x64] sm:$0xf]
    %v2237 = vld [vmem:[%s3 + $0x68] sm:$0xf]
    %v2238 = vld [vmem:[%s3 + $0x6c] sm:$0xf]
    %v2239 = vld [vmem:[%s3 + $0x70] sm:$0xf]
    %v2240 = vld [vmem:[%s3 + $0x74] sm:$0xf]
    %v2241 = vld [vmem:[%s3 + $0x78] sm:$0xf]
    %v2242 = vld [vmem:[%s3 + $0x7c] sm:$0xf]
    %v2243 = vld [vmem:[%s3 + $0x80] sm:$0xf]
    %v2244 = vld [vmem:[%s3 + $0x84] sm:$0xf]
    %v2245 = vld [vmem:[%s3 + $0x88] sm:$0xf]
    %v2246 = vld [vmem:[%s3 + $0x8c] sm:$0xf]
    %v2247 = vld [vmem:[%s3 + $0x90] sm:$0xf]
    %v2248 = vld [vmem:[%s3 + $0x94] sm:$0xf]
    %v2249 = vld [vmem:[%s3 + $0x98] sm:$0xf]
    %v2250 = vld [vmem:[%s3 + $0x9c] sm:$0xf]
    %v2251 = vld [vmem:[%s3 + $0xa0] sm:$0xf]
    %v2252 = vld [vmem:[%s3 + $0xa4] sm:$0xf]
    %v2253 = vld [vmem:[%s3 + $0xa8] sm:$0xf]
    %v2254 = vld [vmem:[%s3 + $0xac] sm:$0xf]
    %v2255 = vld [vmem:[%s3 + $0xb0] sm:$0xf]
    %v2256 = vld [vmem:[%s3 + $0xb4] sm:$0xf]
    %v2257 = vld [vmem:[%s3 + $0xb8] sm:$0xf]
    %v2258 = vld [vmem:[%s3 + $0xbc] sm:$0xf]
    %v2259 = vld [vmem:[%s3 + $0xc0] sm:$0xf]
    %v2260 = vld [vmem:[%s3 + $0xc4] sm:$0xf]
    %v2261 = vld [vmem:[%s3 + $0xc8] sm:$0xf]
    %v2262 = vld [vmem:[%s3 + $0xcc] sm:$0xf]
    %v2263 = vld [vmem:[%s3 + $0xd0] sm:$0xf]
    %v2264 = vld [vmem:[%s3 + $0xd4] sm:$0xf]
    %v2265 = vld [vmem:[%s3 + $0xd8] sm:$0xf]
    %v2266 = vld [vmem:[%s3 + $0xdc] sm:$0xf]
    %v2267 = vld [vmem:[%s3 + $0xe0] sm:$0xf]
    %v2268 = vld [vmem:[%s3 + $0xe4] sm:$0xf]
    %v2269 = vld [vmem:[%s3 + $0xe8] sm:$0xf]
    %v2270 = vld [vmem:[%s3 + $0xec] sm:$0xf]
    %v2271 = vld [vmem:[%s3 + $0xf0] sm:$0xf]
    %v2272 = vld [vmem:[%s3 + $0xf4] sm:$0xf]
    %v2273 = vld [vmem:[%s3 + $0xf8] sm:$0xf]
    %v2274 = vld [vmem:[%s3 + $0xfc] sm:$0xf]
    %v2275 = vunpack.c.l.bf16 %v2211
    %v2276 = vunpack.c.l.bf16 %v2212
    %v2277 = vunpack.c.l.bf16 %v2213
    %v2278 = vunpack.c.l.bf16 %v2214
    %v2279 = vunpack.c.l.bf16 %v2215
    %v2280 = vunpack.c.l.bf16 %v2216
    %v2281 = vunpack.c.l.bf16 %v2217
    %v2282 = vunpack.c.l.bf16 %v2218
    %v2283 = vunpack.c.l.bf16 %v2219
    %v2284 = vunpack.c.l.bf16 %v2220
    %v2285 = vunpack.c.l.bf16 %v2221
    %v2286 = vunpack.c.l.bf16 %v2222
    %v2287 = vunpack.c.l.bf16 %v2223
    %v2288 = vunpack.c.l.bf16 %v2224
    %v2289 = vunpack.c.l.bf16 %v2225
    %v2290 = vunpack.c.l.bf16 %v2226
    %v2291 = vunpack.c.l.bf16 %v2227
    %v2292 = vunpack.c.l.bf16 %v2228
    %v2293 = vunpack.c.l.bf16 %v2229
    %v2294 = vunpack.c.l.bf16 %v2230
    %v2295 = vunpack.c.l.bf16 %v2231
    %v2296 = vunpack.c.l.bf16 %v2232
    %v2297 = vunpack.c.l.bf16 %v2233
    %v2298 = vunpack.c.l.bf16 %v2234
    %v2299 = vunpack.c.l.bf16 %v2235
    %v2300 = vunpack.c.l.bf16 %v2236
    %v2301 = vunpack.c.l.bf16 %v2237
    %v2302 = vunpack.c.l.bf16 %v2238
    %v2303 = vunpack.c.l.bf16 %v2239
    %v2304 = vunpack.c.l.bf16 %v2240
    %v2305 = vunpack.c.l.bf16 %v2241
    %v2306 = vunpack.c.l.bf16 %v2242
    %v2307 = vunpack.c.l.bf16 %v2243
    %v2308 = vunpack.c.l.bf16 %v2244
    %v2309 = vunpack.c.l.bf16 %v2245
    %v2310 = vunpack.c.l.bf16 %v2246
    %v2311 = vunpack.c.l.bf16 %v2247
    %v2312 = vunpack.c.l.bf16 %v2248
    %v2313 = vunpack.c.l.bf16 %v2249
    %v2314 = vunpack.c.l.bf16 %v2250
    %v2315 = vunpack.c.l.bf16 %v2251
    %v2316 = vunpack.c.l.bf16 %v2252
    %v2317 = vunpack.c.l.bf16 %v2253
    %v2318 = vunpack.c.l.bf16 %v2254
    %v2319 = vunpack.c.l.bf16 %v2255
    %v2320 = vunpack.c.l.bf16 %v2256
    %v2321 = vunpack.c.l.bf16 %v2257
    %v2322 = vunpack.c.l.bf16 %v2258
    %v2323 = vunpack.c.l.bf16 %v2259
    %v2324 = vunpack.c.l.bf16 %v2260
    %v2325 = vunpack.c.l.bf16 %v2261
    %v2326 = vunpack.c.l.bf16 %v2262
    %v2327 = vunpack.c.l.bf16 %v2263
    %v2328 = vunpack.c.l.bf16 %v2264
    %v2329 = vunpack.c.l.bf16 %v2265
    %v2330 = vunpack.c.l.bf16 %v2266
    %v2331 = vunpack.c.l.bf16 %v2267
    %v2332 = vunpack.c.l.bf16 %v2268
    %v2333 = vunpack.c.l.bf16 %v2269
    %v2334 = vunpack.c.l.bf16 %v2270
    %v2335 = vunpack.c.l.bf16 %v2271
    %v2336 = vunpack.c.l.bf16 %v2272
    %v2337 = vunpack.c.l.bf16 %v2273
    %v2338 = vunpack.c.l.bf16 %v2274
    %v2339 = vadd.f32 %v2052, %v2275
    %v2340 = vadd.f32 %v2054, %v2276
    %v2341 = vadd.f32 %v2057, %v2277
    %v2342 = vadd.f32 %v2059, %v2278
    %v2343 = vadd.f32 %v2062, %v2279
    %v2344 = vadd.f32 %v2064, %v2280
    %v2345 = vadd.f32 %v2067, %v2281
    %v2346 = vadd.f32 %v2069, %v2282
    %v2347 = vadd.f32 %v2072, %v2283
    %v2348 = vadd.f32 %v2074, %v2284
    %v2349 = vadd.f32 %v2077, %v2285
    %v2350 = vadd.f32 %v2079, %v2286
    %v2351 = vadd.f32 %v2082, %v2287
    %v2352 = vadd.f32 %v2084, %v2288
    %v2353 = vadd.f32 %v2087, %v2289
    %v2354 = vadd.f32 %v2089, %v2290
    %v2355 = vadd.f32 %v2092, %v2291
    %v2356 = vadd.f32 %v2094, %v2292
    %v2357 = vadd.f32 %v2097, %v2293
    %v2358 = vadd.f32 %v2099, %v2294
    %v2359 = vadd.f32 %v2102, %v2295
    %v2360 = vadd.f32 %v2104, %v2296
    %v2361 = vadd.f32 %v2107, %v2297
    %v2362 = vadd.f32 %v2109, %v2298
    %v2363 = vadd.f32 %v2112, %v2299
    %v2364 = vadd.f32 %v2114, %v2300
    %v2365 = vadd.f32 %v2117, %v2301
    %v2366 = vadd.f32 %v2119, %v2302
    %v2367 = vadd.f32 %v2122, %v2303
    %v2368 = vadd.f32 %v2124, %v2304
    %v2369 = vadd.f32 %v2127, %v2305
    %v2370 = vadd.f32 %v2129, %v2306
    %v2371 = vadd.f32 %v2132, %v2307
    %v2372 = vadd.f32 %v2134, %v2308
    %v2373 = vadd.f32 %v2137, %v2309
    %v2374 = vadd.f32 %v2139, %v2310
    %v2375 = vadd.f32 %v2142, %v2311
    %v2376 = vadd.f32 %v2144, %v2312
    %v2377 = vadd.f32 %v2147, %v2313
    %v2378 = vadd.f32 %v2149, %v2314
    %v2379 = vadd.f32 %v2152, %v2315
    %v2380 = vadd.f32 %v2154, %v2316
    %v2381 = vadd.f32 %v2157, %v2317
    %v2382 = vadd.f32 %v2159, %v2318
    %v2383 = vadd.f32 %v2162, %v2319
    %v2384 = vadd.f32 %v2164, %v2320
    %v2385 = vadd.f32 %v2167, %v2321
    %v2386 = vadd.f32 %v2169, %v2322
    %v2387 = vadd.f32 %v2172, %v2323
    %v2388 = vadd.f32 %v2174, %v2324
    %v2389 = vadd.f32 %v2177, %v2325
    %v2390 = vadd.f32 %v2179, %v2326
    %v2391 = vadd.f32 %v2182, %v2327
    %v2392 = vadd.f32 %v2184, %v2328
    %v2393 = vadd.f32 %v2187, %v2329
    %v2394 = vadd.f32 %v2189, %v2330
    %v2395 = vadd.f32 %v2192, %v2331
    %v2396 = vadd.f32 %v2194, %v2332
    %v2397 = vadd.f32 %v2197, %v2333
    %v2398 = vadd.f32 %v2199, %v2334
    %v2399 = vadd.f32 %v2202, %v2335
    %v2400 = vadd.f32 %v2204, %v2336
    %v2401 = vadd.f32 %v2207, %v2337
    %v2402 = vadd.f32 %v2209, %v2338
    %v2403 = vmax.f32 %v2339, 0.0
    %v2404 = vmax.f32 %v2340, 0.0
    %v2405 = vmax.f32 %v2341, 0.0
    %v2406 = vmax.f32 %v2342, 0.0
    %v2407 = vmax.f32 %v2343, 0.0
    %v2408 = vmax.f32 %v2344, 0.0
    %v2409 = vmax.f32 %v2345, 0.0
    %v2410 = vmax.f32 %v2346, 0.0
    %v2411 = vmax.f32 %v2347, 0.0
    %v2412 = vmax.f32 %v2348, 0.0
    %v2413 = vmax.f32 %v2349, 0.0
    %v2414 = vmax.f32 %v2350, 0.0
    %v2415 = vmax.f32 %v2351, 0.0
    %v2416 = vmax.f32 %v2352, 0.0
    %v2417 = vmax.f32 %v2353, 0.0
    %v2418 = vmax.f32 %v2354, 0.0
    %v2419 = vmax.f32 %v2355, 0.0
    %v2420 = vmax.f32 %v2356, 0.0
    %v2421 = vmax.f32 %v2357, 0.0
    %v2422 = vmax.f32 %v2358, 0.0
    %v2423 = vmax.f32 %v2359, 0.0
    %v2424 = vmax.f32 %v2360, 0.0
    %v2425 = vmax.f32 %v2361, 0.0
    %v2426 = vmax.f32 %v2362, 0.0
    %v2427 = vmax.f32 %v2363, 0.0
    %v2428 = vmax.f32 %v2364, 0.0
    %v2429 = vmax.f32 %v2365, 0.0
    %v2430 = vmax.f32 %v2366, 0.0
    %v2431 = vmax.f32 %v2367, 0.0
    %v2432 = vmax.f32 %v2368, 0.0
    %v2433 = vmax.f32 %v2369, 0.0
    %v2434 = vmax.f32 %v2370, 0.0
    %v2435 = vmax.f32 %v2371, 0.0
    %v2436 = vmax.f32 %v2372, 0.0
    %v2437 = vmax.f32 %v2373, 0.0
    %v2438 = vmax.f32 %v2374, 0.0
    %v2439 = vmax.f32 %v2375, 0.0
    %v2440 = vmax.f32 %v2376, 0.0
    %v2441 = vmax.f32 %v2377, 0.0
    %v2442 = vmax.f32 %v2378, 0.0
    %v2443 = vmax.f32 %v2379, 0.0
    %v2444 = vmax.f32 %v2380, 0.0
    %v2445 = vmax.f32 %v2381, 0.0
    %v2446 = vmax.f32 %v2382, 0.0
    %v2447 = vmax.f32 %v2383, 0.0
    %v2448 = vmax.f32 %v2384, 0.0
    %v2449 = vmax.f32 %v2385, 0.0
    %v2450 = vmax.f32 %v2386, 0.0
    %v2451 = vmax.f32 %v2387, 0.0
    %v2452 = vmax.f32 %v2388, 0.0
    %v2453 = vmax.f32 %v2389, 0.0
    %v2454 = vmax.f32 %v2390, 0.0
    %v2455 = vmax.f32 %v2391, 0.0
    %v2456 = vmax.f32 %v2392, 0.0
    %v2457 = vmax.f32 %v2393, 0.0
    %v2458 = vmax.f32 %v2394, 0.0
    %v2459 = vmax.f32 %v2395, 0.0
    %v2460 = vmax.f32 %v2396, 0.0
    %v2461 = vmax.f32 %v2397, 0.0
    %v2462 = vmax.f32 %v2398, 0.0
    %v2463 = vmax.f32 %v2399, 0.0
    %v2464 = vmax.f32 %v2400, 0.0
    %v2465 = vmax.f32 %v2401, 0.0
    %v2466 = vmax.f32 %v2402, 0.0
    %v2467 = vpack.c.bf16 %v2403, %v2403
    %v2468 = vpack.c.bf16 %v2404, %v2404
    %v2469 = vpack.c.bf16 %v2405, %v2405
    %v2470 = vpack.c.bf16 %v2406, %v2406
    %v2471 = vpack.c.bf16 %v2407, %v2407
    %v2472 = vpack.c.bf16 %v2408, %v2408
    %v2473 = vpack.c.bf16 %v2409, %v2409
    %v2474 = vpack.c.bf16 %v2410, %v2410
    %v2475 = vpack.c.bf16 %v2411, %v2411
    %v2476 = vpack.c.bf16 %v2412, %v2412
    %v2477 = vpack.c.bf16 %v2413, %v2413
    %v2478 = vpack.c.bf16 %v2414, %v2414
    %v2479 = vpack.c.bf16 %v2415, %v2415
    %v2480 = vpack.c.bf16 %v2416, %v2416
    %v2481 = vpack.c.bf16 %v2417, %v2417
    %v2482 = vpack.c.bf16 %v2418, %v2418
    %v2483 = vpack.c.bf16 %v2419, %v2419
    %v2484 = vpack.c.bf16 %v2420, %v2420
    %v2485 = vpack.c.bf16 %v2421, %v2421
    %v2486 = vpack.c.bf16 %v2422, %v2422
    %v2487 = vpack.c.bf16 %v2423, %v2423
    %v2488 = vpack.c.bf16 %v2424, %v2424
    %v2489 = vpack.c.bf16 %v2425, %v2425
    %v2490 = vpack.c.bf16 %v2426, %v2426
    %v2491 = vpack.c.bf16 %v2427, %v2427
    %v2492 = vpack.c.bf16 %v2428, %v2428
    %v2493 = vpack.c.bf16 %v2429, %v2429
    %v2494 = vpack.c.bf16 %v2430, %v2430
    %v2495 = vpack.c.bf16 %v2431, %v2431
    %v2496 = vpack.c.bf16 %v2432, %v2432
    %v2497 = vpack.c.bf16 %v2433, %v2433
    %v2498 = vpack.c.bf16 %v2434, %v2434
    %v2499 = vpack.c.bf16 %v2435, %v2435
    %v2500 = vpack.c.bf16 %v2436, %v2436
    %v2501 = vpack.c.bf16 %v2437, %v2437
    %v2502 = vpack.c.bf16 %v2438, %v2438
    %v2503 = vpack.c.bf16 %v2439, %v2439
    %v2504 = vpack.c.bf16 %v2440, %v2440
    %v2505 = vpack.c.bf16 %v2441, %v2441
    %v2506 = vpack.c.bf16 %v2442, %v2442
    %v2507 = vpack.c.bf16 %v2443, %v2443
    %v2508 = vpack.c.bf16 %v2444, %v2444
    %v2509 = vpack.c.bf16 %v2445, %v2445
    %v2510 = vpack.c.bf16 %v2446, %v2446
    %v2511 = vpack.c.bf16 %v2447, %v2447
    %v2512 = vpack.c.bf16 %v2448, %v2448
    %v2513 = vpack.c.bf16 %v2449, %v2449
    %v2514 = vpack.c.bf16 %v2450, %v2450
    %v2515 = vpack.c.bf16 %v2451, %v2451
    %v2516 = vpack.c.bf16 %v2452, %v2452
    %v2517 = vpack.c.bf16 %v2453, %v2453
    %v2518 = vpack.c.bf16 %v2454, %v2454
    %v2519 = vpack.c.bf16 %v2455, %v2455
    %v2520 = vpack.c.bf16 %v2456, %v2456
    %v2521 = vpack.c.bf16 %v2457, %v2457
    %v2522 = vpack.c.bf16 %v2458, %v2458
    %v2523 = vpack.c.bf16 %v2459, %v2459
    %v2524 = vpack.c.bf16 %v2460, %v2460
    %v2525 = vpack.c.bf16 %v2461, %v2461
    %v2526 = vpack.c.bf16 %v2462, %v2462
    %v2527 = vpack.c.bf16 %v2463, %v2463
    %v2528 = vpack.c.bf16 %v2464, %v2464
    %v2529 = vpack.c.bf16 %v2465, %v2465
    %v2530 = vpack.c.bf16 %v2466, %v2466
    %vm2531 = vcmask 519168
    %2532 = vst.msk [vmem:[#allocation2] sm:$0xf] %vm2531, %v2467
    %2533 = vst.msk [vmem:[#allocation2 + $0x4] sm:$0xf] %vm2531, %v2468
    %2534 = vst.msk [vmem:[#allocation2 + $0x8] sm:$0xf] %vm2531, %v2469
    %2535 = vst.msk [vmem:[#allocation2 + $0xc] sm:$0xf] %vm2531, %v2470
    %2536 = vst.msk [vmem:[#allocation2 + $0x10] sm:$0xf] %vm2531, %v2471
    %2537 = vst.msk [vmem:[#allocation2 + $0x14] sm:$0xf] %vm2531, %v2472
    %2538 = vst.msk [vmem:[#allocation2 + $0x18] sm:$0xf] %vm2531, %v2473
    %2539 = vst.msk [vmem:[#allocation2 + $0x1c] sm:$0xf] %vm2531, %v2474
    %2540 = vst.msk [vmem:[#allocation2 + $0x20] sm:$0xf] %vm2531, %v2475
    %2541 = vst.msk [vmem:[#allocation2 + $0x24] sm:$0xf] %vm2531, %v2476
    %2542 = vst.msk [vmem:[#allocation2 + $0x28] sm:$0xf] %vm2531, %v2477
    %2543 = vst.msk [vmem:[#allocation2 + $0x2c] sm:$0xf] %vm2531, %v2478
    %2544 = vst.msk [vmem:[#allocation2 + $0x30] sm:$0xf] %vm2531, %v2479
    %2545 = vst.msk [vmem:[#allocation2 + $0x34] sm:$0xf] %vm2531, %v2480
    %2546 = vst.msk [vmem:[#allocation2 + $0x38] sm:$0xf] %vm2531, %v2481
    %2547 = vst.msk [vmem:[#allocation2 + $0x3c] sm:$0xf] %vm2531, %v2482
    %2548 = vst.msk [vmem:[#allocation2 + $0x40] sm:$0xf] %vm2531, %v2483
    %2549 = vst.msk [vmem:[#allocation2 + $0x44] sm:$0xf] %vm2531, %v2484
    %2550 = vst.msk [vmem:[#allocation2 + $0x48] sm:$0xf] %vm2531, %v2485
    %2551 = vst.msk [vmem:[#allocation2 + $0x4c] sm:$0xf] %vm2531, %v2486
    %2552 = vst.msk [vmem:[#allocation2 + $0x50] sm:$0xf] %vm2531, %v2487
    %2553 = vst.msk [vmem:[#allocation2 + $0x54] sm:$0xf] %vm2531, %v2488
    %2554 = vst.msk [vmem:[#allocation2 + $0x58] sm:$0xf] %vm2531, %v2489
    %2555 = vst.msk [vmem:[#allocation2 + $0x5c] sm:$0xf] %vm2531, %v2490
    %2556 = vst.msk [vmem:[#allocation2 + $0x60] sm:$0xf] %vm2531, %v2491
    %2557 = vst.msk [vmem:[#allocation2 + $0x64] sm:$0xf] %vm2531, %v2492
    %2558 = vst.msk [vmem:[#allocation2 + $0x68] sm:$0xf] %vm2531, %v2493
    %2559 = vst.msk [vmem:[#allocation2 + $0x6c] sm:$0xf] %vm2531, %v2494
    %2560 = vst.msk [vmem:[#allocation2 + $0x70] sm:$0xf] %vm2531, %v2495
    %2561 = vst.msk [vmem:[#allocation2 + $0x74] sm:$0xf] %vm2531, %v2496
    %2562 = vst.msk [vmem:[#allocation2 + $0x78] sm:$0xf] %vm2531, %v2497
    %2563 = vst.msk [vmem:[#allocation2 + $0x7c] sm:$0xf] %vm2531, %v2498
    %2564 = vst.msk [vmem:[#allocation2 + $0x80] sm:$0xf] %vm2531, %v2499
    %2565 = vst.msk [vmem:[#allocation2 + $0x84] sm:$0xf] %vm2531, %v2500
    %2566 = vst.msk [vmem:[#allocation2 + $0x88] sm:$0xf] %vm2531, %v2501
    %2567 = vst.msk [vmem:[#allocation2 + $0x8c] sm:$0xf] %vm2531, %v2502
    %2568 = vst.msk [vmem:[#allocation2 + $0x90] sm:$0xf] %vm2531, %v2503
    %2569 = vst.msk [vmem:[#allocation2 + $0x94] sm:$0xf] %vm2531, %v2504
    %2570 = vst.msk [vmem:[#allocation2 + $0x98] sm:$0xf] %vm2531, %v2505
    %2571 = vst.msk [vmem:[#allocation2 + $0x9c] sm:$0xf] %vm2531, %v2506
    %2572 = vst.msk [vmem:[#allocation2 + $0xa0] sm:$0xf] %vm2531, %v2507
    %2573 = vst.msk [vmem:[#allocation2 + $0xa4] sm:$0xf] %vm2531, %v2508
    %2574 = vst.msk [vmem:[#allocation2 + $0xa8] sm:$0xf] %vm2531, %v2509
    %2575 = vst.msk [vmem:[#allocation2 + $0xac] sm:$0xf] %vm2531, %v2510
    %2576 = vst.msk [vmem:[#allocation2 + $0xb0] sm:$0xf] %vm2531, %v2511
    %2577 = vst.msk [vmem:[#allocation2 + $0xb4] sm:$0xf] %vm2531, %v2512
    %2578 = vst.msk [vmem:[#allocation2 + $0xb8] sm:$0xf] %vm2531, %v2513
    %2579 = vst.msk [vmem:[#allocation2 + $0xbc] sm:$0xf] %vm2531, %v2514
    %2580 = vst.msk [vmem:[#allocation2 + $0xc0] sm:$0xf] %vm2531, %v2515
    %2581 = vst.msk [vmem:[#allocation2 + $0xc4] sm:$0xf] %vm2531, %v2516
    %2582 = vst.msk [vmem:[#allocation2 + $0xc8] sm:$0xf] %vm2531, %v2517
    %2583 = vst.msk [vmem:[#allocation2 + $0xcc] sm:$0xf] %vm2531, %v2518
    %2584 = vst.msk [vmem:[#allocation2 + $0xd0] sm:$0xf] %vm2531, %v2519
    %2585 = vst.msk [vmem:[#allocation2 + $0xd4] sm:$0xf] %vm2531, %v2520
    %2586 = vst.msk [vmem:[#allocation2 + $0xd8] sm:$0xf] %vm2531, %v2521
    %2587 = vst.msk [vmem:[#allocation2 + $0xdc] sm:$0xf] %vm2531, %v2522
    %2588 = vst.msk [vmem:[#allocation2 + $0xe0] sm:$0xf] %vm2531, %v2523
    %2589 = vst.msk [vmem:[#allocation2 + $0xe4] sm:$0xf] %vm2531, %v2524
    %2590 = vst.msk [vmem:[#allocation2 + $0xe8] sm:$0xf] %vm2531, %v2525
    %2591 = vst.msk [vmem:[#allocation2 + $0xec] sm:$0xf] %vm2531, %v2526
    %2592 = vst.msk [vmem:[#allocation2 + $0xf0] sm:$0xf] %vm2531, %v2527
    %2593 = vst.msk [vmem:[#allocation2 + $0xf4] sm:$0xf] %vm2531, %v2528
    %2594 = vst.msk [vmem:[#allocation2 + $0xf8] sm:$0xf] %vm2531, %v2529
    %2595 = vst.msk [vmem:[#allocation2 + $0xfc] sm:$0xf] %vm2531, %v2530
    // Predicated region
    $region18: #{front_fn.9} parent=1 // pred_check
      _
    $region19: #{front_fn.9} parent=1 // pred_check_branch
      %2597 = sbr.rel (0) target = $region21
    $region20: #{front_fn.9} parent=1 // pred_region
      %2599 = vsyncadd [#allocation3], 0
      %s2600 = sshll.u32 [#allocation2], 4
      %s2601 = int_to_ptr.vmem [resolvable:$true] %s2600
      %s2602 = sshll.u32 %s4, 4
      %s2603 = int_to_ptr.hbm [resolvable:$true] %s2602
      %2608 = dma.vmem_to_hbm [thread:$0]  %s2601, 4096, %s2603, [#allocation3], 64, 64, 4
    $region21: #{front_fn.9} parent=1 // pred_fallthru
      _
    // Predicated region
    $region22: #{front_fn.9} parent=1 // pred_check
      _
    $region23: #{front_fn.9} parent=1 // pred_check_branch
      %2610 = sbr.rel (0) target = $region25
    $region24: #{front_fn.9} parent=1 // pred_region
      %2612 = dma.done [#allocation3], 4096
    $region25: #{front_fn.9} parent=1 // pred_fallthru
      _
    %2613 = vsyncpa [#allocation3], 1

</llo_original>
